<compile_context>
chip_gen: v6e
topology: v6e:2x2x1
jax: 0.10.0
libtpu: 0.0.40
codegen_flags: <defaults>
</compile_context>

<pallas_src>
import jax
import jax.numpy as jnp
from jax.experimental import pallas as pl
from jax.experimental.pallas import tpu as pltpu

EPS = 1e-5


def _bn_add_relu_conv_kernel(x_ref, skip_ref, gamma_ref, beta_ref, w_ref, o_ref):
    # x_ref, skip_ref : (Cin, P)  f32   channel-major activations
    # gamma_ref, beta_ref : (Cin, 1) f32
    # w_ref : (Cout, Cin) f32    1x1 conv weight (cast to bf16 in-kernel)
    # o_ref : (Cout, P) f32
    x = x_ref[...]

    # BatchNorm2d (training mode): per-channel batch statistics over the
    # P = N*H*W lane axis, biased variance, matching torch's normalization.
    mean = jnp.mean(x, axis=1, keepdims=True)            # (Cin, 1)
    mean_sq = jnp.mean(x * x, axis=1, keepdims=True)     # (Cin, 1)
    var = jnp.maximum(mean_sq - mean * mean, 0.0)        # clamp for robustness
    inv_std = jax.lax.rsqrt(var + EPS)

    # Fold the BN affine into one per-channel scale / bias.
    scale = gamma_ref[...] * inv_std                     # (Cin, 1)
    bias = beta_ref[...] - mean * scale                  # (Cin, 1)

    # Normalize + residual add + ReLU, then bf16 for the MXU.
    y = jnp.maximum(x * scale + bias + skip_ref[...], 0.0)
    y = y.astype(jnp.bfloat16)

    # In-kernel weight cast (VPU work, hidden under input DMA).
    w = w_ref[...].astype(jnp.bfloat16)                  # (Cout, Cin)

    # 1x1 conv over channels: (Cout, Cin) @ (Cin, P), f32 accumulation.
    # Single grid step -> store directly, no accumulator RMW.
    o_ref[...] = jnp.dot(w, y, preferred_element_type=jnp.float32)

    # TODO(synk): running_mean/running_var momentum update (training-time side
    # effect of track_running_stats=True) is not emitted; it does not affect
    # the forward output.


def bn_add_relu_conv(x297, x290, gamma, beta, conv_w):
    """x297, x290: (N, Cin, H, W) f32;  conv_w: (Cout, Cin, 1, 1) f32."""
    N, Cin, H, W = x297.shape
    Cout = conv_w.shape[0]
    P = N * H * W

    def to_cp(a):
        # NCHW -> (Cin, N*H*W).  Pure reshape (no data movement) when N == 1.
        if N == 1:
            return a.reshape(Cin, P)
        return jnp.transpose(a, (1, 0, 2, 3)).reshape(Cin, P)

    x_cp = to_cp(x297)
    s_cp = to_cp(x290)
    gamma2 = gamma.reshape(Cin, 1)
    beta2 = beta.reshape(Cin, 1)
    # Keep the weight in f32 here: no per-call XLA convert op; the bf16 cast
    # happens inside the kernel on the VMEM tile.
    w2 = conv_w.reshape(Cout, Cin)

    out_cp = pl.pallas_call(
        _bn_add_relu_conv_kernel,
        out_shape=jax.ShapeDtypeStruct((Cout, P), jnp.float32),
        grid=(1,),
        in_specs=[
            pl.BlockSpec((Cin, P), lambda k: (0, 0)),
            pl.BlockSpec((Cin, P), lambda k: (0, 0)),
            pl.BlockSpec((Cin, 1), lambda k: (0, 0)),
            pl.BlockSpec((Cin, 1), lambda k: (0, 0)),
            pl.BlockSpec((Cout, Cin), lambda k: (0, 0)),
        ],
        out_specs=pl.BlockSpec((Cout, P), lambda k: (0, 0)),
        compiler_params=pltpu.CompilerParams(
            dimension_semantics=("arbitrary",),
            vmem_limit_bytes=32 * 1024 * 1024,
        ),
    )(x_cp, s_cp, gamma2, beta2, w2)

    # (Cout, P) -> NCHW.  Pure reshape when N == 1.
    if N == 1:
        return out_cp.reshape(1, Cout, H, W)
    return jnp.transpose(out_cp.reshape(Cout, N, H, W), (1, 0, 2, 3))


def _reference(x297, x290, gamma, beta, conv_w):
    # Pure-JAX f32 reference (training-mode BN + add + ReLU + 1x1 conv).
    mean = jnp.mean(x297, axis=(0, 2, 3), keepdims=True)
    var = jnp.mean((x297 - mean) ** 2, axis=(0, 2, 3), keepdims=True)
    y = (x297 - mean) * jax.lax.rsqrt(var + EPS)
    y = y * gamma.reshape(1, -1, 1, 1) + beta.reshape(1, -1, 1, 1)
    y = jnp.maximum(y + x290, 0.0)
    Cout, Cin = conv_w.shape[0], conv_w.shape[1]
    w = conv_w.reshape(Cout, Cin)
    return jnp.einsum("nchw,oc->nohw", y, w)


if __name__ == "__main__":
    # Shapes fixed by the module: Cin=1024, Cout=256 (from __init__), batch=1,
    # spatial=14x14 as in the reference inputs.
    N, Cin, H, W, Cout = 1, 1024, 14, 14, 256

    key = jax.random.PRNGKey(0)
    k1, k2, k3, k4, k5 = jax.random.split(key, 5)
    x297 = jax.random.normal(k1, (N, Cin, H, W), dtype=jnp.float32)
    x290 = jax.random.normal(k2, (N, Cin, H, W), dtype=jnp.float32)
    gamma = 1.0 + 0.1 * jax.random.normal(k3, (Cin,), dtype=jnp.float32)
    beta = 0.1 * jax.random.normal(k4, (Cin,), dtype=jnp.float32)
    conv_w = 0.02 * jax.random.normal(k5, (Cout, Cin, 1, 1), dtype=jnp.float32)

    fwd = jax.jit(bn_add_relu_conv)
    out = jax.block_until_ready(fwd(x297, x290, gamma, beta, conv_w))

    ref = jax.block_until_ready(_reference(x297, x290, gamma, beta, conv_w))
    assert out.shape == (N, Cout, H, W), out.shape
    max_err = float(jnp.max(jnp.abs(out - ref)))
    # bf16 MXU operands with f32 accumulation over K=1024 -> ~1e-3 scale error.
    assert jnp.allclose(out, ref, atol=1e-2, rtol=1e-2), max_err

    print("KERNEL_OK")
</pallas_src>

<mosaic_0001>
module attributes {stable_mosaic.version = 11 : i64} {
  func.func @_bn_add_relu_conv_kernel(%arg0: i32, %arg1: memref<1024x196xf32, #tpu.memory_space<vmem>>, %arg2: memref<1024x196xf32, #tpu.memory_space<vmem>>, %arg3: memref<1024x1xf32, #tpu.memory_space<vmem>>, %arg4: memref<1024x1xf32, #tpu.memory_space<vmem>>, %arg5: memref<256x1024xf32, #tpu.memory_space<vmem>>, %arg6: memref<256x196xf32, #tpu.memory_space<vmem>>) attributes {dimension_semantics = [#tpu.dimension_semantics<arbitrary>], iteration_bounds = array<i64: 1>, scalar_prefetch = 0 : i64, scratch_operands = 0 : i64, tpu.core_type = #tpu.core_type<tc>, window_params = [{pipeline_mode = #tpu.pipeline_mode<synchronous>, transform_indices = @transform_0, window_bounds = array<i64: 1024, 196>}, {pipeline_mode = #tpu.pipeline_mode<synchronous>, transform_indices = @transform_1, window_bounds = array<i64: 1024, 196>}, {pipeline_mode = #tpu.pipeline_mode<synchronous>, transform_indices = @transform_2, window_bounds = array<i64: 1024, 1>}, {pipeline_mode = #tpu.pipeline_mode<synchronous>, transform_indices = @transform_3, window_bounds = array<i64: 1024, 1>}, {pipeline_mode = #tpu.pipeline_mode<synchronous>, transform_indices = @transform_4, window_bounds = array<i64: 256, 1024>}, {pipeline_mode = #tpu.pipeline_mode<synchronous>, transform_indices = @transform_5, window_bounds = array<i64: 256, 196>}]} {
    %c0 = arith.constant 0 : index
    %c0_0 = arith.constant 0 : index
    %0 = vector.load %arg1[%c0, %c0_0] : memref<1024x196xf32, #tpu.memory_space<vmem>>, vector<1024x196xf32>
    %cst = arith.constant dense<0.000000e+00> : vector<1024xf32>
    %1 = vector.multi_reduction <add>, %0, %cst [1] : vector<1024x196xf32> to vector<1024xf32>
    %2 = vector.shape_cast %1 : vector<1024xf32> to vector<1024x1xf32>
    %cst_1 = arith.constant 1.960000e+02 : f32
    %3 = vector.broadcast %cst_1 : f32 to vector<1024x1xf32>
    %4 = arith.divf %2, %3 : vector<1024x1xf32>
    %5 = arith.mulf %0, %0 : vector<1024x196xf32>
    %cst_2 = arith.constant dense<0.000000e+00> : vector<1024xf32>
    %6 = vector.multi_reduction <add>, %5, %cst_2 [1] : vector<1024x196xf32> to vector<1024xf32>
    %7 = vector.shape_cast %6 : vector<1024xf32> to vector<1024x1xf32>
    %cst_3 = arith.constant 1.960000e+02 : f32
    %8 = vector.broadcast %cst_3 : f32 to vector<1024x1xf32>
    %9 = arith.divf %7, %8 : vector<1024x1xf32>
    %10 = arith.mulf %4, %4 : vector<1024x1xf32>
    %11 = arith.subf %9, %10 : vector<1024x1xf32>
    %cst_4 = arith.constant 0.000000e+00 : f32
    %12 = vector.broadcast %cst_4 : f32 to vector<1024x1xf32>
    %13 = arith.maximumf %11, %12 : vector<1024x1xf32>
    %cst_5 = arith.constant 9.99999974E-6 : f32
    %14 = vector.broadcast %cst_5 : f32 to vector<1024x1xf32>
    %15 = arith.addf %13, %14 : vector<1024x1xf32>
    %16 = math.rsqrt %15 : vector<1024x1xf32>
    %c0_6 = arith.constant 0 : index
    %c0_7 = arith.constant 0 : index
    %17 = vector.load %arg3[%c0_6, %c0_7] : memref<1024x1xf32, #tpu.memory_space<vmem>>, vector<1024x1xf32>
    %18 = arith.mulf %17, %16 : vector<1024x1xf32>
    %c0_8 = arith.constant 0 : index
    %c0_9 = arith.constant 0 : index
    %19 = vector.load %arg4[%c0_8, %c0_9] : memref<1024x1xf32, #tpu.memory_space<vmem>>, vector<1024x1xf32>
    %20 = arith.mulf %4, %18 : vector<1024x1xf32>
    %21 = arith.subf %19, %20 : vector<1024x1xf32>
    %22 = vector.broadcast %18 : vector<1024x1xf32> to vector<1024x196xf32>
    %23 = arith.mulf %0, %22 : vector<1024x196xf32>
    %24 = vector.broadcast %21 : vector<1024x1xf32> to vector<1024x196xf32>
    %25 = arith.addf %23, %24 : vector<1024x196xf32>
    %c0_10 = arith.constant 0 : index
    %c0_11 = arith.constant 0 : index
    %26 = vector.load %arg2[%c0_10, %c0_11] : memref<1024x196xf32, #tpu.memory_space<vmem>>, vector<1024x196xf32>
    %27 = arith.addf %25, %26 : vector<1024x196xf32>
    %cst_12 = arith.constant 0.000000e+00 : f32
    %28 = vector.broadcast %cst_12 : f32 to vector<1024x196xf32>
    %29 = arith.maximumf %27, %28 : vector<1024x196xf32>
    %30 = arith.truncf %29 : vector<1024x196xf32> to vector<1024x196xbf16>
    %c0_13 = arith.constant 0 : index
    %c0_14 = arith.constant 0 : index
    %31 = vector.load %arg5[%c0_13, %c0_14] : memref<256x1024xf32, #tpu.memory_space<vmem>>, vector<256x1024xf32>
    %32 = arith.truncf %31 : vector<256x1024xf32> to vector<256x1024xbf16>
    %cst_15 = arith.constant dense<0.000000e+00> : vector<256x196xf32>
    %33 = tpu.matmul %32, %30, %cst_15 {dimension_numbers = #tpu.dot_dimension_numbers<[1], [0], [0], [1], [0, 0, 1, 1], [], []>} : vector<256x1024xbf16>, vector<1024x196xbf16>, vector<256x196xf32> -> vector<256x196xf32>
    %c0_16 = arith.constant 0 : index
    %c0_17 = arith.constant 0 : index
    %34 = vector.load %arg6[%c0_16, %c0_17] : memref<256x196xf32, #tpu.memory_space<vmem>>, vector<256x196xf32>
    tpu.vector_store %arg6[%c0_16, %c0_17], %33 {strides = array<i32>} : memref<256x196xf32, #tpu.memory_space<vmem>>, vector<256x196xf32>,
    return
  }
  func.func @transform_0(%arg0: i32) -> (i32, i32) {
    %c0_i32 = arith.constant 0 : i32
    %c0_i32_0 = arith.constant 0 : i32
    %c0_i32_1 = arith.constant 0 : i32
    return %c0_i32, %c0_i32_0 : i32, i32
  }
  func.func @transform_1(%arg0: i32) -> (i32, i32) {
    %c0_i32 = arith.constant 0 : i32
    %c0_i32_0 = arith.constant 0 : i32
    %c0_i32_1 = arith.constant 0 : i32
    return %c0_i32, %c0_i32_0 : i32, i32
  }
  func.func @transform_2(%arg0: i32) -> (i32, i32) {
    %c0_i32 = arith.constant 0 : i32
    %c0_i32_0 = arith.constant 0 : i32
    %c0_i32_1 = arith.constant 0 : i32
    return %c0_i32, %c0_i32_0 : i32, i32
  }
  func.func @transform_3(%arg0: i32) -> (i32, i32) {
    %c0_i32 = arith.constant 0 : i32
    %c0_i32_0 = arith.constant 0 : i32
    %c0_i32_1 = arith.constant 0 : i32
    return %c0_i32, %c0_i32_0 : i32, i32
  }
  func.func @transform_4(%arg0: i32) -> (i32, i32) {
    %c0_i32 = arith.constant 0 : i32
    %c0_i32_0 = arith.constant 0 : i32
    %c0_i32_1 = arith.constant 0 : i32
    return %c0_i32, %c0_i32_0 : i32, i32
  }
  func.func @transform_5(%arg0: i32) -> (i32, i32) {
    %c0_i32 = arith.constant 0 : i32
    %c0_i32_0 = arith.constant 0 : i32
    %c0_i32_1 = arith.constant 0 : i32
    return %c0_i32, %c0_i32_0 : i32, i32
  }
}

</mosaic_0001>

<llo_original>
// kernel: bn_add_relu_conv.1
$region0: #{bn_add_relu_conv.1}
  #allocation0 [shape = 'u32[]', space=smem, size = 0x4, offset = 0x4, fixed_abs, tag = 'smem constant byte address 0x4 - core index']
  #allocation1 [shape = 'u32[144,128]{1,0:T(1,128)}', space=vmem, size = 0x12000, scoped, tag = 'internal scratch']
  %s0 = inlined_call_operand.vmem [shape: f32[1024,196], index: 0, kind: input, shape index: {}]
  %s1 = inlined_call_operand.vmem [shape: f32[1024,196], index: 1, kind: input, shape index: {}]
  %s2 = inlined_call_operand.vmem [shape: f32[1024,1], index: 2, kind: input, shape index: {}]
  %s3 = inlined_call_operand.vmem [shape: f32[1024,1], index: 3, kind: input, shape index: {}]
  %s4 = inlined_call_operand.vmem [shape: f32[256,1024], index: 4, kind: input, shape index: {}]
  %s5 = inlined_call_operand.vmem [shape: f32[256,196], index: 5, kind: output, shape index: {}]
  %s6 = sld [smem:[#allocation0]]
  $region30: #{bn_add_relu_conv.1} parent=0
    _
  %s8 = ssub.s32 1, %s6
  %s9 = scalar_select 0, %s8, %s6
  // Predicated region
  $region2: #{bn_add_relu_conv.1} parent=0 // pred_check
    _
  $region3: #{bn_add_relu_conv.1} parent=0 // pred_check_branch
    %11 = sbr.rel (0) target = $region5
  $region4: #{bn_add_relu_conv.1} parent=0 // pred_region
    _
  $region5: #{bn_add_relu_conv.1} parent=0 // pred_fallthru
    _
  // Predicated region
  $region6: #{bn_add_relu_conv.1} parent=0 // pred_check
    _
  $region7: #{bn_add_relu_conv.1} parent=0 // pred_check_branch
    %13 = sbr.rel (0) target = $region9
  $region8: #{bn_add_relu_conv.1} parent=0 // pred_region
    _
  $region9: #{bn_add_relu_conv.1} parent=0 // pred_fallthru
    _
  // Predicated region
  $region10: #{bn_add_relu_conv.1} parent=0 // pred_check
    _
  $region11: #{bn_add_relu_conv.1} parent=0 // pred_check_branch
    %15 = sbr.rel (0) target = $region13
  $region12: #{bn_add_relu_conv.1} parent=0 // pred_region
    _
  $region13: #{bn_add_relu_conv.1} parent=0 // pred_fallthru
    _
  // Predicated region
  $region14: #{bn_add_relu_conv.1} parent=0 // pred_check
    _
  $region15: #{bn_add_relu_conv.1} parent=0 // pred_check_branch
    %17 = sbr.rel (0) target = $region17
  $region16: #{bn_add_relu_conv.1} parent=0 // pred_region
    _
  $region17: #{bn_add_relu_conv.1} parent=0 // pred_fallthru
    _
  // Predicated region
  $region18: #{bn_add_relu_conv.1} parent=0 // pred_check
    _
  $region19: #{bn_add_relu_conv.1} parent=0 // pred_check_branch
    %19 = sbr.rel (0) target = $region21
  $region20: #{bn_add_relu_conv.1} parent=0 // pred_region
    _
  $region21: #{bn_add_relu_conv.1} parent=0 // pred_fallthru
    _
  %v20 = vld [vmem:[%s0] sm:$0xff]
  %v21 = vld [vmem:[%s0 + $0x8] sm:$0xff]
  %v22 = vld [vmem:[%s0 + $0x10] sm:$0xff]
  %v23 = vld [vmem:[%s0 + $0x18] sm:$0xff]
  %v24 = vld [vmem:[%s0 + $0x20] sm:$0xff]
  %v25 = vld [vmem:[%s0 + $0x28] sm:$0xff]
  %v26 = vld [vmem:[%s0 + $0x30] sm:$0xff]
  %v27 = vld [vmem:[%s0 + $0x38] sm:$0xff]
  %v28 = vld [vmem:[%s0 + $0x40] sm:$0xff]
  %v29 = vld [vmem:[%s0 + $0x48] sm:$0xff]
  %v30 = vld [vmem:[%s0 + $0x50] sm:$0xff]
  %v31 = vld [vmem:[%s0 + $0x58] sm:$0xff]
  %v32 = vld [vmem:[%s0 + $0x60] sm:$0xff]
  %v33 = vld [vmem:[%s0 + $0x68] sm:$0xff]
  %v34 = vld [vmem:[%s0 + $0x70] sm:$0xff]
  %v35 = vld [vmem:[%s0 + $0x78] sm:$0xff]
  %v36 = vld [vmem:[%s0 + $0x80] sm:$0xff]
  %v37 = vld [vmem:[%s0 + $0x88] sm:$0xff]
  %v38 = vld [vmem:[%s0 + $0x90] sm:$0xff]
  %v39 = vld [vmem:[%s0 + $0x98] sm:$0xff]
  %v40 = vld [vmem:[%s0 + $0xa0] sm:$0xff]
  %v41 = vld [vmem:[%s0 + $0xa8] sm:$0xff]
  %v42 = vld [vmem:[%s0 + $0xb0] sm:$0xff]
  %v43 = vld [vmem:[%s0 + $0xb8] sm:$0xff]
  %v44 = vld [vmem:[%s0 + $0xc0] sm:$0xff]
  %v45 = vld [vmem:[%s0 + $0xc8] sm:$0xff]
  %v46 = vld [vmem:[%s0 + $0xd0] sm:$0xff]
  %v47 = vld [vmem:[%s0 + $0xd8] sm:$0xff]
  %v48 = vld [vmem:[%s0 + $0xe0] sm:$0xff]
  %v49 = vld [vmem:[%s0 + $0xe8] sm:$0xff]
  %v50 = vld [vmem:[%s0 + $0xf0] sm:$0xff]
  %v51 = vld [vmem:[%s0 + $0xf8] sm:$0xff]
  %v52 = vld [vmem:[%s0 + $0x100] sm:$0xff]
  %v53 = vld [vmem:[%s0 + $0x108] sm:$0xff]
  %v54 = vld [vmem:[%s0 + $0x110] sm:$0xff]
  %v55 = vld [vmem:[%s0 + $0x118] sm:$0xff]
  %v56 = vld [vmem:[%s0 + $0x120] sm:$0xff]
  %v57 = vld [vmem:[%s0 + $0x128] sm:$0xff]
  %v58 = vld [vmem:[%s0 + $0x130] sm:$0xff]
  %v59 = vld [vmem:[%s0 + $0x138] sm:$0xff]
  %v60 = vld [vmem:[%s0 + $0x140] sm:$0xff]
  %v61 = vld [vmem:[%s0 + $0x148] sm:$0xff]
  %v62 = vld [vmem:[%s0 + $0x150] sm:$0xff]
  %v63 = vld [vmem:[%s0 + $0x158] sm:$0xff]
  %v64 = vld [vmem:[%s0 + $0x160] sm:$0xff]
  %v65 = vld [vmem:[%s0 + $0x168] sm:$0xff]
  %v66 = vld [vmem:[%s0 + $0x170] sm:$0xff]
  %v67 = vld [vmem:[%s0 + $0x178] sm:$0xff]
  %v68 = vld [vmem:[%s0 + $0x180] sm:$0xff]
  %v69 = vld [vmem:[%s0 + $0x188] sm:$0xff]
  %v70 = vld [vmem:[%s0 + $0x190] sm:$0xff]
  %v71 = vld [vmem:[%s0 + $0x198] sm:$0xff]
  %v72 = vld [vmem:[%s0 + $0x1a0] sm:$0xff]
  %v73 = vld [vmem:[%s0 + $0x1a8] sm:$0xff]
  %v74 = vld [vmem:[%s0 + $0x1b0] sm:$0xff]
  %v75 = vld [vmem:[%s0 + $0x1b8] sm:$0xff]
  %v76 = vld [vmem:[%s0 + $0x1c0] sm:$0xff]
  %v77 = vld [vmem:[%s0 + $0x1c8] sm:$0xff]
  %v78 = vld [vmem:[%s0 + $0x1d0] sm:$0xff]
  %v79 = vld [vmem:[%s0 + $0x1d8] sm:$0xff]
  %v80 = vld [vmem:[%s0 + $0x1e0] sm:$0xff]
  %v81 = vld [vmem:[%s0 + $0x1e8] sm:$0xff]
  %v82 = vld [vmem:[%s0 + $0x1f0] sm:$0xff]
  %v83 = vld [vmem:[%s0 + $0x1f8] sm:$0xff]
  %v84 = vld [vmem:[%s0 + $0x200] sm:$0xff]
  %v85 = vld [vmem:[%s0 + $0x208] sm:$0xff]
  %v86 = vld [vmem:[%s0 + $0x210] sm:$0xff]
  %v87 = vld [vmem:[%s0 + $0x218] sm:$0xff]
  %v88 = vld [vmem:[%s0 + $0x220] sm:$0xff]
  %v89 = vld [vmem:[%s0 + $0x228] sm:$0xff]
  %v90 = vld [vmem:[%s0 + $0x230] sm:$0xff]
  %v91 = vld [vmem:[%s0 + $0x238] sm:$0xff]
  %v92 = vld [vmem:[%s0 + $0x240] sm:$0xff]
  %v93 = vld [vmem:[%s0 + $0x248] sm:$0xff]
  %v94 = vld [vmem:[%s0 + $0x250] sm:$0xff]
  %v95 = vld [vmem:[%s0 + $0x258] sm:$0xff]
  %v96 = vld [vmem:[%s0 + $0x260] sm:$0xff]
  %v97 = vld [vmem:[%s0 + $0x268] sm:$0xff]
  %v98 = vld [vmem:[%s0 + $0x270] sm:$0xff]
  %v99 = vld [vmem:[%s0 + $0x278] sm:$0xff]
  %v100 = vld [vmem:[%s0 + $0x280] sm:$0xff]
  %v101 = vld [vmem:[%s0 + $0x288] sm:$0xff]
  %v102 = vld [vmem:[%s0 + $0x290] sm:$0xff]
  %v103 = vld [vmem:[%s0 + $0x298] sm:$0xff]
  %v104 = vld [vmem:[%s0 + $0x2a0] sm:$0xff]
  %v105 = vld [vmem:[%s0 + $0x2a8] sm:$0xff]
  %v106 = vld [vmem:[%s0 + $0x2b0] sm:$0xff]
  %v107 = vld [vmem:[%s0 + $0x2b8] sm:$0xff]
  %v108 = vld [vmem:[%s0 + $0x2c0] sm:$0xff]
  %v109 = vld [vmem:[%s0 + $0x2c8] sm:$0xff]
  %v110 = vld [vmem:[%s0 + $0x2d0] sm:$0xff]
  %v111 = vld [vmem:[%s0 + $0x2d8] sm:$0xff]
  %v112 = vld [vmem:[%s0 + $0x2e0] sm:$0xff]
  %v113 = vld [vmem:[%s0 + $0x2e8] sm:$0xff]
  %v114 = vld [vmem:[%s0 + $0x2f0] sm:$0xff]
  %v115 = vld [vmem:[%s0 + $0x2f8] sm:$0xff]
  %v116 = vld [vmem:[%s0 + $0x300] sm:$0xff]
  %v117 = vld [vmem:[%s0 + $0x308] sm:$0xff]
  %v118 = vld [vmem:[%s0 + $0x310] sm:$0xff]
  %v119 = vld [vmem:[%s0 + $0x318] sm:$0xff]
  %v120 = vld [vmem:[%s0 + $0x320] sm:$0xff]
  %v121 = vld [vmem:[%s0 + $0x328] sm:$0xff]
  %v122 = vld [vmem:[%s0 + $0x330] sm:$0xff]
  %v123 = vld [vmem:[%s0 + $0x338] sm:$0xff]
  %v124 = vld [vmem:[%s0 + $0x340] sm:$0xff]
  %v125 = vld [vmem:[%s0 + $0x348] sm:$0xff]
  %v126 = vld [vmem:[%s0 + $0x350] sm:$0xff]
  %v127 = vld [vmem:[%s0 + $0x358] sm:$0xff]
  %v128 = vld [vmem:[%s0 + $0x360] sm:$0xff]
  %v129 = vld [vmem:[%s0 + $0x368] sm:$0xff]
  %v130 = vld [vmem:[%s0 + $0x370] sm:$0xff]
  %v131 = vld [vmem:[%s0 + $0x378] sm:$0xff]
  %v132 = vld [vmem:[%s0 + $0x380] sm:$0xff]
  %v133 = vld [vmem:[%s0 + $0x388] sm:$0xff]
  %v134 = vld [vmem:[%s0 + $0x390] sm:$0xff]
  %v135 = vld [vmem:[%s0 + $0x398] sm:$0xff]
  %v136 = vld [vmem:[%s0 + $0x3a0] sm:$0xff]
  %v137 = vld [vmem:[%s0 + $0x3a8] sm:$0xff]
  %v138 = vld [vmem:[%s0 + $0x3b0] sm:$0xff]
  %v139 = vld [vmem:[%s0 + $0x3b8] sm:$0xff]
  %v140 = vld [vmem:[%s0 + $0x3c0] sm:$0xff]
  %v141 = vld [vmem:[%s0 + $0x3c8] sm:$0xff]
  %v142 = vld [vmem:[%s0 + $0x3d0] sm:$0xff]
  %v143 = vld [vmem:[%s0 + $0x3d8] sm:$0xff]
  %v144 = vld [vmem:[%s0 + $0x3e0] sm:$0xff]
  %v145 = vld [vmem:[%s0 + $0x3e8] sm:$0xff]
  %v146 = vld [vmem:[%s0 + $0x3f0] sm:$0xff]
  %v147 = vld [vmem:[%s0 + $0x3f8] sm:$0xff]
  %v148 = vld [vmem:[%s0 + $0x400] sm:$0xff]
  %v149 = vld [vmem:[%s0 + $0x408] sm:$0xff]
  %v150 = vld [vmem:[%s0 + $0x410] sm:$0xff]
  %v151 = vld [vmem:[%s0 + $0x418] sm:$0xff]
  %v152 = vld [vmem:[%s0 + $0x420] sm:$0xff]
  %v153 = vld [vmem:[%s0 + $0x428] sm:$0xff]
  %v154 = vld [vmem:[%s0 + $0x430] sm:$0xff]
  %v155 = vld [vmem:[%s0 + $0x438] sm:$0xff]
  %v156 = vld [vmem:[%s0 + $0x440] sm:$0xff]
  %v157 = vld [vmem:[%s0 + $0x448] sm:$0xff]
  %v158 = vld [vmem:[%s0 + $0x450] sm:$0xff]
  %v159 = vld [vmem:[%s0 + $0x458] sm:$0xff]
  %v160 = vld [vmem:[%s0 + $0x460] sm:$0xff]
  %v161 = vld [vmem:[%s0 + $0x468] sm:$0xff]
  %v162 = vld [vmem:[%s0 + $0x470] sm:$0xff]
  %v163 = vld [vmem:[%s0 + $0x478] sm:$0xff]
  %v164 = vld [vmem:[%s0 + $0x480] sm:$0xff]
  %v165 = vld [vmem:[%s0 + $0x488] sm:$0xff]
  %v166 = vld [vmem:[%s0 + $0x490] sm:$0xff]
  %v167 = vld [vmem:[%s0 + $0x498] sm:$0xff]
  %v168 = vld [vmem:[%s0 + $0x4a0] sm:$0xff]
  %v169 = vld [vmem:[%s0 + $0x4a8] sm:$0xff]
  %v170 = vld [vmem:[%s0 + $0x4b0] sm:$0xff]
  %v171 = vld [vmem:[%s0 + $0x4b8] sm:$0xff]
  %v172 = vld [vmem:[%s0 + $0x4c0] sm:$0xff]
  %v173 = vld [vmem:[%s0 + $0x4c8] sm:$0xff]
  %v174 = vld [vmem:[%s0 + $0x4d0] sm:$0xff]
  %v175 = vld [vmem:[%s0 + $0x4d8] sm:$0xff]
  %v176 = vld [vmem:[%s0 + $0x4e0] sm:$0xff]
  %v177 = vld [vmem:[%s0 + $0x4e8] sm:$0xff]
  %v178 = vld [vmem:[%s0 + $0x4f0] sm:$0xff]
  %v179 = vld [vmem:[%s0 + $0x4f8] sm:$0xff]
  %v180 = vld [vmem:[%s0 + $0x500] sm:$0xff]
  %v181 = vld [vmem:[%s0 + $0x508] sm:$0xff]
  %v182 = vld [vmem:[%s0 + $0x510] sm:$0xff]
  %v183 = vld [vmem:[%s0 + $0x518] sm:$0xff]
  %v184 = vld [vmem:[%s0 + $0x520] sm:$0xff]
  %v185 = vld [vmem:[%s0 + $0x528] sm:$0xff]
  %v186 = vld [vmem:[%s0 + $0x530] sm:$0xff]
  %v187 = vld [vmem:[%s0 + $0x538] sm:$0xff]
  %v188 = vld [vmem:[%s0 + $0x540] sm:$0xff]
  %v189 = vld [vmem:[%s0 + $0x548] sm:$0xff]
  %v190 = vld [vmem:[%s0 + $0x550] sm:$0xff]
  %v191 = vld [vmem:[%s0 + $0x558] sm:$0xff]
  %v192 = vld [vmem:[%s0 + $0x560] sm:$0xff]
  %v193 = vld [vmem:[%s0 + $0x568] sm:$0xff]
  %v194 = vld [vmem:[%s0 + $0x570] sm:$0xff]
  %v195 = vld [vmem:[%s0 + $0x578] sm:$0xff]
  %v196 = vld [vmem:[%s0 + $0x580] sm:$0xff]
  %v197 = vld [vmem:[%s0 + $0x588] sm:$0xff]
  %v198 = vld [vmem:[%s0 + $0x590] sm:$0xff]
  %v199 = vld [vmem:[%s0 + $0x598] sm:$0xff]
  %v200 = vld [vmem:[%s0 + $0x5a0] sm:$0xff]
  %v201 = vld [vmem:[%s0 + $0x5a8] sm:$0xff]
  %v202 = vld [vmem:[%s0 + $0x5b0] sm:$0xff]
  %v203 = vld [vmem:[%s0 + $0x5b8] sm:$0xff]
  %v204 = vld [vmem:[%s0 + $0x5c0] sm:$0xff]
  %v205 = vld [vmem:[%s0 + $0x5c8] sm:$0xff]
  %v206 = vld [vmem:[%s0 + $0x5d0] sm:$0xff]
  %v207 = vld [vmem:[%s0 + $0x5d8] sm:$0xff]
  %v208 = vld [vmem:[%s0 + $0x5e0] sm:$0xff]
  %v209 = vld [vmem:[%s0 + $0x5e8] sm:$0xff]
  %v210 = vld [vmem:[%s0 + $0x5f0] sm:$0xff]
  %v211 = vld [vmem:[%s0 + $0x5f8] sm:$0xff]
  %v212 = vld [vmem:[%s0 + $0x600] sm:$0xff]
  %v213 = vld [vmem:[%s0 + $0x608] sm:$0xff]
  %v214 = vld [vmem:[%s0 + $0x610] sm:$0xff]
  %v215 = vld [vmem:[%s0 + $0x618] sm:$0xff]
  %v216 = vld [vmem:[%s0 + $0x620] sm:$0xff]
  %v217 = vld [vmem:[%s0 + $0x628] sm:$0xff]
  %v218 = vld [vmem:[%s0 + $0x630] sm:$0xff]
  %v219 = vld [vmem:[%s0 + $0x638] sm:$0xff]
  %v220 = vld [vmem:[%s0 + $0x640] sm:$0xff]
  %v221 = vld [vmem:[%s0 + $0x648] sm:$0xff]
  %v222 = vld [vmem:[%s0 + $0x650] sm:$0xff]
  %v223 = vld [vmem:[%s0 + $0x658] sm:$0xff]
  %v224 = vld [vmem:[%s0 + $0x660] sm:$0xff]
  %v225 = vld [vmem:[%s0 + $0x668] sm:$0xff]
  %v226 = vld [vmem:[%s0 + $0x670] sm:$0xff]
  %v227 = vld [vmem:[%s0 + $0x678] sm:$0xff]
  %v228 = vld [vmem:[%s0 + $0x680] sm:$0xff]
  %v229 = vld [vmem:[%s0 + $0x688] sm:$0xff]
  %v230 = vld [vmem:[%s0 + $0x690] sm:$0xff]
  %v231 = vld [vmem:[%s0 + $0x698] sm:$0xff]
  %v232 = vld [vmem:[%s0 + $0x6a0] sm:$0xff]
  %v233 = vld [vmem:[%s0 + $0x6a8] sm:$0xff]
  %v234 = vld [vmem:[%s0 + $0x6b0] sm:$0xff]
  %v235 = vld [vmem:[%s0 + $0x6b8] sm:$0xff]
  %v236 = vld [vmem:[%s0 + $0x6c0] sm:$0xff]
  %v237 = vld [vmem:[%s0 + $0x6c8] sm:$0xff]
  %v238 = vld [vmem:[%s0 + $0x6d0] sm:$0xff]
  %v239 = vld [vmem:[%s0 + $0x6d8] sm:$0xff]
  %v240 = vld [vmem:[%s0 + $0x6e0] sm:$0xff]
  %v241 = vld [vmem:[%s0 + $0x6e8] sm:$0xff]
  %v242 = vld [vmem:[%s0 + $0x6f0] sm:$0xff]
  %v243 = vld [vmem:[%s0 + $0x6f8] sm:$0xff]
  %v244 = vld [vmem:[%s0 + $0x700] sm:$0xff]
  %v245 = vld [vmem:[%s0 + $0x708] sm:$0xff]
  %v246 = vld [vmem:[%s0 + $0x710] sm:$0xff]
  %v247 = vld [vmem:[%s0 + $0x718] sm:$0xff]
  %v248 = vld [vmem:[%s0 + $0x720] sm:$0xff]
  %v249 = vld [vmem:[%s0 + $0x728] sm:$0xff]
  %v250 = vld [vmem:[%s0 + $0x730] sm:$0xff]
  %v251 = vld [vmem:[%s0 + $0x738] sm:$0xff]
  %v252 = vld [vmem:[%s0 + $0x740] sm:$0xff]
  %v253 = vld [vmem:[%s0 + $0x748] sm:$0xff]
  %v254 = vld [vmem:[%s0 + $0x750] sm:$0xff]
  %v255 = vld [vmem:[%s0 + $0x758] sm:$0xff]
  %v256 = vld [vmem:[%s0 + $0x760] sm:$0xff]
  %v257 = vld [vmem:[%s0 + $0x768] sm:$0xff]
  %v258 = vld [vmem:[%s0 + $0x770] sm:$0xff]
  %v259 = vld [vmem:[%s0 + $0x778] sm:$0xff]
  %v260 = vld [vmem:[%s0 + $0x780] sm:$0xff]
  %v261 = vld [vmem:[%s0 + $0x788] sm:$0xff]
  %v262 = vld [vmem:[%s0 + $0x790] sm:$0xff]
  %v263 = vld [vmem:[%s0 + $0x798] sm:$0xff]
  %v264 = vld [vmem:[%s0 + $0x7a0] sm:$0xff]
  %v265 = vld [vmem:[%s0 + $0x7a8] sm:$0xff]
  %v266 = vld [vmem:[%s0 + $0x7b0] sm:$0xff]
  %v267 = vld [vmem:[%s0 + $0x7b8] sm:$0xff]
  %v268 = vld [vmem:[%s0 + $0x7c0] sm:$0xff]
  %v269 = vld [vmem:[%s0 + $0x7c8] sm:$0xff]
  %v270 = vld [vmem:[%s0 + $0x7d0] sm:$0xff]
  %v271 = vld [vmem:[%s0 + $0x7d8] sm:$0xff]
  %v272 = vld [vmem:[%s0 + $0x7e0] sm:$0xff]
  %v273 = vld [vmem:[%s0 + $0x7e8] sm:$0xff]
  %v274 = vld [vmem:[%s0 + $0x7f0] sm:$0xff]
  %v275 = vld [vmem:[%s0 + $0x7f8] sm:$0xff]
  %vm276 = vcmask 556032
  %v277 = vsel %vm276, %v21, 0.0
  %v278 = vadd.f32 %v20, %v277
  %279 = vadd.xlane.f32.xlu0 %v278
  %v280 = vpop.xlane.xlu0 %279
  %v281 = vsel %vm276, %v23, 0.0
  %v282 = vadd.f32 %v22, %v281
  %283 = vadd.xlane.f32.xlu0 %v282
  %v284 = vpop.xlane.xlu0 %283
  %v285 = vsel %vm276, %v25, 0.0
  %v286 = vadd.f32 %v24, %v285
  %287 = vadd.xlane.f32.xlu0 %v286
  %v288 = vpop.xlane.xlu0 %287
  %v289 = vsel %vm276, %v27, 0.0
  %v290 = vadd.f32 %v26, %v289
  %291 = vadd.xlane.f32.xlu0 %v290
  %v292 = vpop.xlane.xlu0 %291
  %v293 = vsel %vm276, %v29, 0.0
  %v294 = vadd.f32 %v28, %v293
  %295 = vadd.xlane.f32.xlu0 %v294
  %v296 = vpop.xlane.xlu0 %295
  %v297 = vsel %vm276, %v31, 0.0
  %v298 = vadd.f32 %v30, %v297
  %299 = vadd.xlane.f32.xlu0 %v298
  %v300 = vpop.xlane.xlu0 %299
  %v301 = vsel %vm276, %v33, 0.0
  %v302 = vadd.f32 %v32, %v301
  %303 = vadd.xlane.f32.xlu0 %v302
  %v304 = vpop.xlane.xlu0 %303
  %v305 = vsel %vm276, %v35, 0.0
  %v306 = vadd.f32 %v34, %v305
  %307 = vadd.xlane.f32.xlu0 %v306
  %v308 = vpop.xlane.xlu0 %307
  %v309 = vsel %vm276, %v37, 0.0
  %v310 = vadd.f32 %v36, %v309
  %311 = vadd.xlane.f32.xlu0 %v310
  %v312 = vpop.xlane.xlu0 %311
  %v313 = vsel %vm276, %v39, 0.0
  %v314 = vadd.f32 %v38, %v313
  %315 = vadd.xlane.f32.xlu0 %v314
  %v316 = vpop.xlane.xlu0 %315
  %v317 = vsel %vm276, %v41, 0.0
  %v318 = vadd.f32 %v40, %v317
  %319 = vadd.xlane.f32.xlu0 %v318
  %v320 = vpop.xlane.xlu0 %319
  %v321 = vsel %vm276, %v43, 0.0
  %v322 = vadd.f32 %v42, %v321
  %323 = vadd.xlane.f32.xlu0 %v322
  %v324 = vpop.xlane.xlu0 %323
  %v325 = vsel %vm276, %v45, 0.0
  %v326 = vadd.f32 %v44, %v325
  %327 = vadd.xlane.f32.xlu0 %v326
  %v328 = vpop.xlane.xlu0 %327
  %v329 = vsel %vm276, %v47, 0.0
  %v330 = vadd.f32 %v46, %v329
  %331 = vadd.xlane.f32.xlu0 %v330
  %v332 = vpop.xlane.xlu0 %331
  %v333 = vsel %vm276, %v49, 0.0
  %v334 = vadd.f32 %v48, %v333
  %335 = vadd.xlane.f32.xlu0 %v334
  %v336 = vpop.xlane.xlu0 %335
  %v337 = vsel %vm276, %v51, 0.0
  %v338 = vadd.f32 %v50, %v337
  %339 = vadd.xlane.f32.xlu0 %v338
  %v340 = vpop.xlane.xlu0 %339
  %v341 = vsel %vm276, %v53, 0.0
  %v342 = vadd.f32 %v52, %v341
  %343 = vadd.xlane.f32.xlu0 %v342
  %v344 = vpop.xlane.xlu0 %343
  %v345 = vsel %vm276, %v55, 0.0
  %v346 = vadd.f32 %v54, %v345
  %347 = vadd.xlane.f32.xlu0 %v346
  %v348 = vpop.xlane.xlu0 %347
  %v349 = vsel %vm276, %v57, 0.0
  %v350 = vadd.f32 %v56, %v349
  %351 = vadd.xlane.f32.xlu0 %v350
  %v352 = vpop.xlane.xlu0 %351
  %v353 = vsel %vm276, %v59, 0.0
  %v354 = vadd.f32 %v58, %v353
  %355 = vadd.xlane.f32.xlu0 %v354
  %v356 = vpop.xlane.xlu0 %355
  %v357 = vsel %vm276, %v61, 0.0
  %v358 = vadd.f32 %v60, %v357
  %359 = vadd.xlane.f32.xlu0 %v358
  %v360 = vpop.xlane.xlu0 %359
  %v361 = vsel %vm276, %v63, 0.0
  %v362 = vadd.f32 %v62, %v361
  %363 = vadd.xlane.f32.xlu0 %v362
  %v364 = vpop.xlane.xlu0 %363
  %v365 = vsel %vm276, %v65, 0.0
  %v366 = vadd.f32 %v64, %v365
  %367 = vadd.xlane.f32.xlu0 %v366
  %v368 = vpop.xlane.xlu0 %367
  %v369 = vsel %vm276, %v67, 0.0
  %v370 = vadd.f32 %v66, %v369
  %371 = vadd.xlane.f32.xlu0 %v370
  %v372 = vpop.xlane.xlu0 %371
  %v373 = vsel %vm276, %v69, 0.0
  %v374 = vadd.f32 %v68, %v373
  %375 = vadd.xlane.f32.xlu0 %v374
  %v376 = vpop.xlane.xlu0 %375
  %v377 = vsel %vm276, %v71, 0.0
  %v378 = vadd.f32 %v70, %v377
  %379 = vadd.xlane.f32.xlu0 %v378
  %v380 = vpop.xlane.xlu0 %379
  %v381 = vsel %vm276, %v73, 0.0
  %v382 = vadd.f32 %v72, %v381
  %383 = vadd.xlane.f32.xlu0 %v382
  %v384 = vpop.xlane.xlu0 %383
  %v385 = vsel %vm276, %v75, 0.0
  %v386 = vadd.f32 %v74, %v385
  %387 = vadd.xlane.f32.xlu0 %v386
  %v388 = vpop.xlane.xlu0 %387
  %v389 = vsel %vm276, %v77, 0.0
  %v390 = vadd.f32 %v76, %v389
  %391 = vadd.xlane.f32.xlu0 %v390
  %v392 = vpop.xlane.xlu0 %391
  %v393 = vsel %vm276, %v79, 0.0
  %v394 = vadd.f32 %v78, %v393
  %395 = vadd.xlane.f32.xlu0 %v394
  %v396 = vpop.xlane.xlu0 %395
  %v397 = vsel %vm276, %v81, 0.0
  %v398 = vadd.f32 %v80, %v397
  %399 = vadd.xlane.f32.xlu0 %v398
  %v400 = vpop.xlane.xlu0 %399
  %v401 = vsel %vm276, %v83, 0.0
  %v402 = vadd.f32 %v82, %v401
  %403 = vadd.xlane.f32.xlu0 %v402
  %v404 = vpop.xlane.xlu0 %403
  %v405 = vsel %vm276, %v85, 0.0
  %v406 = vadd.f32 %v84, %v405
  %407 = vadd.xlane.f32.xlu0 %v406
  %v408 = vpop.xlane.xlu0 %407
  %v409 = vsel %vm276, %v87, 0.0
  %v410 = vadd.f32 %v86, %v409
  %411 = vadd.xlane.f32.xlu0 %v410
  %v412 = vpop.xlane.xlu0 %411
  %v413 = vsel %vm276, %v89, 0.0
  %v414 = vadd.f32 %v88, %v413
  %415 = vadd.xlane.f32.xlu0 %v414
  %v416 = vpop.xlane.xlu0 %415
  %v417 = vsel %vm276, %v91, 0.0
  %v418 = vadd.f32 %v90, %v417
  %419 = vadd.xlane.f32.xlu0 %v418
  %v420 = vpop.xlane.xlu0 %419
  %v421 = vsel %vm276, %v93, 0.0
  %v422 = vadd.f32 %v92, %v421
  %423 = vadd.xlane.f32.xlu0 %v422
  %v424 = vpop.xlane.xlu0 %423
  %v425 = vsel %vm276, %v95, 0.0
  %v426 = vadd.f32 %v94, %v425
  %427 = vadd.xlane.f32.xlu0 %v426
  %v428 = vpop.xlane.xlu0 %427
  %v429 = vsel %vm276, %v97, 0.0
  %v430 = vadd.f32 %v96, %v429
  %431 = vadd.xlane.f32.xlu0 %v430
  %v432 = vpop.xlane.xlu0 %431
  %v433 = vsel %vm276, %v99, 0.0
  %v434 = vadd.f32 %v98, %v433
  %435 = vadd.xlane.f32.xlu0 %v434
  %v436 = vpop.xlane.xlu0 %435
  %v437 = vsel %vm276, %v101, 0.0
  %v438 = vadd.f32 %v100, %v437
  %439 = vadd.xlane.f32.xlu0 %v438
  %v440 = vpop.xlane.xlu0 %439
  %v441 = vsel %vm276, %v103, 0.0
  %v442 = vadd.f32 %v102, %v441
  %443 = vadd.xlane.f32.xlu0 %v442
  %v444 = vpop.xlane.xlu0 %443
  %v445 = vsel %vm276, %v105, 0.0
  %v446 = vadd.f32 %v104, %v445
  %447 = vadd.xlane.f32.xlu0 %v446
  %v448 = vpop.xlane.xlu0 %447
  %v449 = vsel %vm276, %v107, 0.0
  %v450 = vadd.f32 %v106, %v449
  %451 = vadd.xlane.f32.xlu0 %v450
  %v452 = vpop.xlane.xlu0 %451
  %v453 = vsel %vm276, %v109, 0.0
  %v454 = vadd.f32 %v108, %v453
  %455 = vadd.xlane.f32.xlu0 %v454
  %v456 = vpop.xlane.xlu0 %455
  %v457 = vsel %vm276, %v111, 0.0
  %v458 = vadd.f32 %v110, %v457
  %459 = vadd.xlane.f32.xlu0 %v458
  %v460 = vpop.xlane.xlu0 %459
  %v461 = vsel %vm276, %v113, 0.0
  %v462 = vadd.f32 %v112, %v461
  %463 = vadd.xlane.f32.xlu0 %v462
  %v464 = vpop.xlane.xlu0 %463
  %v465 = vsel %vm276, %v115, 0.0
  %v466 = vadd.f32 %v114, %v465
  %467 = vadd.xlane.f32.xlu0 %v466
  %v468 = vpop.xlane.xlu0 %467
  %v469 = vsel %vm276, %v117, 0.0
  %v470 = vadd.f32 %v116, %v469
  %471 = vadd.xlane.f32.xlu0 %v470
  %v472 = vpop.xlane.xlu0 %471
  %v473 = vsel %vm276, %v119, 0.0
  %v474 = vadd.f32 %v118, %v473
  %475 = vadd.xlane.f32.xlu0 %v474
  %v476 = vpop.xlane.xlu0 %475
  %v477 = vsel %vm276, %v121, 0.0
  %v478 = vadd.f32 %v120, %v477
  %479 = vadd.xlane.f32.xlu0 %v478
  %v480 = vpop.xlane.xlu0 %479
  %v481 = vsel %vm276, %v123, 0.0
  %v482 = vadd.f32 %v122, %v481
  %483 = vadd.xlane.f32.xlu0 %v482
  %v484 = vpop.xlane.xlu0 %483
  %v485 = vsel %vm276, %v125, 0.0
  %v486 = vadd.f32 %v124, %v485
  %487 = vadd.xlane.f32.xlu0 %v486
  %v488 = vpop.xlane.xlu0 %487
  %v489 = vsel %vm276, %v127, 0.0
  %v490 = vadd.f32 %v126, %v489
  %491 = vadd.xlane.f32.xlu0 %v490
  %v492 = vpop.xlane.xlu0 %491
  %v493 = vsel %vm276, %v129, 0.0
  %v494 = vadd.f32 %v128, %v493
  %495 = vadd.xlane.f32.xlu0 %v494
  %v496 = vpop.xlane.xlu0 %495
  %v497 = vsel %vm276, %v131, 0.0
  %v498 = vadd.f32 %v130, %v497
  %499 = vadd.xlane.f32.xlu0 %v498
  %v500 = vpop.xlane.xlu0 %499
  %v501 = vsel %vm276, %v133, 0.0
  %v502 = vadd.f32 %v132, %v501
  %503 = vadd.xlane.f32.xlu0 %v502
  %v504 = vpop.xlane.xlu0 %503
  %v505 = vsel %vm276, %v135, 0.0
  %v506 = vadd.f32 %v134, %v505
  %507 = vadd.xlane.f32.xlu0 %v506
  %v508 = vpop.xlane.xlu0 %507
  %v509 = vsel %vm276, %v137, 0.0
  %v510 = vadd.f32 %v136, %v509
  %511 = vadd.xlane.f32.xlu0 %v510
  %v512 = vpop.xlane.xlu0 %511
  %v513 = vsel %vm276, %v139, 0.0
  %v514 = vadd.f32 %v138, %v513
  %515 = vadd.xlane.f32.xlu0 %v514
  %v516 = vpop.xlane.xlu0 %515
  %v517 = vsel %vm276, %v141, 0.0
  %v518 = vadd.f32 %v140, %v517
  %519 = vadd.xlane.f32.xlu0 %v518
  %v520 = vpop.xlane.xlu0 %519
  %v521 = vsel %vm276, %v143, 0.0
  %v522 = vadd.f32 %v142, %v521
  %523 = vadd.xlane.f32.xlu0 %v522
  %v524 = vpop.xlane.xlu0 %523
  %v525 = vsel %vm276, %v145, 0.0
  %v526 = vadd.f32 %v144, %v525
  %527 = vadd.xlane.f32.xlu0 %v526
  %v528 = vpop.xlane.xlu0 %527
  %v529 = vsel %vm276, %v147, 0.0
  %v530 = vadd.f32 %v146, %v529
  %531 = vadd.xlane.f32.xlu0 %v530
  %v532 = vpop.xlane.xlu0 %531
  %v533 = vsel %vm276, %v149, 0.0
  %v534 = vadd.f32 %v148, %v533
  %535 = vadd.xlane.f32.xlu0 %v534
  %v536 = vpop.xlane.xlu0 %535
  %v537 = vsel %vm276, %v151, 0.0
  %v538 = vadd.f32 %v150, %v537
  %539 = vadd.xlane.f32.xlu0 %v538
  %v540 = vpop.xlane.xlu0 %539
  %v541 = vsel %vm276, %v153, 0.0
  %v542 = vadd.f32 %v152, %v541
  %543 = vadd.xlane.f32.xlu0 %v542
  %v544 = vpop.xlane.xlu0 %543
  %v545 = vsel %vm276, %v155, 0.0
  %v546 = vadd.f32 %v154, %v545
  %547 = vadd.xlane.f32.xlu0 %v546
  %v548 = vpop.xlane.xlu0 %547
  %v549 = vsel %vm276, %v157, 0.0
  %v550 = vadd.f32 %v156, %v549
  %551 = vadd.xlane.f32.xlu0 %v550
  %v552 = vpop.xlane.xlu0 %551
  %v553 = vsel %vm276, %v159, 0.0
  %v554 = vadd.f32 %v158, %v553
  %555 = vadd.xlane.f32.xlu0 %v554
  %v556 = vpop.xlane.xlu0 %555
  %v557 = vsel %vm276, %v161, 0.0
  %v558 = vadd.f32 %v160, %v557
  %559 = vadd.xlane.f32.xlu0 %v558
  %v560 = vpop.xlane.xlu0 %559
  %v561 = vsel %vm276, %v163, 0.0
  %v562 = vadd.f32 %v162, %v561
  %563 = vadd.xlane.f32.xlu0 %v562
  %v564 = vpop.xlane.xlu0 %563
  %v565 = vsel %vm276, %v165, 0.0
  %v566 = vadd.f32 %v164, %v565
  %567 = vadd.xlane.f32.xlu0 %v566
  %v568 = vpop.xlane.xlu0 %567
  %v569 = vsel %vm276, %v167, 0.0
  %v570 = vadd.f32 %v166, %v569
  %571 = vadd.xlane.f32.xlu0 %v570
  %v572 = vpop.xlane.xlu0 %571
  %v573 = vsel %vm276, %v169, 0.0
  %v574 = vadd.f32 %v168, %v573
  %575 = vadd.xlane.f32.xlu0 %v574
  %v576 = vpop.xlane.xlu0 %575
  %v577 = vsel %vm276, %v171, 0.0
  %v578 = vadd.f32 %v170, %v577
  %579 = vadd.xlane.f32.xlu0 %v578
  %v580 = vpop.xlane.xlu0 %579
  %v581 = vsel %vm276, %v173, 0.0
  %v582 = vadd.f32 %v172, %v581
  %583 = vadd.xlane.f32.xlu0 %v582
  %v584 = vpop.xlane.xlu0 %583
  %v585 = vsel %vm276, %v175, 0.0
  %v586 = vadd.f32 %v174, %v585
  %587 = vadd.xlane.f32.xlu0 %v586
  %v588 = vpop.xlane.xlu0 %587
  %v589 = vsel %vm276, %v177, 0.0
  %v590 = vadd.f32 %v176, %v589
  %591 = vadd.xlane.f32.xlu0 %v590
  %v592 = vpop.xlane.xlu0 %591
  %v593 = vsel %vm276, %v179, 0.0
  %v594 = vadd.f32 %v178, %v593
  %595 = vadd.xlane.f32.xlu0 %v594
  %v596 = vpop.xlane.xlu0 %595
  %v597 = vsel %vm276, %v181, 0.0
  %v598 = vadd.f32 %v180, %v597
  %599 = vadd.xlane.f32.xlu0 %v598
  %v600 = vpop.xlane.xlu0 %599
  %v601 = vsel %vm276, %v183, 0.0
  %v602 = vadd.f32 %v182, %v601
  %603 = vadd.xlane.f32.xlu0 %v602
  %v604 = vpop.xlane.xlu0 %603
  %v605 = vsel %vm276, %v185, 0.0
  %v606 = vadd.f32 %v184, %v605
  %607 = vadd.xlane.f32.xlu0 %v606
  %v608 = vpop.xlane.xlu0 %607
  %v609 = vsel %vm276, %v187, 0.0
  %v610 = vadd.f32 %v186, %v609
  %611 = vadd.xlane.f32.xlu0 %v610
  %v612 = vpop.xlane.xlu0 %611
  %v613 = vsel %vm276, %v189, 0.0
  %v614 = vadd.f32 %v188, %v613
  %615 = vadd.xlane.f32.xlu0 %v614
  %v616 = vpop.xlane.xlu0 %615
  %v617 = vsel %vm276, %v191, 0.0
  %v618 = vadd.f32 %v190, %v617
  %619 = vadd.xlane.f32.xlu0 %v618
  %v620 = vpop.xlane.xlu0 %619
  %v621 = vsel %vm276, %v193, 0.0
  %v622 = vadd.f32 %v192, %v621
  %623 = vadd.xlane.f32.xlu0 %v622
  %v624 = vpop.xlane.xlu0 %623
  %v625 = vsel %vm276, %v195, 0.0
  %v626 = vadd.f32 %v194, %v625
  %627 = vadd.xlane.f32.xlu0 %v626
  %v628 = vpop.xlane.xlu0 %627
  %v629 = vsel %vm276, %v197, 0.0
  %v630 = vadd.f32 %v196, %v629
  %631 = vadd.xlane.f32.xlu0 %v630
  %v632 = vpop.xlane.xlu0 %631
  %v633 = vsel %vm276, %v199, 0.0
  %v634 = vadd.f32 %v198, %v633
  %635 = vadd.xlane.f32.xlu0 %v634
  %v636 = vpop.xlane.xlu0 %635
  %v637 = vsel %vm276, %v201, 0.0
  %v638 = vadd.f32 %v200, %v637
  %639 = vadd.xlane.f32.xlu0 %v638
  %v640 = vpop.xlane.xlu0 %639
  %v641 = vsel %vm276, %v203, 0.0
  %v642 = vadd.f32 %v202, %v641
  %643 = vadd.xlane.f32.xlu0 %v642
  %v644 = vpop.xlane.xlu0 %643
  %v645 = vsel %vm276, %v205, 0.0
  %v646 = vadd.f32 %v204, %v645
  %647 = vadd.xlane.f32.xlu0 %v646
  %v648 = vpop.xlane.xlu0 %647
  %v649 = vsel %vm276, %v207, 0.0
  %v650 = vadd.f32 %v206, %v649
  %651 = vadd.xlane.f32.xlu0 %v650
  %v652 = vpop.xlane.xlu0 %651
  %v653 = vsel %vm276, %v209, 0.0
  %v654 = vadd.f32 %v208, %v653
  %655 = vadd.xlane.f32.xlu0 %v654
  %v656 = vpop.xlane.xlu0 %655
  %v657 = vsel %vm276, %v211, 0.0
  %v658 = vadd.f32 %v210, %v657
  %659 = vadd.xlane.f32.xlu0 %v658
  %v660 = vpop.xlane.xlu0 %659
  %v661 = vsel %vm276, %v213, 0.0
  %v662 = vadd.f32 %v212, %v661
  %663 = vadd.xlane.f32.xlu0 %v662
  %v664 = vpop.xlane.xlu0 %663
  %v665 = vsel %vm276, %v215, 0.0
  %v666 = vadd.f32 %v214, %v665
  %667 = vadd.xlane.f32.xlu0 %v666
  %v668 = vpop.xlane.xlu0 %667
  %v669 = vsel %vm276, %v217, 0.0
  %v670 = vadd.f32 %v216, %v669
  %671 = vadd.xlane.f32.xlu0 %v670
  %v672 = vpop.xlane.xlu0 %671
  %v673 = vsel %vm276, %v219, 0.0
  %v674 = vadd.f32 %v218, %v673
  %675 = vadd.xlane.f32.xlu0 %v674
  %v676 = vpop.xlane.xlu0 %675
  %v677 = vsel %vm276, %v221, 0.0
  %v678 = vadd.f32 %v220, %v677
  %679 = vadd.xlane.f32.xlu0 %v678
  %v680 = vpop.xlane.xlu0 %679
  %v681 = vsel %vm276, %v223, 0.0
  %v682 = vadd.f32 %v222, %v681
  %683 = vadd.xlane.f32.xlu0 %v682
  %v684 = vpop.xlane.xlu0 %683
  %v685 = vsel %vm276, %v225, 0.0
  %v686 = vadd.f32 %v224, %v685
  %687 = vadd.xlane.f32.xlu0 %v686
  %v688 = vpop.xlane.xlu0 %687
  %v689 = vsel %vm276, %v227, 0.0
  %v690 = vadd.f32 %v226, %v689
  %691 = vadd.xlane.f32.xlu0 %v690
  %v692 = vpop.xlane.xlu0 %691
  %v693 = vsel %vm276, %v229, 0.0
  %v694 = vadd.f32 %v228, %v693
  %695 = vadd.xlane.f32.xlu0 %v694
  %v696 = vpop.xlane.xlu0 %695
  %v697 = vsel %vm276, %v231, 0.0
  %v698 = vadd.f32 %v230, %v697
  %699 = vadd.xlane.f32.xlu0 %v698
  %v700 = vpop.xlane.xlu0 %699
  %v701 = vsel %vm276, %v233, 0.0
  %v702 = vadd.f32 %v232, %v701
  %703 = vadd.xlane.f32.xlu0 %v702
  %v704 = vpop.xlane.xlu0 %703
  %v705 = vsel %vm276, %v235, 0.0
  %v706 = vadd.f32 %v234, %v705
  %707 = vadd.xlane.f32.xlu0 %v706
  %v708 = vpop.xlane.xlu0 %707
  %v709 = vsel %vm276, %v237, 0.0
  %v710 = vadd.f32 %v236, %v709
  %711 = vadd.xlane.f32.xlu0 %v710
  %v712 = vpop.xlane.xlu0 %711
  %v713 = vsel %vm276, %v239, 0.0
  %v714 = vadd.f32 %v238, %v713
  %715 = vadd.xlane.f32.xlu0 %v714
  %v716 = vpop.xlane.xlu0 %715
  %v717 = vsel %vm276, %v241, 0.0
  %v718 = vadd.f32 %v240, %v717
  %719 = vadd.xlane.f32.xlu0 %v718
  %v720 = vpop.xlane.xlu0 %719
  %v721 = vsel %vm276, %v243, 0.0
  %v722 = vadd.f32 %v242, %v721
  %723 = vadd.xlane.f32.xlu0 %v722
  %v724 = vpop.xlane.xlu0 %723
  %v725 = vsel %vm276, %v245, 0.0
  %v726 = vadd.f32 %v244, %v725
  %727 = vadd.xlane.f32.xlu0 %v726
  %v728 = vpop.xlane.xlu0 %727
  %v729 = vsel %vm276, %v247, 0.0
  %v730 = vadd.f32 %v246, %v729
  %731 = vadd.xlane.f32.xlu0 %v730
  %v732 = vpop.xlane.xlu0 %731
  %v733 = vsel %vm276, %v249, 0.0
  %v734 = vadd.f32 %v248, %v733
  %735 = vadd.xlane.f32.xlu0 %v734
  %v736 = vpop.xlane.xlu0 %735
  %v737 = vsel %vm276, %v251, 0.0
  %v738 = vadd.f32 %v250, %v737
  %739 = vadd.xlane.f32.xlu0 %v738
  %v740 = vpop.xlane.xlu0 %739
  %v741 = vsel %vm276, %v253, 0.0
  %v742 = vadd.f32 %v252, %v741
  %743 = vadd.xlane.f32.xlu0 %v742
  %v744 = vpop.xlane.xlu0 %743
  %v745 = vsel %vm276, %v255, 0.0
  %v746 = vadd.f32 %v254, %v745
  %747 = vadd.xlane.f32.xlu0 %v746
  %v748 = vpop.xlane.xlu0 %747
  %v749 = vsel %vm276, %v257, 0.0
  %v750 = vadd.f32 %v256, %v749
  %751 = vadd.xlane.f32.xlu0 %v750
  %v752 = vpop.xlane.xlu0 %751
  %v753 = vsel %vm276, %v259, 0.0
  %v754 = vadd.f32 %v258, %v753
  %755 = vadd.xlane.f32.xlu0 %v754
  %v756 = vpop.xlane.xlu0 %755
  %v757 = vsel %vm276, %v261, 0.0
  %v758 = vadd.f32 %v260, %v757
  %759 = vadd.xlane.f32.xlu0 %v758
  %v760 = vpop.xlane.xlu0 %759
  %v761 = vsel %vm276, %v263, 0.0
  %v762 = vadd.f32 %v262, %v761
  %763 = vadd.xlane.f32.xlu0 %v762
  %v764 = vpop.xlane.xlu0 %763
  %v765 = vsel %vm276, %v265, 0.0
  %v766 = vadd.f32 %v264, %v765
  %767 = vadd.xlane.f32.xlu0 %v766
  %v768 = vpop.xlane.xlu0 %767
  %v769 = vsel %vm276, %v267, 0.0
  %v770 = vadd.f32 %v266, %v769
  %771 = vadd.xlane.f32.xlu0 %v770
  %v772 = vpop.xlane.xlu0 %771
  %v773 = vsel %vm276, %v269, 0.0
  %v774 = vadd.f32 %v268, %v773
  %775 = vadd.xlane.f32.xlu0 %v774
  %v776 = vpop.xlane.xlu0 %775
  %v777 = vsel %vm276, %v271, 0.0
  %v778 = vadd.f32 %v270, %v777
  %779 = vadd.xlane.f32.xlu0 %v778
  %v780 = vpop.xlane.xlu0 %779
  %v781 = vsel %vm276, %v273, 0.0
  %v782 = vadd.f32 %v272, %v781
  %783 = vadd.xlane.f32.xlu0 %v782
  %v784 = vpop.xlane.xlu0 %783
  %v785 = vsel %vm276, %v275, 0.0
  %v786 = vadd.f32 %v274, %v785
  %787 = vadd.xlane.f32.xlu0 %v786
  %v788 = vpop.xlane.xlu0 %787
  %v789 = vrcp.pop 196.0
  %v790 = vmul.f32 %v280, %v789
  %v791 = vmul.f32 %v284, %v789
  %v792 = vmul.f32 %v288, %v789
  %v793 = vmul.f32 %v292, %v789
  %v794 = vmul.f32 %v296, %v789
  %v795 = vmul.f32 %v300, %v789
  %v796 = vmul.f32 %v304, %v789
  %v797 = vmul.f32 %v308, %v789
  %v798 = vmul.f32 %v312, %v789
  %v799 = vmul.f32 %v316, %v789
  %v800 = vmul.f32 %v320, %v789
  %v801 = vmul.f32 %v324, %v789
  %v802 = vmul.f32 %v328, %v789
  %v803 = vmul.f32 %v332, %v789
  %v804 = vmul.f32 %v336, %v789
  %v805 = vmul.f32 %v340, %v789
  %v806 = vmul.f32 %v344, %v789
  %v807 = vmul.f32 %v348, %v789
  %v808 = vmul.f32 %v352, %v789
  %v809 = vmul.f32 %v356, %v789
  %v810 = vmul.f32 %v360, %v789
  %v811 = vmul.f32 %v364, %v789
  %v812 = vmul.f32 %v368, %v789
  %v813 = vmul.f32 %v372, %v789
  %v814 = vmul.f32 %v376, %v789
  %v815 = vmul.f32 %v380, %v789
  %v816 = vmul.f32 %v384, %v789
  %v817 = vmul.f32 %v388, %v789
  %v818 = vmul.f32 %v392, %v789
  %v819 = vmul.f32 %v396, %v789
  %v820 = vmul.f32 %v400, %v789
  %v821 = vmul.f32 %v404, %v789
  %v822 = vmul.f32 %v408, %v789
  %v823 = vmul.f32 %v412, %v789
  %v824 = vmul.f32 %v416, %v789
  %v825 = vmul.f32 %v420, %v789
  %v826 = vmul.f32 %v424, %v789
  %v827 = vmul.f32 %v428, %v789
  %v828 = vmul.f32 %v432, %v789
  %v829 = vmul.f32 %v436, %v789
  %v830 = vmul.f32 %v440, %v789
  %v831 = vmul.f32 %v444, %v789
  %v832 = vmul.f32 %v448, %v789
  %v833 = vmul.f32 %v452, %v789
  %v834 = vmul.f32 %v456, %v789
  %v835 = vmul.f32 %v460, %v789
  %v836 = vmul.f32 %v464, %v789
  %v837 = vmul.f32 %v468, %v789
  %v838 = vmul.f32 %v472, %v789
  %v839 = vmul.f32 %v476, %v789
  %v840 = vmul.f32 %v480, %v789
  %v841 = vmul.f32 %v484, %v789
  %v842 = vmul.f32 %v488, %v789
  %v843 = vmul.f32 %v492, %v789
  %v844 = vmul.f32 %v496, %v789
  %v845 = vmul.f32 %v500, %v789
  %v846 = vmul.f32 %v504, %v789
  %v847 = vmul.f32 %v508, %v789
  %v848 = vmul.f32 %v512, %v789
  %v849 = vmul.f32 %v516, %v789
  %v850 = vmul.f32 %v520, %v789
  %v851 = vmul.f32 %v524, %v789
  %v852 = vmul.f32 %v528, %v789
  %v853 = vmul.f32 %v532, %v789
  %v854 = vmul.f32 %v536, %v789
  %v855 = vmul.f32 %v540, %v789
  %v856 = vmul.f32 %v544, %v789
  %v857 = vmul.f32 %v548, %v789
  %v858 = vmul.f32 %v552, %v789
  %v859 = vmul.f32 %v556, %v789
  %v860 = vmul.f32 %v560, %v789
  %v861 = vmul.f32 %v564, %v789
  %v862 = vmul.f32 %v568, %v789
  %v863 = vmul.f32 %v572, %v789
  %v864 = vmul.f32 %v576, %v789
  %v865 = vmul.f32 %v580, %v789
  %v866 = vmul.f32 %v584, %v789
  %v867 = vmul.f32 %v588, %v789
  %v868 = vmul.f32 %v592, %v789
  %v869 = vmul.f32 %v596, %v789
  %v870 = vmul.f32 %v600, %v789
  %v871 = vmul.f32 %v604, %v789
  %v872 = vmul.f32 %v608, %v789
  %v873 = vmul.f32 %v612, %v789
  %v874 = vmul.f32 %v616, %v789
  %v875 = vmul.f32 %v620, %v789
  %v876 = vmul.f32 %v624, %v789
  %v877 = vmul.f32 %v628, %v789
  %v878 = vmul.f32 %v632, %v789
  %v879 = vmul.f32 %v636, %v789
  %v880 = vmul.f32 %v640, %v789
  %v881 = vmul.f32 %v644, %v789
  %v882 = vmul.f32 %v648, %v789
  %v883 = vmul.f32 %v652, %v789
  %v884 = vmul.f32 %v656, %v789
  %v885 = vmul.f32 %v660, %v789
  %v886 = vmul.f32 %v664, %v789
  %v887 = vmul.f32 %v668, %v789
  %v888 = vmul.f32 %v672, %v789
  %v889 = vmul.f32 %v676, %v789
  %v890 = vmul.f32 %v680, %v789
  %v891 = vmul.f32 %v684, %v789
  %v892 = vmul.f32 %v688, %v789
  %v893 = vmul.f32 %v692, %v789
  %v894 = vmul.f32 %v696, %v789
  %v895 = vmul.f32 %v700, %v789
  %v896 = vmul.f32 %v704, %v789
  %v897 = vmul.f32 %v708, %v789
  %v898 = vmul.f32 %v712, %v789
  %v899 = vmul.f32 %v716, %v789
  %v900 = vmul.f32 %v720, %v789
  %v901 = vmul.f32 %v724, %v789
  %v902 = vmul.f32 %v728, %v789
  %v903 = vmul.f32 %v732, %v789
  %v904 = vmul.f32 %v736, %v789
  %v905 = vmul.f32 %v740, %v789
  %v906 = vmul.f32 %v744, %v789
  %v907 = vmul.f32 %v748, %v789
  %v908 = vmul.f32 %v752, %v789
  %v909 = vmul.f32 %v756, %v789
  %v910 = vmul.f32 %v760, %v789
  %v911 = vmul.f32 %v764, %v789
  %v912 = vmul.f32 %v768, %v789
  %v913 = vmul.f32 %v772, %v789
  %v914 = vmul.f32 %v776, %v789
  %v915 = vmul.f32 %v780, %v789
  %v916 = vmul.f32 %v784, %v789
  %v917 = vmul.f32 %v788, %v789
  %v918 = vmul.f32 %v20, %v20
  %v919 = vmul.f32 %v21, %v21
  %v920 = vmul.f32 %v22, %v22
  %v921 = vmul.f32 %v23, %v23
  %v922 = vmul.f32 %v24, %v24
  %v923 = vmul.f32 %v25, %v25
  %v924 = vmul.f32 %v26, %v26
  %v925 = vmul.f32 %v27, %v27
  %v926 = vmul.f32 %v28, %v28
  %v927 = vmul.f32 %v29, %v29
  %v928 = vmul.f32 %v30, %v30
  %v929 = vmul.f32 %v31, %v31
  %v930 = vmul.f32 %v32, %v32
  %v931 = vmul.f32 %v33, %v33
  %v932 = vmul.f32 %v34, %v34
  %v933 = vmul.f32 %v35, %v35
  %v934 = vmul.f32 %v36, %v36
  %v935 = vmul.f32 %v37, %v37
  %v936 = vmul.f32 %v38, %v38
  %v937 = vmul.f32 %v39, %v39
  %v938 = vmul.f32 %v40, %v40
  %v939 = vmul.f32 %v41, %v41
  %v940 = vmul.f32 %v42, %v42
  %v941 = vmul.f32 %v43, %v43
  %v942 = vmul.f32 %v44, %v44
  %v943 = vmul.f32 %v45, %v45
  %v944 = vmul.f32 %v46, %v46
  %v945 = vmul.f32 %v47, %v47
  %v946 = vmul.f32 %v48, %v48
  %v947 = vmul.f32 %v49, %v49
  %v948 = vmul.f32 %v50, %v50
  %v949 = vmul.f32 %v51, %v51
  %v950 = vmul.f32 %v52, %v52
  %v951 = vmul.f32 %v53, %v53
  %v952 = vmul.f32 %v54, %v54
  %v953 = vmul.f32 %v55, %v55
  %v954 = vmul.f32 %v56, %v56
  %v955 = vmul.f32 %v57, %v57
  %v956 = vmul.f32 %v58, %v58
  %v957 = vmul.f32 %v59, %v59
  %v958 = vmul.f32 %v60, %v60
  %v959 = vmul.f32 %v61, %v61
  %v960 = vmul.f32 %v62, %v62
  %v961 = vmul.f32 %v63, %v63
  %v962 = vmul.f32 %v64, %v64
  %v963 = vmul.f32 %v65, %v65
  %v964 = vmul.f32 %v66, %v66
  %v965 = vmul.f32 %v67, %v67
  %v966 = vmul.f32 %v68, %v68
  %v967 = vmul.f32 %v69, %v69
  %v968 = vmul.f32 %v70, %v70
  %v969 = vmul.f32 %v71, %v71
  %v970 = vmul.f32 %v72, %v72
  %v971 = vmul.f32 %v73, %v73
  %v972 = vmul.f32 %v74, %v74
  %v973 = vmul.f32 %v75, %v75
  %v974 = vmul.f32 %v76, %v76
  %v975 = vmul.f32 %v77, %v77
  %v976 = vmul.f32 %v78, %v78
  %v977 = vmul.f32 %v79, %v79
  %v978 = vmul.f32 %v80, %v80
  %v979 = vmul.f32 %v81, %v81
  %v980 = vmul.f32 %v82, %v82
  %v981 = vmul.f32 %v83, %v83
  %v982 = vmul.f32 %v84, %v84
  %v983 = vmul.f32 %v85, %v85
  %v984 = vmul.f32 %v86, %v86
  %v985 = vmul.f32 %v87, %v87
  %v986 = vmul.f32 %v88, %v88
  %v987 = vmul.f32 %v89, %v89
  %v988 = vmul.f32 %v90, %v90
  %v989 = vmul.f32 %v91, %v91
  %v990 = vmul.f32 %v92, %v92
  %v991 = vmul.f32 %v93, %v93
  %v992 = vmul.f32 %v94, %v94
  %v993 = vmul.f32 %v95, %v95
  %v994 = vmul.f32 %v96, %v96
  %v995 = vmul.f32 %v97, %v97
  %v996 = vmul.f32 %v98, %v98
  %v997 = vmul.f32 %v99, %v99
  %v998 = vmul.f32 %v100, %v100
  %v999 = vmul.f32 %v101, %v101
  %v1000 = vmul.f32 %v102, %v102
  %v1001 = vmul.f32 %v103, %v103
  %v1002 = vmul.f32 %v104, %v104
  %v1003 = vmul.f32 %v105, %v105
  %v1004 = vmul.f32 %v106, %v106
  %v1005 = vmul.f32 %v107, %v107
  %v1006 = vmul.f32 %v108, %v108
  %v1007 = vmul.f32 %v109, %v109
  %v1008 = vmul.f32 %v110, %v110
  %v1009 = vmul.f32 %v111, %v111
  %v1010 = vmul.f32 %v112, %v112
  %v1011 = vmul.f32 %v113, %v113
  %v1012 = vmul.f32 %v114, %v114
  %v1013 = vmul.f32 %v115, %v115
  %v1014 = vmul.f32 %v116, %v116
  %v1015 = vmul.f32 %v117, %v117
  %v1016 = vmul.f32 %v118, %v118
  %v1017 = vmul.f32 %v119, %v119
  %v1018 = vmul.f32 %v120, %v120
  %v1019 = vmul.f32 %v121, %v121
  %v1020 = vmul.f32 %v122, %v122
  %v1021 = vmul.f32 %v123, %v123
  %v1022 = vmul.f32 %v124, %v124
  %v1023 = vmul.f32 %v125, %v125
  %v1024 = vmul.f32 %v126, %v126
  %v1025 = vmul.f32 %v127, %v127
  %v1026 = vmul.f32 %v128, %v128
  %v1027 = vmul.f32 %v129, %v129
  %v1028 = vmul.f32 %v130, %v130
  %v1029 = vmul.f32 %v131, %v131
  %v1030 = vmul.f32 %v132, %v132
  %v1031 = vmul.f32 %v133, %v133
  %v1032 = vmul.f32 %v134, %v134
  %v1033 = vmul.f32 %v135, %v135
  %v1034 = vmul.f32 %v136, %v136
  %v1035 = vmul.f32 %v137, %v137
  %v1036 = vmul.f32 %v138, %v138
  %v1037 = vmul.f32 %v139, %v139
  %v1038 = vmul.f32 %v140, %v140
  %v1039 = vmul.f32 %v141, %v141
  %v1040 = vmul.f32 %v142, %v142
  %v1041 = vmul.f32 %v143, %v143
  %v1042 = vmul.f32 %v144, %v144
  %v1043 = vmul.f32 %v145, %v145
  %v1044 = vmul.f32 %v146, %v146
  %v1045 = vmul.f32 %v147, %v147
  %v1046 = vmul.f32 %v148, %v148
  %v1047 = vmul.f32 %v149, %v149
  %v1048 = vmul.f32 %v150, %v150
  %v1049 = vmul.f32 %v151, %v151
  %v1050 = vmul.f32 %v152, %v152
  %v1051 = vmul.f32 %v153, %v153
  %v1052 = vmul.f32 %v154, %v154
  %v1053 = vmul.f32 %v155, %v155
  %v1054 = vmul.f32 %v156, %v156
  %v1055 = vmul.f32 %v157, %v157
  %v1056 = vmul.f32 %v158, %v158
  %v1057 = vmul.f32 %v159, %v159
  %v1058 = vmul.f32 %v160, %v160
  %v1059 = vmul.f32 %v161, %v161
  %v1060 = vmul.f32 %v162, %v162
  %v1061 = vmul.f32 %v163, %v163
  %v1062 = vmul.f32 %v164, %v164
  %v1063 = vmul.f32 %v165, %v165
  %v1064 = vmul.f32 %v166, %v166
  %v1065 = vmul.f32 %v167, %v167
  %v1066 = vmul.f32 %v168, %v168
  %v1067 = vmul.f32 %v169, %v169
  %v1068 = vmul.f32 %v170, %v170
  %v1069 = vmul.f32 %v171, %v171
  %v1070 = vmul.f32 %v172, %v172
  %v1071 = vmul.f32 %v173, %v173
  %v1072 = vmul.f32 %v174, %v174
  %v1073 = vmul.f32 %v175, %v175
  %v1074 = vmul.f32 %v176, %v176
  %v1075 = vmul.f32 %v177, %v177
  %v1076 = vmul.f32 %v178, %v178
  %v1077 = vmul.f32 %v179, %v179
  %v1078 = vmul.f32 %v180, %v180
  %v1079 = vmul.f32 %v181, %v181
  %v1080 = vmul.f32 %v182, %v182
  %v1081 = vmul.f32 %v183, %v183
  %v1082 = vmul.f32 %v184, %v184
  %v1083 = vmul.f32 %v185, %v185
  %v1084 = vmul.f32 %v186, %v186
  %v1085 = vmul.f32 %v187, %v187
  %v1086 = vmul.f32 %v188, %v188
  %v1087 = vmul.f32 %v189, %v189
  %v1088 = vmul.f32 %v190, %v190
  %v1089 = vmul.f32 %v191, %v191
  %v1090 = vmul.f32 %v192, %v192
  %v1091 = vmul.f32 %v193, %v193
  %v1092 = vmul.f32 %v194, %v194
  %v1093 = vmul.f32 %v195, %v195
  %v1094 = vmul.f32 %v196, %v196
  %v1095 = vmul.f32 %v197, %v197
  %v1096 = vmul.f32 %v198, %v198
  %v1097 = vmul.f32 %v199, %v199
  %v1098 = vmul.f32 %v200, %v200
  %v1099 = vmul.f32 %v201, %v201
  %v1100 = vmul.f32 %v202, %v202
  %v1101 = vmul.f32 %v203, %v203
  %v1102 = vmul.f32 %v204, %v204
  %v1103 = vmul.f32 %v205, %v205
  %v1104 = vmul.f32 %v206, %v206
  %v1105 = vmul.f32 %v207, %v207
  %v1106 = vmul.f32 %v208, %v208
  %v1107 = vmul.f32 %v209, %v209
  %v1108 = vmul.f32 %v210, %v210
  %v1109 = vmul.f32 %v211, %v211
  %v1110 = vmul.f32 %v212, %v212
  %v1111 = vmul.f32 %v213, %v213
  %v1112 = vmul.f32 %v214, %v214
  %v1113 = vmul.f32 %v215, %v215
  %v1114 = vmul.f32 %v216, %v216
  %v1115 = vmul.f32 %v217, %v217
  %v1116 = vmul.f32 %v218, %v218
  %v1117 = vmul.f32 %v219, %v219
  %v1118 = vmul.f32 %v220, %v220
  %v1119 = vmul.f32 %v221, %v221
  %v1120 = vmul.f32 %v222, %v222
  %v1121 = vmul.f32 %v223, %v223
  %v1122 = vmul.f32 %v224, %v224
  %v1123 = vmul.f32 %v225, %v225
  %v1124 = vmul.f32 %v226, %v226
  %v1125 = vmul.f32 %v227, %v227
  %v1126 = vmul.f32 %v228, %v228
  %v1127 = vmul.f32 %v229, %v229
  %v1128 = vmul.f32 %v230, %v230
  %v1129 = vmul.f32 %v231, %v231
  %v1130 = vmul.f32 %v232, %v232
  %v1131 = vmul.f32 %v233, %v233
  %v1132 = vmul.f32 %v234, %v234
  %v1133 = vmul.f32 %v235, %v235
  %v1134 = vmul.f32 %v236, %v236
  %v1135 = vmul.f32 %v237, %v237
  %v1136 = vmul.f32 %v238, %v238
  %v1137 = vmul.f32 %v239, %v239
  %v1138 = vmul.f32 %v240, %v240
  %v1139 = vmul.f32 %v241, %v241
  %v1140 = vmul.f32 %v242, %v242
  %v1141 = vmul.f32 %v243, %v243
  %v1142 = vmul.f32 %v244, %v244
  %v1143 = vmul.f32 %v245, %v245
  %v1144 = vmul.f32 %v246, %v246
  %v1145 = vmul.f32 %v247, %v247
  %v1146 = vmul.f32 %v248, %v248
  %v1147 = vmul.f32 %v249, %v249
  %v1148 = vmul.f32 %v250, %v250
  %v1149 = vmul.f32 %v251, %v251
  %v1150 = vmul.f32 %v252, %v252
  %v1151 = vmul.f32 %v253, %v253
  %v1152 = vmul.f32 %v254, %v254
  %v1153 = vmul.f32 %v255, %v255
  %v1154 = vmul.f32 %v256, %v256
  %v1155 = vmul.f32 %v257, %v257
  %v1156 = vmul.f32 %v258, %v258
  %v1157 = vmul.f32 %v259, %v259
  %v1158 = vmul.f32 %v260, %v260
  %v1159 = vmul.f32 %v261, %v261
  %v1160 = vmul.f32 %v262, %v262
  %v1161 = vmul.f32 %v263, %v263
  %v1162 = vmul.f32 %v264, %v264
  %v1163 = vmul.f32 %v265, %v265
  %v1164 = vmul.f32 %v266, %v266
  %v1165 = vmul.f32 %v267, %v267
  %v1166 = vmul.f32 %v268, %v268
  %v1167 = vmul.f32 %v269, %v269
  %v1168 = vmul.f32 %v270, %v270
  %v1169 = vmul.f32 %v271, %v271
  %v1170 = vmul.f32 %v272, %v272
  %v1171 = vmul.f32 %v273, %v273
  %v1172 = vmul.f32 %v274, %v274
  %v1173 = vmul.f32 %v275, %v275
  %v1174 = vsel %vm276, %v919, 0.0
  %v1175 = vadd.f32 %v918, %v1174
  %1176 = vadd.xlane.f32.xlu0 %v1175
  %v1177 = vpop.xlane.xlu0 %1176
  %v1178 = vsel %vm276, %v921, 0.0
  %v1179 = vadd.f32 %v920, %v1178
  %1180 = vadd.xlane.f32.xlu0 %v1179
  %v1181 = vpop.xlane.xlu0 %1180
  %v1182 = vsel %vm276, %v923, 0.0
  %v1183 = vadd.f32 %v922, %v1182
  %1184 = vadd.xlane.f32.xlu0 %v1183
  %v1185 = vpop.xlane.xlu0 %1184
  %v1186 = vsel %vm276, %v925, 0.0
  %v1187 = vadd.f32 %v924, %v1186
  %1188 = vadd.xlane.f32.xlu0 %v1187
  %v1189 = vpop.xlane.xlu0 %1188
  %v1190 = vsel %vm276, %v927, 0.0
  %v1191 = vadd.f32 %v926, %v1190
  %1192 = vadd.xlane.f32.xlu0 %v1191
  %v1193 = vpop.xlane.xlu0 %1192
  %v1194 = vsel %vm276, %v929, 0.0
  %v1195 = vadd.f32 %v928, %v1194
  %1196 = vadd.xlane.f32.xlu0 %v1195
  %v1197 = vpop.xlane.xlu0 %1196
  %v1198 = vsel %vm276, %v931, 0.0
  %v1199 = vadd.f32 %v930, %v1198
  %1200 = vadd.xlane.f32.xlu0 %v1199
  %v1201 = vpop.xlane.xlu0 %1200
  %v1202 = vsel %vm276, %v933, 0.0
  %v1203 = vadd.f32 %v932, %v1202
  %1204 = vadd.xlane.f32.xlu0 %v1203
  %v1205 = vpop.xlane.xlu0 %1204
  %v1206 = vsel %vm276, %v935, 0.0
  %v1207 = vadd.f32 %v934, %v1206
  %1208 = vadd.xlane.f32.xlu0 %v1207
  %v1209 = vpop.xlane.xlu0 %1208
  %v1210 = vsel %vm276, %v937, 0.0
  %v1211 = vadd.f32 %v936, %v1210
  %1212 = vadd.xlane.f32.xlu0 %v1211
  %v1213 = vpop.xlane.xlu0 %1212
  %v1214 = vsel %vm276, %v939, 0.0
  %v1215 = vadd.f32 %v938, %v1214
  %1216 = vadd.xlane.f32.xlu0 %v1215
  %v1217 = vpop.xlane.xlu0 %1216
  %v1218 = vsel %vm276, %v941, 0.0
  %v1219 = vadd.f32 %v940, %v1218
  %1220 = vadd.xlane.f32.xlu0 %v1219
  %v1221 = vpop.xlane.xlu0 %1220
  %v1222 = vsel %vm276, %v943, 0.0
  %v1223 = vadd.f32 %v942, %v1222
  %1224 = vadd.xlane.f32.xlu0 %v1223
  %v1225 = vpop.xlane.xlu0 %1224
  %v1226 = vsel %vm276, %v945, 0.0
  %v1227 = vadd.f32 %v944, %v1226
  %1228 = vadd.xlane.f32.xlu0 %v1227
  %v1229 = vpop.xlane.xlu0 %1228
  %v1230 = vsel %vm276, %v947, 0.0
  %v1231 = vadd.f32 %v946, %v1230
  %1232 = vadd.xlane.f32.xlu0 %v1231
  %v1233 = vpop.xlane.xlu0 %1232
  %v1234 = vsel %vm276, %v949, 0.0
  %v1235 = vadd.f32 %v948, %v1234
  %1236 = vadd.xlane.f32.xlu0 %v1235
  %v1237 = vpop.xlane.xlu0 %1236
  %v1238 = vsel %vm276, %v951, 0.0
  %v1239 = vadd.f32 %v950, %v1238
  %1240 = vadd.xlane.f32.xlu0 %v1239
  %v1241 = vpop.xlane.xlu0 %1240
  %v1242 = vsel %vm276, %v953, 0.0
  %v1243 = vadd.f32 %v952, %v1242
  %1244 = vadd.xlane.f32.xlu0 %v1243
  %v1245 = vpop.xlane.xlu0 %1244
  %v1246 = vsel %vm276, %v955, 0.0
  %v1247 = vadd.f32 %v954, %v1246
  %1248 = vadd.xlane.f32.xlu0 %v1247
  %v1249 = vpop.xlane.xlu0 %1248
  %v1250 = vsel %vm276, %v957, 0.0
  %v1251 = vadd.f32 %v956, %v1250
  %1252 = vadd.xlane.f32.xlu0 %v1251
  %v1253 = vpop.xlane.xlu0 %1252
  %v1254 = vsel %vm276, %v959, 0.0
  %v1255 = vadd.f32 %v958, %v1254
  %1256 = vadd.xlane.f32.xlu0 %v1255
  %v1257 = vpop.xlane.xlu0 %1256
  %v1258 = vsel %vm276, %v961, 0.0
  %v1259 = vadd.f32 %v960, %v1258
  %1260 = vadd.xlane.f32.xlu0 %v1259
  %v1261 = vpop.xlane.xlu0 %1260
  %v1262 = vsel %vm276, %v963, 0.0
  %v1263 = vadd.f32 %v962, %v1262
  %1264 = vadd.xlane.f32.xlu0 %v1263
  %v1265 = vpop.xlane.xlu0 %1264
  %v1266 = vsel %vm276, %v965, 0.0
  %v1267 = vadd.f32 %v964, %v1266
  %1268 = vadd.xlane.f32.xlu0 %v1267
  %v1269 = vpop.xlane.xlu0 %1268
  %v1270 = vsel %vm276, %v967, 0.0
  %v1271 = vadd.f32 %v966, %v1270
  %1272 = vadd.xlane.f32.xlu0 %v1271
  %v1273 = vpop.xlane.xlu0 %1272
  %v1274 = vsel %vm276, %v969, 0.0
  %v1275 = vadd.f32 %v968, %v1274
  %1276 = vadd.xlane.f32.xlu0 %v1275
  %v1277 = vpop.xlane.xlu0 %1276
  %v1278 = vsel %vm276, %v971, 0.0
  %v1279 = vadd.f32 %v970, %v1278
  %1280 = vadd.xlane.f32.xlu0 %v1279
  %v1281 = vpop.xlane.xlu0 %1280
  %v1282 = vsel %vm276, %v973, 0.0
  %v1283 = vadd.f32 %v972, %v1282
  %1284 = vadd.xlane.f32.xlu0 %v1283
  %v1285 = vpop.xlane.xlu0 %1284
  %v1286 = vsel %vm276, %v975, 0.0
  %v1287 = vadd.f32 %v974, %v1286
  %1288 = vadd.xlane.f32.xlu0 %v1287
  %v1289 = vpop.xlane.xlu0 %1288
  %v1290 = vsel %vm276, %v977, 0.0
  %v1291 = vadd.f32 %v976, %v1290
  %1292 = vadd.xlane.f32.xlu0 %v1291
  %v1293 = vpop.xlane.xlu0 %1292
  %v1294 = vsel %vm276, %v979, 0.0
  %v1295 = vadd.f32 %v978, %v1294
  %1296 = vadd.xlane.f32.xlu0 %v1295
  %v1297 = vpop.xlane.xlu0 %1296
  %v1298 = vsel %vm276, %v981, 0.0
  %v1299 = vadd.f32 %v980, %v1298
  %1300 = vadd.xlane.f32.xlu0 %v1299
  %v1301 = vpop.xlane.xlu0 %1300
  %v1302 = vsel %vm276, %v983, 0.0
  %v1303 = vadd.f32 %v982, %v1302
  %1304 = vadd.xlane.f32.xlu0 %v1303
  %v1305 = vpop.xlane.xlu0 %1304
  %v1306 = vsel %vm276, %v985, 0.0
  %v1307 = vadd.f32 %v984, %v1306
  %1308 = vadd.xlane.f32.xlu0 %v1307
  %v1309 = vpop.xlane.xlu0 %1308
  %v1310 = vsel %vm276, %v987, 0.0
  %v1311 = vadd.f32 %v986, %v1310
  %1312 = vadd.xlane.f32.xlu0 %v1311
  %v1313 = vpop.xlane.xlu0 %1312
  %v1314 = vsel %vm276, %v989, 0.0
  %v1315 = vadd.f32 %v988, %v1314
  %1316 = vadd.xlane.f32.xlu0 %v1315
  %v1317 = vpop.xlane.xlu0 %1316
  %v1318 = vsel %vm276, %v991, 0.0
  %v1319 = vadd.f32 %v990, %v1318
  %1320 = vadd.xlane.f32.xlu0 %v1319
  %v1321 = vpop.xlane.xlu0 %1320
  %v1322 = vsel %vm276, %v993, 0.0
  %v1323 = vadd.f32 %v992, %v1322
  %1324 = vadd.xlane.f32.xlu0 %v1323
  %v1325 = vpop.xlane.xlu0 %1324
  %v1326 = vsel %vm276, %v995, 0.0
  %v1327 = vadd.f32 %v994, %v1326
  %1328 = vadd.xlane.f32.xlu0 %v1327
  %v1329 = vpop.xlane.xlu0 %1328
  %v1330 = vsel %vm276, %v997, 0.0
  %v1331 = vadd.f32 %v996, %v1330
  %1332 = vadd.xlane.f32.xlu0 %v1331
  %v1333 = vpop.xlane.xlu0 %1332
  %v1334 = vsel %vm276, %v999, 0.0
  %v1335 = vadd.f32 %v998, %v1334
  %1336 = vadd.xlane.f32.xlu0 %v1335
  %v1337 = vpop.xlane.xlu0 %1336
  %v1338 = vsel %vm276, %v1001, 0.0
  %v1339 = vadd.f32 %v1000, %v1338
  %1340 = vadd.xlane.f32.xlu0 %v1339
  %v1341 = vpop.xlane.xlu0 %1340
  %v1342 = vsel %vm276, %v1003, 0.0
  %v1343 = vadd.f32 %v1002, %v1342
  %1344 = vadd.xlane.f32.xlu0 %v1343
  %v1345 = vpop.xlane.xlu0 %1344
  %v1346 = vsel %vm276, %v1005, 0.0
  %v1347 = vadd.f32 %v1004, %v1346
  %1348 = vadd.xlane.f32.xlu0 %v1347
  %v1349 = vpop.xlane.xlu0 %1348
  %v1350 = vsel %vm276, %v1007, 0.0
  %v1351 = vadd.f32 %v1006, %v1350
  %1352 = vadd.xlane.f32.xlu0 %v1351
  %v1353 = vpop.xlane.xlu0 %1352
  %v1354 = vsel %vm276, %v1009, 0.0
  %v1355 = vadd.f32 %v1008, %v1354
  %1356 = vadd.xlane.f32.xlu0 %v1355
  %v1357 = vpop.xlane.xlu0 %1356
  %v1358 = vsel %vm276, %v1011, 0.0
  %v1359 = vadd.f32 %v1010, %v1358
  %1360 = vadd.xlane.f32.xlu0 %v1359
  %v1361 = vpop.xlane.xlu0 %1360
  %v1362 = vsel %vm276, %v1013, 0.0
  %v1363 = vadd.f32 %v1012, %v1362
  %1364 = vadd.xlane.f32.xlu0 %v1363
  %v1365 = vpop.xlane.xlu0 %1364
  %v1366 = vsel %vm276, %v1015, 0.0
  %v1367 = vadd.f32 %v1014, %v1366
  %1368 = vadd.xlane.f32.xlu0 %v1367
  %v1369 = vpop.xlane.xlu0 %1368
  %v1370 = vsel %vm276, %v1017, 0.0
  %v1371 = vadd.f32 %v1016, %v1370
  %1372 = vadd.xlane.f32.xlu0 %v1371
  %v1373 = vpop.xlane.xlu0 %1372
  %v1374 = vsel %vm276, %v1019, 0.0
  %v1375 = vadd.f32 %v1018, %v1374
  %1376 = vadd.xlane.f32.xlu0 %v1375
  %v1377 = vpop.xlane.xlu0 %1376
  %v1378 = vsel %vm276, %v1021, 0.0
  %v1379 = vadd.f32 %v1020, %v1378
  %1380 = vadd.xlane.f32.xlu0 %v1379
  %v1381 = vpop.xlane.xlu0 %1380
  %v1382 = vsel %vm276, %v1023, 0.0
  %v1383 = vadd.f32 %v1022, %v1382
  %1384 = vadd.xlane.f32.xlu0 %v1383
  %v1385 = vpop.xlane.xlu0 %1384
  %v1386 = vsel %vm276, %v1025, 0.0
  %v1387 = vadd.f32 %v1024, %v1386
  %1388 = vadd.xlane.f32.xlu0 %v1387
  %v1389 = vpop.xlane.xlu0 %1388
  %v1390 = vsel %vm276, %v1027, 0.0
  %v1391 = vadd.f32 %v1026, %v1390
  %1392 = vadd.xlane.f32.xlu0 %v1391
  %v1393 = vpop.xlane.xlu0 %1392
  %v1394 = vsel %vm276, %v1029, 0.0
  %v1395 = vadd.f32 %v1028, %v1394
  %1396 = vadd.xlane.f32.xlu0 %v1395
  %v1397 = vpop.xlane.xlu0 %1396
  %v1398 = vsel %vm276, %v1031, 0.0
  %v1399 = vadd.f32 %v1030, %v1398
  %1400 = vadd.xlane.f32.xlu0 %v1399
  %v1401 = vpop.xlane.xlu0 %1400
  %v1402 = vsel %vm276, %v1033, 0.0
  %v1403 = vadd.f32 %v1032, %v1402
  %1404 = vadd.xlane.f32.xlu0 %v1403
  %v1405 = vpop.xlane.xlu0 %1404
  %v1406 = vsel %vm276, %v1035, 0.0
  %v1407 = vadd.f32 %v1034, %v1406
  %1408 = vadd.xlane.f32.xlu0 %v1407
  %v1409 = vpop.xlane.xlu0 %1408
  %v1410 = vsel %vm276, %v1037, 0.0
  %v1411 = vadd.f32 %v1036, %v1410
  %1412 = vadd.xlane.f32.xlu0 %v1411
  %v1413 = vpop.xlane.xlu0 %1412
  %v1414 = vsel %vm276, %v1039, 0.0
  %v1415 = vadd.f32 %v1038, %v1414
  %1416 = vadd.xlane.f32.xlu0 %v1415
  %v1417 = vpop.xlane.xlu0 %1416
  %v1418 = vsel %vm276, %v1041, 0.0
  %v1419 = vadd.f32 %v1040, %v1418
  %1420 = vadd.xlane.f32.xlu0 %v1419
  %v1421 = vpop.xlane.xlu0 %1420
  %v1422 = vsel %vm276, %v1043, 0.0
  %v1423 = vadd.f32 %v1042, %v1422
  %1424 = vadd.xlane.f32.xlu0 %v1423
  %v1425 = vpop.xlane.xlu0 %1424
  %v1426 = vsel %vm276, %v1045, 0.0
  %v1427 = vadd.f32 %v1044, %v1426
  %1428 = vadd.xlane.f32.xlu0 %v1427
  %v1429 = vpop.xlane.xlu0 %1428
  %v1430 = vsel %vm276, %v1047, 0.0
  %v1431 = vadd.f32 %v1046, %v1430
  %1432 = vadd.xlane.f32.xlu0 %v1431
  %v1433 = vpop.xlane.xlu0 %1432
  %v1434 = vsel %vm276, %v1049, 0.0
  %v1435 = vadd.f32 %v1048, %v1434
  %1436 = vadd.xlane.f32.xlu0 %v1435
  %v1437 = vpop.xlane.xlu0 %1436
  %v1438 = vsel %vm276, %v1051, 0.0
  %v1439 = vadd.f32 %v1050, %v1438
  %1440 = vadd.xlane.f32.xlu0 %v1439
  %v1441 = vpop.xlane.xlu0 %1440
  %v1442 = vsel %vm276, %v1053, 0.0
  %v1443 = vadd.f32 %v1052, %v1442
  %1444 = vadd.xlane.f32.xlu0 %v1443
  %v1445 = vpop.xlane.xlu0 %1444
  %v1446 = vsel %vm276, %v1055, 0.0
  %v1447 = vadd.f32 %v1054, %v1446
  %1448 = vadd.xlane.f32.xlu0 %v1447
  %v1449 = vpop.xlane.xlu0 %1448
  %v1450 = vsel %vm276, %v1057, 0.0
  %v1451 = vadd.f32 %v1056, %v1450
  %1452 = vadd.xlane.f32.xlu0 %v1451
  %v1453 = vpop.xlane.xlu0 %1452
  %v1454 = vsel %vm276, %v1059, 0.0
  %v1455 = vadd.f32 %v1058, %v1454
  %1456 = vadd.xlane.f32.xlu0 %v1455
  %v1457 = vpop.xlane.xlu0 %1456
  %v1458 = vsel %vm276, %v1061, 0.0
  %v1459 = vadd.f32 %v1060, %v1458
  %1460 = vadd.xlane.f32.xlu0 %v1459
  %v1461 = vpop.xlane.xlu0 %1460
  %v1462 = vsel %vm276, %v1063, 0.0
  %v1463 = vadd.f32 %v1062, %v1462
  %1464 = vadd.xlane.f32.xlu0 %v1463
  %v1465 = vpop.xlane.xlu0 %1464
  %v1466 = vsel %vm276, %v1065, 0.0
  %v1467 = vadd.f32 %v1064, %v1466
  %1468 = vadd.xlane.f32.xlu0 %v1467
  %v1469 = vpop.xlane.xlu0 %1468
  %v1470 = vsel %vm276, %v1067, 0.0
  %v1471 = vadd.f32 %v1066, %v1470
  %1472 = vadd.xlane.f32.xlu0 %v1471
  %v1473 = vpop.xlane.xlu0 %1472
  %v1474 = vsel %vm276, %v1069, 0.0
  %v1475 = vadd.f32 %v1068, %v1474
  %1476 = vadd.xlane.f32.xlu0 %v1475
  %v1477 = vpop.xlane.xlu0 %1476
  %v1478 = vsel %vm276, %v1071, 0.0
  %v1479 = vadd.f32 %v1070, %v1478
  %1480 = vadd.xlane.f32.xlu0 %v1479
  %v1481 = vpop.xlane.xlu0 %1480
  %v1482 = vsel %vm276, %v1073, 0.0
  %v1483 = vadd.f32 %v1072, %v1482
  %1484 = vadd.xlane.f32.xlu0 %v1483
  %v1485 = vpop.xlane.xlu0 %1484
  %v1486 = vsel %vm276, %v1075, 0.0
  %v1487 = vadd.f32 %v1074, %v1486
  %1488 = vadd.xlane.f32.xlu0 %v1487
  %v1489 = vpop.xlane.xlu0 %1488
  %v1490 = vsel %vm276, %v1077, 0.0
  %v1491 = vadd.f32 %v1076, %v1490
  %1492 = vadd.xlane.f32.xlu0 %v1491
  %v1493 = vpop.xlane.xlu0 %1492
  %v1494 = vsel %vm276, %v1079, 0.0
  %v1495 = vadd.f32 %v1078, %v1494
  %1496 = vadd.xlane.f32.xlu0 %v1495
  %v1497 = vpop.xlane.xlu0 %1496
  %v1498 = vsel %vm276, %v1081, 0.0
  %v1499 = vadd.f32 %v1080, %v1498
  %1500 = vadd.xlane.f32.xlu0 %v1499
  %v1501 = vpop.xlane.xlu0 %1500
  %v1502 = vsel %vm276, %v1083, 0.0
  %v1503 = vadd.f32 %v1082, %v1502
  %1504 = vadd.xlane.f32.xlu0 %v1503
  %v1505 = vpop.xlane.xlu0 %1504
  %v1506 = vsel %vm276, %v1085, 0.0
  %v1507 = vadd.f32 %v1084, %v1506
  %1508 = vadd.xlane.f32.xlu0 %v1507
  %v1509 = vpop.xlane.xlu0 %1508
  %v1510 = vsel %vm276, %v1087, 0.0
  %v1511 = vadd.f32 %v1086, %v1510
  %1512 = vadd.xlane.f32.xlu0 %v1511
  %v1513 = vpop.xlane.xlu0 %1512
  %v1514 = vsel %vm276, %v1089, 0.0
  %v1515 = vadd.f32 %v1088, %v1514
  %1516 = vadd.xlane.f32.xlu0 %v1515
  %v1517 = vpop.xlane.xlu0 %1516
  %v1518 = vsel %vm276, %v1091, 0.0
  %v1519 = vadd.f32 %v1090, %v1518
  %1520 = vadd.xlane.f32.xlu0 %v1519
  %v1521 = vpop.xlane.xlu0 %1520
  %v1522 = vsel %vm276, %v1093, 0.0
  %v1523 = vadd.f32 %v1092, %v1522
  %1524 = vadd.xlane.f32.xlu0 %v1523
  %v1525 = vpop.xlane.xlu0 %1524
  %v1526 = vsel %vm276, %v1095, 0.0
  %v1527 = vadd.f32 %v1094, %v1526
  %1528 = vadd.xlane.f32.xlu0 %v1527
  %v1529 = vpop.xlane.xlu0 %1528
  %v1530 = vsel %vm276, %v1097, 0.0
  %v1531 = vadd.f32 %v1096, %v1530
  %1532 = vadd.xlane.f32.xlu0 %v1531
  %v1533 = vpop.xlane.xlu0 %1532
  %v1534 = vsel %vm276, %v1099, 0.0
  %v1535 = vadd.f32 %v1098, %v1534
  %1536 = vadd.xlane.f32.xlu0 %v1535
  %v1537 = vpop.xlane.xlu0 %1536
  %v1538 = vsel %vm276, %v1101, 0.0
  %v1539 = vadd.f32 %v1100, %v1538
  %1540 = vadd.xlane.f32.xlu0 %v1539
  %v1541 = vpop.xlane.xlu0 %1540
  %v1542 = vsel %vm276, %v1103, 0.0
  %v1543 = vadd.f32 %v1102, %v1542
  %1544 = vadd.xlane.f32.xlu0 %v1543
  %v1545 = vpop.xlane.xlu0 %1544
  %v1546 = vsel %vm276, %v1105, 0.0
  %v1547 = vadd.f32 %v1104, %v1546
  %1548 = vadd.xlane.f32.xlu0 %v1547
  %v1549 = vpop.xlane.xlu0 %1548
  %v1550 = vsel %vm276, %v1107, 0.0
  %v1551 = vadd.f32 %v1106, %v1550
  %1552 = vadd.xlane.f32.xlu0 %v1551
  %v1553 = vpop.xlane.xlu0 %1552
  %v1554 = vsel %vm276, %v1109, 0.0
  %v1555 = vadd.f32 %v1108, %v1554
  %1556 = vadd.xlane.f32.xlu0 %v1555
  %v1557 = vpop.xlane.xlu0 %1556
  %v1558 = vsel %vm276, %v1111, 0.0
  %v1559 = vadd.f32 %v1110, %v1558
  %1560 = vadd.xlane.f32.xlu0 %v1559
  %v1561 = vpop.xlane.xlu0 %1560
  %v1562 = vsel %vm276, %v1113, 0.0
  %v1563 = vadd.f32 %v1112, %v1562
  %1564 = vadd.xlane.f32.xlu0 %v1563
  %v1565 = vpop.xlane.xlu0 %1564
  %v1566 = vsel %vm276, %v1115, 0.0
  %v1567 = vadd.f32 %v1114, %v1566
  %1568 = vadd.xlane.f32.xlu0 %v1567
  %v1569 = vpop.xlane.xlu0 %1568
  %v1570 = vsel %vm276, %v1117, 0.0
  %v1571 = vadd.f32 %v1116, %v1570
  %1572 = vadd.xlane.f32.xlu0 %v1571
  %v1573 = vpop.xlane.xlu0 %1572
  %v1574 = vsel %vm276, %v1119, 0.0
  %v1575 = vadd.f32 %v1118, %v1574
  %1576 = vadd.xlane.f32.xlu0 %v1575
  %v1577 = vpop.xlane.xlu0 %1576
  %v1578 = vsel %vm276, %v1121, 0.0
  %v1579 = vadd.f32 %v1120, %v1578
  %1580 = vadd.xlane.f32.xlu0 %v1579
  %v1581 = vpop.xlane.xlu0 %1580
  %v1582 = vsel %vm276, %v1123, 0.0
  %v1583 = vadd.f32 %v1122, %v1582
  %1584 = vadd.xlane.f32.xlu0 %v1583
  %v1585 = vpop.xlane.xlu0 %1584
  %v1586 = vsel %vm276, %v1125, 0.0
  %v1587 = vadd.f32 %v1124, %v1586
  %1588 = vadd.xlane.f32.xlu0 %v1587
  %v1589 = vpop.xlane.xlu0 %1588
  %v1590 = vsel %vm276, %v1127, 0.0
  %v1591 = vadd.f32 %v1126, %v1590
  %1592 = vadd.xlane.f32.xlu0 %v1591
  %v1593 = vpop.xlane.xlu0 %1592
  %v1594 = vsel %vm276, %v1129, 0.0
  %v1595 = vadd.f32 %v1128, %v1594
  %1596 = vadd.xlane.f32.xlu0 %v1595
  %v1597 = vpop.xlane.xlu0 %1596
  %v1598 = vsel %vm276, %v1131, 0.0
  %v1599 = vadd.f32 %v1130, %v1598
  %1600 = vadd.xlane.f32.xlu0 %v1599
  %v1601 = vpop.xlane.xlu0 %1600
  %v1602 = vsel %vm276, %v1133, 0.0
  %v1603 = vadd.f32 %v1132, %v1602
  %1604 = vadd.xlane.f32.xlu0 %v1603
  %v1605 = vpop.xlane.xlu0 %1604
  %v1606 = vsel %vm276, %v1135, 0.0
  %v1607 = vadd.f32 %v1134, %v1606
  %1608 = vadd.xlane.f32.xlu0 %v1607
  %v1609 = vpop.xlane.xlu0 %1608
  %v1610 = vsel %vm276, %v1137, 0.0
  %v1611 = vadd.f32 %v1136, %v1610
  %1612 = vadd.xlane.f32.xlu0 %v1611
  %v1613 = vpop.xlane.xlu0 %1612
  %v1614 = vsel %vm276, %v1139, 0.0
  %v1615 = vadd.f32 %v1138, %v1614
  %1616 = vadd.xlane.f32.xlu0 %v1615
  %v1617 = vpop.xlane.xlu0 %1616
  %v1618 = vsel %vm276, %v1141, 0.0
  %v1619 = vadd.f32 %v1140, %v1618
  %1620 = vadd.xlane.f32.xlu0 %v1619
  %v1621 = vpop.xlane.xlu0 %1620
  %v1622 = vsel %vm276, %v1143, 0.0
  %v1623 = vadd.f32 %v1142, %v1622
  %1624 = vadd.xlane.f32.xlu0 %v1623
  %v1625 = vpop.xlane.xlu0 %1624
  %v1626 = vsel %vm276, %v1145, 0.0
  %v1627 = vadd.f32 %v1144, %v1626
  %1628 = vadd.xlane.f32.xlu0 %v1627
  %v1629 = vpop.xlane.xlu0 %1628
  %v1630 = vsel %vm276, %v1147, 0.0
  %v1631 = vadd.f32 %v1146, %v1630
  %1632 = vadd.xlane.f32.xlu0 %v1631
  %v1633 = vpop.xlane.xlu0 %1632
  %v1634 = vsel %vm276, %v1149, 0.0
  %v1635 = vadd.f32 %v1148, %v1634
  %1636 = vadd.xlane.f32.xlu0 %v1635
  %v1637 = vpop.xlane.xlu0 %1636
  %v1638 = vsel %vm276, %v1151, 0.0
  %v1639 = vadd.f32 %v1150, %v1638
  %1640 = vadd.xlane.f32.xlu0 %v1639
  %v1641 = vpop.xlane.xlu0 %1640
  %v1642 = vsel %vm276, %v1153, 0.0
  %v1643 = vadd.f32 %v1152, %v1642
  %1644 = vadd.xlane.f32.xlu0 %v1643
  %v1645 = vpop.xlane.xlu0 %1644
  %v1646 = vsel %vm276, %v1155, 0.0
  %v1647 = vadd.f32 %v1154, %v1646
  %1648 = vadd.xlane.f32.xlu0 %v1647
  %v1649 = vpop.xlane.xlu0 %1648
  %v1650 = vsel %vm276, %v1157, 0.0
  %v1651 = vadd.f32 %v1156, %v1650
  %1652 = vadd.xlane.f32.xlu0 %v1651
  %v1653 = vpop.xlane.xlu0 %1652
  %v1654 = vsel %vm276, %v1159, 0.0
  %v1655 = vadd.f32 %v1158, %v1654
  %1656 = vadd.xlane.f32.xlu0 %v1655
  %v1657 = vpop.xlane.xlu0 %1656
  %v1658 = vsel %vm276, %v1161, 0.0
  %v1659 = vadd.f32 %v1160, %v1658
  %1660 = vadd.xlane.f32.xlu0 %v1659
  %v1661 = vpop.xlane.xlu0 %1660
  %v1662 = vsel %vm276, %v1163, 0.0
  %v1663 = vadd.f32 %v1162, %v1662
  %1664 = vadd.xlane.f32.xlu0 %v1663
  %v1665 = vpop.xlane.xlu0 %1664
  %v1666 = vsel %vm276, %v1165, 0.0
  %v1667 = vadd.f32 %v1164, %v1666
  %1668 = vadd.xlane.f32.xlu0 %v1667
  %v1669 = vpop.xlane.xlu0 %1668
  %v1670 = vsel %vm276, %v1167, 0.0
  %v1671 = vadd.f32 %v1166, %v1670
  %1672 = vadd.xlane.f32.xlu0 %v1671
  %v1673 = vpop.xlane.xlu0 %1672
  %v1674 = vsel %vm276, %v1169, 0.0
  %v1675 = vadd.f32 %v1168, %v1674
  %1676 = vadd.xlane.f32.xlu0 %v1675
  %v1677 = vpop.xlane.xlu0 %1676
  %v1678 = vsel %vm276, %v1171, 0.0
  %v1679 = vadd.f32 %v1170, %v1678
  %1680 = vadd.xlane.f32.xlu0 %v1679
  %v1681 = vpop.xlane.xlu0 %1680
  %v1682 = vsel %vm276, %v1173, 0.0
  %v1683 = vadd.f32 %v1172, %v1682
  %1684 = vadd.xlane.f32.xlu0 %v1683
  %v1685 = vpop.xlane.xlu0 %1684
  %v1686 = vmul.f32 %v1177, %v789
  %v1687 = vmul.f32 %v1181, %v789
  %v1688 = vmul.f32 %v1185, %v789
  %v1689 = vmul.f32 %v1189, %v789
  %v1690 = vmul.f32 %v1193, %v789
  %v1691 = vmul.f32 %v1197, %v789
  %v1692 = vmul.f32 %v1201, %v789
  %v1693 = vmul.f32 %v1205, %v789
  %v1694 = vmul.f32 %v1209, %v789
  %v1695 = vmul.f32 %v1213, %v789
  %v1696 = vmul.f32 %v1217, %v789
  %v1697 = vmul.f32 %v1221, %v789
  %v1698 = vmul.f32 %v1225, %v789
  %v1699 = vmul.f32 %v1229, %v789
  %v1700 = vmul.f32 %v1233, %v789
  %v1701 = vmul.f32 %v1237, %v789
  %v1702 = vmul.f32 %v1241, %v789
  %v1703 = vmul.f32 %v1245, %v789
  %v1704 = vmul.f32 %v1249, %v789
  %v1705 = vmul.f32 %v1253, %v789
  %v1706 = vmul.f32 %v1257, %v789
  %v1707 = vmul.f32 %v1261, %v789
  %v1708 = vmul.f32 %v1265, %v789
  %v1709 = vmul.f32 %v1269, %v789
  %v1710 = vmul.f32 %v1273, %v789
  %v1711 = vmul.f32 %v1277, %v789
  %v1712 = vmul.f32 %v1281, %v789
  %v1713 = vmul.f32 %v1285, %v789
  %v1714 = vmul.f32 %v1289, %v789
  %v1715 = vmul.f32 %v1293, %v789
  %v1716 = vmul.f32 %v1297, %v789
  %v1717 = vmul.f32 %v1301, %v789
  %v1718 = vmul.f32 %v1305, %v789
  %v1719 = vmul.f32 %v1309, %v789
  %v1720 = vmul.f32 %v1313, %v789
  %v1721 = vmul.f32 %v1317, %v789
  %v1722 = vmul.f32 %v1321, %v789
  %v1723 = vmul.f32 %v1325, %v789
  %v1724 = vmul.f32 %v1329, %v789
  %v1725 = vmul.f32 %v1333, %v789
  %v1726 = vmul.f32 %v1337, %v789
  %v1727 = vmul.f32 %v1341, %v789
  %v1728 = vmul.f32 %v1345, %v789
  %v1729 = vmul.f32 %v1349, %v789
  %v1730 = vmul.f32 %v1353, %v789
  %v1731 = vmul.f32 %v1357, %v789
  %v1732 = vmul.f32 %v1361, %v789
  %v1733 = vmul.f32 %v1365, %v789
  %v1734 = vmul.f32 %v1369, %v789
  %v1735 = vmul.f32 %v1373, %v789
  %v1736 = vmul.f32 %v1377, %v789
  %v1737 = vmul.f32 %v1381, %v789
  %v1738 = vmul.f32 %v1385, %v789
  %v1739 = vmul.f32 %v1389, %v789
  %v1740 = vmul.f32 %v1393, %v789
  %v1741 = vmul.f32 %v1397, %v789
  %v1742 = vmul.f32 %v1401, %v789
  %v1743 = vmul.f32 %v1405, %v789
  %v1744 = vmul.f32 %v1409, %v789
  %v1745 = vmul.f32 %v1413, %v789
  %v1746 = vmul.f32 %v1417, %v789
  %v1747 = vmul.f32 %v1421, %v789
  %v1748 = vmul.f32 %v1425, %v789
  %v1749 = vmul.f32 %v1429, %v789
  %v1750 = vmul.f32 %v1433, %v789
  %v1751 = vmul.f32 %v1437, %v789
  %v1752 = vmul.f32 %v1441, %v789
  %v1753 = vmul.f32 %v1445, %v789
  %v1754 = vmul.f32 %v1449, %v789
  %v1755 = vmul.f32 %v1453, %v789
  %v1756 = vmul.f32 %v1457, %v789
  %v1757 = vmul.f32 %v1461, %v789
  %v1758 = vmul.f32 %v1465, %v789
  %v1759 = vmul.f32 %v1469, %v789
  %v1760 = vmul.f32 %v1473, %v789
  %v1761 = vmul.f32 %v1477, %v789
  %v1762 = vmul.f32 %v1481, %v789
  %v1763 = vmul.f32 %v1485, %v789
  %v1764 = vmul.f32 %v1489, %v789
  %v1765 = vmul.f32 %v1493, %v789
  %v1766 = vmul.f32 %v1497, %v789
  %v1767 = vmul.f32 %v1501, %v789
  %v1768 = vmul.f32 %v1505, %v789
  %v1769 = vmul.f32 %v1509, %v789
  %v1770 = vmul.f32 %v1513, %v789
  %v1771 = vmul.f32 %v1517, %v789
  %v1772 = vmul.f32 %v1521, %v789
  %v1773 = vmul.f32 %v1525, %v789
  %v1774 = vmul.f32 %v1529, %v789
  %v1775 = vmul.f32 %v1533, %v789
  %v1776 = vmul.f32 %v1537, %v789
  %v1777 = vmul.f32 %v1541, %v789
  %v1778 = vmul.f32 %v1545, %v789
  %v1779 = vmul.f32 %v1549, %v789
  %v1780 = vmul.f32 %v1553, %v789
  %v1781 = vmul.f32 %v1557, %v789
  %v1782 = vmul.f32 %v1561, %v789
  %v1783 = vmul.f32 %v1565, %v789
  %v1784 = vmul.f32 %v1569, %v789
  %v1785 = vmul.f32 %v1573, %v789
  %v1786 = vmul.f32 %v1577, %v789
  %v1787 = vmul.f32 %v1581, %v789
  %v1788 = vmul.f32 %v1585, %v789
  %v1789 = vmul.f32 %v1589, %v789
  %v1790 = vmul.f32 %v1593, %v789
  %v1791 = vmul.f32 %v1597, %v789
  %v1792 = vmul.f32 %v1601, %v789
  %v1793 = vmul.f32 %v1605, %v789
  %v1794 = vmul.f32 %v1609, %v789
  %v1795 = vmul.f32 %v1613, %v789
  %v1796 = vmul.f32 %v1617, %v789
  %v1797 = vmul.f32 %v1621, %v789
  %v1798 = vmul.f32 %v1625, %v789
  %v1799 = vmul.f32 %v1629, %v789
  %v1800 = vmul.f32 %v1633, %v789
  %v1801 = vmul.f32 %v1637, %v789
  %v1802 = vmul.f32 %v1641, %v789
  %v1803 = vmul.f32 %v1645, %v789
  %v1804 = vmul.f32 %v1649, %v789
  %v1805 = vmul.f32 %v1653, %v789
  %v1806 = vmul.f32 %v1657, %v789
  %v1807 = vmul.f32 %v1661, %v789
  %v1808 = vmul.f32 %v1665, %v789
  %v1809 = vmul.f32 %v1669, %v789
  %v1810 = vmul.f32 %v1673, %v789
  %v1811 = vmul.f32 %v1677, %v789
  %v1812 = vmul.f32 %v1681, %v789
  %v1813 = vmul.f32 %v1685, %v789
  %v1814 = vmul.f32 %v790, %v790
  %v1815 = vmul.f32 %v791, %v791
  %v1816 = vmul.f32 %v792, %v792
  %v1817 = vmul.f32 %v793, %v793
  %v1818 = vmul.f32 %v794, %v794
  %v1819 = vmul.f32 %v795, %v795
  %v1820 = vmul.f32 %v796, %v796
  %v1821 = vmul.f32 %v797, %v797
  %v1822 = vmul.f32 %v798, %v798
  %v1823 = vmul.f32 %v799, %v799
  %v1824 = vmul.f32 %v800, %v800
  %v1825 = vmul.f32 %v801, %v801
  %v1826 = vmul.f32 %v802, %v802
  %v1827 = vmul.f32 %v803, %v803
  %v1828 = vmul.f32 %v804, %v804
  %v1829 = vmul.f32 %v805, %v805
  %v1830 = vmul.f32 %v806, %v806
  %v1831 = vmul.f32 %v807, %v807
  %v1832 = vmul.f32 %v808, %v808
  %v1833 = vmul.f32 %v809, %v809
  %v1834 = vmul.f32 %v810, %v810
  %v1835 = vmul.f32 %v811, %v811
  %v1836 = vmul.f32 %v812, %v812
  %v1837 = vmul.f32 %v813, %v813
  %v1838 = vmul.f32 %v814, %v814
  %v1839 = vmul.f32 %v815, %v815
  %v1840 = vmul.f32 %v816, %v816
  %v1841 = vmul.f32 %v817, %v817
  %v1842 = vmul.f32 %v818, %v818
  %v1843 = vmul.f32 %v819, %v819
  %v1844 = vmul.f32 %v820, %v820
  %v1845 = vmul.f32 %v821, %v821
  %v1846 = vmul.f32 %v822, %v822
  %v1847 = vmul.f32 %v823, %v823
  %v1848 = vmul.f32 %v824, %v824
  %v1849 = vmul.f32 %v825, %v825
  %v1850 = vmul.f32 %v826, %v826
  %v1851 = vmul.f32 %v827, %v827
  %v1852 = vmul.f32 %v828, %v828
  %v1853 = vmul.f32 %v829, %v829
  %v1854 = vmul.f32 %v830, %v830
  %v1855 = vmul.f32 %v831, %v831
  %v1856 = vmul.f32 %v832, %v832
  %v1857 = vmul.f32 %v833, %v833
  %v1858 = vmul.f32 %v834, %v834
  %v1859 = vmul.f32 %v835, %v835
  %v1860 = vmul.f32 %v836, %v836
  %v1861 = vmul.f32 %v837, %v837
  %v1862 = vmul.f32 %v838, %v838
  %v1863 = vmul.f32 %v839, %v839
  %v1864 = vmul.f32 %v840, %v840
  %v1865 = vmul.f32 %v841, %v841
  %v1866 = vmul.f32 %v842, %v842
  %v1867 = vmul.f32 %v843, %v843
  %v1868 = vmul.f32 %v844, %v844
  %v1869 = vmul.f32 %v845, %v845
  %v1870 = vmul.f32 %v846, %v846
  %v1871 = vmul.f32 %v847, %v847
  %v1872 = vmul.f32 %v848, %v848
  %v1873 = vmul.f32 %v849, %v849
  %v1874 = vmul.f32 %v850, %v850
  %v1875 = vmul.f32 %v851, %v851
  %v1876 = vmul.f32 %v852, %v852
  %v1877 = vmul.f32 %v853, %v853
  %v1878 = vmul.f32 %v854, %v854
  %v1879 = vmul.f32 %v855, %v855
  %v1880 = vmul.f32 %v856, %v856
  %v1881 = vmul.f32 %v857, %v857
  %v1882 = vmul.f32 %v858, %v858
  %v1883 = vmul.f32 %v859, %v859
  %v1884 = vmul.f32 %v860, %v860
  %v1885 = vmul.f32 %v861, %v861
  %v1886 = vmul.f32 %v862, %v862
  %v1887 = vmul.f32 %v863, %v863
  %v1888 = vmul.f32 %v864, %v864
  %v1889 = vmul.f32 %v865, %v865
  %v1890 = vmul.f32 %v866, %v866
  %v1891 = vmul.f32 %v867, %v867
  %v1892 = vmul.f32 %v868, %v868
  %v1893 = vmul.f32 %v869, %v869
  %v1894 = vmul.f32 %v870, %v870
  %v1895 = vmul.f32 %v871, %v871
  %v1896 = vmul.f32 %v872, %v872
  %v1897 = vmul.f32 %v873, %v873
  %v1898 = vmul.f32 %v874, %v874
  %v1899 = vmul.f32 %v875, %v875
  %v1900 = vmul.f32 %v876, %v876
  %v1901 = vmul.f32 %v877, %v877
  %v1902 = vmul.f32 %v878, %v878
  %v1903 = vmul.f32 %v879, %v879
  %v1904 = vmul.f32 %v880, %v880
  %v1905 = vmul.f32 %v881, %v881
  %v1906 = vmul.f32 %v882, %v882
  %v1907 = vmul.f32 %v883, %v883
  %v1908 = vmul.f32 %v884, %v884
  %v1909 = vmul.f32 %v885, %v885
  %v1910 = vmul.f32 %v886, %v886
  %v1911 = vmul.f32 %v887, %v887
  %v1912 = vmul.f32 %v888, %v888
  %v1913 = vmul.f32 %v889, %v889
  %v1914 = vmul.f32 %v890, %v890
  %v1915 = vmul.f32 %v891, %v891
  %v1916 = vmul.f32 %v892, %v892
  %v1917 = vmul.f32 %v893, %v893
  %v1918 = vmul.f32 %v894, %v894
  %v1919 = vmul.f32 %v895, %v895
  %v1920 = vmul.f32 %v896, %v896
  %v1921 = vmul.f32 %v897, %v897
  %v1922 = vmul.f32 %v898, %v898
  %v1923 = vmul.f32 %v899, %v899
  %v1924 = vmul.f32 %v900, %v900
  %v1925 = vmul.f32 %v901, %v901
  %v1926 = vmul.f32 %v902, %v902
  %v1927 = vmul.f32 %v903, %v903
  %v1928 = vmul.f32 %v904, %v904
  %v1929 = vmul.f32 %v905, %v905
  %v1930 = vmul.f32 %v906, %v906
  %v1931 = vmul.f32 %v907, %v907
  %v1932 = vmul.f32 %v908, %v908
  %v1933 = vmul.f32 %v909, %v909
  %v1934 = vmul.f32 %v910, %v910
  %v1935 = vmul.f32 %v911, %v911
  %v1936 = vmul.f32 %v912, %v912
  %v1937 = vmul.f32 %v913, %v913
  %v1938 = vmul.f32 %v914, %v914
  %v1939 = vmul.f32 %v915, %v915
  %v1940 = vmul.f32 %v916, %v916
  %v1941 = vmul.f32 %v917, %v917
  %v1942 = vsub.f32 %v1686, %v1814
  %v1943 = vsub.f32 %v1687, %v1815
  %v1944 = vsub.f32 %v1688, %v1816
  %v1945 = vsub.f32 %v1689, %v1817
  %v1946 = vsub.f32 %v1690, %v1818
  %v1947 = vsub.f32 %v1691, %v1819
  %v1948 = vsub.f32 %v1692, %v1820
  %v1949 = vsub.f32 %v1693, %v1821
  %v1950 = vsub.f32 %v1694, %v1822
  %v1951 = vsub.f32 %v1695, %v1823
  %v1952 = vsub.f32 %v1696, %v1824
  %v1953 = vsub.f32 %v1697, %v1825
  %v1954 = vsub.f32 %v1698, %v1826
  %v1955 = vsub.f32 %v1699, %v1827
  %v1956 = vsub.f32 %v1700, %v1828
  %v1957 = vsub.f32 %v1701, %v1829
  %v1958 = vsub.f32 %v1702, %v1830
  %v1959 = vsub.f32 %v1703, %v1831
  %v1960 = vsub.f32 %v1704, %v1832
  %v1961 = vsub.f32 %v1705, %v1833
  %v1962 = vsub.f32 %v1706, %v1834
  %v1963 = vsub.f32 %v1707, %v1835
  %v1964 = vsub.f32 %v1708, %v1836
  %v1965 = vsub.f32 %v1709, %v1837
  %v1966 = vsub.f32 %v1710, %v1838
  %v1967 = vsub.f32 %v1711, %v1839
  %v1968 = vsub.f32 %v1712, %v1840
  %v1969 = vsub.f32 %v1713, %v1841
  %v1970 = vsub.f32 %v1714, %v1842
  %v1971 = vsub.f32 %v1715, %v1843
  %v1972 = vsub.f32 %v1716, %v1844
  %v1973 = vsub.f32 %v1717, %v1845
  %v1974 = vsub.f32 %v1718, %v1846
  %v1975 = vsub.f32 %v1719, %v1847
  %v1976 = vsub.f32 %v1720, %v1848
  %v1977 = vsub.f32 %v1721, %v1849
  %v1978 = vsub.f32 %v1722, %v1850
  %v1979 = vsub.f32 %v1723, %v1851
  %v1980 = vsub.f32 %v1724, %v1852
  %v1981 = vsub.f32 %v1725, %v1853
  %v1982 = vsub.f32 %v1726, %v1854
  %v1983 = vsub.f32 %v1727, %v1855
  %v1984 = vsub.f32 %v1728, %v1856
  %v1985 = vsub.f32 %v1729, %v1857
  %v1986 = vsub.f32 %v1730, %v1858
  %v1987 = vsub.f32 %v1731, %v1859
  %v1988 = vsub.f32 %v1732, %v1860
  %v1989 = vsub.f32 %v1733, %v1861
  %v1990 = vsub.f32 %v1734, %v1862
  %v1991 = vsub.f32 %v1735, %v1863
  %v1992 = vsub.f32 %v1736, %v1864
  %v1993 = vsub.f32 %v1737, %v1865
  %v1994 = vsub.f32 %v1738, %v1866
  %v1995 = vsub.f32 %v1739, %v1867
  %v1996 = vsub.f32 %v1740, %v1868
  %v1997 = vsub.f32 %v1741, %v1869
  %v1998 = vsub.f32 %v1742, %v1870
  %v1999 = vsub.f32 %v1743, %v1871
  %v2000 = vsub.f32 %v1744, %v1872
  %v2001 = vsub.f32 %v1745, %v1873
  %v2002 = vsub.f32 %v1746, %v1874
  %v2003 = vsub.f32 %v1747, %v1875
  %v2004 = vsub.f32 %v1748, %v1876
  %v2005 = vsub.f32 %v1749, %v1877
  %v2006 = vsub.f32 %v1750, %v1878
  %v2007 = vsub.f32 %v1751, %v1879
  %v2008 = vsub.f32 %v1752, %v1880
  %v2009 = vsub.f32 %v1753, %v1881
  %v2010 = vsub.f32 %v1754, %v1882
  %v2011 = vsub.f32 %v1755, %v1883
  %v2012 = vsub.f32 %v1756, %v1884
  %v2013 = vsub.f32 %v1757, %v1885
  %v2014 = vsub.f32 %v1758, %v1886
  %v2015 = vsub.f32 %v1759, %v1887
  %v2016 = vsub.f32 %v1760, %v1888
  %v2017 = vsub.f32 %v1761, %v1889
  %v2018 = vsub.f32 %v1762, %v1890
  %v2019 = vsub.f32 %v1763, %v1891
  %v2020 = vsub.f32 %v1764, %v1892
  %v2021 = vsub.f32 %v1765, %v1893
  %v2022 = vsub.f32 %v1766, %v1894
  %v2023 = vsub.f32 %v1767, %v1895
  %v2024 = vsub.f32 %v1768, %v1896
  %v2025 = vsub.f32 %v1769, %v1897
  %v2026 = vsub.f32 %v1770, %v1898
  %v2027 = vsub.f32 %v1771, %v1899
  %v2028 = vsub.f32 %v1772, %v1900
  %v2029 = vsub.f32 %v1773, %v1901
  %v2030 = vsub.f32 %v1774, %v1902
  %v2031 = vsub.f32 %v1775, %v1903
  %v2032 = vsub.f32 %v1776, %v1904
  %v2033 = vsub.f32 %v1777, %v1905
  %v2034 = vsub.f32 %v1778, %v1906
  %v2035 = vsub.f32 %v1779, %v1907
  %v2036 = vsub.f32 %v1780, %v1908
  %v2037 = vsub.f32 %v1781, %v1909
  %v2038 = vsub.f32 %v1782, %v1910
  %v2039 = vsub.f32 %v1783, %v1911
  %v2040 = vsub.f32 %v1784, %v1912
  %v2041 = vsub.f32 %v1785, %v1913
  %v2042 = vsub.f32 %v1786, %v1914
  %v2043 = vsub.f32 %v1787, %v1915
  %v2044 = vsub.f32 %v1788, %v1916
  %v2045 = vsub.f32 %v1789, %v1917
  %v2046 = vsub.f32 %v1790, %v1918
  %v2047 = vsub.f32 %v1791, %v1919
  %v2048 = vsub.f32 %v1792, %v1920
  %v2049 = vsub.f32 %v1793, %v1921
  %v2050 = vsub.f32 %v1794, %v1922
  %v2051 = vsub.f32 %v1795, %v1923
  %v2052 = vsub.f32 %v1796, %v1924
  %v2053 = vsub.f32 %v1797, %v1925
  %v2054 = vsub.f32 %v1798, %v1926
  %v2055 = vsub.f32 %v1799, %v1927
  %v2056 = vsub.f32 %v1800, %v1928
  %v2057 = vsub.f32 %v1801, %v1929
  %v2058 = vsub.f32 %v1802, %v1930
  %v2059 = vsub.f32 %v1803, %v1931
  %v2060 = vsub.f32 %v1804, %v1932
  %v2061 = vsub.f32 %v1805, %v1933
  %v2062 = vsub.f32 %v1806, %v1934
  %v2063 = vsub.f32 %v1807, %v1935
  %v2064 = vsub.f32 %v1808, %v1936
  %v2065 = vsub.f32 %v1809, %v1937
  %v2066 = vsub.f32 %v1810, %v1938
  %v2067 = vsub.f32 %v1811, %v1939
  %v2068 = vsub.f32 %v1812, %v1940
  %v2069 = vsub.f32 %v1813, %v1941
  %v2070 = vmax.f32 %v1942, 0.0
  %v2071 = vmax.f32 %v1943, 0.0
  %v2072 = vmax.f32 %v1944, 0.0
  %v2073 = vmax.f32 %v1945, 0.0
  %v2074 = vmax.f32 %v1946, 0.0
  %v2075 = vmax.f32 %v1947, 0.0
  %v2076 = vmax.f32 %v1948, 0.0
  %v2077 = vmax.f32 %v1949, 0.0
  %v2078 = vmax.f32 %v1950, 0.0
  %v2079 = vmax.f32 %v1951, 0.0
  %v2080 = vmax.f32 %v1952, 0.0
  %v2081 = vmax.f32 %v1953, 0.0
  %v2082 = vmax.f32 %v1954, 0.0
  %v2083 = vmax.f32 %v1955, 0.0
  %v2084 = vmax.f32 %v1956, 0.0
  %v2085 = vmax.f32 %v1957, 0.0
  %v2086 = vmax.f32 %v1958, 0.0
  %v2087 = vmax.f32 %v1959, 0.0
  %v2088 = vmax.f32 %v1960, 0.0
  %v2089 = vmax.f32 %v1961, 0.0
  %v2090 = vmax.f32 %v1962, 0.0
  %v2091 = vmax.f32 %v1963, 0.0
  %v2092 = vmax.f32 %v1964, 0.0
  %v2093 = vmax.f32 %v1965, 0.0
  %v2094 = vmax.f32 %v1966, 0.0
  %v2095 = vmax.f32 %v1967, 0.0
  %v2096 = vmax.f32 %v1968, 0.0
  %v2097 = vmax.f32 %v1969, 0.0
  %v2098 = vmax.f32 %v1970, 0.0
  %v2099 = vmax.f32 %v1971, 0.0
  %v2100 = vmax.f32 %v1972, 0.0
  %v2101 = vmax.f32 %v1973, 0.0
  %v2102 = vmax.f32 %v1974, 0.0
  %v2103 = vmax.f32 %v1975, 0.0
  %v2104 = vmax.f32 %v1976, 0.0
  %v2105 = vmax.f32 %v1977, 0.0
  %v2106 = vmax.f32 %v1978, 0.0
  %v2107 = vmax.f32 %v1979, 0.0
  %v2108 = vmax.f32 %v1980, 0.0
  %v2109 = vmax.f32 %v1981, 0.0
  %v2110 = vmax.f32 %v1982, 0.0
  %v2111 = vmax.f32 %v1983, 0.0
  %v2112 = vmax.f32 %v1984, 0.0
  %v2113 = vmax.f32 %v1985, 0.0
  %v2114 = vmax.f32 %v1986, 0.0
  %v2115 = vmax.f32 %v1987, 0.0
  %v2116 = vmax.f32 %v1988, 0.0
  %v2117 = vmax.f32 %v1989, 0.0
  %v2118 = vmax.f32 %v1990, 0.0
  %v2119 = vmax.f32 %v1991, 0.0
  %v2120 = vmax.f32 %v1992, 0.0
  %v2121 = vmax.f32 %v1993, 0.0
  %v2122 = vmax.f32 %v1994, 0.0
  %v2123 = vmax.f32 %v1995, 0.0
  %v2124 = vmax.f32 %v1996, 0.0
  %v2125 = vmax.f32 %v1997, 0.0
  %v2126 = vmax.f32 %v1998, 0.0
  %v2127 = vmax.f32 %v1999, 0.0
  %v2128 = vmax.f32 %v2000, 0.0
  %v2129 = vmax.f32 %v2001, 0.0
  %v2130 = vmax.f32 %v2002, 0.0
  %v2131 = vmax.f32 %v2003, 0.0
  %v2132 = vmax.f32 %v2004, 0.0
  %v2133 = vmax.f32 %v2005, 0.0
  %v2134 = vmax.f32 %v2006, 0.0
  %v2135 = vmax.f32 %v2007, 0.0
  %v2136 = vmax.f32 %v2008, 0.0
  %v2137 = vmax.f32 %v2009, 0.0
  %v2138 = vmax.f32 %v2010, 0.0
  %v2139 = vmax.f32 %v2011, 0.0
  %v2140 = vmax.f32 %v2012, 0.0
  %v2141 = vmax.f32 %v2013, 0.0
  %v2142 = vmax.f32 %v2014, 0.0
  %v2143 = vmax.f32 %v2015, 0.0
  %v2144 = vmax.f32 %v2016, 0.0
  %v2145 = vmax.f32 %v2017, 0.0
  %v2146 = vmax.f32 %v2018, 0.0
  %v2147 = vmax.f32 %v2019, 0.0
  %v2148 = vmax.f32 %v2020, 0.0
  %v2149 = vmax.f32 %v2021, 0.0
  %v2150 = vmax.f32 %v2022, 0.0
  %v2151 = vmax.f32 %v2023, 0.0
  %v2152 = vmax.f32 %v2024, 0.0
  %v2153 = vmax.f32 %v2025, 0.0
  %v2154 = vmax.f32 %v2026, 0.0
  %v2155 = vmax.f32 %v2027, 0.0
  %v2156 = vmax.f32 %v2028, 0.0
  %v2157 = vmax.f32 %v2029, 0.0
  %v2158 = vmax.f32 %v2030, 0.0
  %v2159 = vmax.f32 %v2031, 0.0
  %v2160 = vmax.f32 %v2032, 0.0
  %v2161 = vmax.f32 %v2033, 0.0
  %v2162 = vmax.f32 %v2034, 0.0
  %v2163 = vmax.f32 %v2035, 0.0
  %v2164 = vmax.f32 %v2036, 0.0
  %v2165 = vmax.f32 %v2037, 0.0
  %v2166 = vmax.f32 %v2038, 0.0
  %v2167 = vmax.f32 %v2039, 0.0
  %v2168 = vmax.f32 %v2040, 0.0
  %v2169 = vmax.f32 %v2041, 0.0
  %v2170 = vmax.f32 %v2042, 0.0
  %v2171 = vmax.f32 %v2043, 0.0
  %v2172 = vmax.f32 %v2044, 0.0
  %v2173 = vmax.f32 %v2045, 0.0
  %v2174 = vmax.f32 %v2046, 0.0
  %v2175 = vmax.f32 %v2047, 0.0
  %v2176 = vmax.f32 %v2048, 0.0
  %v2177 = vmax.f32 %v2049, 0.0
  %v2178 = vmax.f32 %v2050, 0.0
  %v2179 = vmax.f32 %v2051, 0.0
  %v2180 = vmax.f32 %v2052, 0.0
  %v2181 = vmax.f32 %v2053, 0.0
  %v2182 = vmax.f32 %v2054, 0.0
  %v2183 = vmax.f32 %v2055, 0.0
  %v2184 = vmax.f32 %v2056, 0.0
  %v2185 = vmax.f32 %v2057, 0.0
  %v2186 = vmax.f32 %v2058, 0.0
  %v2187 = vmax.f32 %v2059, 0.0
  %v2188 = vmax.f32 %v2060, 0.0
  %v2189 = vmax.f32 %v2061, 0.0
  %v2190 = vmax.f32 %v2062, 0.0
  %v2191 = vmax.f32 %v2063, 0.0
  %v2192 = vmax.f32 %v2064, 0.0
  %v2193 = vmax.f32 %v2065, 0.0
  %v2194 = vmax.f32 %v2066, 0.0
  %v2195 = vmax.f32 %v2067, 0.0
  %v2196 = vmax.f32 %v2068, 0.0
  %v2197 = vmax.f32 %v2069, 0.0
  %v2198 = vadd.f32 %v2070, 1e-05
  %v2199 = vadd.f32 %v2071, 1e-05
  %v2200 = vadd.f32 %v2072, 1e-05
  %v2201 = vadd.f32 %v2073, 1e-05
  %v2202 = vadd.f32 %v2074, 1e-05
  %v2203 = vadd.f32 %v2075, 1e-05
  %v2204 = vadd.f32 %v2076, 1e-05
  %v2205 = vadd.f32 %v2077, 1e-05
  %v2206 = vadd.f32 %v2078, 1e-05
  %v2207 = vadd.f32 %v2079, 1e-05
  %v2208 = vadd.f32 %v2080, 1e-05
  %v2209 = vadd.f32 %v2081, 1e-05
  %v2210 = vadd.f32 %v2082, 1e-05
  %v2211 = vadd.f32 %v2083, 1e-05
  %v2212 = vadd.f32 %v2084, 1e-05
  %v2213 = vadd.f32 %v2085, 1e-05
  %v2214 = vadd.f32 %v2086, 1e-05
  %v2215 = vadd.f32 %v2087, 1e-05
  %v2216 = vadd.f32 %v2088, 1e-05
  %v2217 = vadd.f32 %v2089, 1e-05
  %v2218 = vadd.f32 %v2090, 1e-05
  %v2219 = vadd.f32 %v2091, 1e-05
  %v2220 = vadd.f32 %v2092, 1e-05
  %v2221 = vadd.f32 %v2093, 1e-05
  %v2222 = vadd.f32 %v2094, 1e-05
  %v2223 = vadd.f32 %v2095, 1e-05
  %v2224 = vadd.f32 %v2096, 1e-05
  %v2225 = vadd.f32 %v2097, 1e-05
  %v2226 = vadd.f32 %v2098, 1e-05
  %v2227 = vadd.f32 %v2099, 1e-05
  %v2228 = vadd.f32 %v2100, 1e-05
  %v2229 = vadd.f32 %v2101, 1e-05
  %v2230 = vadd.f32 %v2102, 1e-05
  %v2231 = vadd.f32 %v2103, 1e-05
  %v2232 = vadd.f32 %v2104, 1e-05
  %v2233 = vadd.f32 %v2105, 1e-05
  %v2234 = vadd.f32 %v2106, 1e-05
  %v2235 = vadd.f32 %v2107, 1e-05
  %v2236 = vadd.f32 %v2108, 1e-05
  %v2237 = vadd.f32 %v2109, 1e-05
  %v2238 = vadd.f32 %v2110, 1e-05
  %v2239 = vadd.f32 %v2111, 1e-05
  %v2240 = vadd.f32 %v2112, 1e-05
  %v2241 = vadd.f32 %v2113, 1e-05
  %v2242 = vadd.f32 %v2114, 1e-05
  %v2243 = vadd.f32 %v2115, 1e-05
  %v2244 = vadd.f32 %v2116, 1e-05
  %v2245 = vadd.f32 %v2117, 1e-05
  %v2246 = vadd.f32 %v2118, 1e-05
  %v2247 = vadd.f32 %v2119, 1e-05
  %v2248 = vadd.f32 %v2120, 1e-05
  %v2249 = vadd.f32 %v2121, 1e-05
  %v2250 = vadd.f32 %v2122, 1e-05
  %v2251 = vadd.f32 %v2123, 1e-05
  %v2252 = vadd.f32 %v2124, 1e-05
  %v2253 = vadd.f32 %v2125, 1e-05
  %v2254 = vadd.f32 %v2126, 1e-05
  %v2255 = vadd.f32 %v2127, 1e-05
  %v2256 = vadd.f32 %v2128, 1e-05
  %v2257 = vadd.f32 %v2129, 1e-05
  %v2258 = vadd.f32 %v2130, 1e-05
  %v2259 = vadd.f32 %v2131, 1e-05
  %v2260 = vadd.f32 %v2132, 1e-05
  %v2261 = vadd.f32 %v2133, 1e-05
  %v2262 = vadd.f32 %v2134, 1e-05
  %v2263 = vadd.f32 %v2135, 1e-05
  %v2264 = vadd.f32 %v2136, 1e-05
  %v2265 = vadd.f32 %v2137, 1e-05
  %v2266 = vadd.f32 %v2138, 1e-05
  %v2267 = vadd.f32 %v2139, 1e-05
  %v2268 = vadd.f32 %v2140, 1e-05
  %v2269 = vadd.f32 %v2141, 1e-05
  %v2270 = vadd.f32 %v2142, 1e-05
  %v2271 = vadd.f32 %v2143, 1e-05
  %v2272 = vadd.f32 %v2144, 1e-05
  %v2273 = vadd.f32 %v2145, 1e-05
  %v2274 = vadd.f32 %v2146, 1e-05
  %v2275 = vadd.f32 %v2147, 1e-05
  %v2276 = vadd.f32 %v2148, 1e-05
  %v2277 = vadd.f32 %v2149, 1e-05
  %v2278 = vadd.f32 %v2150, 1e-05
  %v2279 = vadd.f32 %v2151, 1e-05
  %v2280 = vadd.f32 %v2152, 1e-05
  %v2281 = vadd.f32 %v2153, 1e-05
  %v2282 = vadd.f32 %v2154, 1e-05
  %v2283 = vadd.f32 %v2155, 1e-05
  %v2284 = vadd.f32 %v2156, 1e-05
  %v2285 = vadd.f32 %v2157, 1e-05
  %v2286 = vadd.f32 %v2158, 1e-05
  %v2287 = vadd.f32 %v2159, 1e-05
  %v2288 = vadd.f32 %v2160, 1e-05
  %v2289 = vadd.f32 %v2161, 1e-05
  %v2290 = vadd.f32 %v2162, 1e-05
  %v2291 = vadd.f32 %v2163, 1e-05
  %v2292 = vadd.f32 %v2164, 1e-05
  %v2293 = vadd.f32 %v2165, 1e-05
  %v2294 = vadd.f32 %v2166, 1e-05
  %v2295 = vadd.f32 %v2167, 1e-05
  %v2296 = vadd.f32 %v2168, 1e-05
  %v2297 = vadd.f32 %v2169, 1e-05
  %v2298 = vadd.f32 %v2170, 1e-05
  %v2299 = vadd.f32 %v2171, 1e-05
  %v2300 = vadd.f32 %v2172, 1e-05
  %v2301 = vadd.f32 %v2173, 1e-05
  %v2302 = vadd.f32 %v2174, 1e-05
  %v2303 = vadd.f32 %v2175, 1e-05
  %v2304 = vadd.f32 %v2176, 1e-05
  %v2305 = vadd.f32 %v2177, 1e-05
  %v2306 = vadd.f32 %v2178, 1e-05
  %v2307 = vadd.f32 %v2179, 1e-05
  %v2308 = vadd.f32 %v2180, 1e-05
  %v2309 = vadd.f32 %v2181, 1e-05
  %v2310 = vadd.f32 %v2182, 1e-05
  %v2311 = vadd.f32 %v2183, 1e-05
  %v2312 = vadd.f32 %v2184, 1e-05
  %v2313 = vadd.f32 %v2185, 1e-05
  %v2314 = vadd.f32 %v2186, 1e-05
  %v2315 = vadd.f32 %v2187, 1e-05
  %v2316 = vadd.f32 %v2188, 1e-05
  %v2317 = vadd.f32 %v2189, 1e-05
  %v2318 = vadd.f32 %v2190, 1e-05
  %v2319 = vadd.f32 %v2191, 1e-05
  %v2320 = vadd.f32 %v2192, 1e-05
  %v2321 = vadd.f32 %v2193, 1e-05
  %v2322 = vadd.f32 %v2194, 1e-05
  %v2323 = vadd.f32 %v2195, 1e-05
  %v2324 = vadd.f32 %v2196, 1e-05
  %v2325 = vadd.f32 %v2197, 1e-05
  %v2326 = vrsqrt.pop %v2198
  %v2327 = vrsqrt.pop %v2199
  %v2328 = vrsqrt.pop %v2200
  %v2329 = vrsqrt.pop %v2201
  %v2330 = vrsqrt.pop %v2202
  %v2331 = vrsqrt.pop %v2203
  %v2332 = vrsqrt.pop %v2204
  %v2333 = vrsqrt.pop %v2205
  %v2334 = vrsqrt.pop %v2206
  %v2335 = vrsqrt.pop %v2207
  %v2336 = vrsqrt.pop %v2208
  %v2337 = vrsqrt.pop %v2209
  %v2338 = vrsqrt.pop %v2210
  %v2339 = vrsqrt.pop %v2211
  %v2340 = vrsqrt.pop %v2212
  %v2341 = vrsqrt.pop %v2213
  %v2342 = vrsqrt.pop %v2214
  %v2343 = vrsqrt.pop %v2215
  %v2344 = vrsqrt.pop %v2216
  %v2345 = vrsqrt.pop %v2217
  %v2346 = vrsqrt.pop %v2218
  %v2347 = vrsqrt.pop %v2219
  %v2348 = vrsqrt.pop %v2220
  %v2349 = vrsqrt.pop %v2221
  %v2350 = vrsqrt.pop %v2222
  %v2351 = vrsqrt.pop %v2223
  %v2352 = vrsqrt.pop %v2224
  %v2353 = vrsqrt.pop %v2225
  %v2354 = vrsqrt.pop %v2226
  %v2355 = vrsqrt.pop %v2227
  %v2356 = vrsqrt.pop %v2228
  %v2357 = vrsqrt.pop %v2229
  %v2358 = vrsqrt.pop %v2230
  %v2359 = vrsqrt.pop %v2231
  %v2360 = vrsqrt.pop %v2232
  %v2361 = vrsqrt.pop %v2233
  %v2362 = vrsqrt.pop %v2234
  %v2363 = vrsqrt.pop %v2235
  %v2364 = vrsqrt.pop %v2236
  %v2365 = vrsqrt.pop %v2237
  %v2366 = vrsqrt.pop %v2238
  %v2367 = vrsqrt.pop %v2239
  %v2368 = vrsqrt.pop %v2240
  %v2369 = vrsqrt.pop %v2241
  %v2370 = vrsqrt.pop %v2242
  %v2371 = vrsqrt.pop %v2243
  %v2372 = vrsqrt.pop %v2244
  %v2373 = vrsqrt.pop %v2245
  %v2374 = vrsqrt.pop %v2246
  %v2375 = vrsqrt.pop %v2247
  %v2376 = vrsqrt.pop %v2248
  %v2377 = vrsqrt.pop %v2249
  %v2378 = vrsqrt.pop %v2250
  %v2379 = vrsqrt.pop %v2251
  %v2380 = vrsqrt.pop %v2252
  %v2381 = vrsqrt.pop %v2253
  %v2382 = vrsqrt.pop %v2254
  %v2383 = vrsqrt.pop %v2255
  %v2384 = vrsqrt.pop %v2256
  %v2385 = vrsqrt.pop %v2257
  %v2386 = vrsqrt.pop %v2258
  %v2387 = vrsqrt.pop %v2259
  %v2388 = vrsqrt.pop %v2260
  %v2389 = vrsqrt.pop %v2261
  %v2390 = vrsqrt.pop %v2262
  %v2391 = vrsqrt.pop %v2263
  %v2392 = vrsqrt.pop %v2264
  %v2393 = vrsqrt.pop %v2265
  %v2394 = vrsqrt.pop %v2266
  %v2395 = vrsqrt.pop %v2267
  %v2396 = vrsqrt.pop %v2268
  %v2397 = vrsqrt.pop %v2269
  %v2398 = vrsqrt.pop %v2270
  %v2399 = vrsqrt.pop %v2271
  %v2400 = vrsqrt.pop %v2272
  %v2401 = vrsqrt.pop %v2273
  %v2402 = vrsqrt.pop %v2274
  %v2403 = vrsqrt.pop %v2275
  %v2404 = vrsqrt.pop %v2276
  %v2405 = vrsqrt.pop %v2277
  %v2406 = vrsqrt.pop %v2278
  %v2407 = vrsqrt.pop %v2279
  %v2408 = vrsqrt.pop %v2280
  %v2409 = vrsqrt.pop %v2281
  %v2410 = vrsqrt.pop %v2282
  %v2411 = vrsqrt.pop %v2283
  %v2412 = vrsqrt.pop %v2284
  %v2413 = vrsqrt.pop %v2285
  %v2414 = vrsqrt.pop %v2286
  %v2415 = vrsqrt.pop %v2287
  %v2416 = vrsqrt.pop %v2288
  %v2417 = vrsqrt.pop %v2289
  %v2418 = vrsqrt.pop %v2290
  %v2419 = vrsqrt.pop %v2291
  %v2420 = vrsqrt.pop %v2292
  %v2421 = vrsqrt.pop %v2293
  %v2422 = vrsqrt.pop %v2294
  %v2423 = vrsqrt.pop %v2295
  %v2424 = vrsqrt.pop %v2296
  %v2425 = vrsqrt.pop %v2297
  %v2426 = vrsqrt.pop %v2298
  %v2427 = vrsqrt.pop %v2299
  %v2428 = vrsqrt.pop %v2300
  %v2429 = vrsqrt.pop %v2301
  %v2430 = vrsqrt.pop %v2302
  %v2431 = vrsqrt.pop %v2303
  %v2432 = vrsqrt.pop %v2304
  %v2433 = vrsqrt.pop %v2305
  %v2434 = vrsqrt.pop %v2306
  %v2435 = vrsqrt.pop %v2307
  %v2436 = vrsqrt.pop %v2308
  %v2437 = vrsqrt.pop %v2309
  %v2438 = vrsqrt.pop %v2310
  %v2439 = vrsqrt.pop %v2311
  %v2440 = vrsqrt.pop %v2312
  %v2441 = vrsqrt.pop %v2313
  %v2442 = vrsqrt.pop %v2314
  %v2443 = vrsqrt.pop %v2315
  %v2444 = vrsqrt.pop %v2316
  %v2445 = vrsqrt.pop %v2317
  %v2446 = vrsqrt.pop %v2318
  %v2447 = vrsqrt.pop %v2319
  %v2448 = vrsqrt.pop %v2320
  %v2449 = vrsqrt.pop %v2321
  %v2450 = vrsqrt.pop %v2322
  %v2451 = vrsqrt.pop %v2323
  %v2452 = vrsqrt.pop %v2324
  %v2453 = vrsqrt.pop %v2325
  %v2454 = vld [vmem:[%s2] sm:$0xff]
  %v2455 = vld [vmem:[%s2 + $0x8] sm:$0xff]
  %v2456 = vld [vmem:[%s2 + $0x10] sm:$0xff]
  %v2457 = vld [vmem:[%s2 + $0x18] sm:$0xff]
  %v2458 = vld [vmem:[%s2 + $0x20] sm:$0xff]
  %v2459 = vld [vmem:[%s2 + $0x28] sm:$0xff]
  %v2460 = vld [vmem:[%s2 + $0x30] sm:$0xff]
  %v2461 = vld [vmem:[%s2 + $0x38] sm:$0xff]
  %v2462 = vld [vmem:[%s2 + $0x40] sm:$0xff]
  %v2463 = vld [vmem:[%s2 + $0x48] sm:$0xff]
  %v2464 = vld [vmem:[%s2 + $0x50] sm:$0xff]
  %v2465 = vld [vmem:[%s2 + $0x58] sm:$0xff]
  %v2466 = vld [vmem:[%s2 + $0x60] sm:$0xff]
  %v2467 = vld [vmem:[%s2 + $0x68] sm:$0xff]
  %v2468 = vld [vmem:[%s2 + $0x70] sm:$0xff]
  %v2469 = vld [vmem:[%s2 + $0x78] sm:$0xff]
  %v2470 = vld [vmem:[%s2 + $0x80] sm:$0xff]
  %v2471 = vld [vmem:[%s2 + $0x88] sm:$0xff]
  %v2472 = vld [vmem:[%s2 + $0x90] sm:$0xff]
  %v2473 = vld [vmem:[%s2 + $0x98] sm:$0xff]
  %v2474 = vld [vmem:[%s2 + $0xa0] sm:$0xff]
  %v2475 = vld [vmem:[%s2 + $0xa8] sm:$0xff]
  %v2476 = vld [vmem:[%s2 + $0xb0] sm:$0xff]
  %v2477 = vld [vmem:[%s2 + $0xb8] sm:$0xff]
  %v2478 = vld [vmem:[%s2 + $0xc0] sm:$0xff]
  %v2479 = vld [vmem:[%s2 + $0xc8] sm:$0xff]
  %v2480 = vld [vmem:[%s2 + $0xd0] sm:$0xff]
  %v2481 = vld [vmem:[%s2 + $0xd8] sm:$0xff]
  %v2482 = vld [vmem:[%s2 + $0xe0] sm:$0xff]
  %v2483 = vld [vmem:[%s2 + $0xe8] sm:$0xff]
  %v2484 = vld [vmem:[%s2 + $0xf0] sm:$0xff]
  %v2485 = vld [vmem:[%s2 + $0xf8] sm:$0xff]
  %v2486 = vld [vmem:[%s2 + $0x100] sm:$0xff]
  %v2487 = vld [vmem:[%s2 + $0x108] sm:$0xff]
  %v2488 = vld [vmem:[%s2 + $0x110] sm:$0xff]
  %v2489 = vld [vmem:[%s2 + $0x118] sm:$0xff]
  %v2490 = vld [vmem:[%s2 + $0x120] sm:$0xff]
  %v2491 = vld [vmem:[%s2 + $0x128] sm:$0xff]
  %v2492 = vld [vmem:[%s2 + $0x130] sm:$0xff]
  %v2493 = vld [vmem:[%s2 + $0x138] sm:$0xff]
  %v2494 = vld [vmem:[%s2 + $0x140] sm:$0xff]
  %v2495 = vld [vmem:[%s2 + $0x148] sm:$0xff]
  %v2496 = vld [vmem:[%s2 + $0x150] sm:$0xff]
  %v2497 = vld [vmem:[%s2 + $0x158] sm:$0xff]
  %v2498 = vld [vmem:[%s2 + $0x160] sm:$0xff]
  %v2499 = vld [vmem:[%s2 + $0x168] sm:$0xff]
  %v2500 = vld [vmem:[%s2 + $0x170] sm:$0xff]
  %v2501 = vld [vmem:[%s2 + $0x178] sm:$0xff]
  %v2502 = vld [vmem:[%s2 + $0x180] sm:$0xff]
  %v2503 = vld [vmem:[%s2 + $0x188] sm:$0xff]
  %v2504 = vld [vmem:[%s2 + $0x190] sm:$0xff]
  %v2505 = vld [vmem:[%s2 + $0x198] sm:$0xff]
  %v2506 = vld [vmem:[%s2 + $0x1a0] sm:$0xff]
  %v2507 = vld [vmem:[%s2 + $0x1a8] sm:$0xff]
  %v2508 = vld [vmem:[%s2 + $0x1b0] sm:$0xff]
  %v2509 = vld [vmem:[%s2 + $0x1b8] sm:$0xff]
  %v2510 = vld [vmem:[%s2 + $0x1c0] sm:$0xff]
  %v2511 = vld [vmem:[%s2 + $0x1c8] sm:$0xff]
  %v2512 = vld [vmem:[%s2 + $0x1d0] sm:$0xff]
  %v2513 = vld [vmem:[%s2 + $0x1d8] sm:$0xff]
  %v2514 = vld [vmem:[%s2 + $0x1e0] sm:$0xff]
  %v2515 = vld [vmem:[%s2 + $0x1e8] sm:$0xff]
  %v2516 = vld [vmem:[%s2 + $0x1f0] sm:$0xff]
  %v2517 = vld [vmem:[%s2 + $0x1f8] sm:$0xff]
  %v2518 = vld [vmem:[%s2 + $0x200] sm:$0xff]
  %v2519 = vld [vmem:[%s2 + $0x208] sm:$0xff]
  %v2520 = vld [vmem:[%s2 + $0x210] sm:$0xff]
  %v2521 = vld [vmem:[%s2 + $0x218] sm:$0xff]
  %v2522 = vld [vmem:[%s2 + $0x220] sm:$0xff]
  %v2523 = vld [vmem:[%s2 + $0x228] sm:$0xff]
  %v2524 = vld [vmem:[%s2 + $0x230] sm:$0xff]
  %v2525 = vld [vmem:[%s2 + $0x238] sm:$0xff]
  %v2526 = vld [vmem:[%s2 + $0x240] sm:$0xff]
  %v2527 = vld [vmem:[%s2 + $0x248] sm:$0xff]
  %v2528 = vld [vmem:[%s2 + $0x250] sm:$0xff]
  %v2529 = vld [vmem:[%s2 + $0x258] sm:$0xff]
  %v2530 = vld [vmem:[%s2 + $0x260] sm:$0xff]
  %v2531 = vld [vmem:[%s2 + $0x268] sm:$0xff]
  %v2532 = vld [vmem:[%s2 + $0x270] sm:$0xff]
  %v2533 = vld [vmem:[%s2 + $0x278] sm:$0xff]
  %v2534 = vld [vmem:[%s2 + $0x280] sm:$0xff]
  %v2535 = vld [vmem:[%s2 + $0x288] sm:$0xff]
  %v2536 = vld [vmem:[%s2 + $0x290] sm:$0xff]
  %v2537 = vld [vmem:[%s2 + $0x298] sm:$0xff]
  %v2538 = vld [vmem:[%s2 + $0x2a0] sm:$0xff]
  %v2539 = vld [vmem:[%s2 + $0x2a8] sm:$0xff]
  %v2540 = vld [vmem:[%s2 + $0x2b0] sm:$0xff]
  %v2541 = vld [vmem:[%s2 + $0x2b8] sm:$0xff]
  %v2542 = vld [vmem:[%s2 + $0x2c0] sm:$0xff]
  %v2543 = vld [vmem:[%s2 + $0x2c8] sm:$0xff]
  %v2544 = vld [vmem:[%s2 + $0x2d0] sm:$0xff]
  %v2545 = vld [vmem:[%s2 + $0x2d8] sm:$0xff]
  %v2546 = vld [vmem:[%s2 + $0x2e0] sm:$0xff]
  %v2547 = vld [vmem:[%s2 + $0x2e8] sm:$0xff]
  %v2548 = vld [vmem:[%s2 + $0x2f0] sm:$0xff]
  %v2549 = vld [vmem:[%s2 + $0x2f8] sm:$0xff]
  %v2550 = vld [vmem:[%s2 + $0x300] sm:$0xff]
  %v2551 = vld [vmem:[%s2 + $0x308] sm:$0xff]
  %v2552 = vld [vmem:[%s2 + $0x310] sm:$0xff]
  %v2553 = vld [vmem:[%s2 + $0x318] sm:$0xff]
  %v2554 = vld [vmem:[%s2 + $0x320] sm:$0xff]
  %v2555 = vld [vmem:[%s2 + $0x328] sm:$0xff]
  %v2556 = vld [vmem:[%s2 + $0x330] sm:$0xff]
  %v2557 = vld [vmem:[%s2 + $0x338] sm:$0xff]
  %v2558 = vld [vmem:[%s2 + $0x340] sm:$0xff]
  %v2559 = vld [vmem:[%s2 + $0x348] sm:$0xff]
  %v2560 = vld [vmem:[%s2 + $0x350] sm:$0xff]
  %v2561 = vld [vmem:[%s2 + $0x358] sm:$0xff]
  %v2562 = vld [vmem:[%s2 + $0x360] sm:$0xff]
  %v2563 = vld [vmem:[%s2 + $0x368] sm:$0xff]
  %v2564 = vld [vmem:[%s2 + $0x370] sm:$0xff]
  %v2565 = vld [vmem:[%s2 + $0x378] sm:$0xff]
  %v2566 = vld [vmem:[%s2 + $0x380] sm:$0xff]
  %v2567 = vld [vmem:[%s2 + $0x388] sm:$0xff]
  %v2568 = vld [vmem:[%s2 + $0x390] sm:$0xff]
  %v2569 = vld [vmem:[%s2 + $0x398] sm:$0xff]
  %v2570 = vld [vmem:[%s2 + $0x3a0] sm:$0xff]
  %v2571 = vld [vmem:[%s2 + $0x3a8] sm:$0xff]
  %v2572 = vld [vmem:[%s2 + $0x3b0] sm:$0xff]
  %v2573 = vld [vmem:[%s2 + $0x3b8] sm:$0xff]
  %v2574 = vld [vmem:[%s2 + $0x3c0] sm:$0xff]
  %v2575 = vld [vmem:[%s2 + $0x3c8] sm:$0xff]
  %v2576 = vld [vmem:[%s2 + $0x3d0] sm:$0xff]
  %v2577 = vld [vmem:[%s2 + $0x3d8] sm:$0xff]
  %v2578 = vld [vmem:[%s2 + $0x3e0] sm:$0xff]
  %v2579 = vld [vmem:[%s2 + $0x3e8] sm:$0xff]
  %v2580 = vld [vmem:[%s2 + $0x3f0] sm:$0xff]
  %v2581 = vld [vmem:[%s2 + $0x3f8] sm:$0xff]
  %v2582 = vmul.f32 %v2454, %v2326
  %v2583 = vmul.f32 %v2455, %v2327
  %v2584 = vmul.f32 %v2456, %v2328
  %v2585 = vmul.f32 %v2457, %v2329
  %v2586 = vmul.f32 %v2458, %v2330
  %v2587 = vmul.f32 %v2459, %v2331
  %v2588 = vmul.f32 %v2460, %v2332
  %v2589 = vmul.f32 %v2461, %v2333
  %v2590 = vmul.f32 %v2462, %v2334
  %v2591 = vmul.f32 %v2463, %v2335
  %v2592 = vmul.f32 %v2464, %v2336
  %v2593 = vmul.f32 %v2465, %v2337
  %v2594 = vmul.f32 %v2466, %v2338
  %v2595 = vmul.f32 %v2467, %v2339
  %v2596 = vmul.f32 %v2468, %v2340
  %v2597 = vmul.f32 %v2469, %v2341
  %v2598 = vmul.f32 %v2470, %v2342
  %v2599 = vmul.f32 %v2471, %v2343
  %v2600 = vmul.f32 %v2472, %v2344
  %v2601 = vmul.f32 %v2473, %v2345
  %v2602 = vmul.f32 %v2474, %v2346
  %v2603 = vmul.f32 %v2475, %v2347
  %v2604 = vmul.f32 %v2476, %v2348
  %v2605 = vmul.f32 %v2477, %v2349
  %v2606 = vmul.f32 %v2478, %v2350
  %v2607 = vmul.f32 %v2479, %v2351
  %v2608 = vmul.f32 %v2480, %v2352
  %v2609 = vmul.f32 %v2481, %v2353
  %v2610 = vmul.f32 %v2482, %v2354
  %v2611 = vmul.f32 %v2483, %v2355
  %v2612 = vmul.f32 %v2484, %v2356
  %v2613 = vmul.f32 %v2485, %v2357
  %v2614 = vmul.f32 %v2486, %v2358
  %v2615 = vmul.f32 %v2487, %v2359
  %v2616 = vmul.f32 %v2488, %v2360
  %v2617 = vmul.f32 %v2489, %v2361
  %v2618 = vmul.f32 %v2490, %v2362
  %v2619 = vmul.f32 %v2491, %v2363
  %v2620 = vmul.f32 %v2492, %v2364
  %v2621 = vmul.f32 %v2493, %v2365
  %v2622 = vmul.f32 %v2494, %v2366
  %v2623 = vmul.f32 %v2495, %v2367
  %v2624 = vmul.f32 %v2496, %v2368
  %v2625 = vmul.f32 %v2497, %v2369
  %v2626 = vmul.f32 %v2498, %v2370
  %v2627 = vmul.f32 %v2499, %v2371
  %v2628 = vmul.f32 %v2500, %v2372
  %v2629 = vmul.f32 %v2501, %v2373
  %v2630 = vmul.f32 %v2502, %v2374
  %v2631 = vmul.f32 %v2503, %v2375
  %v2632 = vmul.f32 %v2504, %v2376
  %v2633 = vmul.f32 %v2505, %v2377
  %v2634 = vmul.f32 %v2506, %v2378
  %v2635 = vmul.f32 %v2507, %v2379
  %v2636 = vmul.f32 %v2508, %v2380
  %v2637 = vmul.f32 %v2509, %v2381
  %v2638 = vmul.f32 %v2510, %v2382
  %v2639 = vmul.f32 %v2511, %v2383
  %v2640 = vmul.f32 %v2512, %v2384
  %v2641 = vmul.f32 %v2513, %v2385
  %v2642 = vmul.f32 %v2514, %v2386
  %v2643 = vmul.f32 %v2515, %v2387
  %v2644 = vmul.f32 %v2516, %v2388
  %v2645 = vmul.f32 %v2517, %v2389
  %v2646 = vmul.f32 %v2518, %v2390
  %v2647 = vmul.f32 %v2519, %v2391
  %v2648 = vmul.f32 %v2520, %v2392
  %v2649 = vmul.f32 %v2521, %v2393
  %v2650 = vmul.f32 %v2522, %v2394
  %v2651 = vmul.f32 %v2523, %v2395
  %v2652 = vmul.f32 %v2524, %v2396
  %v2653 = vmul.f32 %v2525, %v2397
  %v2654 = vmul.f32 %v2526, %v2398
  %v2655 = vmul.f32 %v2527, %v2399
  %v2656 = vmul.f32 %v2528, %v2400
  %v2657 = vmul.f32 %v2529, %v2401
  %v2658 = vmul.f32 %v2530, %v2402
  %v2659 = vmul.f32 %v2531, %v2403
  %v2660 = vmul.f32 %v2532, %v2404
  %v2661 = vmul.f32 %v2533, %v2405
  %v2662 = vmul.f32 %v2534, %v2406
  %v2663 = vmul.f32 %v2535, %v2407
  %v2664 = vmul.f32 %v2536, %v2408
  %v2665 = vmul.f32 %v2537, %v2409
  %v2666 = vmul.f32 %v2538, %v2410
  %v2667 = vmul.f32 %v2539, %v2411
  %v2668 = vmul.f32 %v2540, %v2412
  %v2669 = vmul.f32 %v2541, %v2413
  %v2670 = vmul.f32 %v2542, %v2414
  %v2671 = vmul.f32 %v2543, %v2415
  %v2672 = vmul.f32 %v2544, %v2416
  %v2673 = vmul.f32 %v2545, %v2417
  %v2674 = vmul.f32 %v2546, %v2418
  %v2675 = vmul.f32 %v2547, %v2419
  %v2676 = vmul.f32 %v2548, %v2420
  %v2677 = vmul.f32 %v2549, %v2421
  %v2678 = vmul.f32 %v2550, %v2422
  %v2679 = vmul.f32 %v2551, %v2423
  %v2680 = vmul.f32 %v2552, %v2424
  %v2681 = vmul.f32 %v2553, %v2425
  %v2682 = vmul.f32 %v2554, %v2426
  %v2683 = vmul.f32 %v2555, %v2427
  %v2684 = vmul.f32 %v2556, %v2428
  %v2685 = vmul.f32 %v2557, %v2429
  %v2686 = vmul.f32 %v2558, %v2430
  %v2687 = vmul.f32 %v2559, %v2431
  %v2688 = vmul.f32 %v2560, %v2432
  %v2689 = vmul.f32 %v2561, %v2433
  %v2690 = vmul.f32 %v2562, %v2434
  %v2691 = vmul.f32 %v2563, %v2435
  %v2692 = vmul.f32 %v2564, %v2436
  %v2693 = vmul.f32 %v2565, %v2437
  %v2694 = vmul.f32 %v2566, %v2438
  %v2695 = vmul.f32 %v2567, %v2439
  %v2696 = vmul.f32 %v2568, %v2440
  %v2697 = vmul.f32 %v2569, %v2441
  %v2698 = vmul.f32 %v2570, %v2442
  %v2699 = vmul.f32 %v2571, %v2443
  %v2700 = vmul.f32 %v2572, %v2444
  %v2701 = vmul.f32 %v2573, %v2445
  %v2702 = vmul.f32 %v2574, %v2446
  %v2703 = vmul.f32 %v2575, %v2447
  %v2704 = vmul.f32 %v2576, %v2448
  %v2705 = vmul.f32 %v2577, %v2449
  %v2706 = vmul.f32 %v2578, %v2450
  %v2707 = vmul.f32 %v2579, %v2451
  %v2708 = vmul.f32 %v2580, %v2452
  %v2709 = vmul.f32 %v2581, %v2453
  %v2710 = vld [vmem:[%s3] sm:$0xff]
  %v2711 = vld [vmem:[%s3 + $0x8] sm:$0xff]
  %v2712 = vld [vmem:[%s3 + $0x10] sm:$0xff]
  %v2713 = vld [vmem:[%s3 + $0x18] sm:$0xff]
  %v2714 = vld [vmem:[%s3 + $0x20] sm:$0xff]
  %v2715 = vld [vmem:[%s3 + $0x28] sm:$0xff]
  %v2716 = vld [vmem:[%s3 + $0x30] sm:$0xff]
  %v2717 = vld [vmem:[%s3 + $0x38] sm:$0xff]
  %v2718 = vld [vmem:[%s3 + $0x40] sm:$0xff]
  %v2719 = vld [vmem:[%s3 + $0x48] sm:$0xff]
  %v2720 = vld [vmem:[%s3 + $0x50] sm:$0xff]
  %v2721 = vld [vmem:[%s3 + $0x58] sm:$0xff]
  %v2722 = vld [vmem:[%s3 + $0x60] sm:$0xff]
  %v2723 = vld [vmem:[%s3 + $0x68] sm:$0xff]
  %v2724 = vld [vmem:[%s3 + $0x70] sm:$0xff]
  %v2725 = vld [vmem:[%s3 + $0x78] sm:$0xff]
  %v2726 = vld [vmem:[%s3 + $0x80] sm:$0xff]
  %v2727 = vld [vmem:[%s3 + $0x88] sm:$0xff]
  %v2728 = vld [vmem:[%s3 + $0x90] sm:$0xff]
  %v2729 = vld [vmem:[%s3 + $0x98] sm:$0xff]
  %v2730 = vld [vmem:[%s3 + $0xa0] sm:$0xff]
  %v2731 = vld [vmem:[%s3 + $0xa8] sm:$0xff]
  %v2732 = vld [vmem:[%s3 + $0xb0] sm:$0xff]
  %v2733 = vld [vmem:[%s3 + $0xb8] sm:$0xff]
  %v2734 = vld [vmem:[%s3 + $0xc0] sm:$0xff]
  %v2735 = vld [vmem:[%s3 + $0xc8] sm:$0xff]
  %v2736 = vld [vmem:[%s3 + $0xd0] sm:$0xff]
  %v2737 = vld [vmem:[%s3 + $0xd8] sm:$0xff]
  %v2738 = vld [vmem:[%s3 + $0xe0] sm:$0xff]
  %v2739 = vld [vmem:[%s3 + $0xe8] sm:$0xff]
  %v2740 = vld [vmem:[%s3 + $0xf0] sm:$0xff]
  %v2741 = vld [vmem:[%s3 + $0xf8] sm:$0xff]
  %v2742 = vld [vmem:[%s3 + $0x100] sm:$0xff]
  %v2743 = vld [vmem:[%s3 + $0x108] sm:$0xff]
  %v2744 = vld [vmem:[%s3 + $0x110] sm:$0xff]
  %v2745 = vld [vmem:[%s3 + $0x118] sm:$0xff]
  %v2746 = vld [vmem:[%s3 + $0x120] sm:$0xff]
  %v2747 = vld [vmem:[%s3 + $0x128] sm:$0xff]
  %v2748 = vld [vmem:[%s3 + $0x130] sm:$0xff]
  %v2749 = vld [vmem:[%s3 + $0x138] sm:$0xff]
  %v2750 = vld [vmem:[%s3 + $0x140] sm:$0xff]
  %v2751 = vld [vmem:[%s3 + $0x148] sm:$0xff]
  %v2752 = vld [vmem:[%s3 + $0x150] sm:$0xff]
  %v2753 = vld [vmem:[%s3 + $0x158] sm:$0xff]
  %v2754 = vld [vmem:[%s3 + $0x160] sm:$0xff]
  %v2755 = vld [vmem:[%s3 + $0x168] sm:$0xff]
  %v2756 = vld [vmem:[%s3 + $0x170] sm:$0xff]
  %v2757 = vld [vmem:[%s3 + $0x178] sm:$0xff]
  %v2758 = vld [vmem:[%s3 + $0x180] sm:$0xff]
  %v2759 = vld [vmem:[%s3 + $0x188] sm:$0xff]
  %v2760 = vld [vmem:[%s3 + $0x190] sm:$0xff]
  %v2761 = vld [vmem:[%s3 + $0x198] sm:$0xff]
  %v2762 = vld [vmem:[%s3 + $0x1a0] sm:$0xff]
  %v2763 = vld [vmem:[%s3 + $0x1a8] sm:$0xff]
  %v2764 = vld [vmem:[%s3 + $0x1b0] sm:$0xff]
  %v2765 = vld [vmem:[%s3 + $0x1b8] sm:$0xff]
  %v2766 = vld [vmem:[%s3 + $0x1c0] sm:$0xff]
  %v2767 = vld [vmem:[%s3 + $0x1c8] sm:$0xff]
  %v2768 = vld [vmem:[%s3 + $0x1d0] sm:$0xff]
  %v2769 = vld [vmem:[%s3 + $0x1d8] sm:$0xff]
  %v2770 = vld [vmem:[%s3 + $0x1e0] sm:$0xff]
  %v2771 = vld [vmem:[%s3 + $0x1e8] sm:$0xff]
  %v2772 = vld [vmem:[%s3 + $0x1f0] sm:$0xff]
  %v2773 = vld [vmem:[%s3 + $0x1f8] sm:$0xff]
  %v2774 = vld [vmem:[%s3 + $0x200] sm:$0xff]
  %v2775 = vld [vmem:[%s3 + $0x208] sm:$0xff]
  %v2776 = vld [vmem:[%s3 + $0x210] sm:$0xff]
  %v2777 = vld [vmem:[%s3 + $0x218] sm:$0xff]
  %v2778 = vld [vmem:[%s3 + $0x220] sm:$0xff]
  %v2779 = vld [vmem:[%s3 + $0x228] sm:$0xff]
  %v2780 = vld [vmem:[%s3 + $0x230] sm:$0xff]
  %v2781 = vld [vmem:[%s3 + $0x238] sm:$0xff]
  %v2782 = vld [vmem:[%s3 + $0x240] sm:$0xff]
  %v2783 = vld [vmem:[%s3 + $0x248] sm:$0xff]
  %v2784 = vld [vmem:[%s3 + $0x250] sm:$0xff]
  %v2785 = vld [vmem:[%s3 + $0x258] sm:$0xff]
  %v2786 = vld [vmem:[%s3 + $0x260] sm:$0xff]
  %v2787 = vld [vmem:[%s3 + $0x268] sm:$0xff]
  %v2788 = vld [vmem:[%s3 + $0x270] sm:$0xff]
  %v2789 = vld [vmem:[%s3 + $0x278] sm:$0xff]
  %v2790 = vld [vmem:[%s3 + $0x280] sm:$0xff]
  %v2791 = vld [vmem:[%s3 + $0x288] sm:$0xff]
  %v2792 = vld [vmem:[%s3 + $0x290] sm:$0xff]
  %v2793 = vld [vmem:[%s3 + $0x298] sm:$0xff]
  %v2794 = vld [vmem:[%s3 + $0x2a0] sm:$0xff]
  %v2795 = vld [vmem:[%s3 + $0x2a8] sm:$0xff]
  %v2796 = vld [vmem:[%s3 + $0x2b0] sm:$0xff]
  %v2797 = vld [vmem:[%s3 + $0x2b8] sm:$0xff]
  %v2798 = vld [vmem:[%s3 + $0x2c0] sm:$0xff]
  %v2799 = vld [vmem:[%s3 + $0x2c8] sm:$0xff]
  %v2800 = vld [vmem:[%s3 + $0x2d0] sm:$0xff]
  %v2801 = vld [vmem:[%s3 + $0x2d8] sm:$0xff]
  %v2802 = vld [vmem:[%s3 + $0x2e0] sm:$0xff]
  %v2803 = vld [vmem:[%s3 + $0x2e8] sm:$0xff]
  %v2804 = vld [vmem:[%s3 + $0x2f0] sm:$0xff]
  %v2805 = vld [vmem:[%s3 + $0x2f8] sm:$0xff]
  %v2806 = vld [vmem:[%s3 + $0x300] sm:$0xff]
  %v2807 = vld [vmem:[%s3 + $0x308] sm:$0xff]
  %v2808 = vld [vmem:[%s3 + $0x310] sm:$0xff]
  %v2809 = vld [vmem:[%s3 + $0x318] sm:$0xff]
  %v2810 = vld [vmem:[%s3 + $0x320] sm:$0xff]
  %v2811 = vld [vmem:[%s3 + $0x328] sm:$0xff]
  %v2812 = vld [vmem:[%s3 + $0x330] sm:$0xff]
  %v2813 = vld [vmem:[%s3 + $0x338] sm:$0xff]
  %v2814 = vld [vmem:[%s3 + $0x340] sm:$0xff]
  %v2815 = vld [vmem:[%s3 + $0x348] sm:$0xff]
  %v2816 = vld [vmem:[%s3 + $0x350] sm:$0xff]
  %v2817 = vld [vmem:[%s3 + $0x358] sm:$0xff]
  %v2818 = vld [vmem:[%s3 + $0x360] sm:$0xff]
  %v2819 = vld [vmem:[%s3 + $0x368] sm:$0xff]
  %v2820 = vld [vmem:[%s3 + $0x370] sm:$0xff]
  %v2821 = vld [vmem:[%s3 + $0x378] sm:$0xff]
  %v2822 = vld [vmem:[%s3 + $0x380] sm:$0xff]
  %v2823 = vld [vmem:[%s3 + $0x388] sm:$0xff]
  %v2824 = vld [vmem:[%s3 + $0x390] sm:$0xff]
  %v2825 = vld [vmem:[%s3 + $0x398] sm:$0xff]
  %v2826 = vld [vmem:[%s3 + $0x3a0] sm:$0xff]
  %v2827 = vld [vmem:[%s3 + $0x3a8] sm:$0xff]
  %v2828 = vld [vmem:[%s3 + $0x3b0] sm:$0xff]
  %v2829 = vld [vmem:[%s3 + $0x3b8] sm:$0xff]
  %v2830 = vld [vmem:[%s3 + $0x3c0] sm:$0xff]
  %v2831 = vld [vmem:[%s3 + $0x3c8] sm:$0xff]
  %v2832 = vld [vmem:[%s3 + $0x3d0] sm:$0xff]
  %v2833 = vld [vmem:[%s3 + $0x3d8] sm:$0xff]
  %v2834 = vld [vmem:[%s3 + $0x3e0] sm:$0xff]
  %v2835 = vld [vmem:[%s3 + $0x3e8] sm:$0xff]
  %v2836 = vld [vmem:[%s3 + $0x3f0] sm:$0xff]
  %v2837 = vld [vmem:[%s3 + $0x3f8] sm:$0xff]
  %v2838 = vmul.f32 %v790, %v2582
  %v2839 = vmul.f32 %v791, %v2583
  %v2840 = vmul.f32 %v792, %v2584
  %v2841 = vmul.f32 %v793, %v2585
  %v2842 = vmul.f32 %v794, %v2586
  %v2843 = vmul.f32 %v795, %v2587
  %v2844 = vmul.f32 %v796, %v2588
  %v2845 = vmul.f32 %v797, %v2589
  %v2846 = vmul.f32 %v798, %v2590
  %v2847 = vmul.f32 %v799, %v2591
  %v2848 = vmul.f32 %v800, %v2592
  %v2849 = vmul.f32 %v801, %v2593
  %v2850 = vmul.f32 %v802, %v2594
  %v2851 = vmul.f32 %v803, %v2595
  %v2852 = vmul.f32 %v804, %v2596
  %v2853 = vmul.f32 %v805, %v2597
  %v2854 = vmul.f32 %v806, %v2598
  %v2855 = vmul.f32 %v807, %v2599
  %v2856 = vmul.f32 %v808, %v2600
  %v2857 = vmul.f32 %v809, %v2601
  %v2858 = vmul.f32 %v810, %v2602
  %v2859 = vmul.f32 %v811, %v2603
  %v2860 = vmul.f32 %v812, %v2604
  %v2861 = vmul.f32 %v813, %v2605
  %v2862 = vmul.f32 %v814, %v2606
  %v2863 = vmul.f32 %v815, %v2607
  %v2864 = vmul.f32 %v816, %v2608
  %v2865 = vmul.f32 %v817, %v2609
  %v2866 = vmul.f32 %v818, %v2610
  %v2867 = vmul.f32 %v819, %v2611
  %v2868 = vmul.f32 %v820, %v2612
  %v2869 = vmul.f32 %v821, %v2613
  %v2870 = vmul.f32 %v822, %v2614
  %v2871 = vmul.f32 %v823, %v2615
  %v2872 = vmul.f32 %v824, %v2616
  %v2873 = vmul.f32 %v825, %v2617
  %v2874 = vmul.f32 %v826, %v2618
  %v2875 = vmul.f32 %v827, %v2619
  %v2876 = vmul.f32 %v828, %v2620
  %v2877 = vmul.f32 %v829, %v2621
  %v2878 = vmul.f32 %v830, %v2622
  %v2879 = vmul.f32 %v831, %v2623
  %v2880 = vmul.f32 %v832, %v2624
  %v2881 = vmul.f32 %v833, %v2625
  %v2882 = vmul.f32 %v834, %v2626
  %v2883 = vmul.f32 %v835, %v2627
  %v2884 = vmul.f32 %v836, %v2628
  %v2885 = vmul.f32 %v837, %v2629
  %v2886 = vmul.f32 %v838, %v2630
  %v2887 = vmul.f32 %v839, %v2631
  %v2888 = vmul.f32 %v840, %v2632
  %v2889 = vmul.f32 %v841, %v2633
  %v2890 = vmul.f32 %v842, %v2634
  %v2891 = vmul.f32 %v843, %v2635
  %v2892 = vmul.f32 %v844, %v2636
  %v2893 = vmul.f32 %v845, %v2637
  %v2894 = vmul.f32 %v846, %v2638
  %v2895 = vmul.f32 %v847, %v2639
  %v2896 = vmul.f32 %v848, %v2640
  %v2897 = vmul.f32 %v849, %v2641
  %v2898 = vmul.f32 %v850, %v2642
  %v2899 = vmul.f32 %v851, %v2643
  %v2900 = vmul.f32 %v852, %v2644
  %v2901 = vmul.f32 %v853, %v2645
  %v2902 = vmul.f32 %v854, %v2646
  %v2903 = vmul.f32 %v855, %v2647
  %v2904 = vmul.f32 %v856, %v2648
  %v2905 = vmul.f32 %v857, %v2649
  %v2906 = vmul.f32 %v858, %v2650
  %v2907 = vmul.f32 %v859, %v2651
  %v2908 = vmul.f32 %v860, %v2652
  %v2909 = vmul.f32 %v861, %v2653
  %v2910 = vmul.f32 %v862, %v2654
  %v2911 = vmul.f32 %v863, %v2655
  %v2912 = vmul.f32 %v864, %v2656
  %v2913 = vmul.f32 %v865, %v2657
  %v2914 = vmul.f32 %v866, %v2658
  %v2915 = vmul.f32 %v867, %v2659
  %v2916 = vmul.f32 %v868, %v2660
  %v2917 = vmul.f32 %v869, %v2661
  %v2918 = vmul.f32 %v870, %v2662
  %v2919 = vmul.f32 %v871, %v2663
  %v2920 = vmul.f32 %v872, %v2664
  %v2921 = vmul.f32 %v873, %v2665
  %v2922 = vmul.f32 %v874, %v2666
  %v2923 = vmul.f32 %v875, %v2667
  %v2924 = vmul.f32 %v876, %v2668
  %v2925 = vmul.f32 %v877, %v2669
  %v2926 = vmul.f32 %v878, %v2670
  %v2927 = vmul.f32 %v879, %v2671
  %v2928 = vmul.f32 %v880, %v2672
  %v2929 = vmul.f32 %v881, %v2673
  %v2930 = vmul.f32 %v882, %v2674
  %v2931 = vmul.f32 %v883, %v2675
  %v2932 = vmul.f32 %v884, %v2676
  %v2933 = vmul.f32 %v885, %v2677
  %v2934 = vmul.f32 %v886, %v2678
  %v2935 = vmul.f32 %v887, %v2679
  %v2936 = vmul.f32 %v888, %v2680
  %v2937 = vmul.f32 %v889, %v2681
  %v2938 = vmul.f32 %v890, %v2682
  %v2939 = vmul.f32 %v891, %v2683
  %v2940 = vmul.f32 %v892, %v2684
  %v2941 = vmul.f32 %v893, %v2685
  %v2942 = vmul.f32 %v894, %v2686
  %v2943 = vmul.f32 %v895, %v2687
  %v2944 = vmul.f32 %v896, %v2688
  %v2945 = vmul.f32 %v897, %v2689
  %v2946 = vmul.f32 %v898, %v2690
  %v2947 = vmul.f32 %v899, %v2691
  %v2948 = vmul.f32 %v900, %v2692
  %v2949 = vmul.f32 %v901, %v2693
  %v2950 = vmul.f32 %v902, %v2694
  %v2951 = vmul.f32 %v903, %v2695
  %v2952 = vmul.f32 %v904, %v2696
  %v2953 = vmul.f32 %v905, %v2697
  %v2954 = vmul.f32 %v906, %v2698
  %v2955 = vmul.f32 %v907, %v2699
  %v2956 = vmul.f32 %v908, %v2700
  %v2957 = vmul.f32 %v909, %v2701
  %v2958 = vmul.f32 %v910, %v2702
  %v2959 = vmul.f32 %v911, %v2703
  %v2960 = vmul.f32 %v912, %v2704
  %v2961 = vmul.f32 %v913, %v2705
  %v2962 = vmul.f32 %v914, %v2706
  %v2963 = vmul.f32 %v915, %v2707
  %v2964 = vmul.f32 %v916, %v2708
  %v2965 = vmul.f32 %v917, %v2709
  %v2966 = vsub.f32 %v2710, %v2838
  %v2967 = vsub.f32 %v2711, %v2839
  %v2968 = vsub.f32 %v2712, %v2840
  %v2969 = vsub.f32 %v2713, %v2841
  %v2970 = vsub.f32 %v2714, %v2842
  %v2971 = vsub.f32 %v2715, %v2843
  %v2972 = vsub.f32 %v2716, %v2844
  %v2973 = vsub.f32 %v2717, %v2845
  %v2974 = vsub.f32 %v2718, %v2846
  %v2975 = vsub.f32 %v2719, %v2847
  %v2976 = vsub.f32 %v2720, %v2848
  %v2977 = vsub.f32 %v2721, %v2849
  %v2978 = vsub.f32 %v2722, %v2850
  %v2979 = vsub.f32 %v2723, %v2851
  %v2980 = vsub.f32 %v2724, %v2852
  %v2981 = vsub.f32 %v2725, %v2853
  %v2982 = vsub.f32 %v2726, %v2854
  %v2983 = vsub.f32 %v2727, %v2855
  %v2984 = vsub.f32 %v2728, %v2856
  %v2985 = vsub.f32 %v2729, %v2857
  %v2986 = vsub.f32 %v2730, %v2858
  %v2987 = vsub.f32 %v2731, %v2859
  %v2988 = vsub.f32 %v2732, %v2860
  %v2989 = vsub.f32 %v2733, %v2861
  %v2990 = vsub.f32 %v2734, %v2862
  %v2991 = vsub.f32 %v2735, %v2863
  %v2992 = vsub.f32 %v2736, %v2864
  %v2993 = vsub.f32 %v2737, %v2865
  %v2994 = vsub.f32 %v2738, %v2866
  %v2995 = vsub.f32 %v2739, %v2867
  %v2996 = vsub.f32 %v2740, %v2868
  %v2997 = vsub.f32 %v2741, %v2869
  %v2998 = vsub.f32 %v2742, %v2870
  %v2999 = vsub.f32 %v2743, %v2871
  %v3000 = vsub.f32 %v2744, %v2872
  %v3001 = vsub.f32 %v2745, %v2873
  %v3002 = vsub.f32 %v2746, %v2874
  %v3003 = vsub.f32 %v2747, %v2875
  %v3004 = vsub.f32 %v2748, %v2876
  %v3005 = vsub.f32 %v2749, %v2877
  %v3006 = vsub.f32 %v2750, %v2878
  %v3007 = vsub.f32 %v2751, %v2879
  %v3008 = vsub.f32 %v2752, %v2880
  %v3009 = vsub.f32 %v2753, %v2881
  %v3010 = vsub.f32 %v2754, %v2882
  %v3011 = vsub.f32 %v2755, %v2883
  %v3012 = vsub.f32 %v2756, %v2884
  %v3013 = vsub.f32 %v2757, %v2885
  %v3014 = vsub.f32 %v2758, %v2886
  %v3015 = vsub.f32 %v2759, %v2887
  %v3016 = vsub.f32 %v2760, %v2888
  %v3017 = vsub.f32 %v2761, %v2889
  %v3018 = vsub.f32 %v2762, %v2890
  %v3019 = vsub.f32 %v2763, %v2891
  %v3020 = vsub.f32 %v2764, %v2892
  %v3021 = vsub.f32 %v2765, %v2893
  %v3022 = vsub.f32 %v2766, %v2894
  %v3023 = vsub.f32 %v2767, %v2895
  %v3024 = vsub.f32 %v2768, %v2896
  %v3025 = vsub.f32 %v2769, %v2897
  %v3026 = vsub.f32 %v2770, %v2898
  %v3027 = vsub.f32 %v2771, %v2899
  %v3028 = vsub.f32 %v2772, %v2900
  %v3029 = vsub.f32 %v2773, %v2901
  %v3030 = vsub.f32 %v2774, %v2902
  %v3031 = vsub.f32 %v2775, %v2903
  %v3032 = vsub.f32 %v2776, %v2904
  %v3033 = vsub.f32 %v2777, %v2905
  %v3034 = vsub.f32 %v2778, %v2906
  %v3035 = vsub.f32 %v2779, %v2907
  %v3036 = vsub.f32 %v2780, %v2908
  %v3037 = vsub.f32 %v2781, %v2909
  %v3038 = vsub.f32 %v2782, %v2910
  %v3039 = vsub.f32 %v2783, %v2911
  %v3040 = vsub.f32 %v2784, %v2912
  %v3041 = vsub.f32 %v2785, %v2913
  %v3042 = vsub.f32 %v2786, %v2914
  %v3043 = vsub.f32 %v2787, %v2915
  %v3044 = vsub.f32 %v2788, %v2916
  %v3045 = vsub.f32 %v2789, %v2917
  %v3046 = vsub.f32 %v2790, %v2918
  %v3047 = vsub.f32 %v2791, %v2919
  %v3048 = vsub.f32 %v2792, %v2920
  %v3049 = vsub.f32 %v2793, %v2921
  %v3050 = vsub.f32 %v2794, %v2922
  %v3051 = vsub.f32 %v2795, %v2923
  %v3052 = vsub.f32 %v2796, %v2924
  %v3053 = vsub.f32 %v2797, %v2925
  %v3054 = vsub.f32 %v2798, %v2926
  %v3055 = vsub.f32 %v2799, %v2927
  %v3056 = vsub.f32 %v2800, %v2928
  %v3057 = vsub.f32 %v2801, %v2929
  %v3058 = vsub.f32 %v2802, %v2930
  %v3059 = vsub.f32 %v2803, %v2931
  %v3060 = vsub.f32 %v2804, %v2932
  %v3061 = vsub.f32 %v2805, %v2933
  %v3062 = vsub.f32 %v2806, %v2934
  %v3063 = vsub.f32 %v2807, %v2935
  %v3064 = vsub.f32 %v2808, %v2936
  %v3065 = vsub.f32 %v2809, %v2937
  %v3066 = vsub.f32 %v2810, %v2938
  %v3067 = vsub.f32 %v2811, %v2939
  %v3068 = vsub.f32 %v2812, %v2940
  %v3069 = vsub.f32 %v2813, %v2941
  %v3070 = vsub.f32 %v2814, %v2942
  %v3071 = vsub.f32 %v2815, %v2943
  %v3072 = vsub.f32 %v2816, %v2944
  %v3073 = vsub.f32 %v2817, %v2945
  %v3074 = vsub.f32 %v2818, %v2946
  %v3075 = vsub.f32 %v2819, %v2947
  %v3076 = vsub.f32 %v2820, %v2948
  %v3077 = vsub.f32 %v2821, %v2949
  %v3078 = vsub.f32 %v2822, %v2950
  %v3079 = vsub.f32 %v2823, %v2951
  %v3080 = vsub.f32 %v2824, %v2952
  %v3081 = vsub.f32 %v2825, %v2953
  %v3082 = vsub.f32 %v2826, %v2954
  %v3083 = vsub.f32 %v2827, %v2955
  %v3084 = vsub.f32 %v2828, %v2956
  %v3085 = vsub.f32 %v2829, %v2957
  %v3086 = vsub.f32 %v2830, %v2958
  %v3087 = vsub.f32 %v2831, %v2959
  %v3088 = vsub.f32 %v2832, %v2960
  %v3089 = vsub.f32 %v2833, %v2961
  %v3090 = vsub.f32 %v2834, %v2962
  %v3091 = vsub.f32 %v2835, %v2963
  %v3092 = vsub.f32 %v2836, %v2964
  %v3093 = vsub.f32 %v2837, %v2965
  %3095 = vset.pattern.permute.xlu0 0
  %3096 = vperm.xlu0 %3095, %v2582
  %v3097 = vpop.permute.xlu0 %3096
  %3100 = vset.pattern.permute.xlu0 0
  %3101 = vperm.xlu0 %3100, %v2583
  %v3102 = vpop.permute.xlu0 %3101
  %3105 = vset.pattern.permute.xlu0 0
  %3106 = vperm.xlu0 %3105, %v2584
  %v3107 = vpop.permute.xlu0 %3106
  %3110 = vset.pattern.permute.xlu0 0
  %3111 = vperm.xlu0 %3110, %v2585
  %v3112 = vpop.permute.xlu0 %3111
  %3115 = vset.pattern.permute.xlu0 0
  %3116 = vperm.xlu0 %3115, %v2586
  %v3117 = vpop.permute.xlu0 %3116
  %3120 = vset.pattern.permute.xlu0 0
  %3121 = vperm.xlu0 %3120, %v2587
  %v3122 = vpop.permute.xlu0 %3121
  %3125 = vset.pattern.permute.xlu0 0
  %3126 = vperm.xlu0 %3125, %v2588
  %v3127 = vpop.permute.xlu0 %3126
  %3130 = vset.pattern.permute.xlu0 0
  %3131 = vperm.xlu0 %3130, %v2589
  %v3132 = vpop.permute.xlu0 %3131
  %3135 = vset.pattern.permute.xlu0 0
  %3136 = vperm.xlu0 %3135, %v2590
  %v3137 = vpop.permute.xlu0 %3136
  %3140 = vset.pattern.permute.xlu0 0
  %3141 = vperm.xlu0 %3140, %v2591
  %v3142 = vpop.permute.xlu0 %3141
  %3145 = vset.pattern.permute.xlu0 0
  %3146 = vperm.xlu0 %3145, %v2592
  %v3147 = vpop.permute.xlu0 %3146
  %3150 = vset.pattern.permute.xlu0 0
  %3151 = vperm.xlu0 %3150, %v2593
  %v3152 = vpop.permute.xlu0 %3151
  %3155 = vset.pattern.permute.xlu0 0
  %3156 = vperm.xlu0 %3155, %v2594
  %v3157 = vpop.permute.xlu0 %3156
  %3160 = vset.pattern.permute.xlu0 0
  %3161 = vperm.xlu0 %3160, %v2595
  %v3162 = vpop.permute.xlu0 %3161
  %3165 = vset.pattern.permute.xlu0 0
  %3166 = vperm.xlu0 %3165, %v2596
  %v3167 = vpop.permute.xlu0 %3166
  %3170 = vset.pattern.permute.xlu0 0
  %3171 = vperm.xlu0 %3170, %v2597
  %v3172 = vpop.permute.xlu0 %3171
  %3175 = vset.pattern.permute.xlu0 0
  %3176 = vperm.xlu0 %3175, %v2598
  %v3177 = vpop.permute.xlu0 %3176
  %3180 = vset.pattern.permute.xlu0 0
  %3181 = vperm.xlu0 %3180, %v2599
  %v3182 = vpop.permute.xlu0 %3181
  %3185 = vset.pattern.permute.xlu0 0
  %3186 = vperm.xlu0 %3185, %v2600
  %v3187 = vpop.permute.xlu0 %3186
  %3190 = vset.pattern.permute.xlu0 0
  %3191 = vperm.xlu0 %3190, %v2601
  %v3192 = vpop.permute.xlu0 %3191
  %3195 = vset.pattern.permute.xlu0 0
  %3196 = vperm.xlu0 %3195, %v2602
  %v3197 = vpop.permute.xlu0 %3196
  %3200 = vset.pattern.permute.xlu0 0
  %3201 = vperm.xlu0 %3200, %v2603
  %v3202 = vpop.permute.xlu0 %3201
  %3205 = vset.pattern.permute.xlu0 0
  %3206 = vperm.xlu0 %3205, %v2604
  %v3207 = vpop.permute.xlu0 %3206
  %3210 = vset.pattern.permute.xlu0 0
  %3211 = vperm.xlu0 %3210, %v2605
  %v3212 = vpop.permute.xlu0 %3211
  %3215 = vset.pattern.permute.xlu0 0
  %3216 = vperm.xlu0 %3215, %v2606
  %v3217 = vpop.permute.xlu0 %3216
  %3220 = vset.pattern.permute.xlu0 0
  %3221 = vperm.xlu0 %3220, %v2607
  %v3222 = vpop.permute.xlu0 %3221
  %3225 = vset.pattern.permute.xlu0 0
  %3226 = vperm.xlu0 %3225, %v2608
  %v3227 = vpop.permute.xlu0 %3226
  %3230 = vset.pattern.permute.xlu0 0
  %3231 = vperm.xlu0 %3230, %v2609
  %v3232 = vpop.permute.xlu0 %3231
  %3235 = vset.pattern.permute.xlu0 0
  %3236 = vperm.xlu0 %3235, %v2610
  %v3237 = vpop.permute.xlu0 %3236
  %3240 = vset.pattern.permute.xlu0 0
  %3241 = vperm.xlu0 %3240, %v2611
  %v3242 = vpop.permute.xlu0 %3241
  %3245 = vset.pattern.permute.xlu0 0
  %3246 = vperm.xlu0 %3245, %v2612
  %v3247 = vpop.permute.xlu0 %3246
  %3250 = vset.pattern.permute.xlu0 0
  %3251 = vperm.xlu0 %3250, %v2613
  %v3252 = vpop.permute.xlu0 %3251
  %3255 = vset.pattern.permute.xlu0 0
  %3256 = vperm.xlu0 %3255, %v2614
  %v3257 = vpop.permute.xlu0 %3256
  %3260 = vset.pattern.permute.xlu0 0
  %3261 = vperm.xlu0 %3260, %v2615
  %v3262 = vpop.permute.xlu0 %3261
  %3265 = vset.pattern.permute.xlu0 0
  %3266 = vperm.xlu0 %3265, %v2616
  %v3267 = vpop.permute.xlu0 %3266
  %3270 = vset.pattern.permute.xlu0 0
  %3271 = vperm.xlu0 %3270, %v2617
  %v3272 = vpop.permute.xlu0 %3271
  %3275 = vset.pattern.permute.xlu0 0
  %3276 = vperm.xlu0 %3275, %v2618
  %v3277 = vpop.permute.xlu0 %3276
  %3280 = vset.pattern.permute.xlu0 0
  %3281 = vperm.xlu0 %3280, %v2619
  %v3282 = vpop.permute.xlu0 %3281
  %3285 = vset.pattern.permute.xlu0 0
  %3286 = vperm.xlu0 %3285, %v2620
  %v3287 = vpop.permute.xlu0 %3286
  %3290 = vset.pattern.permute.xlu0 0
  %3291 = vperm.xlu0 %3290, %v2621
  %v3292 = vpop.permute.xlu0 %3291
  %3295 = vset.pattern.permute.xlu0 0
  %3296 = vperm.xlu0 %3295, %v2622
  %v3297 = vpop.permute.xlu0 %3296
  %3300 = vset.pattern.permute.xlu0 0
  %3301 = vperm.xlu0 %3300, %v2623
  %v3302 = vpop.permute.xlu0 %3301
  %3305 = vset.pattern.permute.xlu0 0
  %3306 = vperm.xlu0 %3305, %v2624
  %v3307 = vpop.permute.xlu0 %3306
  %3310 = vset.pattern.permute.xlu0 0
  %3311 = vperm.xlu0 %3310, %v2625
  %v3312 = vpop.permute.xlu0 %3311
  %3315 = vset.pattern.permute.xlu0 0
  %3316 = vperm.xlu0 %3315, %v2626
  %v3317 = vpop.permute.xlu0 %3316
  %3320 = vset.pattern.permute.xlu0 0
  %3321 = vperm.xlu0 %3320, %v2627
  %v3322 = vpop.permute.xlu0 %3321
  %3325 = vset.pattern.permute.xlu0 0
  %3326 = vperm.xlu0 %3325, %v2628
  %v3327 = vpop.permute.xlu0 %3326
  %3330 = vset.pattern.permute.xlu0 0
  %3331 = vperm.xlu0 %3330, %v2629
  %v3332 = vpop.permute.xlu0 %3331
  %3335 = vset.pattern.permute.xlu0 0
  %3336 = vperm.xlu0 %3335, %v2630
  %v3337 = vpop.permute.xlu0 %3336
  %3340 = vset.pattern.permute.xlu0 0
  %3341 = vperm.xlu0 %3340, %v2631
  %v3342 = vpop.permute.xlu0 %3341
  %3345 = vset.pattern.permute.xlu0 0
  %3346 = vperm.xlu0 %3345, %v2632
  %v3347 = vpop.permute.xlu0 %3346
  %3350 = vset.pattern.permute.xlu0 0
  %3351 = vperm.xlu0 %3350, %v2633
  %v3352 = vpop.permute.xlu0 %3351
  %3355 = vset.pattern.permute.xlu0 0
  %3356 = vperm.xlu0 %3355, %v2634
  %v3357 = vpop.permute.xlu0 %3356
  %3360 = vset.pattern.permute.xlu0 0
  %3361 = vperm.xlu0 %3360, %v2635
  %v3362 = vpop.permute.xlu0 %3361
  %3365 = vset.pattern.permute.xlu0 0
  %3366 = vperm.xlu0 %3365, %v2636
  %v3367 = vpop.permute.xlu0 %3366
  %3370 = vset.pattern.permute.xlu0 0
  %3371 = vperm.xlu0 %3370, %v2637
  %v3372 = vpop.permute.xlu0 %3371
  %3375 = vset.pattern.permute.xlu0 0
  %3376 = vperm.xlu0 %3375, %v2638
  %v3377 = vpop.permute.xlu0 %3376
  %3380 = vset.pattern.permute.xlu0 0
  %3381 = vperm.xlu0 %3380, %v2639
  %v3382 = vpop.permute.xlu0 %3381
  %3385 = vset.pattern.permute.xlu0 0
  %3386 = vperm.xlu0 %3385, %v2640
  %v3387 = vpop.permute.xlu0 %3386
  %3390 = vset.pattern.permute.xlu0 0
  %3391 = vperm.xlu0 %3390, %v2641
  %v3392 = vpop.permute.xlu0 %3391
  %3395 = vset.pattern.permute.xlu0 0
  %3396 = vperm.xlu0 %3395, %v2642
  %v3397 = vpop.permute.xlu0 %3396
  %3400 = vset.pattern.permute.xlu0 0
  %3401 = vperm.xlu0 %3400, %v2643
  %v3402 = vpop.permute.xlu0 %3401
  %3405 = vset.pattern.permute.xlu0 0
  %3406 = vperm.xlu0 %3405, %v2644
  %v3407 = vpop.permute.xlu0 %3406
  %3410 = vset.pattern.permute.xlu0 0
  %3411 = vperm.xlu0 %3410, %v2645
  %v3412 = vpop.permute.xlu0 %3411
  %3415 = vset.pattern.permute.xlu0 0
  %3416 = vperm.xlu0 %3415, %v2646
  %v3417 = vpop.permute.xlu0 %3416
  %3420 = vset.pattern.permute.xlu0 0
  %3421 = vperm.xlu0 %3420, %v2647
  %v3422 = vpop.permute.xlu0 %3421
  %3425 = vset.pattern.permute.xlu0 0
  %3426 = vperm.xlu0 %3425, %v2648
  %v3427 = vpop.permute.xlu0 %3426
  %3430 = vset.pattern.permute.xlu0 0
  %3431 = vperm.xlu0 %3430, %v2649
  %v3432 = vpop.permute.xlu0 %3431
  %3435 = vset.pattern.permute.xlu0 0
  %3436 = vperm.xlu0 %3435, %v2650
  %v3437 = vpop.permute.xlu0 %3436
  %3440 = vset.pattern.permute.xlu0 0
  %3441 = vperm.xlu0 %3440, %v2651
  %v3442 = vpop.permute.xlu0 %3441
  %3445 = vset.pattern.permute.xlu0 0
  %3446 = vperm.xlu0 %3445, %v2652
  %v3447 = vpop.permute.xlu0 %3446
  %3450 = vset.pattern.permute.xlu0 0
  %3451 = vperm.xlu0 %3450, %v2653
  %v3452 = vpop.permute.xlu0 %3451
  %3455 = vset.pattern.permute.xlu0 0
  %3456 = vperm.xlu0 %3455, %v2654
  %v3457 = vpop.permute.xlu0 %3456
  %3460 = vset.pattern.permute.xlu0 0
  %3461 = vperm.xlu0 %3460, %v2655
  %v3462 = vpop.permute.xlu0 %3461
  %3465 = vset.pattern.permute.xlu0 0
  %3466 = vperm.xlu0 %3465, %v2656
  %v3467 = vpop.permute.xlu0 %3466
  %3470 = vset.pattern.permute.xlu0 0
  %3471 = vperm.xlu0 %3470, %v2657
  %v3472 = vpop.permute.xlu0 %3471
  %3475 = vset.pattern.permute.xlu0 0
  %3476 = vperm.xlu0 %3475, %v2658
  %v3477 = vpop.permute.xlu0 %3476
  %3480 = vset.pattern.permute.xlu0 0
  %3481 = vperm.xlu0 %3480, %v2659
  %v3482 = vpop.permute.xlu0 %3481
  %3485 = vset.pattern.permute.xlu0 0
  %3486 = vperm.xlu0 %3485, %v2660
  %v3487 = vpop.permute.xlu0 %3486
  %3490 = vset.pattern.permute.xlu0 0
  %3491 = vperm.xlu0 %3490, %v2661
  %v3492 = vpop.permute.xlu0 %3491
  %3495 = vset.pattern.permute.xlu0 0
  %3496 = vperm.xlu0 %3495, %v2662
  %v3497 = vpop.permute.xlu0 %3496
  %3500 = vset.pattern.permute.xlu0 0
  %3501 = vperm.xlu0 %3500, %v2663
  %v3502 = vpop.permute.xlu0 %3501
  %3505 = vset.pattern.permute.xlu0 0
  %3506 = vperm.xlu0 %3505, %v2664
  %v3507 = vpop.permute.xlu0 %3506
  %3510 = vset.pattern.permute.xlu0 0
  %3511 = vperm.xlu0 %3510, %v2665
  %v3512 = vpop.permute.xlu0 %3511
  %3515 = vset.pattern.permute.xlu0 0
  %3516 = vperm.xlu0 %3515, %v2666
  %v3517 = vpop.permute.xlu0 %3516
  %3520 = vset.pattern.permute.xlu0 0
  %3521 = vperm.xlu0 %3520, %v2667
  %v3522 = vpop.permute.xlu0 %3521
  %3525 = vset.pattern.permute.xlu0 0
  %3526 = vperm.xlu0 %3525, %v2668
  %v3527 = vpop.permute.xlu0 %3526
  %3530 = vset.pattern.permute.xlu0 0
  %3531 = vperm.xlu0 %3530, %v2669
  %v3532 = vpop.permute.xlu0 %3531
  %3535 = vset.pattern.permute.xlu0 0
  %3536 = vperm.xlu0 %3535, %v2670
  %v3537 = vpop.permute.xlu0 %3536
  %3540 = vset.pattern.permute.xlu0 0
  %3541 = vperm.xlu0 %3540, %v2671
  %v3542 = vpop.permute.xlu0 %3541
  %3545 = vset.pattern.permute.xlu0 0
  %3546 = vperm.xlu0 %3545, %v2672
  %v3547 = vpop.permute.xlu0 %3546
  %3550 = vset.pattern.permute.xlu0 0
  %3551 = vperm.xlu0 %3550, %v2673
  %v3552 = vpop.permute.xlu0 %3551
  %3555 = vset.pattern.permute.xlu0 0
  %3556 = vperm.xlu0 %3555, %v2674
  %v3557 = vpop.permute.xlu0 %3556
  %3560 = vset.pattern.permute.xlu0 0
  %3561 = vperm.xlu0 %3560, %v2675
  %v3562 = vpop.permute.xlu0 %3561
  %3565 = vset.pattern.permute.xlu0 0
  %3566 = vperm.xlu0 %3565, %v2676
  %v3567 = vpop.permute.xlu0 %3566
  %3570 = vset.pattern.permute.xlu0 0
  %3571 = vperm.xlu0 %3570, %v2677
  %v3572 = vpop.permute.xlu0 %3571
  %3575 = vset.pattern.permute.xlu0 0
  %3576 = vperm.xlu0 %3575, %v2678
  %v3577 = vpop.permute.xlu0 %3576
  %3580 = vset.pattern.permute.xlu0 0
  %3581 = vperm.xlu0 %3580, %v2679
  %v3582 = vpop.permute.xlu0 %3581
  %3585 = vset.pattern.permute.xlu0 0
  %3586 = vperm.xlu0 %3585, %v2680
  %v3587 = vpop.permute.xlu0 %3586
  %3590 = vset.pattern.permute.xlu0 0
  %3591 = vperm.xlu0 %3590, %v2681
  %v3592 = vpop.permute.xlu0 %3591
  %3595 = vset.pattern.permute.xlu0 0
  %3596 = vperm.xlu0 %3595, %v2682
  %v3597 = vpop.permute.xlu0 %3596
  %3600 = vset.pattern.permute.xlu0 0
  %3601 = vperm.xlu0 %3600, %v2683
  %v3602 = vpop.permute.xlu0 %3601
  %3605 = vset.pattern.permute.xlu0 0
  %3606 = vperm.xlu0 %3605, %v2684
  %v3607 = vpop.permute.xlu0 %3606
  %3610 = vset.pattern.permute.xlu0 0
  %3611 = vperm.xlu0 %3610, %v2685
  %v3612 = vpop.permute.xlu0 %3611
  %3615 = vset.pattern.permute.xlu0 0
  %3616 = vperm.xlu0 %3615, %v2686
  %v3617 = vpop.permute.xlu0 %3616
  %3620 = vset.pattern.permute.xlu0 0
  %3621 = vperm.xlu0 %3620, %v2687
  %v3622 = vpop.permute.xlu0 %3621
  %3625 = vset.pattern.permute.xlu0 0
  %3626 = vperm.xlu0 %3625, %v2688
  %v3627 = vpop.permute.xlu0 %3626
  %3630 = vset.pattern.permute.xlu0 0
  %3631 = vperm.xlu0 %3630, %v2689
  %v3632 = vpop.permute.xlu0 %3631
  %3635 = vset.pattern.permute.xlu0 0
  %3636 = vperm.xlu0 %3635, %v2690
  %v3637 = vpop.permute.xlu0 %3636
  %3640 = vset.pattern.permute.xlu0 0
  %3641 = vperm.xlu0 %3640, %v2691
  %v3642 = vpop.permute.xlu0 %3641
  %3645 = vset.pattern.permute.xlu0 0
  %3646 = vperm.xlu0 %3645, %v2692
  %v3647 = vpop.permute.xlu0 %3646
  %3650 = vset.pattern.permute.xlu0 0
  %3651 = vperm.xlu0 %3650, %v2693
  %v3652 = vpop.permute.xlu0 %3651
  %3655 = vset.pattern.permute.xlu0 0
  %3656 = vperm.xlu0 %3655, %v2694
  %v3657 = vpop.permute.xlu0 %3656
  %3660 = vset.pattern.permute.xlu0 0
  %3661 = vperm.xlu0 %3660, %v2695
  %v3662 = vpop.permute.xlu0 %3661
  %3665 = vset.pattern.permute.xlu0 0
  %3666 = vperm.xlu0 %3665, %v2696
  %v3667 = vpop.permute.xlu0 %3666
  %3670 = vset.pattern.permute.xlu0 0
  %3671 = vperm.xlu0 %3670, %v2697
  %v3672 = vpop.permute.xlu0 %3671
  %3675 = vset.pattern.permute.xlu0 0
  %3676 = vperm.xlu0 %3675, %v2698
  %v3677 = vpop.permute.xlu0 %3676
  %3680 = vset.pattern.permute.xlu0 0
  %3681 = vperm.xlu0 %3680, %v2699
  %v3682 = vpop.permute.xlu0 %3681
  %3685 = vset.pattern.permute.xlu0 0
  %3686 = vperm.xlu0 %3685, %v2700
  %v3687 = vpop.permute.xlu0 %3686
  %3690 = vset.pattern.permute.xlu0 0
  %3691 = vperm.xlu0 %3690, %v2701
  %v3692 = vpop.permute.xlu0 %3691
  %3695 = vset.pattern.permute.xlu0 0
  %3696 = vperm.xlu0 %3695, %v2702
  %v3697 = vpop.permute.xlu0 %3696
  %3700 = vset.pattern.permute.xlu0 0
  %3701 = vperm.xlu0 %3700, %v2703
  %v3702 = vpop.permute.xlu0 %3701
  %3705 = vset.pattern.permute.xlu0 0
  %3706 = vperm.xlu0 %3705, %v2704
  %v3707 = vpop.permute.xlu0 %3706
  %3710 = vset.pattern.permute.xlu0 0
  %3711 = vperm.xlu0 %3710, %v2705
  %v3712 = vpop.permute.xlu0 %3711
  %3715 = vset.pattern.permute.xlu0 0
  %3716 = vperm.xlu0 %3715, %v2706
  %v3717 = vpop.permute.xlu0 %3716
  %3720 = vset.pattern.permute.xlu0 0
  %3721 = vperm.xlu0 %3720, %v2707
  %v3722 = vpop.permute.xlu0 %3721
  %3725 = vset.pattern.permute.xlu0 0
  %3726 = vperm.xlu0 %3725, %v2708
  %v3727 = vpop.permute.xlu0 %3726
  %3730 = vset.pattern.permute.xlu0 0
  %3731 = vperm.xlu0 %3730, %v2709
  %v3732 = vpop.permute.xlu0 %3731
  %v3734 = vmul.f32 %v20, %v3097
  %v3735 = vmul.f32 %v21, %v3097
  %v3736 = vmul.f32 %v22, %v3102
  %v3737 = vmul.f32 %v23, %v3102
  %v3738 = vmul.f32 %v24, %v3107
  %v3739 = vmul.f32 %v25, %v3107
  %v3740 = vmul.f32 %v26, %v3112
  %v3741 = vmul.f32 %v27, %v3112
  %v3742 = vmul.f32 %v28, %v3117
  %v3743 = vmul.f32 %v29, %v3117
  %v3744 = vmul.f32 %v30, %v3122
  %v3745 = vmul.f32 %v31, %v3122
  %v3746 = vmul.f32 %v32, %v3127
  %v3747 = vmul.f32 %v33, %v3127
  %v3748 = vmul.f32 %v34, %v3132
  %v3749 = vmul.f32 %v35, %v3132
  %v3750 = vmul.f32 %v36, %v3137
  %v3751 = vmul.f32 %v37, %v3137
  %v3752 = vmul.f32 %v38, %v3142
  %v3753 = vmul.f32 %v39, %v3142
  %v3754 = vmul.f32 %v40, %v3147
  %v3755 = vmul.f32 %v41, %v3147
  %v3756 = vmul.f32 %v42, %v3152
  %v3757 = vmul.f32 %v43, %v3152
  %v3758 = vmul.f32 %v44, %v3157
  %v3759 = vmul.f32 %v45, %v3157
  %v3760 = vmul.f32 %v46, %v3162
  %v3761 = vmul.f32 %v47, %v3162
  %v3762 = vmul.f32 %v48, %v3167
  %v3763 = vmul.f32 %v49, %v3167
  %v3764 = vmul.f32 %v50, %v3172
  %v3765 = vmul.f32 %v51, %v3172
  %v3766 = vmul.f32 %v52, %v3177
  %v3767 = vmul.f32 %v53, %v3177
  %v3768 = vmul.f32 %v54, %v3182
  %v3769 = vmul.f32 %v55, %v3182
  %v3770 = vmul.f32 %v56, %v3187
  %v3771 = vmul.f32 %v57, %v3187
  %v3772 = vmul.f32 %v58, %v3192
  %v3773 = vmul.f32 %v59, %v3192
  %v3774 = vmul.f32 %v60, %v3197
  %v3775 = vmul.f32 %v61, %v3197
  %v3776 = vmul.f32 %v62, %v3202
  %v3777 = vmul.f32 %v63, %v3202
  %v3778 = vmul.f32 %v64, %v3207
  %v3779 = vmul.f32 %v65, %v3207
  %v3780 = vmul.f32 %v66, %v3212
  %v3781 = vmul.f32 %v67, %v3212
  %v3782 = vmul.f32 %v68, %v3217
  %v3783 = vmul.f32 %v69, %v3217
  %v3784 = vmul.f32 %v70, %v3222
  %v3785 = vmul.f32 %v71, %v3222
  %v3786 = vmul.f32 %v72, %v3227
  %v3787 = vmul.f32 %v73, %v3227
  %v3788 = vmul.f32 %v74, %v3232
  %v3789 = vmul.f32 %v75, %v3232
  %v3790 = vmul.f32 %v76, %v3237
  %v3791 = vmul.f32 %v77, %v3237
  %v3792 = vmul.f32 %v78, %v3242
  %v3793 = vmul.f32 %v79, %v3242
  %v3794 = vmul.f32 %v80, %v3247
  %v3795 = vmul.f32 %v81, %v3247
  %v3796 = vmul.f32 %v82, %v3252
  %v3797 = vmul.f32 %v83, %v3252
  %v3798 = vmul.f32 %v84, %v3257
  %v3799 = vmul.f32 %v85, %v3257
  %v3800 = vmul.f32 %v86, %v3262
  %v3801 = vmul.f32 %v87, %v3262
  %v3802 = vmul.f32 %v88, %v3267
  %v3803 = vmul.f32 %v89, %v3267
  %v3804 = vmul.f32 %v90, %v3272
  %v3805 = vmul.f32 %v91, %v3272
  %v3806 = vmul.f32 %v92, %v3277
  %v3807 = vmul.f32 %v93, %v3277
  %v3808 = vmul.f32 %v94, %v3282
  %v3809 = vmul.f32 %v95, %v3282
  %v3810 = vmul.f32 %v96, %v3287
  %v3811 = vmul.f32 %v97, %v3287
  %v3812 = vmul.f32 %v98, %v3292
  %v3813 = vmul.f32 %v99, %v3292
  %v3814 = vmul.f32 %v100, %v3297
  %v3815 = vmul.f32 %v101, %v3297
  %v3816 = vmul.f32 %v102, %v3302
  %v3817 = vmul.f32 %v103, %v3302
  %v3818 = vmul.f32 %v104, %v3307
  %v3819 = vmul.f32 %v105, %v3307
  %v3820 = vmul.f32 %v106, %v3312
  %v3821 = vmul.f32 %v107, %v3312
  %v3822 = vmul.f32 %v108, %v3317
  %v3823 = vmul.f32 %v109, %v3317
  %v3824 = vmul.f32 %v110, %v3322
  %v3825 = vmul.f32 %v111, %v3322
  %v3826 = vmul.f32 %v112, %v3327
  %v3827 = vmul.f32 %v113, %v3327
  %v3828 = vmul.f32 %v114, %v3332
  %v3829 = vmul.f32 %v115, %v3332
  %v3830 = vmul.f32 %v116, %v3337
  %v3831 = vmul.f32 %v117, %v3337
  %v3832 = vmul.f32 %v118, %v3342
  %v3833 = vmul.f32 %v119, %v3342
  %v3834 = vmul.f32 %v120, %v3347
  %v3835 = vmul.f32 %v121, %v3347
  %v3836 = vmul.f32 %v122, %v3352
  %v3837 = vmul.f32 %v123, %v3352
  %v3838 = vmul.f32 %v124, %v3357
  %v3839 = vmul.f32 %v125, %v3357
  %v3840 = vmul.f32 %v126, %v3362
  %v3841 = vmul.f32 %v127, %v3362
  %v3842 = vmul.f32 %v128, %v3367
  %v3843 = vmul.f32 %v129, %v3367
  %v3844 = vmul.f32 %v130, %v3372
  %v3845 = vmul.f32 %v131, %v3372
  %v3846 = vmul.f32 %v132, %v3377
  %v3847 = vmul.f32 %v133, %v3377
  %v3848 = vmul.f32 %v134, %v3382
  %v3849 = vmul.f32 %v135, %v3382
  %v3850 = vmul.f32 %v136, %v3387
  %v3851 = vmul.f32 %v137, %v3387
  %v3852 = vmul.f32 %v138, %v3392
  %v3853 = vmul.f32 %v139, %v3392
  %v3854 = vmul.f32 %v140, %v3397
  %v3855 = vmul.f32 %v141, %v3397
  %v3856 = vmul.f32 %v142, %v3402
  %v3857 = vmul.f32 %v143, %v3402
  %v3858 = vmul.f32 %v144, %v3407
  %v3859 = vmul.f32 %v145, %v3407
  %v3860 = vmul.f32 %v146, %v3412
  %v3861 = vmul.f32 %v147, %v3412
  %v3862 = vmul.f32 %v148, %v3417
  %v3863 = vmul.f32 %v149, %v3417
  %v3864 = vmul.f32 %v150, %v3422
  %v3865 = vmul.f32 %v151, %v3422
  %v3866 = vmul.f32 %v152, %v3427
  %v3867 = vmul.f32 %v153, %v3427
  %v3868 = vmul.f32 %v154, %v3432
  %v3869 = vmul.f32 %v155, %v3432
  %v3870 = vmul.f32 %v156, %v3437
  %v3871 = vmul.f32 %v157, %v3437
  %v3872 = vmul.f32 %v158, %v3442
  %v3873 = vmul.f32 %v159, %v3442
  %v3874 = vmul.f32 %v160, %v3447
  %v3875 = vmul.f32 %v161, %v3447
  %v3876 = vmul.f32 %v162, %v3452
  %v3877 = vmul.f32 %v163, %v3452
  %v3878 = vmul.f32 %v164, %v3457
  %v3879 = vmul.f32 %v165, %v3457
  %v3880 = vmul.f32 %v166, %v3462
  %v3881 = vmul.f32 %v167, %v3462
  %v3882 = vmul.f32 %v168, %v3467
  %v3883 = vmul.f32 %v169, %v3467
  %v3884 = vmul.f32 %v170, %v3472
  %v3885 = vmul.f32 %v171, %v3472
  %v3886 = vmul.f32 %v172, %v3477
  %v3887 = vmul.f32 %v173, %v3477
  %v3888 = vmul.f32 %v174, %v3482
  %v3889 = vmul.f32 %v175, %v3482
  %v3890 = vmul.f32 %v176, %v3487
  %v3891 = vmul.f32 %v177, %v3487
  %v3892 = vmul.f32 %v178, %v3492
  %v3893 = vmul.f32 %v179, %v3492
  %v3894 = vmul.f32 %v180, %v3497
  %v3895 = vmul.f32 %v181, %v3497
  %v3896 = vmul.f32 %v182, %v3502
  %v3897 = vmul.f32 %v183, %v3502
  %v3898 = vmul.f32 %v184, %v3507
  %v3899 = vmul.f32 %v185, %v3507
  %v3900 = vmul.f32 %v186, %v3512
  %v3901 = vmul.f32 %v187, %v3512
  %v3902 = vmul.f32 %v188, %v3517
  %v3903 = vmul.f32 %v189, %v3517
  %v3904 = vmul.f32 %v190, %v3522
  %v3905 = vmul.f32 %v191, %v3522
  %v3906 = vmul.f32 %v192, %v3527
  %v3907 = vmul.f32 %v193, %v3527
  %v3908 = vmul.f32 %v194, %v3532
  %v3909 = vmul.f32 %v195, %v3532
  %v3910 = vmul.f32 %v196, %v3537
  %v3911 = vmul.f32 %v197, %v3537
  %v3912 = vmul.f32 %v198, %v3542
  %v3913 = vmul.f32 %v199, %v3542
  %v3914 = vmul.f32 %v200, %v3547
  %v3915 = vmul.f32 %v201, %v3547
  %v3916 = vmul.f32 %v202, %v3552
  %v3917 = vmul.f32 %v203, %v3552
  %v3918 = vmul.f32 %v204, %v3557
  %v3919 = vmul.f32 %v205, %v3557
  %v3920 = vmul.f32 %v206, %v3562
  %v3921 = vmul.f32 %v207, %v3562
  %v3922 = vmul.f32 %v208, %v3567
  %v3923 = vmul.f32 %v209, %v3567
  %v3924 = vmul.f32 %v210, %v3572
  %v3925 = vmul.f32 %v211, %v3572
  %v3926 = vmul.f32 %v212, %v3577
  %v3927 = vmul.f32 %v213, %v3577
  %v3928 = vmul.f32 %v214, %v3582
  %v3929 = vmul.f32 %v215, %v3582
  %v3930 = vmul.f32 %v216, %v3587
  %v3931 = vmul.f32 %v217, %v3587
  %v3932 = vmul.f32 %v218, %v3592
  %v3933 = vmul.f32 %v219, %v3592
  %v3934 = vmul.f32 %v220, %v3597
  %v3935 = vmul.f32 %v221, %v3597
  %v3936 = vmul.f32 %v222, %v3602
  %v3937 = vmul.f32 %v223, %v3602
  %v3938 = vmul.f32 %v224, %v3607
  %v3939 = vmul.f32 %v225, %v3607
  %v3940 = vmul.f32 %v226, %v3612
  %v3941 = vmul.f32 %v227, %v3612
  %v3942 = vmul.f32 %v228, %v3617
  %v3943 = vmul.f32 %v229, %v3617
  %v3944 = vmul.f32 %v230, %v3622
  %v3945 = vmul.f32 %v231, %v3622
  %v3946 = vmul.f32 %v232, %v3627
  %v3947 = vmul.f32 %v233, %v3627
  %v3948 = vmul.f32 %v234, %v3632
  %v3949 = vmul.f32 %v235, %v3632
  %v3950 = vmul.f32 %v236, %v3637
  %v3951 = vmul.f32 %v237, %v3637
  %v3952 = vmul.f32 %v238, %v3642
  %v3953 = vmul.f32 %v239, %v3642
  %v3954 = vmul.f32 %v240, %v3647
  %v3955 = vmul.f32 %v241, %v3647
  %v3956 = vmul.f32 %v242, %v3652
  %v3957 = vmul.f32 %v243, %v3652
  %v3958 = vmul.f32 %v244, %v3657
  %v3959 = vmul.f32 %v245, %v3657
  %v3960 = vmul.f32 %v246, %v3662
  %v3961 = vmul.f32 %v247, %v3662
  %v3962 = vmul.f32 %v248, %v3667
  %v3963 = vmul.f32 %v249, %v3667
  %v3964 = vmul.f32 %v250, %v3672
  %v3965 = vmul.f32 %v251, %v3672
  %v3966 = vmul.f32 %v252, %v3677
  %v3967 = vmul.f32 %v253, %v3677
  %v3968 = vmul.f32 %v254, %v3682
  %v3969 = vmul.f32 %v255, %v3682
  %v3970 = vmul.f32 %v256, %v3687
  %v3971 = vmul.f32 %v257, %v3687
  %v3972 = vmul.f32 %v258, %v3692
  %v3973 = vmul.f32 %v259, %v3692
  %v3974 = vmul.f32 %v260, %v3697
  %v3975 = vmul.f32 %v261, %v3697
  %v3976 = vmul.f32 %v262, %v3702
  %v3977 = vmul.f32 %v263, %v3702
  %v3978 = vmul.f32 %v264, %v3707
  %v3979 = vmul.f32 %v265, %v3707
  %v3980 = vmul.f32 %v266, %v3712
  %v3981 = vmul.f32 %v267, %v3712
  %v3982 = vmul.f32 %v268, %v3717
  %v3983 = vmul.f32 %v269, %v3717
  %v3984 = vmul.f32 %v270, %v3722
  %v3985 = vmul.f32 %v271, %v3722
  %v3986 = vmul.f32 %v272, %v3727
  %v3987 = vmul.f32 %v273, %v3727
  %v3988 = vmul.f32 %v274, %v3732
  %v3989 = vmul.f32 %v275, %v3732
  %3991 = vset.pattern.permute.xlu0 0
  %3992 = vperm.xlu0 %3991, %v2966
  %v3993 = vpop.permute.xlu0 %3992
  %3996 = vset.pattern.permute.xlu0 0
  %3997 = vperm.xlu0 %3996, %v2967
  %v3998 = vpop.permute.xlu0 %3997
  %4001 = vset.pattern.permute.xlu0 0
  %4002 = vperm.xlu0 %4001, %v2968
  %v4003 = vpop.permute.xlu0 %4002
  %4006 = vset.pattern.permute.xlu0 0
  %4007 = vperm.xlu0 %4006, %v2969
  %v4008 = vpop.permute.xlu0 %4007
  %4011 = vset.pattern.permute.xlu0 0
  %4012 = vperm.xlu0 %4011, %v2970
  %v4013 = vpop.permute.xlu0 %4012
  %4016 = vset.pattern.permute.xlu0 0
  %4017 = vperm.xlu0 %4016, %v2971
  %v4018 = vpop.permute.xlu0 %4017
  %4021 = vset.pattern.permute.xlu0 0
  %4022 = vperm.xlu0 %4021, %v2972
  %v4023 = vpop.permute.xlu0 %4022
  %4026 = vset.pattern.permute.xlu0 0
  %4027 = vperm.xlu0 %4026, %v2973
  %v4028 = vpop.permute.xlu0 %4027
  %4031 = vset.pattern.permute.xlu0 0
  %4032 = vperm.xlu0 %4031, %v2974
  %v4033 = vpop.permute.xlu0 %4032
  %4036 = vset.pattern.permute.xlu0 0
  %4037 = vperm.xlu0 %4036, %v2975
  %v4038 = vpop.permute.xlu0 %4037
  %4041 = vset.pattern.permute.xlu0 0
  %4042 = vperm.xlu0 %4041, %v2976
  %v4043 = vpop.permute.xlu0 %4042
  %4046 = vset.pattern.permute.xlu0 0
  %4047 = vperm.xlu0 %4046, %v2977
  %v4048 = vpop.permute.xlu0 %4047
  %4051 = vset.pattern.permute.xlu0 0
  %4052 = vperm.xlu0 %4051, %v2978
  %v4053 = vpop.permute.xlu0 %4052
  %4056 = vset.pattern.permute.xlu0 0
  %4057 = vperm.xlu0 %4056, %v2979
  %v4058 = vpop.permute.xlu0 %4057
  %4061 = vset.pattern.permute.xlu0 0
  %4062 = vperm.xlu0 %4061, %v2980
  %v4063 = vpop.permute.xlu0 %4062
  %4066 = vset.pattern.permute.xlu0 0
  %4067 = vperm.xlu0 %4066, %v2981
  %v4068 = vpop.permute.xlu0 %4067
  %4071 = vset.pattern.permute.xlu0 0
  %4072 = vperm.xlu0 %4071, %v2982
  %v4073 = vpop.permute.xlu0 %4072
  %4076 = vset.pattern.permute.xlu0 0
  %4077 = vperm.xlu0 %4076, %v2983
  %v4078 = vpop.permute.xlu0 %4077
  %4081 = vset.pattern.permute.xlu0 0
  %4082 = vperm.xlu0 %4081, %v2984
  %v4083 = vpop.permute.xlu0 %4082
  %4086 = vset.pattern.permute.xlu0 0
  %4087 = vperm.xlu0 %4086, %v2985
  %v4088 = vpop.permute.xlu0 %4087
  %4091 = vset.pattern.permute.xlu0 0
  %4092 = vperm.xlu0 %4091, %v2986
  %v4093 = vpop.permute.xlu0 %4092
  %4096 = vset.pattern.permute.xlu0 0
  %4097 = vperm.xlu0 %4096, %v2987
  %v4098 = vpop.permute.xlu0 %4097
  %4101 = vset.pattern.permute.xlu0 0
  %4102 = vperm.xlu0 %4101, %v2988
  %v4103 = vpop.permute.xlu0 %4102
  %4106 = vset.pattern.permute.xlu0 0
  %4107 = vperm.xlu0 %4106, %v2989
  %v4108 = vpop.permute.xlu0 %4107
  %4111 = vset.pattern.permute.xlu0 0
  %4112 = vperm.xlu0 %4111, %v2990
  %v4113 = vpop.permute.xlu0 %4112
  %4116 = vset.pattern.permute.xlu0 0
  %4117 = vperm.xlu0 %4116, %v2991
  %v4118 = vpop.permute.xlu0 %4117
  %4121 = vset.pattern.permute.xlu0 0
  %4122 = vperm.xlu0 %4121, %v2992
  %v4123 = vpop.permute.xlu0 %4122
  %4126 = vset.pattern.permute.xlu0 0
  %4127 = vperm.xlu0 %4126, %v2993
  %v4128 = vpop.permute.xlu0 %4127
  %4131 = vset.pattern.permute.xlu0 0
  %4132 = vperm.xlu0 %4131, %v2994
  %v4133 = vpop.permute.xlu0 %4132
  %4136 = vset.pattern.permute.xlu0 0
  %4137 = vperm.xlu0 %4136, %v2995
  %v4138 = vpop.permute.xlu0 %4137
  %4141 = vset.pattern.permute.xlu0 0
  %4142 = vperm.xlu0 %4141, %v2996
  %v4143 = vpop.permute.xlu0 %4142
  %4146 = vset.pattern.permute.xlu0 0
  %4147 = vperm.xlu0 %4146, %v2997
  %v4148 = vpop.permute.xlu0 %4147
  %4151 = vset.pattern.permute.xlu0 0
  %4152 = vperm.xlu0 %4151, %v2998
  %v4153 = vpop.permute.xlu0 %4152
  %4156 = vset.pattern.permute.xlu0 0
  %4157 = vperm.xlu0 %4156, %v2999
  %v4158 = vpop.permute.xlu0 %4157
  %4161 = vset.pattern.permute.xlu0 0
  %4162 = vperm.xlu0 %4161, %v3000
  %v4163 = vpop.permute.xlu0 %4162
  %4166 = vset.pattern.permute.xlu0 0
  %4167 = vperm.xlu0 %4166, %v3001
  %v4168 = vpop.permute.xlu0 %4167
  %4171 = vset.pattern.permute.xlu0 0
  %4172 = vperm.xlu0 %4171, %v3002
  %v4173 = vpop.permute.xlu0 %4172
  %4176 = vset.pattern.permute.xlu0 0
  %4177 = vperm.xlu0 %4176, %v3003
  %v4178 = vpop.permute.xlu0 %4177
  %4181 = vset.pattern.permute.xlu0 0
  %4182 = vperm.xlu0 %4181, %v3004
  %v4183 = vpop.permute.xlu0 %4182
  %4186 = vset.pattern.permute.xlu0 0
  %4187 = vperm.xlu0 %4186, %v3005
  %v4188 = vpop.permute.xlu0 %4187
  %4191 = vset.pattern.permute.xlu0 0
  %4192 = vperm.xlu0 %4191, %v3006
  %v4193 = vpop.permute.xlu0 %4192
  %4196 = vset.pattern.permute.xlu0 0
  %4197 = vperm.xlu0 %4196, %v3007
  %v4198 = vpop.permute.xlu0 %4197
  %4201 = vset.pattern.permute.xlu0 0
  %4202 = vperm.xlu0 %4201, %v3008
  %v4203 = vpop.permute.xlu0 %4202
  %4206 = vset.pattern.permute.xlu0 0
  %4207 = vperm.xlu0 %4206, %v3009
  %v4208 = vpop.permute.xlu0 %4207
  %4211 = vset.pattern.permute.xlu0 0
  %4212 = vperm.xlu0 %4211, %v3010
  %v4213 = vpop.permute.xlu0 %4212
  %4216 = vset.pattern.permute.xlu0 0
  %4217 = vperm.xlu0 %4216, %v3011
  %v4218 = vpop.permute.xlu0 %4217
  %4221 = vset.pattern.permute.xlu0 0
  %4222 = vperm.xlu0 %4221, %v3012
  %v4223 = vpop.permute.xlu0 %4222
  %4226 = vset.pattern.permute.xlu0 0
  %4227 = vperm.xlu0 %4226, %v3013
  %v4228 = vpop.permute.xlu0 %4227
  %4231 = vset.pattern.permute.xlu0 0
  %4232 = vperm.xlu0 %4231, %v3014
  %v4233 = vpop.permute.xlu0 %4232
  %4236 = vset.pattern.permute.xlu0 0
  %4237 = vperm.xlu0 %4236, %v3015
  %v4238 = vpop.permute.xlu0 %4237
  %4241 = vset.pattern.permute.xlu0 0
  %4242 = vperm.xlu0 %4241, %v3016
  %v4243 = vpop.permute.xlu0 %4242
  %4246 = vset.pattern.permute.xlu0 0
  %4247 = vperm.xlu0 %4246, %v3017
  %v4248 = vpop.permute.xlu0 %4247
  %4251 = vset.pattern.permute.xlu0 0
  %4252 = vperm.xlu0 %4251, %v3018
  %v4253 = vpop.permute.xlu0 %4252
  %4256 = vset.pattern.permute.xlu0 0
  %4257 = vperm.xlu0 %4256, %v3019
  %v4258 = vpop.permute.xlu0 %4257
  %4261 = vset.pattern.permute.xlu0 0
  %4262 = vperm.xlu0 %4261, %v3020
  %v4263 = vpop.permute.xlu0 %4262
  %4266 = vset.pattern.permute.xlu0 0
  %4267 = vperm.xlu0 %4266, %v3021
  %v4268 = vpop.permute.xlu0 %4267
  %4271 = vset.pattern.permute.xlu0 0
  %4272 = vperm.xlu0 %4271, %v3022
  %v4273 = vpop.permute.xlu0 %4272
  %4276 = vset.pattern.permute.xlu0 0
  %4277 = vperm.xlu0 %4276, %v3023
  %v4278 = vpop.permute.xlu0 %4277
  %4281 = vset.pattern.permute.xlu0 0
  %4282 = vperm.xlu0 %4281, %v3024
  %v4283 = vpop.permute.xlu0 %4282
  %4286 = vset.pattern.permute.xlu0 0
  %4287 = vperm.xlu0 %4286, %v3025
  %v4288 = vpop.permute.xlu0 %4287
  %4291 = vset.pattern.permute.xlu0 0
  %4292 = vperm.xlu0 %4291, %v3026
  %v4293 = vpop.permute.xlu0 %4292
  %4296 = vset.pattern.permute.xlu0 0
  %4297 = vperm.xlu0 %4296, %v3027
  %v4298 = vpop.permute.xlu0 %4297
  %4301 = vset.pattern.permute.xlu0 0
  %4302 = vperm.xlu0 %4301, %v3028
  %v4303 = vpop.permute.xlu0 %4302
  %4306 = vset.pattern.permute.xlu0 0
  %4307 = vperm.xlu0 %4306, %v3029
  %v4308 = vpop.permute.xlu0 %4307
  %4311 = vset.pattern.permute.xlu0 0
  %4312 = vperm.xlu0 %4311, %v3030
  %v4313 = vpop.permute.xlu0 %4312
  %4316 = vset.pattern.permute.xlu0 0
  %4317 = vperm.xlu0 %4316, %v3031
  %v4318 = vpop.permute.xlu0 %4317
  %4321 = vset.pattern.permute.xlu0 0
  %4322 = vperm.xlu0 %4321, %v3032
  %v4323 = vpop.permute.xlu0 %4322
  %4326 = vset.pattern.permute.xlu0 0
  %4327 = vperm.xlu0 %4326, %v3033
  %v4328 = vpop.permute.xlu0 %4327
  %4331 = vset.pattern.permute.xlu0 0
  %4332 = vperm.xlu0 %4331, %v3034
  %v4333 = vpop.permute.xlu0 %4332
  %4336 = vset.pattern.permute.xlu0 0
  %4337 = vperm.xlu0 %4336, %v3035
  %v4338 = vpop.permute.xlu0 %4337
  %4341 = vset.pattern.permute.xlu0 0
  %4342 = vperm.xlu0 %4341, %v3036
  %v4343 = vpop.permute.xlu0 %4342
  %4346 = vset.pattern.permute.xlu0 0
  %4347 = vperm.xlu0 %4346, %v3037
  %v4348 = vpop.permute.xlu0 %4347
  %4351 = vset.pattern.permute.xlu0 0
  %4352 = vperm.xlu0 %4351, %v3038
  %v4353 = vpop.permute.xlu0 %4352
  %4356 = vset.pattern.permute.xlu0 0
  %4357 = vperm.xlu0 %4356, %v3039
  %v4358 = vpop.permute.xlu0 %4357
  %4361 = vset.pattern.permute.xlu0 0
  %4362 = vperm.xlu0 %4361, %v3040
  %v4363 = vpop.permute.xlu0 %4362
  %4366 = vset.pattern.permute.xlu0 0
  %4367 = vperm.xlu0 %4366, %v3041
  %v4368 = vpop.permute.xlu0 %4367
  %4371 = vset.pattern.permute.xlu0 0
  %4372 = vperm.xlu0 %4371, %v3042
  %v4373 = vpop.permute.xlu0 %4372
  %4376 = vset.pattern.permute.xlu0 0
  %4377 = vperm.xlu0 %4376, %v3043
  %v4378 = vpop.permute.xlu0 %4377
  %4381 = vset.pattern.permute.xlu0 0
  %4382 = vperm.xlu0 %4381, %v3044
  %v4383 = vpop.permute.xlu0 %4382
  %4386 = vset.pattern.permute.xlu0 0
  %4387 = vperm.xlu0 %4386, %v3045
  %v4388 = vpop.permute.xlu0 %4387
  %4391 = vset.pattern.permute.xlu0 0
  %4392 = vperm.xlu0 %4391, %v3046
  %v4393 = vpop.permute.xlu0 %4392
  %4396 = vset.pattern.permute.xlu0 0
  %4397 = vperm.xlu0 %4396, %v3047
  %v4398 = vpop.permute.xlu0 %4397
  %4401 = vset.pattern.permute.xlu0 0
  %4402 = vperm.xlu0 %4401, %v3048
  %v4403 = vpop.permute.xlu0 %4402
  %4406 = vset.pattern.permute.xlu0 0
  %4407 = vperm.xlu0 %4406, %v3049
  %v4408 = vpop.permute.xlu0 %4407
  %4411 = vset.pattern.permute.xlu0 0
  %4412 = vperm.xlu0 %4411, %v3050
  %v4413 = vpop.permute.xlu0 %4412
  %4416 = vset.pattern.permute.xlu0 0
  %4417 = vperm.xlu0 %4416, %v3051
  %v4418 = vpop.permute.xlu0 %4417
  %4421 = vset.pattern.permute.xlu0 0
  %4422 = vperm.xlu0 %4421, %v3052
  %v4423 = vpop.permute.xlu0 %4422
  %4426 = vset.pattern.permute.xlu0 0
  %4427 = vperm.xlu0 %4426, %v3053
  %v4428 = vpop.permute.xlu0 %4427
  %4431 = vset.pattern.permute.xlu0 0
  %4432 = vperm.xlu0 %4431, %v3054
  %v4433 = vpop.permute.xlu0 %4432
  %4436 = vset.pattern.permute.xlu0 0
  %4437 = vperm.xlu0 %4436, %v3055
  %v4438 = vpop.permute.xlu0 %4437
  %4441 = vset.pattern.permute.xlu0 0
  %4442 = vperm.xlu0 %4441, %v3056
  %v4443 = vpop.permute.xlu0 %4442
  %4446 = vset.pattern.permute.xlu0 0
  %4447 = vperm.xlu0 %4446, %v3057
  %v4448 = vpop.permute.xlu0 %4447
  %4451 = vset.pattern.permute.xlu0 0
  %4452 = vperm.xlu0 %4451, %v3058
  %v4453 = vpop.permute.xlu0 %4452
  %4456 = vset.pattern.permute.xlu0 0
  %4457 = vperm.xlu0 %4456, %v3059
  %v4458 = vpop.permute.xlu0 %4457
  %4461 = vset.pattern.permute.xlu0 0
  %4462 = vperm.xlu0 %4461, %v3060
  %v4463 = vpop.permute.xlu0 %4462
  %4466 = vset.pattern.permute.xlu0 0
  %4467 = vperm.xlu0 %4466, %v3061
  %v4468 = vpop.permute.xlu0 %4467
  %4471 = vset.pattern.permute.xlu0 0
  %4472 = vperm.xlu0 %4471, %v3062
  %v4473 = vpop.permute.xlu0 %4472
  %4476 = vset.pattern.permute.xlu0 0
  %4477 = vperm.xlu0 %4476, %v3063
  %v4478 = vpop.permute.xlu0 %4477
  %4481 = vset.pattern.permute.xlu0 0
  %4482 = vperm.xlu0 %4481, %v3064
  %v4483 = vpop.permute.xlu0 %4482
  %4486 = vset.pattern.permute.xlu0 0
  %4487 = vperm.xlu0 %4486, %v3065
  %v4488 = vpop.permute.xlu0 %4487
  %4491 = vset.pattern.permute.xlu0 0
  %4492 = vperm.xlu0 %4491, %v3066
  %v4493 = vpop.permute.xlu0 %4492
  %4496 = vset.pattern.permute.xlu0 0
  %4497 = vperm.xlu0 %4496, %v3067
  %v4498 = vpop.permute.xlu0 %4497
  %4501 = vset.pattern.permute.xlu0 0
  %4502 = vperm.xlu0 %4501, %v3068
  %v4503 = vpop.permute.xlu0 %4502
  %4506 = vset.pattern.permute.xlu0 0
  %4507 = vperm.xlu0 %4506, %v3069
  %v4508 = vpop.permute.xlu0 %4507
  %4511 = vset.pattern.permute.xlu0 0
  %4512 = vperm.xlu0 %4511, %v3070
  %v4513 = vpop.permute.xlu0 %4512
  %4516 = vset.pattern.permute.xlu0 0
  %4517 = vperm.xlu0 %4516, %v3071
  %v4518 = vpop.permute.xlu0 %4517
  %4521 = vset.pattern.permute.xlu0 0
  %4522 = vperm.xlu0 %4521, %v3072
  %v4523 = vpop.permute.xlu0 %4522
  %4526 = vset.pattern.permute.xlu0 0
  %4527 = vperm.xlu0 %4526, %v3073
  %v4528 = vpop.permute.xlu0 %4527
  %4531 = vset.pattern.permute.xlu0 0
  %4532 = vperm.xlu0 %4531, %v3074
  %v4533 = vpop.permute.xlu0 %4532
  %4536 = vset.pattern.permute.xlu0 0
  %4537 = vperm.xlu0 %4536, %v3075
  %v4538 = vpop.permute.xlu0 %4537
  %4541 = vset.pattern.permute.xlu0 0
  %4542 = vperm.xlu0 %4541, %v3076
  %v4543 = vpop.permute.xlu0 %4542
  %4546 = vset.pattern.permute.xlu0 0
  %4547 = vperm.xlu0 %4546, %v3077
  %v4548 = vpop.permute.xlu0 %4547
  %4551 = vset.pattern.permute.xlu0 0
  %4552 = vperm.xlu0 %4551, %v3078
  %v4553 = vpop.permute.xlu0 %4552
  %4556 = vset.pattern.permute.xlu0 0
  %4557 = vperm.xlu0 %4556, %v3079
  %v4558 = vpop.permute.xlu0 %4557
  %4561 = vset.pattern.permute.xlu0 0
  %4562 = vperm.xlu0 %4561, %v3080
  %v4563 = vpop.permute.xlu0 %4562
  %4566 = vset.pattern.permute.xlu0 0
  %4567 = vperm.xlu0 %4566, %v3081
  %v4568 = vpop.permute.xlu0 %4567
  %4571 = vset.pattern.permute.xlu0 0
  %4572 = vperm.xlu0 %4571, %v3082
  %v4573 = vpop.permute.xlu0 %4572
  %4576 = vset.pattern.permute.xlu0 0
  %4577 = vperm.xlu0 %4576, %v3083
  %v4578 = vpop.permute.xlu0 %4577
  %4581 = vset.pattern.permute.xlu0 0
  %4582 = vperm.xlu0 %4581, %v3084
  %v4583 = vpop.permute.xlu0 %4582
  %4586 = vset.pattern.permute.xlu0 0
  %4587 = vperm.xlu0 %4586, %v3085
  %v4588 = vpop.permute.xlu0 %4587
  %4591 = vset.pattern.permute.xlu0 0
  %4592 = vperm.xlu0 %4591, %v3086
  %v4593 = vpop.permute.xlu0 %4592
  %4596 = vset.pattern.permute.xlu0 0
  %4597 = vperm.xlu0 %4596, %v3087
  %v4598 = vpop.permute.xlu0 %4597
  %4601 = vset.pattern.permute.xlu0 0
  %4602 = vperm.xlu0 %4601, %v3088
  %v4603 = vpop.permute.xlu0 %4602
  %4606 = vset.pattern.permute.xlu0 0
  %4607 = vperm.xlu0 %4606, %v3089
  %v4608 = vpop.permute.xlu0 %4607
  %4611 = vset.pattern.permute.xlu0 0
  %4612 = vperm.xlu0 %4611, %v3090
  %v4613 = vpop.permute.xlu0 %4612
  %4616 = vset.pattern.permute.xlu0 0
  %4617 = vperm.xlu0 %4616, %v3091
  %v4618 = vpop.permute.xlu0 %4617
  %4621 = vset.pattern.permute.xlu0 0
  %4622 = vperm.xlu0 %4621, %v3092
  %v4623 = vpop.permute.xlu0 %4622
  %4626 = vset.pattern.permute.xlu0 0
  %4627 = vperm.xlu0 %4626, %v3093
  %v4628 = vpop.permute.xlu0 %4627
  %v4630 = vadd.f32 %v3734, %v3993
  %v4631 = vadd.f32 %v3735, %v3993
  %v4632 = vadd.f32 %v3736, %v3998
  %v4633 = vadd.f32 %v3737, %v3998
  %v4634 = vadd.f32 %v3738, %v4003
  %v4635 = vadd.f32 %v3739, %v4003
  %v4636 = vadd.f32 %v3740, %v4008
  %v4637 = vadd.f32 %v3741, %v4008
  %v4638 = vadd.f32 %v3742, %v4013
  %v4639 = vadd.f32 %v3743, %v4013
  %v4640 = vadd.f32 %v3744, %v4018
  %v4641 = vadd.f32 %v3745, %v4018
  %v4642 = vadd.f32 %v3746, %v4023
  %v4643 = vadd.f32 %v3747, %v4023
  %v4644 = vadd.f32 %v3748, %v4028
  %v4645 = vadd.f32 %v3749, %v4028
  %v4646 = vadd.f32 %v3750, %v4033
  %v4647 = vadd.f32 %v3751, %v4033
  %v4648 = vadd.f32 %v3752, %v4038
  %v4649 = vadd.f32 %v3753, %v4038
  %v4650 = vadd.f32 %v3754, %v4043
  %v4651 = vadd.f32 %v3755, %v4043
  %v4652 = vadd.f32 %v3756, %v4048
  %v4653 = vadd.f32 %v3757, %v4048
  %v4654 = vadd.f32 %v3758, %v4053
  %v4655 = vadd.f32 %v3759, %v4053
  %v4656 = vadd.f32 %v3760, %v4058
  %v4657 = vadd.f32 %v3761, %v4058
  %v4658 = vadd.f32 %v3762, %v4063
  %v4659 = vadd.f32 %v3763, %v4063
  %v4660 = vadd.f32 %v3764, %v4068
  %v4661 = vadd.f32 %v3765, %v4068
  %v4662 = vadd.f32 %v3766, %v4073
  %v4663 = vadd.f32 %v3767, %v4073
  %v4664 = vadd.f32 %v3768, %v4078
  %v4665 = vadd.f32 %v3769, %v4078
  %v4666 = vadd.f32 %v3770, %v4083
  %v4667 = vadd.f32 %v3771, %v4083
  %v4668 = vadd.f32 %v3772, %v4088
  %v4669 = vadd.f32 %v3773, %v4088
  %v4670 = vadd.f32 %v3774, %v4093
  %v4671 = vadd.f32 %v3775, %v4093
  %v4672 = vadd.f32 %v3776, %v4098
  %v4673 = vadd.f32 %v3777, %v4098
  %v4674 = vadd.f32 %v3778, %v4103
  %v4675 = vadd.f32 %v3779, %v4103
  %v4676 = vadd.f32 %v3780, %v4108
  %v4677 = vadd.f32 %v3781, %v4108
  %v4678 = vadd.f32 %v3782, %v4113
  %v4679 = vadd.f32 %v3783, %v4113
  %v4680 = vadd.f32 %v3784, %v4118
  %v4681 = vadd.f32 %v3785, %v4118
  %v4682 = vadd.f32 %v3786, %v4123
  %v4683 = vadd.f32 %v3787, %v4123
  %v4684 = vadd.f32 %v3788, %v4128
  %v4685 = vadd.f32 %v3789, %v4128
  %v4686 = vadd.f32 %v3790, %v4133
  %v4687 = vadd.f32 %v3791, %v4133
  %v4688 = vadd.f32 %v3792, %v4138
  %v4689 = vadd.f32 %v3793, %v4138
  %v4690 = vadd.f32 %v3794, %v4143
  %v4691 = vadd.f32 %v3795, %v4143
  %v4692 = vadd.f32 %v3796, %v4148
  %v4693 = vadd.f32 %v3797, %v4148
  %v4694 = vadd.f32 %v3798, %v4153
  %v4695 = vadd.f32 %v3799, %v4153
  %v4696 = vadd.f32 %v3800, %v4158
  %v4697 = vadd.f32 %v3801, %v4158
  %v4698 = vadd.f32 %v3802, %v4163
  %v4699 = vadd.f32 %v3803, %v4163
  %v4700 = vadd.f32 %v3804, %v4168
  %v4701 = vadd.f32 %v3805, %v4168
  %v4702 = vadd.f32 %v3806, %v4173
  %v4703 = vadd.f32 %v3807, %v4173
  %v4704 = vadd.f32 %v3808, %v4178
  %v4705 = vadd.f32 %v3809, %v4178
  %v4706 = vadd.f32 %v3810, %v4183
  %v4707 = vadd.f32 %v3811, %v4183
  %v4708 = vadd.f32 %v3812, %v4188
  %v4709 = vadd.f32 %v3813, %v4188
  %v4710 = vadd.f32 %v3814, %v4193
  %v4711 = vadd.f32 %v3815, %v4193
  %v4712 = vadd.f32 %v3816, %v4198
  %v4713 = vadd.f32 %v3817, %v4198
  %v4714 = vadd.f32 %v3818, %v4203
  %v4715 = vadd.f32 %v3819, %v4203
  %v4716 = vadd.f32 %v3820, %v4208
  %v4717 = vadd.f32 %v3821, %v4208
  %v4718 = vadd.f32 %v3822, %v4213
  %v4719 = vadd.f32 %v3823, %v4213
  %v4720 = vadd.f32 %v3824, %v4218
  %v4721 = vadd.f32 %v3825, %v4218
  %v4722 = vadd.f32 %v3826, %v4223
  %v4723 = vadd.f32 %v3827, %v4223
  %v4724 = vadd.f32 %v3828, %v4228
  %v4725 = vadd.f32 %v3829, %v4228
  %v4726 = vadd.f32 %v3830, %v4233
  %v4727 = vadd.f32 %v3831, %v4233
  %v4728 = vadd.f32 %v3832, %v4238
  %v4729 = vadd.f32 %v3833, %v4238
  %v4730 = vadd.f32 %v3834, %v4243
  %v4731 = vadd.f32 %v3835, %v4243
  %v4732 = vadd.f32 %v3836, %v4248
  %v4733 = vadd.f32 %v3837, %v4248
  %v4734 = vadd.f32 %v3838, %v4253
  %v4735 = vadd.f32 %v3839, %v4253
  %v4736 = vadd.f32 %v3840, %v4258
  %v4737 = vadd.f32 %v3841, %v4258
  %v4738 = vadd.f32 %v3842, %v4263
  %v4739 = vadd.f32 %v3843, %v4263
  %v4740 = vadd.f32 %v3844, %v4268
  %v4741 = vadd.f32 %v3845, %v4268
  %v4742 = vadd.f32 %v3846, %v4273
  %v4743 = vadd.f32 %v3847, %v4273
  %v4744 = vadd.f32 %v3848, %v4278
  %v4745 = vadd.f32 %v3849, %v4278
  %v4746 = vadd.f32 %v3850, %v4283
  %v4747 = vadd.f32 %v3851, %v4283
  %v4748 = vadd.f32 %v3852, %v4288
  %v4749 = vadd.f32 %v3853, %v4288
  %v4750 = vadd.f32 %v3854, %v4293
  %v4751 = vadd.f32 %v3855, %v4293
  %v4752 = vadd.f32 %v3856, %v4298
  %v4753 = vadd.f32 %v3857, %v4298
  %v4754 = vadd.f32 %v3858, %v4303
  %v4755 = vadd.f32 %v3859, %v4303
  %v4756 = vadd.f32 %v3860, %v4308
  %v4757 = vadd.f32 %v3861, %v4308
  %v4758 = vadd.f32 %v3862, %v4313
  %v4759 = vadd.f32 %v3863, %v4313
  %v4760 = vadd.f32 %v3864, %v4318
  %v4761 = vadd.f32 %v3865, %v4318
  %v4762 = vadd.f32 %v3866, %v4323
  %v4763 = vadd.f32 %v3867, %v4323
  %v4764 = vadd.f32 %v3868, %v4328
  %v4765 = vadd.f32 %v3869, %v4328
  %v4766 = vadd.f32 %v3870, %v4333
  %v4767 = vadd.f32 %v3871, %v4333
  %v4768 = vadd.f32 %v3872, %v4338
  %v4769 = vadd.f32 %v3873, %v4338
  %v4770 = vadd.f32 %v3874, %v4343
  %v4771 = vadd.f32 %v3875, %v4343
  %v4772 = vadd.f32 %v3876, %v4348
  %v4773 = vadd.f32 %v3877, %v4348
  %v4774 = vadd.f32 %v3878, %v4353
  %v4775 = vadd.f32 %v3879, %v4353
  %v4776 = vadd.f32 %v3880, %v4358
  %v4777 = vadd.f32 %v3881, %v4358
  %v4778 = vadd.f32 %v3882, %v4363
  %v4779 = vadd.f32 %v3883, %v4363
  %v4780 = vadd.f32 %v3884, %v4368
  %v4781 = vadd.f32 %v3885, %v4368
  %v4782 = vadd.f32 %v3886, %v4373
  %v4783 = vadd.f32 %v3887, %v4373
  %v4784 = vadd.f32 %v3888, %v4378
  %v4785 = vadd.f32 %v3889, %v4378
  %v4786 = vadd.f32 %v3890, %v4383
  %v4787 = vadd.f32 %v3891, %v4383
  %v4788 = vadd.f32 %v3892, %v4388
  %v4789 = vadd.f32 %v3893, %v4388
  %v4790 = vadd.f32 %v3894, %v4393
  %v4791 = vadd.f32 %v3895, %v4393
  %v4792 = vadd.f32 %v3896, %v4398
  %v4793 = vadd.f32 %v3897, %v4398
  %v4794 = vadd.f32 %v3898, %v4403
  %v4795 = vadd.f32 %v3899, %v4403
  %v4796 = vadd.f32 %v3900, %v4408
  %v4797 = vadd.f32 %v3901, %v4408
  %v4798 = vadd.f32 %v3902, %v4413
  %v4799 = vadd.f32 %v3903, %v4413
  %v4800 = vadd.f32 %v3904, %v4418
  %v4801 = vadd.f32 %v3905, %v4418
  %v4802 = vadd.f32 %v3906, %v4423
  %v4803 = vadd.f32 %v3907, %v4423
  %v4804 = vadd.f32 %v3908, %v4428
  %v4805 = vadd.f32 %v3909, %v4428
  %v4806 = vadd.f32 %v3910, %v4433
  %v4807 = vadd.f32 %v3911, %v4433
  %v4808 = vadd.f32 %v3912, %v4438
  %v4809 = vadd.f32 %v3913, %v4438
  %v4810 = vadd.f32 %v3914, %v4443
  %v4811 = vadd.f32 %v3915, %v4443
  %v4812 = vadd.f32 %v3916, %v4448
  %v4813 = vadd.f32 %v3917, %v4448
  %v4814 = vadd.f32 %v3918, %v4453
  %v4815 = vadd.f32 %v3919, %v4453
  %v4816 = vadd.f32 %v3920, %v4458
  %v4817 = vadd.f32 %v3921, %v4458
  %v4818 = vadd.f32 %v3922, %v4463
  %v4819 = vadd.f32 %v3923, %v4463
  %v4820 = vadd.f32 %v3924, %v4468
  %v4821 = vadd.f32 %v3925, %v4468
  %v4822 = vadd.f32 %v3926, %v4473
  %v4823 = vadd.f32 %v3927, %v4473
  %v4824 = vadd.f32 %v3928, %v4478
  %v4825 = vadd.f32 %v3929, %v4478
  %v4826 = vadd.f32 %v3930, %v4483
  %v4827 = vadd.f32 %v3931, %v4483
  %v4828 = vadd.f32 %v3932, %v4488
  %v4829 = vadd.f32 %v3933, %v4488
  %v4830 = vadd.f32 %v3934, %v4493
  %v4831 = vadd.f32 %v3935, %v4493
  %v4832 = vadd.f32 %v3936, %v4498
  %v4833 = vadd.f32 %v3937, %v4498
  %v4834 = vadd.f32 %v3938, %v4503
  %v4835 = vadd.f32 %v3939, %v4503
  %v4836 = vadd.f32 %v3940, %v4508
  %v4837 = vadd.f32 %v3941, %v4508
  %v4838 = vadd.f32 %v3942, %v4513
  %v4839 = vadd.f32 %v3943, %v4513
  %v4840 = vadd.f32 %v3944, %v4518
  %v4841 = vadd.f32 %v3945, %v4518
  %v4842 = vadd.f32 %v3946, %v4523
  %v4843 = vadd.f32 %v3947, %v4523
  %v4844 = vadd.f32 %v3948, %v4528
  %v4845 = vadd.f32 %v3949, %v4528
  %v4846 = vadd.f32 %v3950, %v4533
  %v4847 = vadd.f32 %v3951, %v4533
  %v4848 = vadd.f32 %v3952, %v4538
  %v4849 = vadd.f32 %v3953, %v4538
  %v4850 = vadd.f32 %v3954, %v4543
  %v4851 = vadd.f32 %v3955, %v4543
  %v4852 = vadd.f32 %v3956, %v4548
  %v4853 = vadd.f32 %v3957, %v4548
  %v4854 = vadd.f32 %v3958, %v4553
  %v4855 = vadd.f32 %v3959, %v4553
  %v4856 = vadd.f32 %v3960, %v4558
  %v4857 = vadd.f32 %v3961, %v4558
  %v4858 = vadd.f32 %v3962, %v4563
  %v4859 = vadd.f32 %v3963, %v4563
  %v4860 = vadd.f32 %v3964, %v4568
  %v4861 = vadd.f32 %v3965, %v4568
  %v4862 = vadd.f32 %v3966, %v4573
  %v4863 = vadd.f32 %v3967, %v4573
  %v4864 = vadd.f32 %v3968, %v4578
  %v4865 = vadd.f32 %v3969, %v4578
  %v4866 = vadd.f32 %v3970, %v4583
  %v4867 = vadd.f32 %v3971, %v4583
  %v4868 = vadd.f32 %v3972, %v4588
  %v4869 = vadd.f32 %v3973, %v4588
  %v4870 = vadd.f32 %v3974, %v4593
  %v4871 = vadd.f32 %v3975, %v4593
  %v4872 = vadd.f32 %v3976, %v4598
  %v4873 = vadd.f32 %v3977, %v4598
  %v4874 = vadd.f32 %v3978, %v4603
  %v4875 = vadd.f32 %v3979, %v4603
  %v4876 = vadd.f32 %v3980, %v4608
  %v4877 = vadd.f32 %v3981, %v4608
  %v4878 = vadd.f32 %v3982, %v4613
  %v4879 = vadd.f32 %v3983, %v4613
  %v4880 = vadd.f32 %v3984, %v4618
  %v4881 = vadd.f32 %v3985, %v4618
  %v4882 = vadd.f32 %v3986, %v4623
  %v4883 = vadd.f32 %v3987, %v4623
  %v4884 = vadd.f32 %v3988, %v4628
  %v4885 = vadd.f32 %v3989, %v4628
  %v4886 = vld [vmem:[%s1] sm:$0xff]
  %v4887 = vld [vmem:[%s1 + $0x8] sm:$0xff]
  %v4888 = vld [vmem:[%s1 + $0x10] sm:$0xff]
  %v4889 = vld [vmem:[%s1 + $0x18] sm:$0xff]
  %v4890 = vld [vmem:[%s1 + $0x20] sm:$0xff]
  %v4891 = vld [vmem:[%s1 + $0x28] sm:$0xff]
  %v4892 = vld [vmem:[%s1 + $0x30] sm:$0xff]
  %v4893 = vld [vmem:[%s1 + $0x38] sm:$0xff]
  %v4894 = vld [vmem:[%s1 + $0x40] sm:$0xff]
  %v4895 = vld [vmem:[%s1 + $0x48] sm:$0xff]
  %v4896 = vld [vmem:[%s1 + $0x50] sm:$0xff]
  %v4897 = vld [vmem:[%s1 + $0x58] sm:$0xff]
  %v4898 = vld [vmem:[%s1 + $0x60] sm:$0xff]
  %v4899 = vld [vmem:[%s1 + $0x68] sm:$0xff]
  %v4900 = vld [vmem:[%s1 + $0x70] sm:$0xff]
  %v4901 = vld [vmem:[%s1 + $0x78] sm:$0xff]
  %v4902 = vld [vmem:[%s1 + $0x80] sm:$0xff]
  %v4903 = vld [vmem:[%s1 + $0x88] sm:$0xff]
  %v4904 = vld [vmem:[%s1 + $0x90] sm:$0xff]
  %v4905 = vld [vmem:[%s1 + $0x98] sm:$0xff]
  %v4906 = vld [vmem:[%s1 + $0xa0] sm:$0xff]
  %v4907 = vld [vmem:[%s1 + $0xa8] sm:$0xff]
  %v4908 = vld [vmem:[%s1 + $0xb0] sm:$0xff]
  %v4909 = vld [vmem:[%s1 + $0xb8] sm:$0xff]
  %v4910 = vld [vmem:[%s1 + $0xc0] sm:$0xff]
  %v4911 = vld [vmem:[%s1 + $0xc8] sm:$0xff]
  %v4912 = vld [vmem:[%s1 + $0xd0] sm:$0xff]
  %v4913 = vld [vmem:[%s1 + $0xd8] sm:$0xff]
  %v4914 = vld [vmem:[%s1 + $0xe0] sm:$0xff]
  %v4915 = vld [vmem:[%s1 + $0xe8] sm:$0xff]
  %v4916 = vld [vmem:[%s1 + $0xf0] sm:$0xff]
  %v4917 = vld [vmem:[%s1 + $0xf8] sm:$0xff]
  %v4918 = vld [vmem:[%s1 + $0x100] sm:$0xff]
  %v4919 = vld [vmem:[%s1 + $0x108] sm:$0xff]
  %v4920 = vld [vmem:[%s1 + $0x110] sm:$0xff]
  %v4921 = vld [vmem:[%s1 + $0x118] sm:$0xff]
  %v4922 = vld [vmem:[%s1 + $0x120] sm:$0xff]
  %v4923 = vld [vmem:[%s1 + $0x128] sm:$0xff]
  %v4924 = vld [vmem:[%s1 + $0x130] sm:$0xff]
  %v4925 = vld [vmem:[%s1 + $0x138] sm:$0xff]
  %v4926 = vld [vmem:[%s1 + $0x140] sm:$0xff]
  %v4927 = vld [vmem:[%s1 + $0x148] sm:$0xff]
  %v4928 = vld [vmem:[%s1 + $0x150] sm:$0xff]
  %v4929 = vld [vmem:[%s1 + $0x158] sm:$0xff]
  %v4930 = vld [vmem:[%s1 + $0x160] sm:$0xff]
  %v4931 = vld [vmem:[%s1 + $0x168] sm:$0xff]
  %v4932 = vld [vmem:[%s1 + $0x170] sm:$0xff]
  %v4933 = vld [vmem:[%s1 + $0x178] sm:$0xff]
  %v4934 = vld [vmem:[%s1 + $0x180] sm:$0xff]
  %v4935 = vld [vmem:[%s1 + $0x188] sm:$0xff]
  %v4936 = vld [vmem:[%s1 + $0x190] sm:$0xff]
  %v4937 = vld [vmem:[%s1 + $0x198] sm:$0xff]
  %v4938 = vld [vmem:[%s1 + $0x1a0] sm:$0xff]
  %v4939 = vld [vmem:[%s1 + $0x1a8] sm:$0xff]
  %v4940 = vld [vmem:[%s1 + $0x1b0] sm:$0xff]
  %v4941 = vld [vmem:[%s1 + $0x1b8] sm:$0xff]
  %v4942 = vld [vmem:[%s1 + $0x1c0] sm:$0xff]
  %v4943 = vld [vmem:[%s1 + $0x1c8] sm:$0xff]
  %v4944 = vld [vmem:[%s1 + $0x1d0] sm:$0xff]
  %v4945 = vld [vmem:[%s1 + $0x1d8] sm:$0xff]
  %v4946 = vld [vmem:[%s1 + $0x1e0] sm:$0xff]
  %v4947 = vld [vmem:[%s1 + $0x1e8] sm:$0xff]
  %v4948 = vld [vmem:[%s1 + $0x1f0] sm:$0xff]
  %v4949 = vld [vmem:[%s1 + $0x1f8] sm:$0xff]
  %v4950 = vld [vmem:[%s1 + $0x200] sm:$0xff]
  %v4951 = vld [vmem:[%s1 + $0x208] sm:$0xff]
  %v4952 = vld [vmem:[%s1 + $0x210] sm:$0xff]
  %v4953 = vld [vmem:[%s1 + $0x218] sm:$0xff]
  %v4954 = vld [vmem:[%s1 + $0x220] sm:$0xff]
  %v4955 = vld [vmem:[%s1 + $0x228] sm:$0xff]
  %v4956 = vld [vmem:[%s1 + $0x230] sm:$0xff]
  %v4957 = vld [vmem:[%s1 + $0x238] sm:$0xff]
  %v4958 = vld [vmem:[%s1 + $0x240] sm:$0xff]
  %v4959 = vld [vmem:[%s1 + $0x248] sm:$0xff]
  %v4960 = vld [vmem:[%s1 + $0x250] sm:$0xff]
  %v4961 = vld [vmem:[%s1 + $0x258] sm:$0xff]
  %v4962 = vld [vmem:[%s1 + $0x260] sm:$0xff]
  %v4963 = vld [vmem:[%s1 + $0x268] sm:$0xff]
  %v4964 = vld [vmem:[%s1 + $0x270] sm:$0xff]
  %v4965 = vld [vmem:[%s1 + $0x278] sm:$0xff]
  %v4966 = vld [vmem:[%s1 + $0x280] sm:$0xff]
  %v4967 = vld [vmem:[%s1 + $0x288] sm:$0xff]
  %v4968 = vld [vmem:[%s1 + $0x290] sm:$0xff]
  %v4969 = vld [vmem:[%s1 + $0x298] sm:$0xff]
  %v4970 = vld [vmem:[%s1 + $0x2a0] sm:$0xff]
  %v4971 = vld [vmem:[%s1 + $0x2a8] sm:$0xff]
  %v4972 = vld [vmem:[%s1 + $0x2b0] sm:$0xff]
  %v4973 = vld [vmem:[%s1 + $0x2b8] sm:$0xff]
  %v4974 = vld [vmem:[%s1 + $0x2c0] sm:$0xff]
  %v4975 = vld [vmem:[%s1 + $0x2c8] sm:$0xff]
  %v4976 = vld [vmem:[%s1 + $0x2d0] sm:$0xff]
  %v4977 = vld [vmem:[%s1 + $0x2d8] sm:$0xff]
  %v4978 = vld [vmem:[%s1 + $0x2e0] sm:$0xff]
  %v4979 = vld [vmem:[%s1 + $0x2e8] sm:$0xff]
  %v4980 = vld [vmem:[%s1 + $0x2f0] sm:$0xff]
  %v4981 = vld [vmem:[%s1 + $0x2f8] sm:$0xff]
  %v4982 = vld [vmem:[%s1 + $0x300] sm:$0xff]
  %v4983 = vld [vmem:[%s1 + $0x308] sm:$0xff]
  %v4984 = vld [vmem:[%s1 + $0x310] sm:$0xff]
  %v4985 = vld [vmem:[%s1 + $0x318] sm:$0xff]
  %v4986 = vld [vmem:[%s1 + $0x320] sm:$0xff]
  %v4987 = vld [vmem:[%s1 + $0x328] sm:$0xff]
  %v4988 = vld [vmem:[%s1 + $0x330] sm:$0xff]
  %v4989 = vld [vmem:[%s1 + $0x338] sm:$0xff]
  %v4990 = vld [vmem:[%s1 + $0x340] sm:$0xff]
  %v4991 = vld [vmem:[%s1 + $0x348] sm:$0xff]
  %v4992 = vld [vmem:[%s1 + $0x350] sm:$0xff]
  %v4993 = vld [vmem:[%s1 + $0x358] sm:$0xff]
  %v4994 = vld [vmem:[%s1 + $0x360] sm:$0xff]
  %v4995 = vld [vmem:[%s1 + $0x368] sm:$0xff]
  %v4996 = vld [vmem:[%s1 + $0x370] sm:$0xff]
  %v4997 = vld [vmem:[%s1 + $0x378] sm:$0xff]
  %v4998 = vld [vmem:[%s1 + $0x380] sm:$0xff]
  %v4999 = vld [vmem:[%s1 + $0x388] sm:$0xff]
  %v5000 = vld [vmem:[%s1 + $0x390] sm:$0xff]
  %v5001 = vld [vmem:[%s1 + $0x398] sm:$0xff]
  %v5002 = vld [vmem:[%s1 + $0x3a0] sm:$0xff]
  %v5003 = vld [vmem:[%s1 + $0x3a8] sm:$0xff]
  %v5004 = vld [vmem:[%s1 + $0x3b0] sm:$0xff]
  %v5005 = vld [vmem:[%s1 + $0x3b8] sm:$0xff]
  %v5006 = vld [vmem:[%s1 + $0x3c0] sm:$0xff]
  %v5007 = vld [vmem:[%s1 + $0x3c8] sm:$0xff]
  %v5008 = vld [vmem:[%s1 + $0x3d0] sm:$0xff]
  %v5009 = vld [vmem:[%s1 + $0x3d8] sm:$0xff]
  %v5010 = vld [vmem:[%s1 + $0x3e0] sm:$0xff]
  %v5011 = vld [vmem:[%s1 + $0x3e8] sm:$0xff]
  %v5012 = vld [vmem:[%s1 + $0x3f0] sm:$0xff]
  %v5013 = vld [vmem:[%s1 + $0x3f8] sm:$0xff]
  %v5014 = vld [vmem:[%s1 + $0x400] sm:$0xff]
  %v5015 = vld [vmem:[%s1 + $0x408] sm:$0xff]
  %v5016 = vld [vmem:[%s1 + $0x410] sm:$0xff]
  %v5017 = vld [vmem:[%s1 + $0x418] sm:$0xff]
  %v5018 = vld [vmem:[%s1 + $0x420] sm:$0xff]
  %v5019 = vld [vmem:[%s1 + $0x428] sm:$0xff]
  %v5020 = vld [vmem:[%s1 + $0x430] sm:$0xff]
  %v5021 = vld [vmem:[%s1 + $0x438] sm:$0xff]
  %v5022 = vld [vmem:[%s1 + $0x440] sm:$0xff]
  %v5023 = vld [vmem:[%s1 + $0x448] sm:$0xff]
  %v5024 = vld [vmem:[%s1 + $0x450] sm:$0xff]
  %v5025 = vld [vmem:[%s1 + $0x458] sm:$0xff]
  %v5026 = vld [vmem:[%s1 + $0x460] sm:$0xff]
  %v5027 = vld [vmem:[%s1 + $0x468] sm:$0xff]
  %v5028 = vld [vmem:[%s1 + $0x470] sm:$0xff]
  %v5029 = vld [vmem:[%s1 + $0x478] sm:$0xff]
  %v5030 = vld [vmem:[%s1 + $0x480] sm:$0xff]
  %v5031 = vld [vmem:[%s1 + $0x488] sm:$0xff]
  %v5032 = vld [vmem:[%s1 + $0x490] sm:$0xff]
  %v5033 = vld [vmem:[%s1 + $0x498] sm:$0xff]
  %v5034 = vld [vmem:[%s1 + $0x4a0] sm:$0xff]
  %v5035 = vld [vmem:[%s1 + $0x4a8] sm:$0xff]
  %v5036 = vld [vmem:[%s1 + $0x4b0] sm:$0xff]
  %v5037 = vld [vmem:[%s1 + $0x4b8] sm:$0xff]
  %v5038 = vld [vmem:[%s1 + $0x4c0] sm:$0xff]
  %v5039 = vld [vmem:[%s1 + $0x4c8] sm:$0xff]
  %v5040 = vld [vmem:[%s1 + $0x4d0] sm:$0xff]
  %v5041 = vld [vmem:[%s1 + $0x4d8] sm:$0xff]
  %v5042 = vld [vmem:[%s1 + $0x4e0] sm:$0xff]
  %v5043 = vld [vmem:[%s1 + $0x4e8] sm:$0xff]
  %v5044 = vld [vmem:[%s1 + $0x4f0] sm:$0xff]
  %v5045 = vld [vmem:[%s1 + $0x4f8] sm:$0xff]
  %v5046 = vld [vmem:[%s1 + $0x500] sm:$0xff]
  %v5047 = vld [vmem:[%s1 + $0x508] sm:$0xff]
  %v5048 = vld [vmem:[%s1 + $0x510] sm:$0xff]
  %v5049 = vld [vmem:[%s1 + $0x518] sm:$0xff]
  %v5050 = vld [vmem:[%s1 + $0x520] sm:$0xff]
  %v5051 = vld [vmem:[%s1 + $0x528] sm:$0xff]
  %v5052 = vld [vmem:[%s1 + $0x530] sm:$0xff]
  %v5053 = vld [vmem:[%s1 + $0x538] sm:$0xff]
  %v5054 = vld [vmem:[%s1 + $0x540] sm:$0xff]
  %v5055 = vld [vmem:[%s1 + $0x548] sm:$0xff]
  %v5056 = vld [vmem:[%s1 + $0x550] sm:$0xff]
  %v5057 = vld [vmem:[%s1 + $0x558] sm:$0xff]
  %v5058 = vld [vmem:[%s1 + $0x560] sm:$0xff]
  %v5059 = vld [vmem:[%s1 + $0x568] sm:$0xff]
  %v5060 = vld [vmem:[%s1 + $0x570] sm:$0xff]
  %v5061 = vld [vmem:[%s1 + $0x578] sm:$0xff]
  %v5062 = vld [vmem:[%s1 + $0x580] sm:$0xff]
  %v5063 = vld [vmem:[%s1 + $0x588] sm:$0xff]
  %v5064 = vld [vmem:[%s1 + $0x590] sm:$0xff]
  %v5065 = vld [vmem:[%s1 + $0x598] sm:$0xff]
  %v5066 = vld [vmem:[%s1 + $0x5a0] sm:$0xff]
  %v5067 = vld [vmem:[%s1 + $0x5a8] sm:$0xff]
  %v5068 = vld [vmem:[%s1 + $0x5b0] sm:$0xff]
  %v5069 = vld [vmem:[%s1 + $0x5b8] sm:$0xff]
  %v5070 = vld [vmem:[%s1 + $0x5c0] sm:$0xff]
  %v5071 = vld [vmem:[%s1 + $0x5c8] sm:$0xff]
  %v5072 = vld [vmem:[%s1 + $0x5d0] sm:$0xff]
  %v5073 = vld [vmem:[%s1 + $0x5d8] sm:$0xff]
  %v5074 = vld [vmem:[%s1 + $0x5e0] sm:$0xff]
  %v5075 = vld [vmem:[%s1 + $0x5e8] sm:$0xff]
  %v5076 = vld [vmem:[%s1 + $0x5f0] sm:$0xff]
  %v5077 = vld [vmem:[%s1 + $0x5f8] sm:$0xff]
  %v5078 = vld [vmem:[%s1 + $0x600] sm:$0xff]
  %v5079 = vld [vmem:[%s1 + $0x608] sm:$0xff]
  %v5080 = vld [vmem:[%s1 + $0x610] sm:$0xff]
  %v5081 = vld [vmem:[%s1 + $0x618] sm:$0xff]
  %v5082 = vld [vmem:[%s1 + $0x620] sm:$0xff]
  %v5083 = vld [vmem:[%s1 + $0x628] sm:$0xff]
  %v5084 = vld [vmem:[%s1 + $0x630] sm:$0xff]
  %v5085 = vld [vmem:[%s1 + $0x638] sm:$0xff]
  %v5086 = vld [vmem:[%s1 + $0x640] sm:$0xff]
  %v5087 = vld [vmem:[%s1 + $0x648] sm:$0xff]
  %v5088 = vld [vmem:[%s1 + $0x650] sm:$0xff]
  %v5089 = vld [vmem:[%s1 + $0x658] sm:$0xff]
  %v5090 = vld [vmem:[%s1 + $0x660] sm:$0xff]
  %v5091 = vld [vmem:[%s1 + $0x668] sm:$0xff]
  %v5092 = vld [vmem:[%s1 + $0x670] sm:$0xff]
  %v5093 = vld [vmem:[%s1 + $0x678] sm:$0xff]
  %v5094 = vld [vmem:[%s1 + $0x680] sm:$0xff]
  %v5095 = vld [vmem:[%s1 + $0x688] sm:$0xff]
  %v5096 = vld [vmem:[%s1 + $0x690] sm:$0xff]
  %v5097 = vld [vmem:[%s1 + $0x698] sm:$0xff]
  %v5098 = vld [vmem:[%s1 + $0x6a0] sm:$0xff]
  %v5099 = vld [vmem:[%s1 + $0x6a8] sm:$0xff]
  %v5100 = vld [vmem:[%s1 + $0x6b0] sm:$0xff]
  %v5101 = vld [vmem:[%s1 + $0x6b8] sm:$0xff]
  %v5102 = vld [vmem:[%s1 + $0x6c0] sm:$0xff]
  %v5103 = vld [vmem:[%s1 + $0x6c8] sm:$0xff]
  %v5104 = vld [vmem:[%s1 + $0x6d0] sm:$0xff]
  %v5105 = vld [vmem:[%s1 + $0x6d8] sm:$0xff]
  %v5106 = vld [vmem:[%s1 + $0x6e0] sm:$0xff]
  %v5107 = vld [vmem:[%s1 + $0x6e8] sm:$0xff]
  %v5108 = vld [vmem:[%s1 + $0x6f0] sm:$0xff]
  %v5109 = vld [vmem:[%s1 + $0x6f8] sm:$0xff]
  %v5110 = vld [vmem:[%s1 + $0x700] sm:$0xff]
  %v5111 = vld [vmem:[%s1 + $0x708] sm:$0xff]
  %v5112 = vld [vmem:[%s1 + $0x710] sm:$0xff]
  %v5113 = vld [vmem:[%s1 + $0x718] sm:$0xff]
  %v5114 = vld [vmem:[%s1 + $0x720] sm:$0xff]
  %v5115 = vld [vmem:[%s1 + $0x728] sm:$0xff]
  %v5116 = vld [vmem:[%s1 + $0x730] sm:$0xff]
  %v5117 = vld [vmem:[%s1 + $0x738] sm:$0xff]
  %v5118 = vld [vmem:[%s1 + $0x740] sm:$0xff]
  %v5119 = vld [vmem:[%s1 + $0x748] sm:$0xff]
  %v5120 = vld [vmem:[%s1 + $0x750] sm:$0xff]
  %v5121 = vld [vmem:[%s1 + $0x758] sm:$0xff]
  %v5122 = vld [vmem:[%s1 + $0x760] sm:$0xff]
  %v5123 = vld [vmem:[%s1 + $0x768] sm:$0xff]
  %v5124 = vld [vmem:[%s1 + $0x770] sm:$0xff]
  %v5125 = vld [vmem:[%s1 + $0x778] sm:$0xff]
  %v5126 = vld [vmem:[%s1 + $0x780] sm:$0xff]
  %v5127 = vld [vmem:[%s1 + $0x788] sm:$0xff]
  %v5128 = vld [vmem:[%s1 + $0x790] sm:$0xff]
  %v5129 = vld [vmem:[%s1 + $0x798] sm:$0xff]
  %v5130 = vld [vmem:[%s1 + $0x7a0] sm:$0xff]
  %v5131 = vld [vmem:[%s1 + $0x7a8] sm:$0xff]
  %v5132 = vld [vmem:[%s1 + $0x7b0] sm:$0xff]
  %v5133 = vld [vmem:[%s1 + $0x7b8] sm:$0xff]
  %v5134 = vld [vmem:[%s1 + $0x7c0] sm:$0xff]
  %v5135 = vld [vmem:[%s1 + $0x7c8] sm:$0xff]
  %v5136 = vld [vmem:[%s1 + $0x7d0] sm:$0xff]
  %v5137 = vld [vmem:[%s1 + $0x7d8] sm:$0xff]
  %v5138 = vld [vmem:[%s1 + $0x7e0] sm:$0xff]
  %v5139 = vld [vmem:[%s1 + $0x7e8] sm:$0xff]
  %v5140 = vld [vmem:[%s1 + $0x7f0] sm:$0xff]
  %v5141 = vld [vmem:[%s1 + $0x7f8] sm:$0xff]
  %v5142 = vadd.f32 %v4630, %v4886
  %v5143 = vadd.f32 %v4631, %v4887
  %v5144 = vadd.f32 %v4632, %v4888
  %v5145 = vadd.f32 %v4633, %v4889
  %v5146 = vadd.f32 %v4634, %v4890
  %v5147 = vadd.f32 %v4635, %v4891
  %v5148 = vadd.f32 %v4636, %v4892
  %v5149 = vadd.f32 %v4637, %v4893
  %v5150 = vadd.f32 %v4638, %v4894
  %v5151 = vadd.f32 %v4639, %v4895
  %v5152 = vadd.f32 %v4640, %v4896
  %v5153 = vadd.f32 %v4641, %v4897
  %v5154 = vadd.f32 %v4642, %v4898
  %v5155 = vadd.f32 %v4643, %v4899
  %v5156 = vadd.f32 %v4644, %v4900
  %v5157 = vadd.f32 %v4645, %v4901
  %v5158 = vadd.f32 %v4646, %v4902
  %v5159 = vadd.f32 %v4647, %v4903
  %v5160 = vadd.f32 %v4648, %v4904
  %v5161 = vadd.f32 %v4649, %v4905
  %v5162 = vadd.f32 %v4650, %v4906
  %v5163 = vadd.f32 %v4651, %v4907
  %v5164 = vadd.f32 %v4652, %v4908
  %v5165 = vadd.f32 %v4653, %v4909
  %v5166 = vadd.f32 %v4654, %v4910
  %v5167 = vadd.f32 %v4655, %v4911
  %v5168 = vadd.f32 %v4656, %v4912
  %v5169 = vadd.f32 %v4657, %v4913
  %v5170 = vadd.f32 %v4658, %v4914
  %v5171 = vadd.f32 %v4659, %v4915
  %v5172 = vadd.f32 %v4660, %v4916
  %v5173 = vadd.f32 %v4661, %v4917
  %v5174 = vadd.f32 %v4662, %v4918
  %v5175 = vadd.f32 %v4663, %v4919
  %v5176 = vadd.f32 %v4664, %v4920
  %v5177 = vadd.f32 %v4665, %v4921
  %v5178 = vadd.f32 %v4666, %v4922
  %v5179 = vadd.f32 %v4667, %v4923
  %v5180 = vadd.f32 %v4668, %v4924
  %v5181 = vadd.f32 %v4669, %v4925
  %v5182 = vadd.f32 %v4670, %v4926
  %v5183 = vadd.f32 %v4671, %v4927
  %v5184 = vadd.f32 %v4672, %v4928
  %v5185 = vadd.f32 %v4673, %v4929
  %v5186 = vadd.f32 %v4674, %v4930
  %v5187 = vadd.f32 %v4675, %v4931
  %v5188 = vadd.f32 %v4676, %v4932
  %v5189 = vadd.f32 %v4677, %v4933
  %v5190 = vadd.f32 %v4678, %v4934
  %v5191 = vadd.f32 %v4679, %v4935
  %v5192 = vadd.f32 %v4680, %v4936
  %v5193 = vadd.f32 %v4681, %v4937
  %v5194 = vadd.f32 %v4682, %v4938
  %v5195 = vadd.f32 %v4683, %v4939
  %v5196 = vadd.f32 %v4684, %v4940
  %v5197 = vadd.f32 %v4685, %v4941
  %v5198 = vadd.f32 %v4686, %v4942
  %v5199 = vadd.f32 %v4687, %v4943
  %v5200 = vadd.f32 %v4688, %v4944
  %v5201 = vadd.f32 %v4689, %v4945
  %v5202 = vadd.f32 %v4690, %v4946
  %v5203 = vadd.f32 %v4691, %v4947
  %v5204 = vadd.f32 %v4692, %v4948
  %v5205 = vadd.f32 %v4693, %v4949
  %v5206 = vadd.f32 %v4694, %v4950
  %v5207 = vadd.f32 %v4695, %v4951
  %v5208 = vadd.f32 %v4696, %v4952
  %v5209 = vadd.f32 %v4697, %v4953
  %v5210 = vadd.f32 %v4698, %v4954
  %v5211 = vadd.f32 %v4699, %v4955
  %v5212 = vadd.f32 %v4700, %v4956
  %v5213 = vadd.f32 %v4701, %v4957
  %v5214 = vadd.f32 %v4702, %v4958
  %v5215 = vadd.f32 %v4703, %v4959
  %v5216 = vadd.f32 %v4704, %v4960
  %v5217 = vadd.f32 %v4705, %v4961
  %v5218 = vadd.f32 %v4706, %v4962
  %v5219 = vadd.f32 %v4707, %v4963
  %v5220 = vadd.f32 %v4708, %v4964
  %v5221 = vadd.f32 %v4709, %v4965
  %v5222 = vadd.f32 %v4710, %v4966
  %v5223 = vadd.f32 %v4711, %v4967
  %v5224 = vadd.f32 %v4712, %v4968
  %v5225 = vadd.f32 %v4713, %v4969
  %v5226 = vadd.f32 %v4714, %v4970
  %v5227 = vadd.f32 %v4715, %v4971
  %v5228 = vadd.f32 %v4716, %v4972
  %v5229 = vadd.f32 %v4717, %v4973
  %v5230 = vadd.f32 %v4718, %v4974
  %v5231 = vadd.f32 %v4719, %v4975
  %v5232 = vadd.f32 %v4720, %v4976
  %v5233 = vadd.f32 %v4721, %v4977
  %v5234 = vadd.f32 %v4722, %v4978
  %v5235 = vadd.f32 %v4723, %v4979
  %v5236 = vadd.f32 %v4724, %v4980
  %v5237 = vadd.f32 %v4725, %v4981
  %v5238 = vadd.f32 %v4726, %v4982
  %v5239 = vadd.f32 %v4727, %v4983
  %v5240 = vadd.f32 %v4728, %v4984
  %v5241 = vadd.f32 %v4729, %v4985
  %v5242 = vadd.f32 %v4730, %v4986
  %v5243 = vadd.f32 %v4731, %v4987
  %v5244 = vadd.f32 %v4732, %v4988
  %v5245 = vadd.f32 %v4733, %v4989
  %v5246 = vadd.f32 %v4734, %v4990
  %v5247 = vadd.f32 %v4735, %v4991
  %v5248 = vadd.f32 %v4736, %v4992
  %v5249 = vadd.f32 %v4737, %v4993
  %v5250 = vadd.f32 %v4738, %v4994
  %v5251 = vadd.f32 %v4739, %v4995
  %v5252 = vadd.f32 %v4740, %v4996
  %v5253 = vadd.f32 %v4741, %v4997
  %v5254 = vadd.f32 %v4742, %v4998
  %v5255 = vadd.f32 %v4743, %v4999
  %v5256 = vadd.f32 %v4744, %v5000
  %v5257 = vadd.f32 %v4745, %v5001
  %v5258 = vadd.f32 %v4746, %v5002
  %v5259 = vadd.f32 %v4747, %v5003
  %v5260 = vadd.f32 %v4748, %v5004
  %v5261 = vadd.f32 %v4749, %v5005
  %v5262 = vadd.f32 %v4750, %v5006
  %v5263 = vadd.f32 %v4751, %v5007
  %v5264 = vadd.f32 %v4752, %v5008
  %v5265 = vadd.f32 %v4753, %v5009
  %v5266 = vadd.f32 %v4754, %v5010
  %v5267 = vadd.f32 %v4755, %v5011
  %v5268 = vadd.f32 %v4756, %v5012
  %v5269 = vadd.f32 %v4757, %v5013
  %v5270 = vadd.f32 %v4758, %v5014
  %v5271 = vadd.f32 %v4759, %v5015
  %v5272 = vadd.f32 %v4760, %v5016
  %v5273 = vadd.f32 %v4761, %v5017
  %v5274 = vadd.f32 %v4762, %v5018
  %v5275 = vadd.f32 %v4763, %v5019
  %v5276 = vadd.f32 %v4764, %v5020
  %v5277 = vadd.f32 %v4765, %v5021
  %v5278 = vadd.f32 %v4766, %v5022
  %v5279 = vadd.f32 %v4767, %v5023
  %v5280 = vadd.f32 %v4768, %v5024
  %v5281 = vadd.f32 %v4769, %v5025
  %v5282 = vadd.f32 %v4770, %v5026
  %v5283 = vadd.f32 %v4771, %v5027
  %v5284 = vadd.f32 %v4772, %v5028
  %v5285 = vadd.f32 %v4773, %v5029
  %v5286 = vadd.f32 %v4774, %v5030
  %v5287 = vadd.f32 %v4775, %v5031
  %v5288 = vadd.f32 %v4776, %v5032
  %v5289 = vadd.f32 %v4777, %v5033
  %v5290 = vadd.f32 %v4778, %v5034
  %v5291 = vadd.f32 %v4779, %v5035
  %v5292 = vadd.f32 %v4780, %v5036
  %v5293 = vadd.f32 %v4781, %v5037
  %v5294 = vadd.f32 %v4782, %v5038
  %v5295 = vadd.f32 %v4783, %v5039
  %v5296 = vadd.f32 %v4784, %v5040
  %v5297 = vadd.f32 %v4785, %v5041
  %v5298 = vadd.f32 %v4786, %v5042
  %v5299 = vadd.f32 %v4787, %v5043
  %v5300 = vadd.f32 %v4788, %v5044
  %v5301 = vadd.f32 %v4789, %v5045
  %v5302 = vadd.f32 %v4790, %v5046
  %v5303 = vadd.f32 %v4791, %v5047
  %v5304 = vadd.f32 %v4792, %v5048
  %v5305 = vadd.f32 %v4793, %v5049
  %v5306 = vadd.f32 %v4794, %v5050
  %v5307 = vadd.f32 %v4795, %v5051
  %v5308 = vadd.f32 %v4796, %v5052
  %v5309 = vadd.f32 %v4797, %v5053
  %v5310 = vadd.f32 %v4798, %v5054
  %v5311 = vadd.f32 %v4799, %v5055
  %v5312 = vadd.f32 %v4800, %v5056
  %v5313 = vadd.f32 %v4801, %v5057
  %v5314 = vadd.f32 %v4802, %v5058
  %v5315 = vadd.f32 %v4803, %v5059
  %v5316 = vadd.f32 %v4804, %v5060
  %v5317 = vadd.f32 %v4805, %v5061
  %v5318 = vadd.f32 %v4806, %v5062
  %v5319 = vadd.f32 %v4807, %v5063
  %v5320 = vadd.f32 %v4808, %v5064
  %v5321 = vadd.f32 %v4809, %v5065
  %v5322 = vadd.f32 %v4810, %v5066
  %v5323 = vadd.f32 %v4811, %v5067
  %v5324 = vadd.f32 %v4812, %v5068
  %v5325 = vadd.f32 %v4813, %v5069
  %v5326 = vadd.f32 %v4814, %v5070
  %v5327 = vadd.f32 %v4815, %v5071
  %v5328 = vadd.f32 %v4816, %v5072
  %v5329 = vadd.f32 %v4817, %v5073
  %v5330 = vadd.f32 %v4818, %v5074
  %v5331 = vadd.f32 %v4819, %v5075
  %v5332 = vadd.f32 %v4820, %v5076
  %v5333 = vadd.f32 %v4821, %v5077
  %v5334 = vadd.f32 %v4822, %v5078
  %v5335 = vadd.f32 %v4823, %v5079
  %v5336 = vadd.f32 %v4824, %v5080
  %v5337 = vadd.f32 %v4825, %v5081
  %v5338 = vadd.f32 %v4826, %v5082
  %v5339 = vadd.f32 %v4827, %v5083
  %v5340 = vadd.f32 %v4828, %v5084
  %v5341 = vadd.f32 %v4829, %v5085
  %v5342 = vadd.f32 %v4830, %v5086
  %v5343 = vadd.f32 %v4831, %v5087
  %v5344 = vadd.f32 %v4832, %v5088
  %v5345 = vadd.f32 %v4833, %v5089
  %v5346 = vadd.f32 %v4834, %v5090
  %v5347 = vadd.f32 %v4835, %v5091
  %v5348 = vadd.f32 %v4836, %v5092
  %v5349 = vadd.f32 %v4837, %v5093
  %v5350 = vadd.f32 %v4838, %v5094
  %v5351 = vadd.f32 %v4839, %v5095
  %v5352 = vadd.f32 %v4840, %v5096
  %v5353 = vadd.f32 %v4841, %v5097
  %v5354 = vadd.f32 %v4842, %v5098
  %v5355 = vadd.f32 %v4843, %v5099
  %v5356 = vadd.f32 %v4844, %v5100
  %v5357 = vadd.f32 %v4845, %v5101
  %v5358 = vadd.f32 %v4846, %v5102
  %v5359 = vadd.f32 %v4847, %v5103
  %v5360 = vadd.f32 %v4848, %v5104
  %v5361 = vadd.f32 %v4849, %v5105
  %v5362 = vadd.f32 %v4850, %v5106
  %v5363 = vadd.f32 %v4851, %v5107
  %v5364 = vadd.f32 %v4852, %v5108
  %v5365 = vadd.f32 %v4853, %v5109
  %v5366 = vadd.f32 %v4854, %v5110
  %v5367 = vadd.f32 %v4855, %v5111
  %v5368 = vadd.f32 %v4856, %v5112
  %v5369 = vadd.f32 %v4857, %v5113
  %v5370 = vadd.f32 %v4858, %v5114
  %v5371 = vadd.f32 %v4859, %v5115
  %v5372 = vadd.f32 %v4860, %v5116
  %v5373 = vadd.f32 %v4861, %v5117
  %v5374 = vadd.f32 %v4862, %v5118
  %v5375 = vadd.f32 %v4863, %v5119
  %v5376 = vadd.f32 %v4864, %v5120
  %v5377 = vadd.f32 %v4865, %v5121
  %v5378 = vadd.f32 %v4866, %v5122
  %v5379 = vadd.f32 %v4867, %v5123
  %v5380 = vadd.f32 %v4868, %v5124
  %v5381 = vadd.f32 %v4869, %v5125
  %v5382 = vadd.f32 %v4870, %v5126
  %v5383 = vadd.f32 %v4871, %v5127
  %v5384 = vadd.f32 %v4872, %v5128
  %v5385 = vadd.f32 %v4873, %v5129
  %v5386 = vadd.f32 %v4874, %v5130
  %v5387 = vadd.f32 %v4875, %v5131
  %v5388 = vadd.f32 %v4876, %v5132
  %v5389 = vadd.f32 %v4877, %v5133
  %v5390 = vadd.f32 %v4878, %v5134
  %v5391 = vadd.f32 %v4879, %v5135
  %v5392 = vadd.f32 %v4880, %v5136
  %v5393 = vadd.f32 %v4881, %v5137
  %v5394 = vadd.f32 %v4882, %v5138
  %v5395 = vadd.f32 %v4883, %v5139
  %v5396 = vadd.f32 %v4884, %v5140
  %v5397 = vadd.f32 %v4885, %v5141
  %v5398 = vmax.f32 %v5142, 0.0
  %v5399 = vmax.f32 %v5143, 0.0
  %v5400 = vmax.f32 %v5144, 0.0
  %v5401 = vmax.f32 %v5145, 0.0
  %v5402 = vmax.f32 %v5146, 0.0
  %v5403 = vmax.f32 %v5147, 0.0
  %v5404 = vmax.f32 %v5148, 0.0
  %v5405 = vmax.f32 %v5149, 0.0
  %v5406 = vmax.f32 %v5150, 0.0
  %v5407 = vmax.f32 %v5151, 0.0
  %v5408 = vmax.f32 %v5152, 0.0
  %v5409 = vmax.f32 %v5153, 0.0
  %v5410 = vmax.f32 %v5154, 0.0
  %v5411 = vmax.f32 %v5155, 0.0
  %v5412 = vmax.f32 %v5156, 0.0
  %v5413 = vmax.f32 %v5157, 0.0
  %v5414 = vmax.f32 %v5158, 0.0
  %v5415 = vmax.f32 %v5159, 0.0
  %v5416 = vmax.f32 %v5160, 0.0
  %v5417 = vmax.f32 %v5161, 0.0
  %v5418 = vmax.f32 %v5162, 0.0
  %v5419 = vmax.f32 %v5163, 0.0
  %v5420 = vmax.f32 %v5164, 0.0
  %v5421 = vmax.f32 %v5165, 0.0
  %v5422 = vmax.f32 %v5166, 0.0
  %v5423 = vmax.f32 %v5167, 0.0
  %v5424 = vmax.f32 %v5168, 0.0
  %v5425 = vmax.f32 %v5169, 0.0
  %v5426 = vmax.f32 %v5170, 0.0
  %v5427 = vmax.f32 %v5171, 0.0
  %v5428 = vmax.f32 %v5172, 0.0
  %v5429 = vmax.f32 %v5173, 0.0
  %v5430 = vmax.f32 %v5174, 0.0
  %v5431 = vmax.f32 %v5175, 0.0
  %v5432 = vmax.f32 %v5176, 0.0
  %v5433 = vmax.f32 %v5177, 0.0
  %v5434 = vmax.f32 %v5178, 0.0
  %v5435 = vmax.f32 %v5179, 0.0
  %v5436 = vmax.f32 %v5180, 0.0
  %v5437 = vmax.f32 %v5181, 0.0
  %v5438 = vmax.f32 %v5182, 0.0
  %v5439 = vmax.f32 %v5183, 0.0
  %v5440 = vmax.f32 %v5184, 0.0
  %v5441 = vmax.f32 %v5185, 0.0
  %v5442 = vmax.f32 %v5186, 0.0
  %v5443 = vmax.f32 %v5187, 0.0
  %v5444 = vmax.f32 %v5188, 0.0
  %v5445 = vmax.f32 %v5189, 0.0
  %v5446 = vmax.f32 %v5190, 0.0
  %v5447 = vmax.f32 %v5191, 0.0
  %v5448 = vmax.f32 %v5192, 0.0
  %v5449 = vmax.f32 %v5193, 0.0
  %v5450 = vmax.f32 %v5194, 0.0
  %v5451 = vmax.f32 %v5195, 0.0
  %v5452 = vmax.f32 %v5196, 0.0
  %v5453 = vmax.f32 %v5197, 0.0
  %v5454 = vmax.f32 %v5198, 0.0
  %v5455 = vmax.f32 %v5199, 0.0
  %v5456 = vmax.f32 %v5200, 0.0
  %v5457 = vmax.f32 %v5201, 0.0
  %v5458 = vmax.f32 %v5202, 0.0
  %v5459 = vmax.f32 %v5203, 0.0
  %v5460 = vmax.f32 %v5204, 0.0
  %v5461 = vmax.f32 %v5205, 0.0
  %v5462 = vmax.f32 %v5206, 0.0
  %v5463 = vmax.f32 %v5207, 0.0
  %v5464 = vmax.f32 %v5208, 0.0
  %v5465 = vmax.f32 %v5209, 0.0
  %v5466 = vmax.f32 %v5210, 0.0
  %v5467 = vmax.f32 %v5211, 0.0
  %v5468 = vmax.f32 %v5212, 0.0
  %v5469 = vmax.f32 %v5213, 0.0
  %v5470 = vmax.f32 %v5214, 0.0
  %v5471 = vmax.f32 %v5215, 0.0
  %v5472 = vmax.f32 %v5216, 0.0
  %v5473 = vmax.f32 %v5217, 0.0
  %v5474 = vmax.f32 %v5218, 0.0
  %v5475 = vmax.f32 %v5219, 0.0
  %v5476 = vmax.f32 %v5220, 0.0
  %v5477 = vmax.f32 %v5221, 0.0
  %v5478 = vmax.f32 %v5222, 0.0
  %v5479 = vmax.f32 %v5223, 0.0
  %v5480 = vmax.f32 %v5224, 0.0
  %v5481 = vmax.f32 %v5225, 0.0
  %v5482 = vmax.f32 %v5226, 0.0
  %v5483 = vmax.f32 %v5227, 0.0
  %v5484 = vmax.f32 %v5228, 0.0
  %v5485 = vmax.f32 %v5229, 0.0
  %v5486 = vmax.f32 %v5230, 0.0
  %v5487 = vmax.f32 %v5231, 0.0
  %v5488 = vmax.f32 %v5232, 0.0
  %v5489 = vmax.f32 %v5233, 0.0
  %v5490 = vmax.f32 %v5234, 0.0
  %v5491 = vmax.f32 %v5235, 0.0
  %v5492 = vmax.f32 %v5236, 0.0
  %v5493 = vmax.f32 %v5237, 0.0
  %v5494 = vmax.f32 %v5238, 0.0
  %v5495 = vmax.f32 %v5239, 0.0
  %v5496 = vmax.f32 %v5240, 0.0
  %v5497 = vmax.f32 %v5241, 0.0
  %v5498 = vmax.f32 %v5242, 0.0
  %v5499 = vmax.f32 %v5243, 0.0
  %v5500 = vmax.f32 %v5244, 0.0
  %v5501 = vmax.f32 %v5245, 0.0
  %v5502 = vmax.f32 %v5246, 0.0
  %v5503 = vmax.f32 %v5247, 0.0
  %v5504 = vmax.f32 %v5248, 0.0
  %v5505 = vmax.f32 %v5249, 0.0
  %v5506 = vmax.f32 %v5250, 0.0
  %v5507 = vmax.f32 %v5251, 0.0
  %v5508 = vmax.f32 %v5252, 0.0
  %v5509 = vmax.f32 %v5253, 0.0
  %v5510 = vmax.f32 %v5254, 0.0
  %v5511 = vmax.f32 %v5255, 0.0
  %v5512 = vmax.f32 %v5256, 0.0
  %v5513 = vmax.f32 %v5257, 0.0
  %v5514 = vmax.f32 %v5258, 0.0
  %v5515 = vmax.f32 %v5259, 0.0
  %v5516 = vmax.f32 %v5260, 0.0
  %v5517 = vmax.f32 %v5261, 0.0
  %v5518 = vmax.f32 %v5262, 0.0
  %v5519 = vmax.f32 %v5263, 0.0
  %v5520 = vmax.f32 %v5264, 0.0
  %v5521 = vmax.f32 %v5265, 0.0
  %v5522 = vmax.f32 %v5266, 0.0
  %v5523 = vmax.f32 %v5267, 0.0
  %v5524 = vmax.f32 %v5268, 0.0
  %v5525 = vmax.f32 %v5269, 0.0
  %v5526 = vmax.f32 %v5270, 0.0
  %v5527 = vmax.f32 %v5271, 0.0
  %v5528 = vmax.f32 %v5272, 0.0
  %v5529 = vmax.f32 %v5273, 0.0
  %v5530 = vmax.f32 %v5274, 0.0
  %v5531 = vmax.f32 %v5275, 0.0
  %v5532 = vmax.f32 %v5276, 0.0
  %v5533 = vmax.f32 %v5277, 0.0
  %v5534 = vmax.f32 %v5278, 0.0
  %v5535 = vmax.f32 %v5279, 0.0
  %v5536 = vmax.f32 %v5280, 0.0
  %v5537 = vmax.f32 %v5281, 0.0
  %v5538 = vmax.f32 %v5282, 0.0
  %v5539 = vmax.f32 %v5283, 0.0
  %v5540 = vmax.f32 %v5284, 0.0
  %v5541 = vmax.f32 %v5285, 0.0
  %v5542 = vmax.f32 %v5286, 0.0
  %v5543 = vmax.f32 %v5287, 0.0
  %v5544 = vmax.f32 %v5288, 0.0
  %v5545 = vmax.f32 %v5289, 0.0
  %v5546 = vmax.f32 %v5290, 0.0
  %v5547 = vmax.f32 %v5291, 0.0
  %v5548 = vmax.f32 %v5292, 0.0
  %v5549 = vmax.f32 %v5293, 0.0
  %v5550 = vmax.f32 %v5294, 0.0
  %v5551 = vmax.f32 %v5295, 0.0
  %v5552 = vmax.f32 %v5296, 0.0
  %v5553 = vmax.f32 %v5297, 0.0
  %v5554 = vmax.f32 %v5298, 0.0
  %v5555 = vmax.f32 %v5299, 0.0
  %v5556 = vmax.f32 %v5300, 0.0
  %v5557 = vmax.f32 %v5301, 0.0
  %v5558 = vmax.f32 %v5302, 0.0
  %v5559 = vmax.f32 %v5303, 0.0
  %v5560 = vmax.f32 %v5304, 0.0
  %v5561 = vmax.f32 %v5305, 0.0
  %v5562 = vmax.f32 %v5306, 0.0
  %v5563 = vmax.f32 %v5307, 0.0
  %v5564 = vmax.f32 %v5308, 0.0
  %v5565 = vmax.f32 %v5309, 0.0
  %v5566 = vmax.f32 %v5310, 0.0
  %v5567 = vmax.f32 %v5311, 0.0
  %v5568 = vmax.f32 %v5312, 0.0
  %v5569 = vmax.f32 %v5313, 0.0
  %v5570 = vmax.f32 %v5314, 0.0
  %v5571 = vmax.f32 %v5315, 0.0
  %v5572 = vmax.f32 %v5316, 0.0
  %v5573 = vmax.f32 %v5317, 0.0
  %v5574 = vmax.f32 %v5318, 0.0
  %v5575 = vmax.f32 %v5319, 0.0
  %v5576 = vmax.f32 %v5320, 0.0
  %v5577 = vmax.f32 %v5321, 0.0
  %v5578 = vmax.f32 %v5322, 0.0
  %v5579 = vmax.f32 %v5323, 0.0
  %v5580 = vmax.f32 %v5324, 0.0
  %v5581 = vmax.f32 %v5325, 0.0
  %v5582 = vmax.f32 %v5326, 0.0
  %v5583 = vmax.f32 %v5327, 0.0
  %v5584 = vmax.f32 %v5328, 0.0
  %v5585 = vmax.f32 %v5329, 0.0
  %v5586 = vmax.f32 %v5330, 0.0
  %v5587 = vmax.f32 %v5331, 0.0
  %v5588 = vmax.f32 %v5332, 0.0
  %v5589 = vmax.f32 %v5333, 0.0
  %v5590 = vmax.f32 %v5334, 0.0
  %v5591 = vmax.f32 %v5335, 0.0
  %v5592 = vmax.f32 %v5336, 0.0
  %v5593 = vmax.f32 %v5337, 0.0
  %v5594 = vmax.f32 %v5338, 0.0
  %v5595 = vmax.f32 %v5339, 0.0
  %v5596 = vmax.f32 %v5340, 0.0
  %v5597 = vmax.f32 %v5341, 0.0
  %v5598 = vmax.f32 %v5342, 0.0
  %v5599 = vmax.f32 %v5343, 0.0
  %v5600 = vmax.f32 %v5344, 0.0
  %v5601 = vmax.f32 %v5345, 0.0
  %v5602 = vmax.f32 %v5346, 0.0
  %v5603 = vmax.f32 %v5347, 0.0
  %v5604 = vmax.f32 %v5348, 0.0
  %v5605 = vmax.f32 %v5349, 0.0
  %v5606 = vmax.f32 %v5350, 0.0
  %v5607 = vmax.f32 %v5351, 0.0
  %v5608 = vmax.f32 %v5352, 0.0
  %v5609 = vmax.f32 %v5353, 0.0
  %v5610 = vmax.f32 %v5354, 0.0
  %v5611 = vmax.f32 %v5355, 0.0
  %v5612 = vmax.f32 %v5356, 0.0
  %v5613 = vmax.f32 %v5357, 0.0
  %v5614 = vmax.f32 %v5358, 0.0
  %v5615 = vmax.f32 %v5359, 0.0
  %v5616 = vmax.f32 %v5360, 0.0
  %v5617 = vmax.f32 %v5361, 0.0
  %v5618 = vmax.f32 %v5362, 0.0
  %v5619 = vmax.f32 %v5363, 0.0
  %v5620 = vmax.f32 %v5364, 0.0
  %v5621 = vmax.f32 %v5365, 0.0
  %v5622 = vmax.f32 %v5366, 0.0
  %v5623 = vmax.f32 %v5367, 0.0
  %v5624 = vmax.f32 %v5368, 0.0
  %v5625 = vmax.f32 %v5369, 0.0
  %v5626 = vmax.f32 %v5370, 0.0
  %v5627 = vmax.f32 %v5371, 0.0
  %v5628 = vmax.f32 %v5372, 0.0
  %v5629 = vmax.f32 %v5373, 0.0
  %v5630 = vmax.f32 %v5374, 0.0
  %v5631 = vmax.f32 %v5375, 0.0
  %v5632 = vmax.f32 %v5376, 0.0
  %v5633 = vmax.f32 %v5377, 0.0
  %v5634 = vmax.f32 %v5378, 0.0
  %v5635 = vmax.f32 %v5379, 0.0
  %v5636 = vmax.f32 %v5380, 0.0
  %v5637 = vmax.f32 %v5381, 0.0
  %v5638 = vmax.f32 %v5382, 0.0
  %v5639 = vmax.f32 %v5383, 0.0
  %v5640 = vmax.f32 %v5384, 0.0
  %v5641 = vmax.f32 %v5385, 0.0
  %v5642 = vmax.f32 %v5386, 0.0
  %v5643 = vmax.f32 %v5387, 0.0
  %v5644 = vmax.f32 %v5388, 0.0
  %v5645 = vmax.f32 %v5389, 0.0
  %v5646 = vmax.f32 %v5390, 0.0
  %v5647 = vmax.f32 %v5391, 0.0
  %v5648 = vmax.f32 %v5392, 0.0
  %v5649 = vmax.f32 %v5393, 0.0
  %v5650 = vmax.f32 %v5394, 0.0
  %v5651 = vmax.f32 %v5395, 0.0
  %v5652 = vmax.f32 %v5396, 0.0
  %v5653 = vmax.f32 %v5397, 0.0
  %v5654 = vpack.c.bf16 %v5400, %v5398
  %v5655 = vpack.c.bf16 %v5401, %v5399
  %v5656 = vpack.c.bf16 %v5404, %v5402
  %v5657 = vpack.c.bf16 %v5405, %v5403
  %v5658 = vpack.c.bf16 %v5408, %v5406
  %v5659 = vpack.c.bf16 %v5409, %v5407
  %v5660 = vpack.c.bf16 %v5412, %v5410
  %v5661 = vpack.c.bf16 %v5413, %v5411
  %v5662 = vpack.c.bf16 %v5416, %v5414
  %v5663 = vpack.c.bf16 %v5417, %v5415
  %v5664 = vpack.c.bf16 %v5420, %v5418
  %v5665 = vpack.c.bf16 %v5421, %v5419
  %v5666 = vpack.c.bf16 %v5424, %v5422
  %v5667 = vpack.c.bf16 %v5425, %v5423
  %v5668 = vpack.c.bf16 %v5428, %v5426
  %v5669 = vpack.c.bf16 %v5429, %v5427
  %v5670 = vpack.c.bf16 %v5432, %v5430
  %v5671 = vpack.c.bf16 %v5433, %v5431
  %v5672 = vpack.c.bf16 %v5436, %v5434
  %v5673 = vpack.c.bf16 %v5437, %v5435
  %v5674 = vpack.c.bf16 %v5440, %v5438
  %v5675 = vpack.c.bf16 %v5441, %v5439
  %v5676 = vpack.c.bf16 %v5444, %v5442
  %v5677 = vpack.c.bf16 %v5445, %v5443
  %v5678 = vpack.c.bf16 %v5448, %v5446
  %v5679 = vpack.c.bf16 %v5449, %v5447
  %v5680 = vpack.c.bf16 %v5452, %v5450
  %v5681 = vpack.c.bf16 %v5453, %v5451
  %v5682 = vpack.c.bf16 %v5456, %v5454
  %v5683 = vpack.c.bf16 %v5457, %v5455
  %v5684 = vpack.c.bf16 %v5460, %v5458
  %v5685 = vpack.c.bf16 %v5461, %v5459
  %v5686 = vpack.c.bf16 %v5464, %v5462
  %v5687 = vpack.c.bf16 %v5465, %v5463
  %v5688 = vpack.c.bf16 %v5468, %v5466
  %v5689 = vpack.c.bf16 %v5469, %v5467
  %v5690 = vpack.c.bf16 %v5472, %v5470
  %v5691 = vpack.c.bf16 %v5473, %v5471
  %v5692 = vpack.c.bf16 %v5476, %v5474
  %v5693 = vpack.c.bf16 %v5477, %v5475
  %v5694 = vpack.c.bf16 %v5480, %v5478
  %v5695 = vpack.c.bf16 %v5481, %v5479
  %v5696 = vpack.c.bf16 %v5484, %v5482
  %v5697 = vpack.c.bf16 %v5485, %v5483
  %v5698 = vpack.c.bf16 %v5488, %v5486
  %v5699 = vpack.c.bf16 %v5489, %v5487
  %v5700 = vpack.c.bf16 %v5492, %v5490
  %v5701 = vpack.c.bf16 %v5493, %v5491
  %v5702 = vpack.c.bf16 %v5496, %v5494
  %v5703 = vpack.c.bf16 %v5497, %v5495
  %v5704 = vpack.c.bf16 %v5500, %v5498
  %v5705 = vpack.c.bf16 %v5501, %v5499
  %v5706 = vpack.c.bf16 %v5504, %v5502
  %v5707 = vpack.c.bf16 %v5505, %v5503
  %v5708 = vpack.c.bf16 %v5508, %v5506
  %v5709 = vpack.c.bf16 %v5509, %v5507
  %v5710 = vpack.c.bf16 %v5512, %v5510
  %v5711 = vpack.c.bf16 %v5513, %v5511
  %v5712 = vpack.c.bf16 %v5516, %v5514
  %v5713 = vpack.c.bf16 %v5517, %v5515
  %v5714 = vpack.c.bf16 %v5520, %v5518
  %v5715 = vpack.c.bf16 %v5521, %v5519
  %v5716 = vpack.c.bf16 %v5524, %v5522
  %v5717 = vpack.c.bf16 %v5525, %v5523
  %v5718 = vpack.c.bf16 %v5528, %v5526
  %v5719 = vpack.c.bf16 %v5529, %v5527
  %v5720 = vpack.c.bf16 %v5532, %v5530
  %v5721 = vpack.c.bf16 %v5533, %v5531
  %v5722 = vpack.c.bf16 %v5536, %v5534
  %v5723 = vpack.c.bf16 %v5537, %v5535
  %v5724 = vpack.c.bf16 %v5540, %v5538
  %v5725 = vpack.c.bf16 %v5541, %v5539
  %v5726 = vpack.c.bf16 %v5544, %v5542
  %v5727 = vpack.c.bf16 %v5545, %v5543
  %v5728 = vpack.c.bf16 %v5548, %v5546
  %v5729 = vpack.c.bf16 %v5549, %v5547
  %v5730 = vpack.c.bf16 %v5552, %v5550
  %v5731 = vpack.c.bf16 %v5553, %v5551
  %v5732 = vpack.c.bf16 %v5556, %v5554
  %v5733 = vpack.c.bf16 %v5557, %v5555
  %v5734 = vpack.c.bf16 %v5560, %v5558
  %v5735 = vpack.c.bf16 %v5561, %v5559
  %v5736 = vpack.c.bf16 %v5564, %v5562
  %v5737 = vpack.c.bf16 %v5565, %v5563
  %v5738 = vpack.c.bf16 %v5568, %v5566
  %v5739 = vpack.c.bf16 %v5569, %v5567
  %v5740 = vpack.c.bf16 %v5572, %v5570
  %v5741 = vpack.c.bf16 %v5573, %v5571
  %v5742 = vpack.c.bf16 %v5576, %v5574
  %v5743 = vpack.c.bf16 %v5577, %v5575
  %v5744 = vpack.c.bf16 %v5580, %v5578
  %v5745 = vpack.c.bf16 %v5581, %v5579
  %v5746 = vpack.c.bf16 %v5584, %v5582
  %v5747 = vpack.c.bf16 %v5585, %v5583
  %v5748 = vpack.c.bf16 %v5588, %v5586
  %v5749 = vpack.c.bf16 %v5589, %v5587
  %v5750 = vpack.c.bf16 %v5592, %v5590
  %v5751 = vpack.c.bf16 %v5593, %v5591
  %v5752 = vpack.c.bf16 %v5596, %v5594
  %v5753 = vpack.c.bf16 %v5597, %v5595
  %v5754 = vpack.c.bf16 %v5600, %v5598
  %v5755 = vpack.c.bf16 %v5601, %v5599
  %v5756 = vpack.c.bf16 %v5604, %v5602
  %v5757 = vpack.c.bf16 %v5605, %v5603
  %v5758 = vpack.c.bf16 %v5608, %v5606
  %v5759 = vpack.c.bf16 %v5609, %v5607
  %v5760 = vpack.c.bf16 %v5612, %v5610
  %v5761 = vpack.c.bf16 %v5613, %v5611
  %v5762 = vpack.c.bf16 %v5616, %v5614
  %v5763 = vpack.c.bf16 %v5617, %v5615
  %v5764 = vpack.c.bf16 %v5620, %v5618
  %v5765 = vpack.c.bf16 %v5621, %v5619
  %v5766 = vpack.c.bf16 %v5624, %v5622
  %v5767 = vpack.c.bf16 %v5625, %v5623
  %v5768 = vpack.c.bf16 %v5628, %v5626
  %v5769 = vpack.c.bf16 %v5629, %v5627
  %v5770 = vpack.c.bf16 %v5632, %v5630
  %v5771 = vpack.c.bf16 %v5633, %v5631
  %v5772 = vpack.c.bf16 %v5636, %v5634
  %v5773 = vpack.c.bf16 %v5637, %v5635
  %v5774 = vpack.c.bf16 %v5640, %v5638
  %v5775 = vpack.c.bf16 %v5641, %v5639
  %v5776 = vpack.c.bf16 %v5644, %v5642
  %v5777 = vpack.c.bf16 %v5645, %v5643
  %v5778 = vpack.c.bf16 %v5648, %v5646
  %v5779 = vpack.c.bf16 %v5649, %v5647
  %v5780 = vpack.c.bf16 %v5652, %v5650
  %v5781 = vpack.c.bf16 %v5653, %v5651
  %v5782 = vld [vmem:[%s4] sm:$0xff]
  %v5783 = vld [vmem:[%s4 + $0x8] sm:$0xff]
  %v5784 = vld [vmem:[%s4 + $0x10] sm:$0xff]
  %v5785 = vld [vmem:[%s4 + $0x18] sm:$0xff]
  %v5786 = vld [vmem:[%s4 + $0x20] sm:$0xff]
  %v5787 = vld [vmem:[%s4 + $0x28] sm:$0xff]
  %v5788 = vld [vmem:[%s4 + $0x30] sm:$0xff]
  %v5789 = vld [vmem:[%s4 + $0x38] sm:$0xff]
  %v5790 = vld [vmem:[%s4 + $0x40] sm:$0xff]
  %v5791 = vld [vmem:[%s4 + $0x48] sm:$0xff]
  %v5792 = vld [vmem:[%s4 + $0x50] sm:$0xff]
  %v5793 = vld [vmem:[%s4 + $0x58] sm:$0xff]
  %v5794 = vld [vmem:[%s4 + $0x60] sm:$0xff]
  %v5795 = vld [vmem:[%s4 + $0x68] sm:$0xff]
  %v5796 = vld [vmem:[%s4 + $0x70] sm:$0xff]
  %v5797 = vld [vmem:[%s4 + $0x78] sm:$0xff]
  %v5798 = vld [vmem:[%s4 + $0x80] sm:$0xff]
  %v5799 = vld [vmem:[%s4 + $0x88] sm:$0xff]
  %v5800 = vld [vmem:[%s4 + $0x90] sm:$0xff]
  %v5801 = vld [vmem:[%s4 + $0x98] sm:$0xff]
  %v5802 = vld [vmem:[%s4 + $0xa0] sm:$0xff]
  %v5803 = vld [vmem:[%s4 + $0xa8] sm:$0xff]
  %v5804 = vld [vmem:[%s4 + $0xb0] sm:$0xff]
  %v5805 = vld [vmem:[%s4 + $0xb8] sm:$0xff]
  %v5806 = vld [vmem:[%s4 + $0xc0] sm:$0xff]
  %v5807 = vld [vmem:[%s4 + $0xc8] sm:$0xff]
  %v5808 = vld [vmem:[%s4 + $0xd0] sm:$0xff]
  %v5809 = vld [vmem:[%s4 + $0xd8] sm:$0xff]
  %v5810 = vld [vmem:[%s4 + $0xe0] sm:$0xff]
  %v5811 = vld [vmem:[%s4 + $0xe8] sm:$0xff]
  %v5812 = vld [vmem:[%s4 + $0xf0] sm:$0xff]
  %v5813 = vld [vmem:[%s4 + $0xf8] sm:$0xff]
  %v5814 = vld [vmem:[%s4 + $0x100] sm:$0xff]
  %v5815 = vld [vmem:[%s4 + $0x108] sm:$0xff]
  %v5816 = vld [vmem:[%s4 + $0x110] sm:$0xff]
  %v5817 = vld [vmem:[%s4 + $0x118] sm:$0xff]
  %v5818 = vld [vmem:[%s4 + $0x120] sm:$0xff]
  %v5819 = vld [vmem:[%s4 + $0x128] sm:$0xff]
  %v5820 = vld [vmem:[%s4 + $0x130] sm:$0xff]
  %v5821 = vld [vmem:[%s4 + $0x138] sm:$0xff]
  %v5822 = vld [vmem:[%s4 + $0x140] sm:$0xff]
  %v5823 = vld [vmem:[%s4 + $0x148] sm:$0xff]
  %v5824 = vld [vmem:[%s4 + $0x150] sm:$0xff]
  %v5825 = vld [vmem:[%s4 + $0x158] sm:$0xff]
  %v5826 = vld [vmem:[%s4 + $0x160] sm:$0xff]
  %v5827 = vld [vmem:[%s4 + $0x168] sm:$0xff]
  %v5828 = vld [vmem:[%s4 + $0x170] sm:$0xff]
  %v5829 = vld [vmem:[%s4 + $0x178] sm:$0xff]
  %v5830 = vld [vmem:[%s4 + $0x180] sm:$0xff]
  %v5831 = vld [vmem:[%s4 + $0x188] sm:$0xff]
  %v5832 = vld [vmem:[%s4 + $0x190] sm:$0xff]
  %v5833 = vld [vmem:[%s4 + $0x198] sm:$0xff]
  %v5834 = vld [vmem:[%s4 + $0x1a0] sm:$0xff]
  %v5835 = vld [vmem:[%s4 + $0x1a8] sm:$0xff]
  %v5836 = vld [vmem:[%s4 + $0x1b0] sm:$0xff]
  %v5837 = vld [vmem:[%s4 + $0x1b8] sm:$0xff]
  %v5838 = vld [vmem:[%s4 + $0x1c0] sm:$0xff]
  %v5839 = vld [vmem:[%s4 + $0x1c8] sm:$0xff]
  %v5840 = vld [vmem:[%s4 + $0x1d0] sm:$0xff]
  %v5841 = vld [vmem:[%s4 + $0x1d8] sm:$0xff]
  %v5842 = vld [vmem:[%s4 + $0x1e0] sm:$0xff]
  %v5843 = vld [vmem:[%s4 + $0x1e8] sm:$0xff]
  %v5844 = vld [vmem:[%s4 + $0x1f0] sm:$0xff]
  %v5845 = vld [vmem:[%s4 + $0x1f8] sm:$0xff]
  %v5846 = vld [vmem:[%s4 + $0x200] sm:$0xff]
  %v5847 = vld [vmem:[%s4 + $0x208] sm:$0xff]
  %v5848 = vld [vmem:[%s4 + $0x210] sm:$0xff]
  %v5849 = vld [vmem:[%s4 + $0x218] sm:$0xff]
  %v5850 = vld [vmem:[%s4 + $0x220] sm:$0xff]
  %v5851 = vld [vmem:[%s4 + $0x228] sm:$0xff]
  %v5852 = vld [vmem:[%s4 + $0x230] sm:$0xff]
  %v5853 = vld [vmem:[%s4 + $0x238] sm:$0xff]
  %v5854 = vld [vmem:[%s4 + $0x240] sm:$0xff]
  %v5855 = vld [vmem:[%s4 + $0x248] sm:$0xff]
  %v5856 = vld [vmem:[%s4 + $0x250] sm:$0xff]
  %v5857 = vld [vmem:[%s4 + $0x258] sm:$0xff]
  %v5858 = vld [vmem:[%s4 + $0x260] sm:$0xff]
  %v5859 = vld [vmem:[%s4 + $0x268] sm:$0xff]
  %v5860 = vld [vmem:[%s4 + $0x270] sm:$0xff]
  %v5861 = vld [vmem:[%s4 + $0x278] sm:$0xff]
  %v5862 = vld [vmem:[%s4 + $0x280] sm:$0xff]
  %v5863 = vld [vmem:[%s4 + $0x288] sm:$0xff]
  %v5864 = vld [vmem:[%s4 + $0x290] sm:$0xff]
  %v5865 = vld [vmem:[%s4 + $0x298] sm:$0xff]
  %v5866 = vld [vmem:[%s4 + $0x2a0] sm:$0xff]
  %v5867 = vld [vmem:[%s4 + $0x2a8] sm:$0xff]
  %v5868 = vld [vmem:[%s4 + $0x2b0] sm:$0xff]
  %v5869 = vld [vmem:[%s4 + $0x2b8] sm:$0xff]
  %v5870 = vld [vmem:[%s4 + $0x2c0] sm:$0xff]
  %v5871 = vld [vmem:[%s4 + $0x2c8] sm:$0xff]
  %v5872 = vld [vmem:[%s4 + $0x2d0] sm:$0xff]
  %v5873 = vld [vmem:[%s4 + $0x2d8] sm:$0xff]
  %v5874 = vld [vmem:[%s4 + $0x2e0] sm:$0xff]
  %v5875 = vld [vmem:[%s4 + $0x2e8] sm:$0xff]
  %v5876 = vld [vmem:[%s4 + $0x2f0] sm:$0xff]
  %v5877 = vld [vmem:[%s4 + $0x2f8] sm:$0xff]
  %v5878 = vld [vmem:[%s4 + $0x300] sm:$0xff]
  %v5879 = vld [vmem:[%s4 + $0x308] sm:$0xff]
  %v5880 = vld [vmem:[%s4 + $0x310] sm:$0xff]
  %v5881 = vld [vmem:[%s4 + $0x318] sm:$0xff]
  %v5882 = vld [vmem:[%s4 + $0x320] sm:$0xff]
  %v5883 = vld [vmem:[%s4 + $0x328] sm:$0xff]
  %v5884 = vld [vmem:[%s4 + $0x330] sm:$0xff]
  %v5885 = vld [vmem:[%s4 + $0x338] sm:$0xff]
  %v5886 = vld [vmem:[%s4 + $0x340] sm:$0xff]
  %v5887 = vld [vmem:[%s4 + $0x348] sm:$0xff]
  %v5888 = vld [vmem:[%s4 + $0x350] sm:$0xff]
  %v5889 = vld [vmem:[%s4 + $0x358] sm:$0xff]
  %v5890 = vld [vmem:[%s4 + $0x360] sm:$0xff]
  %v5891 = vld [vmem:[%s4 + $0x368] sm:$0xff]
  %v5892 = vld [vmem:[%s4 + $0x370] sm:$0xff]
  %v5893 = vld [vmem:[%s4 + $0x378] sm:$0xff]
  %v5894 = vld [vmem:[%s4 + $0x380] sm:$0xff]
  %v5895 = vld [vmem:[%s4 + $0x388] sm:$0xff]
  %v5896 = vld [vmem:[%s4 + $0x390] sm:$0xff]
  %v5897 = vld [vmem:[%s4 + $0x398] sm:$0xff]
  %v5898 = vld [vmem:[%s4 + $0x3a0] sm:$0xff]
  %v5899 = vld [vmem:[%s4 + $0x3a8] sm:$0xff]
  %v5900 = vld [vmem:[%s4 + $0x3b0] sm:$0xff]
  %v5901 = vld [vmem:[%s4 + $0x3b8] sm:$0xff]
  %v5902 = vld [vmem:[%s4 + $0x3c0] sm:$0xff]
  %v5903 = vld [vmem:[%s4 + $0x3c8] sm:$0xff]
  %v5904 = vld [vmem:[%s4 + $0x3d0] sm:$0xff]
  %v5905 = vld [vmem:[%s4 + $0x3d8] sm:$0xff]
  %v5906 = vld [vmem:[%s4 + $0x3e0] sm:$0xff]
  %v5907 = vld [vmem:[%s4 + $0x3e8] sm:$0xff]
  %v5908 = vld [vmem:[%s4 + $0x3f0] sm:$0xff]
  %v5909 = vld [vmem:[%s4 + $0x3f8] sm:$0xff]
  %v5910 = vld [vmem:[%s4 + $0x400] sm:$0xff]
  %v5911 = vld [vmem:[%s4 + $0x408] sm:$0xff]
  %v5912 = vld [vmem:[%s4 + $0x410] sm:$0xff]
  %v5913 = vld [vmem:[%s4 + $0x418] sm:$0xff]
  %v5914 = vld [vmem:[%s4 + $0x420] sm:$0xff]
  %v5915 = vld [vmem:[%s4 + $0x428] sm:$0xff]
  %v5916 = vld [vmem:[%s4 + $0x430] sm:$0xff]
  %v5917 = vld [vmem:[%s4 + $0x438] sm:$0xff]
  %v5918 = vld [vmem:[%s4 + $0x440] sm:$0xff]
  %v5919 = vld [vmem:[%s4 + $0x448] sm:$0xff]
  %v5920 = vld [vmem:[%s4 + $0x450] sm:$0xff]
  %v5921 = vld [vmem:[%s4 + $0x458] sm:$0xff]
  %v5922 = vld [vmem:[%s4 + $0x460] sm:$0xff]
  %v5923 = vld [vmem:[%s4 + $0x468] sm:$0xff]
  %v5924 = vld [vmem:[%s4 + $0x470] sm:$0xff]
  %v5925 = vld [vmem:[%s4 + $0x478] sm:$0xff]
  %v5926 = vld [vmem:[%s4 + $0x480] sm:$0xff]
  %v5927 = vld [vmem:[%s4 + $0x488] sm:$0xff]
  %v5928 = vld [vmem:[%s4 + $0x490] sm:$0xff]
  %v5929 = vld [vmem:[%s4 + $0x498] sm:$0xff]
  %v5930 = vld [vmem:[%s4 + $0x4a0] sm:$0xff]
  %v5931 = vld [vmem:[%s4 + $0x4a8] sm:$0xff]
  %v5932 = vld [vmem:[%s4 + $0x4b0] sm:$0xff]
  %v5933 = vld [vmem:[%s4 + $0x4b8] sm:$0xff]
  %v5934 = vld [vmem:[%s4 + $0x4c0] sm:$0xff]
  %v5935 = vld [vmem:[%s4 + $0x4c8] sm:$0xff]
  %v5936 = vld [vmem:[%s4 + $0x4d0] sm:$0xff]
  %v5937 = vld [vmem:[%s4 + $0x4d8] sm:$0xff]
  %v5938 = vld [vmem:[%s4 + $0x4e0] sm:$0xff]
  %v5939 = vld [vmem:[%s4 + $0x4e8] sm:$0xff]
  %v5940 = vld [vmem:[%s4 + $0x4f0] sm:$0xff]
  %v5941 = vld [vmem:[%s4 + $0x4f8] sm:$0xff]
  %v5942 = vld [vmem:[%s4 + $0x500] sm:$0xff]
  %v5943 = vld [vmem:[%s4 + $0x508] sm:$0xff]
  %v5944 = vld [vmem:[%s4 + $0x510] sm:$0xff]
  %v5945 = vld [vmem:[%s4 + $0x518] sm:$0xff]
  %v5946 = vld [vmem:[%s4 + $0x520] sm:$0xff]
  %v5947 = vld [vmem:[%s4 + $0x528] sm:$0xff]
  %v5948 = vld [vmem:[%s4 + $0x530] sm:$0xff]
  %v5949 = vld [vmem:[%s4 + $0x538] sm:$0xff]
  %v5950 = vld [vmem:[%s4 + $0x540] sm:$0xff]
  %v5951 = vld [vmem:[%s4 + $0x548] sm:$0xff]
  %v5952 = vld [vmem:[%s4 + $0x550] sm:$0xff]
  %v5953 = vld [vmem:[%s4 + $0x558] sm:$0xff]
  %v5954 = vld [vmem:[%s4 + $0x560] sm:$0xff]
  %v5955 = vld [vmem:[%s4 + $0x568] sm:$0xff]
  %v5956 = vld [vmem:[%s4 + $0x570] sm:$0xff]
  %v5957 = vld [vmem:[%s4 + $0x578] sm:$0xff]
  %v5958 = vld [vmem:[%s4 + $0x580] sm:$0xff]
  %v5959 = vld [vmem:[%s4 + $0x588] sm:$0xff]
  %v5960 = vld [vmem:[%s4 + $0x590] sm:$0xff]
  %v5961 = vld [vmem:[%s4 + $0x598] sm:$0xff]
  %v5962 = vld [vmem:[%s4 + $0x5a0] sm:$0xff]
  %v5963 = vld [vmem:[%s4 + $0x5a8] sm:$0xff]
  %v5964 = vld [vmem:[%s4 + $0x5b0] sm:$0xff]
  %v5965 = vld [vmem:[%s4 + $0x5b8] sm:$0xff]
  %v5966 = vld [vmem:[%s4 + $0x5c0] sm:$0xff]
  %v5967 = vld [vmem:[%s4 + $0x5c8] sm:$0xff]
  %v5968 = vld [vmem:[%s4 + $0x5d0] sm:$0xff]
  %v5969 = vld [vmem:[%s4 + $0x5d8] sm:$0xff]
  %v5970 = vld [vmem:[%s4 + $0x5e0] sm:$0xff]
  %v5971 = vld [vmem:[%s4 + $0x5e8] sm:$0xff]
  %v5972 = vld [vmem:[%s4 + $0x5f0] sm:$0xff]
  %v5973 = vld [vmem:[%s4 + $0x5f8] sm:$0xff]
  %v5974 = vld [vmem:[%s4 + $0x600] sm:$0xff]
  %v5975 = vld [vmem:[%s4 + $0x608] sm:$0xff]
  %v5976 = vld [vmem:[%s4 + $0x610] sm:$0xff]
  %v5977 = vld [vmem:[%s4 + $0x618] sm:$0xff]
  %v5978 = vld [vmem:[%s4 + $0x620] sm:$0xff]
  %v5979 = vld [vmem:[%s4 + $0x628] sm:$0xff]
  %v5980 = vld [vmem:[%s4 + $0x630] sm:$0xff]
  %v5981 = vld [vmem:[%s4 + $0x638] sm:$0xff]
  %v5982 = vld [vmem:[%s4 + $0x640] sm:$0xff]
  %v5983 = vld [vmem:[%s4 + $0x648] sm:$0xff]
  %v5984 = vld [vmem:[%s4 + $0x650] sm:$0xff]
  %v5985 = vld [vmem:[%s4 + $0x658] sm:$0xff]
  %v5986 = vld [vmem:[%s4 + $0x660] sm:$0xff]
  %v5987 = vld [vmem:[%s4 + $0x668] sm:$0xff]
  %v5988 = vld [vmem:[%s4 + $0x670] sm:$0xff]
  %v5989 = vld [vmem:[%s4 + $0x678] sm:$0xff]
  %v5990 = vld [vmem:[%s4 + $0x680] sm:$0xff]
  %v5991 = vld [vmem:[%s4 + $0x688] sm:$0xff]
  %v5992 = vld [vmem:[%s4 + $0x690] sm:$0xff]
  %v5993 = vld [vmem:[%s4 + $0x698] sm:$0xff]
  %v5994 = vld [vmem:[%s4 + $0x6a0] sm:$0xff]
  %v5995 = vld [vmem:[%s4 + $0x6a8] sm:$0xff]
  %v5996 = vld [vmem:[%s4 + $0x6b0] sm:$0xff]
  %v5997 = vld [vmem:[%s4 + $0x6b8] sm:$0xff]
  %v5998 = vld [vmem:[%s4 + $0x6c0] sm:$0xff]
  %v5999 = vld [vmem:[%s4 + $0x6c8] sm:$0xff]
  %v6000 = vld [vmem:[%s4 + $0x6d0] sm:$0xff]
  %v6001 = vld [vmem:[%s4 + $0x6d8] sm:$0xff]
  %v6002 = vld [vmem:[%s4 + $0x6e0] sm:$0xff]
  %v6003 = vld [vmem:[%s4 + $0x6e8] sm:$0xff]
  %v6004 = vld [vmem:[%s4 + $0x6f0] sm:$0xff]
  %v6005 = vld [vmem:[%s4 + $0x6f8] sm:$0xff]
  %v6006 = vld [vmem:[%s4 + $0x700] sm:$0xff]
  %v6007 = vld [vmem:[%s4 + $0x708] sm:$0xff]
  %v6008 = vld [vmem:[%s4 + $0x710] sm:$0xff]
  %v6009 = vld [vmem:[%s4 + $0x718] sm:$0xff]
  %v6010 = vld [vmem:[%s4 + $0x720] sm:$0xff]
  %v6011 = vld [vmem:[%s4 + $0x728] sm:$0xff]
  %v6012 = vld [vmem:[%s4 + $0x730] sm:$0xff]
  %v6013 = vld [vmem:[%s4 + $0x738] sm:$0xff]
  %v6014 = vld [vmem:[%s4 + $0x740] sm:$0xff]
  %v6015 = vld [vmem:[%s4 + $0x748] sm:$0xff]
  %v6016 = vld [vmem:[%s4 + $0x750] sm:$0xff]
  %v6017 = vld [vmem:[%s4 + $0x758] sm:$0xff]
  %v6018 = vld [vmem:[%s4 + $0x760] sm:$0xff]
  %v6019 = vld [vmem:[%s4 + $0x768] sm:$0xff]
  %v6020 = vld [vmem:[%s4 + $0x770] sm:$0xff]
  %v6021 = vld [vmem:[%s4 + $0x778] sm:$0xff]
  %v6022 = vld [vmem:[%s4 + $0x780] sm:$0xff]
  %v6023 = vld [vmem:[%s4 + $0x788] sm:$0xff]
  %v6024 = vld [vmem:[%s4 + $0x790] sm:$0xff]
  %v6025 = vld [vmem:[%s4 + $0x798] sm:$0xff]
  %v6026 = vld [vmem:[%s4 + $0x7a0] sm:$0xff]
  %v6027 = vld [vmem:[%s4 + $0x7a8] sm:$0xff]
  %v6028 = vld [vmem:[%s4 + $0x7b0] sm:$0xff]
  %v6029 = vld [vmem:[%s4 + $0x7b8] sm:$0xff]
  %v6030 = vld [vmem:[%s4 + $0x7c0] sm:$0xff]
  %v6031 = vld [vmem:[%s4 + $0x7c8] sm:$0xff]
  %v6032 = vld [vmem:[%s4 + $0x7d0] sm:$0xff]
  %v6033 = vld [vmem:[%s4 + $0x7d8] sm:$0xff]
  %v6034 = vld [vmem:[%s4 + $0x7e0] sm:$0xff]
  %v6035 = vld [vmem:[%s4 + $0x7e8] sm:$0xff]
  %v6036 = vld [vmem:[%s4 + $0x7f0] sm:$0xff]
  %v6037 = vld [vmem:[%s4 + $0x7f8] sm:$0xff]
  %v6038 = vpack.c.bf16 %v5790, %v5782
  %v6039 = vpack.c.bf16 %v5791, %v5783
  %v6040 = vpack.c.bf16 %v5792, %v5784
  %v6041 = vpack.c.bf16 %v5793, %v5785
  %v6042 = vpack.c.bf16 %v5794, %v5786
  %v6043 = vpack.c.bf16 %v5795, %v5787
  %v6044 = vpack.c.bf16 %v5796, %v5788
  %v6045 = vpack.c.bf16 %v5797, %v5789
  %v6046 = vpack.c.bf16 %v5806, %v5798
  %v6047 = vpack.c.bf16 %v5807, %v5799
  %v6048 = vpack.c.bf16 %v5808, %v5800
  %v6049 = vpack.c.bf16 %v5809, %v5801
  %v6050 = vpack.c.bf16 %v5810, %v5802
  %v6051 = vpack.c.bf16 %v5811, %v5803
  %v6052 = vpack.c.bf16 %v5812, %v5804
  %v6053 = vpack.c.bf16 %v5813, %v5805
  %v6054 = vpack.c.bf16 %v5822, %v5814
  %v6055 = vpack.c.bf16 %v5823, %v5815
  %v6056 = vpack.c.bf16 %v5824, %v5816
  %v6057 = vpack.c.bf16 %v5825, %v5817
  %v6058 = vpack.c.bf16 %v5826, %v5818
  %v6059 = vpack.c.bf16 %v5827, %v5819
  %v6060 = vpack.c.bf16 %v5828, %v5820
  %v6061 = vpack.c.bf16 %v5829, %v5821
  %v6062 = vpack.c.bf16 %v5838, %v5830
  %v6063 = vpack.c.bf16 %v5839, %v5831
  %v6064 = vpack.c.bf16 %v5840, %v5832
  %v6065 = vpack.c.bf16 %v5841, %v5833
  %v6066 = vpack.c.bf16 %v5842, %v5834
  %v6067 = vpack.c.bf16 %v5843, %v5835
  %v6068 = vpack.c.bf16 %v5844, %v5836
  %v6069 = vpack.c.bf16 %v5845, %v5837
  %v6070 = vpack.c.bf16 %v5854, %v5846
  %v6071 = vpack.c.bf16 %v5855, %v5847
  %v6072 = vpack.c.bf16 %v5856, %v5848
  %v6073 = vpack.c.bf16 %v5857, %v5849
  %v6074 = vpack.c.bf16 %v5858, %v5850
  %v6075 = vpack.c.bf16 %v5859, %v5851
  %v6076 = vpack.c.bf16 %v5860, %v5852
  %v6077 = vpack.c.bf16 %v5861, %v5853
  %v6078 = vpack.c.bf16 %v5870, %v5862
  %v6079 = vpack.c.bf16 %v5871, %v5863
  %v6080 = vpack.c.bf16 %v5872, %v5864
  %v6081 = vpack.c.bf16 %v5873, %v5865
  %v6082 = vpack.c.bf16 %v5874, %v5866
  %v6083 = vpack.c.bf16 %v5875, %v5867
  %v6084 = vpack.c.bf16 %v5876, %v5868
  %v6085 = vpack.c.bf16 %v5877, %v5869
  %v6086 = vpack.c.bf16 %v5886, %v5878
  %v6087 = vpack.c.bf16 %v5887, %v5879
  %v6088 = vpack.c.bf16 %v5888, %v5880
  %v6089 = vpack.c.bf16 %v5889, %v5881
  %v6090 = vpack.c.bf16 %v5890, %v5882
  %v6091 = vpack.c.bf16 %v5891, %v5883
  %v6092 = vpack.c.bf16 %v5892, %v5884
  %v6093 = vpack.c.bf16 %v5893, %v5885
  %v6094 = vpack.c.bf16 %v5902, %v5894
  %v6095 = vpack.c.bf16 %v5903, %v5895
  %v6096 = vpack.c.bf16 %v5904, %v5896
  %v6097 = vpack.c.bf16 %v5905, %v5897
  %v6098 = vpack.c.bf16 %v5906, %v5898
  %v6099 = vpack.c.bf16 %v5907, %v5899
  %v6100 = vpack.c.bf16 %v5908, %v5900
  %v6101 = vpack.c.bf16 %v5909, %v5901
  %v6102 = vpack.c.bf16 %v5918, %v5910
  %v6103 = vpack.c.bf16 %v5919, %v5911
  %v6104 = vpack.c.bf16 %v5920, %v5912
  %v6105 = vpack.c.bf16 %v5921, %v5913
  %v6106 = vpack.c.bf16 %v5922, %v5914
  %v6107 = vpack.c.bf16 %v5923, %v5915
  %v6108 = vpack.c.bf16 %v5924, %v5916
  %v6109 = vpack.c.bf16 %v5925, %v5917
  %v6110 = vpack.c.bf16 %v5934, %v5926
  %v6111 = vpack.c.bf16 %v5935, %v5927
  %v6112 = vpack.c.bf16 %v5936, %v5928
  %v6113 = vpack.c.bf16 %v5937, %v5929
  %v6114 = vpack.c.bf16 %v5938, %v5930
  %v6115 = vpack.c.bf16 %v5939, %v5931
  %v6116 = vpack.c.bf16 %v5940, %v5932
  %v6117 = vpack.c.bf16 %v5941, %v5933
  %v6118 = vpack.c.bf16 %v5950, %v5942
  %v6119 = vpack.c.bf16 %v5951, %v5943
  %v6120 = vpack.c.bf16 %v5952, %v5944
  %v6121 = vpack.c.bf16 %v5953, %v5945
  %v6122 = vpack.c.bf16 %v5954, %v5946
  %v6123 = vpack.c.bf16 %v5955, %v5947
  %v6124 = vpack.c.bf16 %v5956, %v5948
  %v6125 = vpack.c.bf16 %v5957, %v5949
  %v6126 = vpack.c.bf16 %v5966, %v5958
  %v6127 = vpack.c.bf16 %v5967, %v5959
  %v6128 = vpack.c.bf16 %v5968, %v5960
  %v6129 = vpack.c.bf16 %v5969, %v5961
  %v6130 = vpack.c.bf16 %v5970, %v5962
  %v6131 = vpack.c.bf16 %v5971, %v5963
  %v6132 = vpack.c.bf16 %v5972, %v5964
  %v6133 = vpack.c.bf16 %v5973, %v5965
  %v6134 = vpack.c.bf16 %v5982, %v5974
  %v6135 = vpack.c.bf16 %v5983, %v5975
  %v6136 = vpack.c.bf16 %v5984, %v5976
  %v6137 = vpack.c.bf16 %v5985, %v5977
  %v6138 = vpack.c.bf16 %v5986, %v5978
  %v6139 = vpack.c.bf16 %v5987, %v5979
  %v6140 = vpack.c.bf16 %v5988, %v5980
  %v6141 = vpack.c.bf16 %v5989, %v5981
  %v6142 = vpack.c.bf16 %v5998, %v5990
  %v6143 = vpack.c.bf16 %v5999, %v5991
  %v6144 = vpack.c.bf16 %v6000, %v5992
  %v6145 = vpack.c.bf16 %v6001, %v5993
  %v6146 = vpack.c.bf16 %v6002, %v5994
  %v6147 = vpack.c.bf16 %v6003, %v5995
  %v6148 = vpack.c.bf16 %v6004, %v5996
  %v6149 = vpack.c.bf16 %v6005, %v5997
  %v6150 = vpack.c.bf16 %v6014, %v6006
  %v6151 = vpack.c.bf16 %v6015, %v6007
  %v6152 = vpack.c.bf16 %v6016, %v6008
  %v6153 = vpack.c.bf16 %v6017, %v6009
  %v6154 = vpack.c.bf16 %v6018, %v6010
  %v6155 = vpack.c.bf16 %v6019, %v6011
  %v6156 = vpack.c.bf16 %v6020, %v6012
  %v6157 = vpack.c.bf16 %v6021, %v6013
  %v6158 = vpack.c.bf16 %v6030, %v6022
  %v6159 = vpack.c.bf16 %v6031, %v6023
  %v6160 = vpack.c.bf16 %v6032, %v6024
  %v6161 = vpack.c.bf16 %v6033, %v6025
  %v6162 = vpack.c.bf16 %v6034, %v6026
  %v6163 = vpack.c.bf16 %v6035, %v6027
  %v6164 = vpack.c.bf16 %v6036, %v6028
  %v6165 = vpack.c.bf16 %v6037, %v6029
  %6166 = vmatprep.subr.bf16.mxu0 %v5669
  %6167 = vmatpush1.bf16.msra.mxu0 %v5668
  %6168 = vmatprep.subr.bf16.mxu0 %v5667
  %6169 = vmatpush1.bf16.msra.mxu0 %v5666
  %6170 = vmatprep.subr.bf16.mxu0 %v5665
  %6171 = vmatpush1.bf16.msra.mxu0 %v5664
  %6172 = vmatprep.subr.bf16.mxu0 %v5663
  %6173 = vmatpush1.bf16.msra.mxu0 %v5662
  %6174 = vmatprep.subr.bf16.mxu0 %v5661
  %6175 = vmatpush1.bf16.msra.mxu0 %v5660
  %6176 = vmatprep.subr.bf16.mxu0 %v5659
  %6177 = vmatpush1.bf16.msra.mxu0 %v5658
  %6178 = vmatprep.subr.bf16.mxu0 %v5657
  %6179 = vmatpush1.bf16.msra.mxu0 %v5656
  %6180 = vmatprep.subr.bf16.mxu0 %v5655
  %6181 = vmatpush1.bf16.msra.mxu0 %v5654
  %6182 = vmatprep.subr.bf16.mxu0 %v5685
  %6183 = vmatpush2.bf16.msra.mxu0 %v5684
  %6184 = vmatprep.subr.bf16.mxu0 %v5683
  %6185 = vmatpush2.bf16.msra.mxu0 %v5682
  %6186 = vmatprep.subr.bf16.mxu0 %v5681
  %6187 = vmatpush2.bf16.msra.mxu0 %v5680
  %6188 = vmatprep.subr.bf16.mxu0 %v5679
  %6189 = vmatpush2.bf16.msra.mxu0 %v5678
  %6190 = vmatprep.subr.bf16.mxu0 %v5677
  %6191 = vmatpush2.bf16.msra.mxu0 %v5676
  %6192 = vmatprep.subr.bf16.mxu0 %v5675
  %6193 = vmatpush2.bf16.msra.mxu0 %v5674
  %6194 = vmatprep.subr.bf16.mxu0 %v5673
  %6195 = vmatpush2.bf16.msra.mxu0 %v5672
  %6196 = vmatprep.subr.bf16.mxu0 %v5671
  %6197 = vmatpush2.bf16.msra.mxu0 %v5670
  %6198 = vmatprep.mubr.bf16.mxu0 %v6039
  %6199 = vmatmul.mubr.bf16.gmra.mxu0 %v6038
  %v6200 = vpop.f32.mrf.mxu0
  %v6201 = vadd.f32 0.0, %v6200
  %v6202 = vpop.f32.mrf.mxu0
  %v6203 = vadd.f32 0.0, %v6202
  %v6204 = vpop.f32.mrf.mxu0
  %v6205 = vadd.f32 0.0, %v6204
  %v6206 = vpop.f32.mrf.mxu0
  %v6207 = vadd.f32 0.0, %v6206
  %6208 = vmatprep.mubr.bf16.mxu0 %v6047
  %6209 = vmatmul.mubr.bf16.gmra.mxu0 %v6046
  %v6210 = vpop.f32.mrf.mxu0
  %v6211 = vadd.f32 0.0, %v6210
  %v6212 = vpop.f32.mrf.mxu0
  %v6213 = vadd.f32 0.0, %v6212
  %v6214 = vpop.f32.mrf.mxu0
  %v6215 = vadd.f32 0.0, %v6214
  %v6216 = vpop.f32.mrf.mxu0
  %v6217 = vadd.f32 0.0, %v6216
  %6218 = vmatprep.mubr.bf16.mxu0 %v6055
  %6219 = vmatmul.mubr.bf16.gmra.mxu0 %v6054
  %v6220 = vpop.f32.mrf.mxu0
  %v6221 = vadd.f32 0.0, %v6220
  %v6222 = vpop.f32.mrf.mxu0
  %v6223 = vadd.f32 0.0, %v6222
  %v6224 = vpop.f32.mrf.mxu0
  %v6225 = vadd.f32 0.0, %v6224
  %v6226 = vpop.f32.mrf.mxu0
  %v6227 = vadd.f32 0.0, %v6226
  %6228 = vmatprep.mubr.bf16.mxu0 %v6063
  %6229 = vmatmul.mubr.bf16.gmra.mxu0 %v6062
  %v6230 = vpop.f32.mrf.mxu0
  %v6231 = vadd.f32 0.0, %v6230
  %v6232 = vpop.f32.mrf.mxu0
  %v6233 = vadd.f32 0.0, %v6232
  %v6234 = vpop.f32.mrf.mxu0
  %v6235 = vadd.f32 0.0, %v6234
  %v6236 = vpop.f32.mrf.mxu0
  %v6237 = vadd.f32 0.0, %v6236
  %6238 = vmatprep.mubr.bf16.mxu0 %v6071
  %6239 = vmatmul.mubr.bf16.gmra.mxu0 %v6070
  %v6240 = vpop.f32.mrf.mxu0
  %v6241 = vadd.f32 0.0, %v6240
  %v6242 = vpop.f32.mrf.mxu0
  %v6243 = vadd.f32 0.0, %v6242
  %v6244 = vpop.f32.mrf.mxu0
  %v6245 = vadd.f32 0.0, %v6244
  %v6246 = vpop.f32.mrf.mxu0
  %v6247 = vadd.f32 0.0, %v6246
  %6248 = vmatprep.mubr.bf16.mxu0 %v6079
  %6249 = vmatmul.mubr.bf16.gmra.mxu0 %v6078
  %v6250 = vpop.f32.mrf.mxu0
  %v6251 = vadd.f32 0.0, %v6250
  %v6252 = vpop.f32.mrf.mxu0
  %v6253 = vadd.f32 0.0, %v6252
  %v6254 = vpop.f32.mrf.mxu0
  %v6255 = vadd.f32 0.0, %v6254
  %v6256 = vpop.f32.mrf.mxu0
  %v6257 = vadd.f32 0.0, %v6256
  %6258 = vmatprep.mubr.bf16.mxu0 %v6087
  %6259 = vmatmul.mubr.bf16.gmra.mxu0 %v6086
  %v6260 = vpop.f32.mrf.mxu0
  %v6261 = vadd.f32 0.0, %v6260
  %v6262 = vpop.f32.mrf.mxu0
  %v6263 = vadd.f32 0.0, %v6262
  %v6264 = vpop.f32.mrf.mxu0
  %v6265 = vadd.f32 0.0, %v6264
  %v6266 = vpop.f32.mrf.mxu0
  %v6267 = vadd.f32 0.0, %v6266
  %6268 = vmatprep.mubr.bf16.mxu0 %v6095
  %6269 = vmatmul.mubr.bf16.gmra.mxu0 %v6094
  %v6270 = vpop.f32.mrf.mxu0
  %v6271 = vadd.f32 0.0, %v6270
  %v6272 = vpop.f32.mrf.mxu0
  %v6273 = vadd.f32 0.0, %v6272
  %v6274 = vpop.f32.mrf.mxu0
  %v6275 = vadd.f32 0.0, %v6274
  %v6276 = vpop.f32.mrf.mxu0
  %v6277 = vadd.f32 0.0, %v6276
  %6278 = vmatprep.mubr.bf16.mxu0 %v6103
  %6279 = vmatmul.mubr.bf16.gmra.mxu0 %v6102
  %v6280 = vpop.f32.mrf.mxu0
  %v6281 = vadd.f32 0.0, %v6280
  %v6282 = vpop.f32.mrf.mxu0
  %v6283 = vadd.f32 0.0, %v6282
  %v6284 = vpop.f32.mrf.mxu0
  %v6285 = vadd.f32 0.0, %v6284
  %v6286 = vpop.f32.mrf.mxu0
  %v6287 = vadd.f32 0.0, %v6286
  %6288 = vmatprep.mubr.bf16.mxu0 %v6111
  %6289 = vmatmul.mubr.bf16.gmra.mxu0 %v6110
  %v6290 = vpop.f32.mrf.mxu0
  %v6291 = vadd.f32 0.0, %v6290
  %v6292 = vpop.f32.mrf.mxu0
  %v6293 = vadd.f32 0.0, %v6292
  %v6294 = vpop.f32.mrf.mxu0
  %v6295 = vadd.f32 0.0, %v6294
  %v6296 = vpop.f32.mrf.mxu0
  %v6297 = vadd.f32 0.0, %v6296
  %6298 = vmatprep.mubr.bf16.mxu0 %v6119
  %6299 = vmatmul.mubr.bf16.gmra.mxu0 %v6118
  %v6300 = vpop.f32.mrf.mxu0
  %v6301 = vadd.f32 0.0, %v6300
  %v6302 = vpop.f32.mrf.mxu0
  %v6303 = vadd.f32 0.0, %v6302
  %v6304 = vpop.f32.mrf.mxu0
  %v6305 = vadd.f32 0.0, %v6304
  %v6306 = vpop.f32.mrf.mxu0
  %v6307 = vadd.f32 0.0, %v6306
  %6308 = vmatprep.mubr.bf16.mxu0 %v6127
  %6309 = vmatmul.mubr.bf16.gmra.mxu0 %v6126
  %v6310 = vpop.f32.mrf.mxu0
  %v6311 = vadd.f32 0.0, %v6310
  %v6312 = vpop.f32.mrf.mxu0
  %v6313 = vadd.f32 0.0, %v6312
  %v6314 = vpop.f32.mrf.mxu0
  %v6315 = vadd.f32 0.0, %v6314
  %v6316 = vpop.f32.mrf.mxu0
  %v6317 = vadd.f32 0.0, %v6316
  %6318 = vmatprep.mubr.bf16.mxu0 %v6135
  %6319 = vmatmul.mubr.bf16.gmra.mxu0 %v6134
  %v6320 = vpop.f32.mrf.mxu0
  %v6321 = vadd.f32 0.0, %v6320
  %v6322 = vpop.f32.mrf.mxu0
  %v6323 = vadd.f32 0.0, %v6322
  %v6324 = vpop.f32.mrf.mxu0
  %v6325 = vadd.f32 0.0, %v6324
  %v6326 = vpop.f32.mrf.mxu0
  %v6327 = vadd.f32 0.0, %v6326
  %6328 = vmatprep.mubr.bf16.mxu0 %v6143
  %6329 = vmatmul.mubr.bf16.gmra.mxu0 %v6142
  %v6330 = vpop.f32.mrf.mxu0
  %v6331 = vadd.f32 0.0, %v6330
  %v6332 = vpop.f32.mrf.mxu0
  %v6333 = vadd.f32 0.0, %v6332
  %v6334 = vpop.f32.mrf.mxu0
  %v6335 = vadd.f32 0.0, %v6334
  %v6336 = vpop.f32.mrf.mxu0
  %v6337 = vadd.f32 0.0, %v6336
  %6338 = vmatprep.mubr.bf16.mxu0 %v6151
  %6339 = vmatmul.mubr.bf16.gmra.mxu0 %v6150
  %v6340 = vpop.f32.mrf.mxu0
  %v6341 = vadd.f32 0.0, %v6340
  %v6342 = vpop.f32.mrf.mxu0
  %v6343 = vadd.f32 0.0, %v6342
  %v6344 = vpop.f32.mrf.mxu0
  %v6345 = vadd.f32 0.0, %v6344
  %v6346 = vpop.f32.mrf.mxu0
  %v6347 = vadd.f32 0.0, %v6346
  %6348 = vmatprep.mubr.bf16.mxu0 %v6159
  %6349 = vmatmul.mubr.bf16.gmra.mxu0 %v6158
  %v6350 = vpop.f32.mrf.mxu0
  %v6351 = vadd.f32 0.0, %v6350
  %v6352 = vpop.f32.mrf.mxu0
  %v6353 = vadd.f32 0.0, %v6352
  %v6354 = vpop.f32.mrf.mxu0
  %v6355 = vadd.f32 0.0, %v6354
  %v6356 = vpop.f32.mrf.mxu0
  %v6357 = vadd.f32 0.0, %v6356
  %6358 = vdwg.mxu0
  %6359 = vmatprep.subr.bf16.mxu0 %v5701
  %6360 = vmatpush1.bf16.msra.mxu0 %v5700
  %6361 = vmatprep.subr.bf16.mxu0 %v5699
  %6362 = vmatpush1.bf16.msra.mxu0 %v5698
  %6363 = vmatprep.subr.bf16.mxu0 %v5697
  %6364 = vmatpush1.bf16.msra.mxu0 %v5696
  %6365 = vmatprep.subr.bf16.mxu0 %v5695
  %6366 = vmatpush1.bf16.msra.mxu0 %v5694
  %6367 = vmatprep.subr.bf16.mxu0 %v5693
  %6368 = vmatpush1.bf16.msra.mxu0 %v5692
  %6369 = vmatprep.subr.bf16.mxu0 %v5691
  %6370 = vmatpush1.bf16.msra.mxu0 %v5690
  %6371 = vmatprep.subr.bf16.mxu0 %v5689
  %6372 = vmatpush1.bf16.msra.mxu0 %v5688
  %6373 = vmatprep.subr.bf16.mxu0 %v5687
  %6374 = vmatpush1.bf16.msra.mxu0 %v5686
  %6375 = vmatprep.subr.bf16.mxu0 %v5717
  %6376 = vmatpush2.bf16.msra.mxu0 %v5716
  %6377 = vmatprep.subr.bf16.mxu0 %v5715
  %6378 = vmatpush2.bf16.msra.mxu0 %v5714
  %6379 = vmatprep.subr.bf16.mxu0 %v5713
  %6380 = vmatpush2.bf16.msra.mxu0 %v5712
  %6381 = vmatprep.subr.bf16.mxu0 %v5711
  %6382 = vmatpush2.bf16.msra.mxu0 %v5710
  %6383 = vmatprep.subr.bf16.mxu0 %v5709
  %6384 = vmatpush2.bf16.msra.mxu0 %v5708
  %6385 = vmatprep.subr.bf16.mxu0 %v5707
  %6386 = vmatpush2.bf16.msra.mxu0 %v5706
  %6387 = vmatprep.subr.bf16.mxu0 %v5705
  %6388 = vmatpush2.bf16.msra.mxu0 %v5704
  %6389 = vmatprep.subr.bf16.mxu0 %v5703
  %6390 = vmatpush2.bf16.msra.mxu0 %v5702
  %6391 = vmatprep.mubr.bf16.mxu0 %v6041
  %6392 = vmatmul.mubr.bf16.gmra.mxu0 %v6040
  %v6393 = vpop.f32.mrf.mxu0
  %v6394 = vadd.f32 %v6201, %v6393
  %v6395 = vpop.f32.mrf.mxu0
  %v6396 = vadd.f32 %v6203, %v6395
  %v6397 = vpop.f32.mrf.mxu0
  %v6398 = vadd.f32 %v6205, %v6397
  %v6399 = vpop.f32.mrf.mxu0
  %v6400 = vadd.f32 %v6207, %v6399
  %6401 = vmatprep.mubr.bf16.mxu0 %v6049
  %6402 = vmatmul.mubr.bf16.gmra.mxu0 %v6048
  %v6403 = vpop.f32.mrf.mxu0
  %v6404 = vadd.f32 %v6211, %v6403
  %v6405 = vpop.f32.mrf.mxu0
  %v6406 = vadd.f32 %v6213, %v6405
  %v6407 = vpop.f32.mrf.mxu0
  %v6408 = vadd.f32 %v6215, %v6407
  %v6409 = vpop.f32.mrf.mxu0
  %v6410 = vadd.f32 %v6217, %v6409
  %6411 = vmatprep.mubr.bf16.mxu0 %v6057
  %6412 = vmatmul.mubr.bf16.gmra.mxu0 %v6056
  %v6413 = vpop.f32.mrf.mxu0
  %v6414 = vadd.f32 %v6221, %v6413
  %v6415 = vpop.f32.mrf.mxu0
  %v6416 = vadd.f32 %v6223, %v6415
  %v6417 = vpop.f32.mrf.mxu0
  %v6418 = vadd.f32 %v6225, %v6417
  %v6419 = vpop.f32.mrf.mxu0
  %v6420 = vadd.f32 %v6227, %v6419
  %6421 = vmatprep.mubr.bf16.mxu0 %v6065
  %6422 = vmatmul.mubr.bf16.gmra.mxu0 %v6064
  %v6423 = vpop.f32.mrf.mxu0
  %v6424 = vadd.f32 %v6231, %v6423
  %v6425 = vpop.f32.mrf.mxu0
  %v6426 = vadd.f32 %v6233, %v6425
  %v6427 = vpop.f32.mrf.mxu0
  %v6428 = vadd.f32 %v6235, %v6427
  %v6429 = vpop.f32.mrf.mxu0
  %v6430 = vadd.f32 %v6237, %v6429
  %6431 = vmatprep.mubr.bf16.mxu0 %v6073
  %6432 = vmatmul.mubr.bf16.gmra.mxu0 %v6072
  %v6433 = vpop.f32.mrf.mxu0
  %v6434 = vadd.f32 %v6241, %v6433
  %v6435 = vpop.f32.mrf.mxu0
  %v6436 = vadd.f32 %v6243, %v6435
  %v6437 = vpop.f32.mrf.mxu0
  %v6438 = vadd.f32 %v6245, %v6437
  %v6439 = vpop.f32.mrf.mxu0
  %v6440 = vadd.f32 %v6247, %v6439
  %6441 = vmatprep.mubr.bf16.mxu0 %v6081
  %6442 = vmatmul.mubr.bf16.gmra.mxu0 %v6080
  %v6443 = vpop.f32.mrf.mxu0
  %v6444 = vadd.f32 %v6251, %v6443
  %v6445 = vpop.f32.mrf.mxu0
  %v6446 = vadd.f32 %v6253, %v6445
  %v6447 = vpop.f32.mrf.mxu0
  %v6448 = vadd.f32 %v6255, %v6447
  %v6449 = vpop.f32.mrf.mxu0
  %v6450 = vadd.f32 %v6257, %v6449
  %6451 = vmatprep.mubr.bf16.mxu0 %v6089
  %6452 = vmatmul.mubr.bf16.gmra.mxu0 %v6088
  %v6453 = vpop.f32.mrf.mxu0
  %v6454 = vadd.f32 %v6261, %v6453
  %v6455 = vpop.f32.mrf.mxu0
  %v6456 = vadd.f32 %v6263, %v6455
  %v6457 = vpop.f32.mrf.mxu0
  %v6458 = vadd.f32 %v6265, %v6457
  %v6459 = vpop.f32.mrf.mxu0
  %v6460 = vadd.f32 %v6267, %v6459
  %6461 = vmatprep.mubr.bf16.mxu0 %v6097
  %6462 = vmatmul.mubr.bf16.gmra.mxu0 %v6096
  %v6463 = vpop.f32.mrf.mxu0
  %v6464 = vadd.f32 %v6271, %v6463
  %v6465 = vpop.f32.mrf.mxu0
  %v6466 = vadd.f32 %v6273, %v6465
  %v6467 = vpop.f32.mrf.mxu0
  %v6468 = vadd.f32 %v6275, %v6467
  %v6469 = vpop.f32.mrf.mxu0
  %v6470 = vadd.f32 %v6277, %v6469
  %6471 = vmatprep.mubr.bf16.mxu0 %v6105
  %6472 = vmatmul.mubr.bf16.gmra.mxu0 %v6104
  %v6473 = vpop.f32.mrf.mxu0
  %v6474 = vadd.f32 %v6281, %v6473
  %v6475 = vpop.f32.mrf.mxu0
  %v6476 = vadd.f32 %v6283, %v6475
  %v6477 = vpop.f32.mrf.mxu0
  %v6478 = vadd.f32 %v6285, %v6477
  %v6479 = vpop.f32.mrf.mxu0
  %v6480 = vadd.f32 %v6287, %v6479
  %6481 = vmatprep.mubr.bf16.mxu0 %v6113
  %6482 = vmatmul.mubr.bf16.gmra.mxu0 %v6112
  %v6483 = vpop.f32.mrf.mxu0
  %v6484 = vadd.f32 %v6291, %v6483
  %v6485 = vpop.f32.mrf.mxu0
  %v6486 = vadd.f32 %v6293, %v6485
  %v6487 = vpop.f32.mrf.mxu0
  %v6488 = vadd.f32 %v6295, %v6487
  %v6489 = vpop.f32.mrf.mxu0
  %v6490 = vadd.f32 %v6297, %v6489
  %6491 = vmatprep.mubr.bf16.mxu0 %v6121
  %6492 = vmatmul.mubr.bf16.gmra.mxu0 %v6120
  %v6493 = vpop.f32.mrf.mxu0
  %v6494 = vadd.f32 %v6301, %v6493
  %v6495 = vpop.f32.mrf.mxu0
  %v6496 = vadd.f32 %v6303, %v6495
  %v6497 = vpop.f32.mrf.mxu0
  %v6498 = vadd.f32 %v6305, %v6497
  %v6499 = vpop.f32.mrf.mxu0
  %v6500 = vadd.f32 %v6307, %v6499
  %6501 = vmatprep.mubr.bf16.mxu0 %v6129
  %6502 = vmatmul.mubr.bf16.gmra.mxu0 %v6128
  %v6503 = vpop.f32.mrf.mxu0
  %v6504 = vadd.f32 %v6311, %v6503
  %v6505 = vpop.f32.mrf.mxu0
  %v6506 = vadd.f32 %v6313, %v6505
  %v6507 = vpop.f32.mrf.mxu0
  %v6508 = vadd.f32 %v6315, %v6507
  %v6509 = vpop.f32.mrf.mxu0
  %v6510 = vadd.f32 %v6317, %v6509
  %6511 = vmatprep.mubr.bf16.mxu0 %v6137
  %6512 = vmatmul.mubr.bf16.gmra.mxu0 %v6136
  %v6513 = vpop.f32.mrf.mxu0
  %v6514 = vadd.f32 %v6321, %v6513
  %v6515 = vpop.f32.mrf.mxu0
  %v6516 = vadd.f32 %v6323, %v6515
  %v6517 = vpop.f32.mrf.mxu0
  %v6518 = vadd.f32 %v6325, %v6517
  %v6519 = vpop.f32.mrf.mxu0
  %v6520 = vadd.f32 %v6327, %v6519
  %6521 = vmatprep.mubr.bf16.mxu0 %v6145
  %6522 = vmatmul.mubr.bf16.gmra.mxu0 %v6144
  %v6523 = vpop.f32.mrf.mxu0
  %v6524 = vadd.f32 %v6331, %v6523
  %v6525 = vpop.f32.mrf.mxu0
  %v6526 = vadd.f32 %v6333, %v6525
  %v6527 = vpop.f32.mrf.mxu0
  %v6528 = vadd.f32 %v6335, %v6527
  %v6529 = vpop.f32.mrf.mxu0
  %v6530 = vadd.f32 %v6337, %v6529
  %6531 = vmatprep.mubr.bf16.mxu0 %v6153
  %6532 = vmatmul.mubr.bf16.gmra.mxu0 %v6152
  %v6533 = vpop.f32.mrf.mxu0
  %v6534 = vadd.f32 %v6341, %v6533
  %v6535 = vpop.f32.mrf.mxu0
  %v6536 = vadd.f32 %v6343, %v6535
  %v6537 = vpop.f32.mrf.mxu0
  %v6538 = vadd.f32 %v6345, %v6537
  %v6539 = vpop.f32.mrf.mxu0
  %v6540 = vadd.f32 %v6347, %v6539
  %6541 = vmatprep.mubr.bf16.mxu0 %v6161
  %6542 = vmatmul.mubr.bf16.gmra.mxu0 %v6160
  %v6543 = vpop.f32.mrf.mxu0
  %v6544 = vadd.f32 %v6351, %v6543
  %v6545 = vpop.f32.mrf.mxu0
  %v6546 = vadd.f32 %v6353, %v6545
  %v6547 = vpop.f32.mrf.mxu0
  %v6548 = vadd.f32 %v6355, %v6547
  %v6549 = vpop.f32.mrf.mxu0
  %v6550 = vadd.f32 %v6357, %v6549
  %6551 = vdwg.mxu0
  %6552 = vmatprep.subr.bf16.mxu0 %v5733
  %6553 = vmatpush1.bf16.msra.mxu0 %v5732
  %6554 = vmatprep.subr.bf16.mxu0 %v5731
  %6555 = vmatpush1.bf16.msra.mxu0 %v5730
  %6556 = vmatprep.subr.bf16.mxu0 %v5729
  %6557 = vmatpush1.bf16.msra.mxu0 %v5728
  %6558 = vmatprep.subr.bf16.mxu0 %v5727
  %6559 = vmatpush1.bf16.msra.mxu0 %v5726
  %6560 = vmatprep.subr.bf16.mxu0 %v5725
  %6561 = vmatpush1.bf16.msra.mxu0 %v5724
  %6562 = vmatprep.subr.bf16.mxu0 %v5723
  %6563 = vmatpush1.bf16.msra.mxu0 %v5722
  %6564 = vmatprep.subr.bf16.mxu0 %v5721
  %6565 = vmatpush1.bf16.msra.mxu0 %v5720
  %6566 = vmatprep.subr.bf16.mxu0 %v5719
  %6567 = vmatpush1.bf16.msra.mxu0 %v5718
  %6568 = vmatprep.subr.bf16.mxu0 %v5749
  %6569 = vmatpush2.bf16.msra.mxu0 %v5748
  %6570 = vmatprep.subr.bf16.mxu0 %v5747
  %6571 = vmatpush2.bf16.msra.mxu0 %v5746
  %6572 = vmatprep.subr.bf16.mxu0 %v5745
  %6573 = vmatpush2.bf16.msra.mxu0 %v5744
  %6574 = vmatprep.subr.bf16.mxu0 %v5743
  %6575 = vmatpush2.bf16.msra.mxu0 %v5742
  %6576 = vmatprep.subr.bf16.mxu0 %v5741
  %6577 = vmatpush2.bf16.msra.mxu0 %v5740
  %6578 = vmatprep.subr.bf16.mxu0 %v5739
  %6579 = vmatpush2.bf16.msra.mxu0 %v5738
  %6580 = vmatprep.subr.bf16.mxu0 %v5737
  %6581 = vmatpush2.bf16.msra.mxu0 %v5736
  %6582 = vmatprep.subr.bf16.mxu0 %v5735
  %6583 = vmatpush2.bf16.msra.mxu0 %v5734
  %6584 = vmatprep.mubr.bf16.mxu0 %v6043
  %6585 = vmatmul.mubr.bf16.gmra.mxu0 %v6042
  %v6586 = vpop.f32.mrf.mxu0
  %v6587 = vadd.f32 %v6394, %v6586
  %v6588 = vpop.f32.mrf.mxu0
  %v6589 = vadd.f32 %v6396, %v6588
  %v6590 = vpop.f32.mrf.mxu0
  %v6591 = vadd.f32 %v6398, %v6590
  %v6592 = vpop.f32.mrf.mxu0
  %v6593 = vadd.f32 %v6400, %v6592
  %6594 = vmatprep.mubr.bf16.mxu0 %v6051
  %6595 = vmatmul.mubr.bf16.gmra.mxu0 %v6050
  %v6596 = vpop.f32.mrf.mxu0
  %v6597 = vadd.f32 %v6404, %v6596
  %v6598 = vpop.f32.mrf.mxu0
  %v6599 = vadd.f32 %v6406, %v6598
  %v6600 = vpop.f32.mrf.mxu0
  %v6601 = vadd.f32 %v6408, %v6600
  %v6602 = vpop.f32.mrf.mxu0
  %v6603 = vadd.f32 %v6410, %v6602
  %6604 = vmatprep.mubr.bf16.mxu0 %v6059
  %6605 = vmatmul.mubr.bf16.gmra.mxu0 %v6058
  %v6606 = vpop.f32.mrf.mxu0
  %v6607 = vadd.f32 %v6414, %v6606
  %v6608 = vpop.f32.mrf.mxu0
  %v6609 = vadd.f32 %v6416, %v6608
  %v6610 = vpop.f32.mrf.mxu0
  %v6611 = vadd.f32 %v6418, %v6610
  %v6612 = vpop.f32.mrf.mxu0
  %v6613 = vadd.f32 %v6420, %v6612
  %6614 = vmatprep.mubr.bf16.mxu0 %v6067
  %6615 = vmatmul.mubr.bf16.gmra.mxu0 %v6066
  %v6616 = vpop.f32.mrf.mxu0
  %v6617 = vadd.f32 %v6424, %v6616
  %v6618 = vpop.f32.mrf.mxu0
  %v6619 = vadd.f32 %v6426, %v6618
  %v6620 = vpop.f32.mrf.mxu0
  %v6621 = vadd.f32 %v6428, %v6620
  %v6622 = vpop.f32.mrf.mxu0
  %v6623 = vadd.f32 %v6430, %v6622
  %6624 = vmatprep.mubr.bf16.mxu0 %v6075
  %6625 = vmatmul.mubr.bf16.gmra.mxu0 %v6074
  %v6626 = vpop.f32.mrf.mxu0
  %v6627 = vadd.f32 %v6434, %v6626
  %v6628 = vpop.f32.mrf.mxu0
  %v6629 = vadd.f32 %v6436, %v6628
  %v6630 = vpop.f32.mrf.mxu0
  %v6631 = vadd.f32 %v6438, %v6630
  %v6632 = vpop.f32.mrf.mxu0
  %v6633 = vadd.f32 %v6440, %v6632
  %6634 = vmatprep.mubr.bf16.mxu0 %v6083
  %6635 = vmatmul.mubr.bf16.gmra.mxu0 %v6082
  %v6636 = vpop.f32.mrf.mxu0
  %v6637 = vadd.f32 %v6444, %v6636
  %v6638 = vpop.f32.mrf.mxu0
  %v6639 = vadd.f32 %v6446, %v6638
  %v6640 = vpop.f32.mrf.mxu0
  %v6641 = vadd.f32 %v6448, %v6640
  %v6642 = vpop.f32.mrf.mxu0
  %v6643 = vadd.f32 %v6450, %v6642
  %6644 = vmatprep.mubr.bf16.mxu0 %v6091
  %6645 = vmatmul.mubr.bf16.gmra.mxu0 %v6090
  %v6646 = vpop.f32.mrf.mxu0
  %v6647 = vadd.f32 %v6454, %v6646
  %v6648 = vpop.f32.mrf.mxu0
  %v6649 = vadd.f32 %v6456, %v6648
  %v6650 = vpop.f32.mrf.mxu0
  %v6651 = vadd.f32 %v6458, %v6650
  %v6652 = vpop.f32.mrf.mxu0
  %v6653 = vadd.f32 %v6460, %v6652
  %6654 = vmatprep.mubr.bf16.mxu0 %v6099
  %6655 = vmatmul.mubr.bf16.gmra.mxu0 %v6098
  %v6656 = vpop.f32.mrf.mxu0
  %v6657 = vadd.f32 %v6464, %v6656
  %v6658 = vpop.f32.mrf.mxu0
  %v6659 = vadd.f32 %v6466, %v6658
  %v6660 = vpop.f32.mrf.mxu0
  %v6661 = vadd.f32 %v6468, %v6660
  %v6662 = vpop.f32.mrf.mxu0
  %v6663 = vadd.f32 %v6470, %v6662
  %6664 = vmatprep.mubr.bf16.mxu0 %v6107
  %6665 = vmatmul.mubr.bf16.gmra.mxu0 %v6106
  %v6666 = vpop.f32.mrf.mxu0
  %v6667 = vadd.f32 %v6474, %v6666
  %v6668 = vpop.f32.mrf.mxu0
  %v6669 = vadd.f32 %v6476, %v6668
  %v6670 = vpop.f32.mrf.mxu0
  %v6671 = vadd.f32 %v6478, %v6670
  %v6672 = vpop.f32.mrf.mxu0
  %v6673 = vadd.f32 %v6480, %v6672
  %6674 = vmatprep.mubr.bf16.mxu0 %v6115
  %6675 = vmatmul.mubr.bf16.gmra.mxu0 %v6114
  %v6676 = vpop.f32.mrf.mxu0
  %v6677 = vadd.f32 %v6484, %v6676
  %v6678 = vpop.f32.mrf.mxu0
  %v6679 = vadd.f32 %v6486, %v6678
  %v6680 = vpop.f32.mrf.mxu0
  %v6681 = vadd.f32 %v6488, %v6680
  %v6682 = vpop.f32.mrf.mxu0
  %v6683 = vadd.f32 %v6490, %v6682
  %6684 = vmatprep.mubr.bf16.mxu0 %v6123
  %6685 = vmatmul.mubr.bf16.gmra.mxu0 %v6122
  %v6686 = vpop.f32.mrf.mxu0
  %v6687 = vadd.f32 %v6494, %v6686
  %v6688 = vpop.f32.mrf.mxu0
  %v6689 = vadd.f32 %v6496, %v6688
  %v6690 = vpop.f32.mrf.mxu0
  %v6691 = vadd.f32 %v6498, %v6690
  %v6692 = vpop.f32.mrf.mxu0
  %v6693 = vadd.f32 %v6500, %v6692
  %6694 = vmatprep.mubr.bf16.mxu0 %v6131
  %6695 = vmatmul.mubr.bf16.gmra.mxu0 %v6130
  %v6696 = vpop.f32.mrf.mxu0
  %v6697 = vadd.f32 %v6504, %v6696
  %v6698 = vpop.f32.mrf.mxu0
  %v6699 = vadd.f32 %v6506, %v6698
  %v6700 = vpop.f32.mrf.mxu0
  %v6701 = vadd.f32 %v6508, %v6700
  %v6702 = vpop.f32.mrf.mxu0
  %v6703 = vadd.f32 %v6510, %v6702
  %6704 = vmatprep.mubr.bf16.mxu0 %v6139
  %6705 = vmatmul.mubr.bf16.gmra.mxu0 %v6138
  %v6706 = vpop.f32.mrf.mxu0
  %v6707 = vadd.f32 %v6514, %v6706
  %v6708 = vpop.f32.mrf.mxu0
  %v6709 = vadd.f32 %v6516, %v6708
  %v6710 = vpop.f32.mrf.mxu0
  %v6711 = vadd.f32 %v6518, %v6710
  %v6712 = vpop.f32.mrf.mxu0
  %v6713 = vadd.f32 %v6520, %v6712
  %6714 = vmatprep.mubr.bf16.mxu0 %v6147
  %6715 = vmatmul.mubr.bf16.gmra.mxu0 %v6146
  %v6716 = vpop.f32.mrf.mxu0
  %v6717 = vadd.f32 %v6524, %v6716
  %v6718 = vpop.f32.mrf.mxu0
  %v6719 = vadd.f32 %v6526, %v6718
  %v6720 = vpop.f32.mrf.mxu0
  %v6721 = vadd.f32 %v6528, %v6720
  %v6722 = vpop.f32.mrf.mxu0
  %v6723 = vadd.f32 %v6530, %v6722
  %6724 = vmatprep.mubr.bf16.mxu0 %v6155
  %6725 = vmatmul.mubr.bf16.gmra.mxu0 %v6154
  %v6726 = vpop.f32.mrf.mxu0
  %v6727 = vadd.f32 %v6534, %v6726
  %v6728 = vpop.f32.mrf.mxu0
  %v6729 = vadd.f32 %v6536, %v6728
  %v6730 = vpop.f32.mrf.mxu0
  %v6731 = vadd.f32 %v6538, %v6730
  %v6732 = vpop.f32.mrf.mxu0
  %v6733 = vadd.f32 %v6540, %v6732
  %6734 = vmatprep.mubr.bf16.mxu0 %v6163
  %6735 = vmatmul.mubr.bf16.gmra.mxu0 %v6162
  %v6736 = vpop.f32.mrf.mxu0
  %v6737 = vadd.f32 %v6544, %v6736
  %v6738 = vpop.f32.mrf.mxu0
  %v6739 = vadd.f32 %v6546, %v6738
  %v6740 = vpop.f32.mrf.mxu0
  %v6741 = vadd.f32 %v6548, %v6740
  %v6742 = vpop.f32.mrf.mxu0
  %v6743 = vadd.f32 %v6550, %v6742
  %6744 = vdwg.mxu0
  %6745 = vmatprep.subr.bf16.mxu0 %v5765
  %6746 = vmatpush1.bf16.msra.mxu0 %v5764
  %6747 = vmatprep.subr.bf16.mxu0 %v5763
  %6748 = vmatpush1.bf16.msra.mxu0 %v5762
  %6749 = vmatprep.subr.bf16.mxu0 %v5761
  %6750 = vmatpush1.bf16.msra.mxu0 %v5760
  %6751 = vmatprep.subr.bf16.mxu0 %v5759
  %6752 = vmatpush1.bf16.msra.mxu0 %v5758
  %6753 = vmatprep.subr.bf16.mxu0 %v5757
  %6754 = vmatpush1.bf16.msra.mxu0 %v5756
  %6755 = vmatprep.subr.bf16.mxu0 %v5755
  %6756 = vmatpush1.bf16.msra.mxu0 %v5754
  %6757 = vmatprep.subr.bf16.mxu0 %v5753
  %6758 = vmatpush1.bf16.msra.mxu0 %v5752
  %6759 = vmatprep.subr.bf16.mxu0 %v5751
  %6760 = vmatpush1.bf16.msra.mxu0 %v5750
  %6761 = vmatprep.subr.bf16.mxu0 %v5781
  %6762 = vmatpush2.bf16.msra.mxu0 %v5780
  %6763 = vmatprep.subr.bf16.mxu0 %v5779
  %6764 = vmatpush2.bf16.msra.mxu0 %v5778
  %6765 = vmatprep.subr.bf16.mxu0 %v5777
  %6766 = vmatpush2.bf16.msra.mxu0 %v5776
  %6767 = vmatprep.subr.bf16.mxu0 %v5775
  %6768 = vmatpush2.bf16.msra.mxu0 %v5774
  %6769 = vmatprep.subr.bf16.mxu0 %v5773
  %6770 = vmatpush2.bf16.msra.mxu0 %v5772
  %6771 = vmatprep.subr.bf16.mxu0 %v5771
  %6772 = vmatpush2.bf16.msra.mxu0 %v5770
  %6773 = vmatprep.subr.bf16.mxu0 %v5769
  %6774 = vmatpush2.bf16.msra.mxu0 %v5768
  %6775 = vmatprep.subr.bf16.mxu0 %v5767
  %6776 = vmatpush2.bf16.msra.mxu0 %v5766
  %6777 = vmatprep.mubr.bf16.mxu0 %v6045
  %6778 = vmatmul.mubr.bf16.gmra.mxu0 %v6044
  %v6779 = vpop.f32.mrf.mxu0
  %v6780 = vadd.f32 %v6587, %v6779
  %v6781 = vpop.f32.mrf.mxu0
  %v6782 = vadd.f32 %v6589, %v6781
  %v6783 = vpop.f32.mrf.mxu0
  %v6784 = vadd.f32 %v6591, %v6783
  %v6785 = vpop.f32.mrf.mxu0
  %v6786 = vadd.f32 %v6593, %v6785
  %6787 = vmatprep.mubr.bf16.mxu0 %v6053
  %6788 = vmatmul.mubr.bf16.gmra.mxu0 %v6052
  %v6789 = vpop.f32.mrf.mxu0
  %v6790 = vadd.f32 %v6597, %v6789
  %v6791 = vpop.f32.mrf.mxu0
  %v6792 = vadd.f32 %v6599, %v6791
  %v6793 = vpop.f32.mrf.mxu0
  %v6794 = vadd.f32 %v6601, %v6793
  %v6795 = vpop.f32.mrf.mxu0
  %v6796 = vadd.f32 %v6603, %v6795
  %6797 = vmatprep.mubr.bf16.mxu0 %v6061
  %6798 = vmatmul.mubr.bf16.gmra.mxu0 %v6060
  %v6799 = vpop.f32.mrf.mxu0
  %v6800 = vadd.f32 %v6607, %v6799
  %v6801 = vpop.f32.mrf.mxu0
  %v6802 = vadd.f32 %v6609, %v6801
  %v6803 = vpop.f32.mrf.mxu0
  %v6804 = vadd.f32 %v6611, %v6803
  %v6805 = vpop.f32.mrf.mxu0
  %v6806 = vadd.f32 %v6613, %v6805
  %6807 = vmatprep.mubr.bf16.mxu0 %v6069
  %6808 = vmatmul.mubr.bf16.gmra.mxu0 %v6068
  %v6809 = vpop.f32.mrf.mxu0
  %v6810 = vadd.f32 %v6617, %v6809
  %v6811 = vpop.f32.mrf.mxu0
  %v6812 = vadd.f32 %v6619, %v6811
  %v6813 = vpop.f32.mrf.mxu0
  %v6814 = vadd.f32 %v6621, %v6813
  %v6815 = vpop.f32.mrf.mxu0
  %v6816 = vadd.f32 %v6623, %v6815
  %6817 = vmatprep.mubr.bf16.mxu0 %v6077
  %6818 = vmatmul.mubr.bf16.gmra.mxu0 %v6076
  %v6819 = vpop.f32.mrf.mxu0
  %v6820 = vadd.f32 %v6627, %v6819
  %v6821 = vpop.f32.mrf.mxu0
  %v6822 = vadd.f32 %v6629, %v6821
  %v6823 = vpop.f32.mrf.mxu0
  %v6824 = vadd.f32 %v6631, %v6823
  %v6825 = vpop.f32.mrf.mxu0
  %v6826 = vadd.f32 %v6633, %v6825
  %6827 = vmatprep.mubr.bf16.mxu0 %v6085
  %6828 = vmatmul.mubr.bf16.gmra.mxu0 %v6084
  %v6829 = vpop.f32.mrf.mxu0
  %v6830 = vadd.f32 %v6637, %v6829
  %v6831 = vpop.f32.mrf.mxu0
  %v6832 = vadd.f32 %v6639, %v6831
  %v6833 = vpop.f32.mrf.mxu0
  %v6834 = vadd.f32 %v6641, %v6833
  %v6835 = vpop.f32.mrf.mxu0
  %v6836 = vadd.f32 %v6643, %v6835
  %6837 = vmatprep.mubr.bf16.mxu0 %v6093
  %6838 = vmatmul.mubr.bf16.gmra.mxu0 %v6092
  %v6839 = vpop.f32.mrf.mxu0
  %v6840 = vadd.f32 %v6647, %v6839
  %v6841 = vpop.f32.mrf.mxu0
  %v6842 = vadd.f32 %v6649, %v6841
  %v6843 = vpop.f32.mrf.mxu0
  %v6844 = vadd.f32 %v6651, %v6843
  %v6845 = vpop.f32.mrf.mxu0
  %v6846 = vadd.f32 %v6653, %v6845
  %6847 = vmatprep.mubr.bf16.mxu0 %v6101
  %6848 = vmatmul.mubr.bf16.gmra.mxu0 %v6100
  %v6849 = vpop.f32.mrf.mxu0
  %v6850 = vadd.f32 %v6657, %v6849
  %v6851 = vpop.f32.mrf.mxu0
  %v6852 = vadd.f32 %v6659, %v6851
  %v6853 = vpop.f32.mrf.mxu0
  %v6854 = vadd.f32 %v6661, %v6853
  %v6855 = vpop.f32.mrf.mxu0
  %v6856 = vadd.f32 %v6663, %v6855
  %6857 = vmatprep.mubr.bf16.mxu0 %v6109
  %6858 = vmatmul.mubr.bf16.gmra.mxu0 %v6108
  %v6859 = vpop.f32.mrf.mxu0
  %v6860 = vadd.f32 %v6667, %v6859
  %v6861 = vpop.f32.mrf.mxu0
  %v6862 = vadd.f32 %v6669, %v6861
  %v6863 = vpop.f32.mrf.mxu0
  %v6864 = vadd.f32 %v6671, %v6863
  %v6865 = vpop.f32.mrf.mxu0
  %v6866 = vadd.f32 %v6673, %v6865
  %6867 = vmatprep.mubr.bf16.mxu0 %v6117
  %6868 = vmatmul.mubr.bf16.gmra.mxu0 %v6116
  %v6869 = vpop.f32.mrf.mxu0
  %v6870 = vadd.f32 %v6677, %v6869
  %v6871 = vpop.f32.mrf.mxu0
  %v6872 = vadd.f32 %v6679, %v6871
  %v6873 = vpop.f32.mrf.mxu0
  %v6874 = vadd.f32 %v6681, %v6873
  %v6875 = vpop.f32.mrf.mxu0
  %v6876 = vadd.f32 %v6683, %v6875
  %6877 = vmatprep.mubr.bf16.mxu0 %v6125
  %6878 = vmatmul.mubr.bf16.gmra.mxu0 %v6124
  %v6879 = vpop.f32.mrf.mxu0
  %v6880 = vadd.f32 %v6687, %v6879
  %v6881 = vpop.f32.mrf.mxu0
  %v6882 = vadd.f32 %v6689, %v6881
  %v6883 = vpop.f32.mrf.mxu0
  %v6884 = vadd.f32 %v6691, %v6883
  %v6885 = vpop.f32.mrf.mxu0
  %v6886 = vadd.f32 %v6693, %v6885
  %6887 = vmatprep.mubr.bf16.mxu0 %v6133
  %6888 = vmatmul.mubr.bf16.gmra.mxu0 %v6132
  %v6889 = vpop.f32.mrf.mxu0
  %v6890 = vadd.f32 %v6697, %v6889
  %v6891 = vpop.f32.mrf.mxu0
  %v6892 = vadd.f32 %v6699, %v6891
  %v6893 = vpop.f32.mrf.mxu0
  %v6894 = vadd.f32 %v6701, %v6893
  %v6895 = vpop.f32.mrf.mxu0
  %v6896 = vadd.f32 %v6703, %v6895
  %6897 = vmatprep.mubr.bf16.mxu0 %v6141
  %6898 = vmatmul.mubr.bf16.gmra.mxu0 %v6140
  %v6899 = vpop.f32.mrf.mxu0
  %v6900 = vadd.f32 %v6707, %v6899
  %v6901 = vpop.f32.mrf.mxu0
  %v6902 = vadd.f32 %v6709, %v6901
  %v6903 = vpop.f32.mrf.mxu0
  %v6904 = vadd.f32 %v6711, %v6903
  %v6905 = vpop.f32.mrf.mxu0
  %v6906 = vadd.f32 %v6713, %v6905
  %6907 = vmatprep.mubr.bf16.mxu0 %v6149
  %6908 = vmatmul.mubr.bf16.gmra.mxu0 %v6148
  %v6909 = vpop.f32.mrf.mxu0
  %v6910 = vadd.f32 %v6717, %v6909
  %v6911 = vpop.f32.mrf.mxu0
  %v6912 = vadd.f32 %v6719, %v6911
  %v6913 = vpop.f32.mrf.mxu0
  %v6914 = vadd.f32 %v6721, %v6913
  %v6915 = vpop.f32.mrf.mxu0
  %v6916 = vadd.f32 %v6723, %v6915
  %6917 = vmatprep.mubr.bf16.mxu0 %v6157
  %6918 = vmatmul.mubr.bf16.gmra.mxu0 %v6156
  %v6919 = vpop.f32.mrf.mxu0
  %v6920 = vadd.f32 %v6727, %v6919
  %v6921 = vpop.f32.mrf.mxu0
  %v6922 = vadd.f32 %v6729, %v6921
  %v6923 = vpop.f32.mrf.mxu0
  %v6924 = vadd.f32 %v6731, %v6923
  %v6925 = vpop.f32.mrf.mxu0
  %v6926 = vadd.f32 %v6733, %v6925
  %6927 = vmatprep.mubr.bf16.mxu0 %v6165
  %6928 = vmatmul.mubr.bf16.gmra.mxu0 %v6164
  %v6929 = vpop.f32.mrf.mxu0
  %v6930 = vadd.f32 %v6737, %v6929
  %v6931 = vpop.f32.mrf.mxu0
  %v6932 = vadd.f32 %v6739, %v6931
  %v6933 = vpop.f32.mrf.mxu0
  %v6934 = vadd.f32 %v6741, %v6933
  %v6935 = vpop.f32.mrf.mxu0
  %v6936 = vadd.f32 %v6743, %v6935
  %6937 = vdwg.mxu0
  %6938 = vst [vmem:[%s5] sm:$0xff] %v6780
  %6939 = vst.msk [vmem:[%s5 + $0x8] sm:$0xff] %vm276, %v6782
  %6940 = vst [vmem:[%s5 + $0x10] sm:$0xff] %v6784
  %6941 = vst.msk [vmem:[%s5 + $0x18] sm:$0xff] %vm276, %v6786
  %6942 = vst [vmem:[%s5 + $0x20] sm:$0xff] %v6790
  %6943 = vst.msk [vmem:[%s5 + $0x28] sm:$0xff] %vm276, %v6792
  %6944 = vst [vmem:[%s5 + $0x30] sm:$0xff] %v6794
  %6945 = vst.msk [vmem:[%s5 + $0x38] sm:$0xff] %vm276, %v6796
  %6946 = vst [vmem:[%s5 + $0x40] sm:$0xff] %v6800
  %6947 = vst.msk [vmem:[%s5 + $0x48] sm:$0xff] %vm276, %v6802
  %6948 = vst [vmem:[%s5 + $0x50] sm:$0xff] %v6804
  %6949 = vst.msk [vmem:[%s5 + $0x58] sm:$0xff] %vm276, %v6806
  %6950 = vst [vmem:[%s5 + $0x60] sm:$0xff] %v6810
  %6951 = vst.msk [vmem:[%s5 + $0x68] sm:$0xff] %vm276, %v6812
  %6952 = vst [vmem:[%s5 + $0x70] sm:$0xff] %v6814
  %6953 = vst.msk [vmem:[%s5 + $0x78] sm:$0xff] %vm276, %v6816
  %6954 = vst [vmem:[%s5 + $0x80] sm:$0xff] %v6820
  %6955 = vst.msk [vmem:[%s5 + $0x88] sm:$0xff] %vm276, %v6822
  %6956 = vst [vmem:[%s5 + $0x90] sm:$0xff] %v6824
  %6957 = vst.msk [vmem:[%s5 + $0x98] sm:$0xff] %vm276, %v6826
  %6958 = vst [vmem:[%s5 + $0xa0] sm:$0xff] %v6830
  %6959 = vst.msk [vmem:[%s5 + $0xa8] sm:$0xff] %vm276, %v6832
  %6960 = vst [vmem:[%s5 + $0xb0] sm:$0xff] %v6834
  %6961 = vst.msk [vmem:[%s5 + $0xb8] sm:$0xff] %vm276, %v6836
  %6962 = vst [vmem:[%s5 + $0xc0] sm:$0xff] %v6840
  %6963 = vst.msk [vmem:[%s5 + $0xc8] sm:$0xff] %vm276, %v6842
  %6964 = vst [vmem:[%s5 + $0xd0] sm:$0xff] %v6844
  %6965 = vst.msk [vmem:[%s5 + $0xd8] sm:$0xff] %vm276, %v6846
  %6966 = vst [vmem:[%s5 + $0xe0] sm:$0xff] %v6850
  %6967 = vst.msk [vmem:[%s5 + $0xe8] sm:$0xff] %vm276, %v6852
  %6968 = vst [vmem:[%s5 + $0xf0] sm:$0xff] %v6854
  %6969 = vst.msk [vmem:[%s5 + $0xf8] sm:$0xff] %vm276, %v6856
  %6970 = vst [vmem:[%s5 + $0x100] sm:$0xff] %v6860
  %6971 = vst.msk [vmem:[%s5 + $0x108] sm:$0xff] %vm276, %v6862
  %6972 = vst [vmem:[%s5 + $0x110] sm:$0xff] %v6864
  %6973 = vst.msk [vmem:[%s5 + $0x118] sm:$0xff] %vm276, %v6866
  %6974 = vst [vmem:[%s5 + $0x120] sm:$0xff] %v6870
  %6975 = vst.msk [vmem:[%s5 + $0x128] sm:$0xff] %vm276, %v6872
  %6976 = vst [vmem:[%s5 + $0x130] sm:$0xff] %v6874
  %6977 = vst.msk [vmem:[%s5 + $0x138] sm:$0xff] %vm276, %v6876
  %6978 = vst [vmem:[%s5 + $0x140] sm:$0xff] %v6880
  %6979 = vst.msk [vmem:[%s5 + $0x148] sm:$0xff] %vm276, %v6882
  %6980 = vst [vmem:[%s5 + $0x150] sm:$0xff] %v6884
  %6981 = vst.msk [vmem:[%s5 + $0x158] sm:$0xff] %vm276, %v6886
  %6982 = vst [vmem:[%s5 + $0x160] sm:$0xff] %v6890
  %6983 = vst.msk [vmem:[%s5 + $0x168] sm:$0xff] %vm276, %v6892
  %6984 = vst [vmem:[%s5 + $0x170] sm:$0xff] %v6894
  %6985 = vst.msk [vmem:[%s5 + $0x178] sm:$0xff] %vm276, %v6896
  %6986 = vst [vmem:[%s5 + $0x180] sm:$0xff] %v6900
  %6987 = vst.msk [vmem:[%s5 + $0x188] sm:$0xff] %vm276, %v6902
  %6988 = vst [vmem:[%s5 + $0x190] sm:$0xff] %v6904
  %6989 = vst.msk [vmem:[%s5 + $0x198] sm:$0xff] %vm276, %v6906
  %6990 = vst [vmem:[%s5 + $0x1a0] sm:$0xff] %v6910
  %6991 = vst.msk [vmem:[%s5 + $0x1a8] sm:$0xff] %vm276, %v6912
  %6992 = vst [vmem:[%s5 + $0x1b0] sm:$0xff] %v6914
  %6993 = vst.msk [vmem:[%s5 + $0x1b8] sm:$0xff] %vm276, %v6916
  %6994 = vst [vmem:[%s5 + $0x1c0] sm:$0xff] %v6920
  %6995 = vst.msk [vmem:[%s5 + $0x1c8] sm:$0xff] %vm276, %v6922
  %6996 = vst [vmem:[%s5 + $0x1d0] sm:$0xff] %v6924
  %6997 = vst.msk [vmem:[%s5 + $0x1d8] sm:$0xff] %vm276, %v6926
  %6998 = vst [vmem:[%s5 + $0x1e0] sm:$0xff] %v6930
  %6999 = vst.msk [vmem:[%s5 + $0x1e8] sm:$0xff] %vm276, %v6932
  %7000 = vst [vmem:[%s5 + $0x1f0] sm:$0xff] %v6934
  %7001 = vst.msk [vmem:[%s5 + $0x1f8] sm:$0xff] %vm276, %v6936
  // Predicated region
  $region22: #{bn_add_relu_conv.1} parent=0 // pred_check
    _
  $region23: #{bn_add_relu_conv.1} parent=0 // pred_check_branch
    %7003 = sbr.rel (0) target = $region25
  $region24: #{bn_add_relu_conv.1} parent=0 // pred_region
    _
  $region25: #{bn_add_relu_conv.1} parent=0 // pred_fallthru
    _
  // Predicated region
  $region26: #{bn_add_relu_conv.1} parent=0 // pred_check
    _
  $region27: #{bn_add_relu_conv.1} parent=0 // pred_check_branch
    %7005 = sbr.rel (0) target = $region29
  $region28: #{bn_add_relu_conv.1} parent=0 // pred_region
    _
  $region29: #{bn_add_relu_conv.1} parent=0 // pred_fallthru
    _

</llo_original>
